<compile_context>
chip_gen: v6e
topology: v6e:2x2x1
jax: 0.10.0
libtpu: 0.0.40
codegen_flags: <defaults>
</compile_context>

<pallas_src>
import jax
import jax.numpy as jnp
from jax import lax
from jax.experimental import pallas as pl
from jax.experimental.pallas import tpu as pltpu

# ------------------------- scaled-down configuration -------------------------
B        = 2            # batch
C_IN     = 3            # image channels
IMG      = 32           # image H = W
PATCH    = 16           # conv1 kernel == stride (ViT patch size, scaled)
GRID     = IMG // PATCH
N_PATCH  = GRID * GRID
TOKENS   = N_PATCH + 1  # cls + patches
BT       = B * TOKENS   # rows per pass (cls-first layout)
ROWS     = 2 * BT       # both passes row-stacked
CPP      = C_IN * PATCH * PATCH
D_VIS    = 32           # visual transformer width   (768 in ViT-B/32)
H_VIS    = 4            # visual attention heads
MLP_VIS  = 4 * D_VIS
N_LAYERS = 10           # visual depth (needs layers 0..9 for extract_layers)
COND_DIM = 32           # CLIP projection dim        (512 in real model)
EXTRACT  = (3, 6, 9)
NE       = len(EXTRACT)
COND_LAYER = 0
R_DIM    = 16           # reduce_dim                 (128 in real model)
H_DEC    = 4            # decoder heads
FF_DEC   = 64           # decoder feed-forward dim   (2048 default, scaled)
TCK      = PATCH        # trans_conv kernel == stride
KK       = TCK * TCK


# ------------------------------ in-kernel helpers ------------------------------
def _ln(x, g, b):
    mu = jnp.mean(x, axis=-1, keepdims=True)
    xc = x - mu
    var = jnp.mean(xc * xc, axis=-1, keepdims=True)
    return xc * lax.rsqrt(var + 1e-5) * g + b


def _attend(q, k, v, hmask, n_heads, addm, mult=None):
    """All-heads attention on a row-stacked (rows, D) slab.

    Per-head lane masks (hmask) keep everything full-width; `addm` is a
    block-diagonal additive mask (-1e30 across (pass, batch) blocks) so a
    single softmax over all rows reproduces per-batch softmax; `mult[h]` is
    the CLIPSeg multiplicative cls-row mask (ones when unmasked).  The
    1/sqrt(head_dim) scale is already folded into the q projection weights.
    """
    ob = jnp.zeros_like(q)
    for h in range(n_heads):
        hm = hmask[h:h + 1, :]                                         # (1, D)
        s = lax.dot_general(q * hm, k, (((1,), (1,)), ((), ())),
                            preferred_element_type=jnp.float32)        # (rows, rows)
        if mult is not None:
            s = s * mult[h]
        s = s + addm
        s = s - jnp.max(s, axis=-1, keepdims=True)
        e = jnp.exp(s)
        p = e * pl.reciprocal(jnp.sum(e, axis=-1, keepdims=True), approx=True)
        ob = ob + jnp.dot(p, v * hm, preferred_element_type=jnp.float32)
    return ob


# ------------------------------ encoder kernel ------------------------------
def _encoder_kernel(mult_ref, addm_ref, patches_ref, scat_ref, convw_ref, eb_ref,
                    lnpre_g_ref, lnpre_b_ref,
                    ln1g_ref, ln1b_ref, win_ref, bin_ref, wo_ref, bo_ref,
                    ln2g_ref, ln2b_ref, wfc_ref, bfc_ref, wpj_ref, bpj_ref,
                    lnpost_g_ref, lnpost_b_ref, proj_ref, hmask_ref,
                    acts_ref, vq_ref, x_scr):
    l = pl.program_id(0)

    @pl.when(l == 0)
    def _embed():
        # conv1 (stride == kernel, bias=False) as one patch matmul; cls/pos
        # embedding placed via a precomputed one-hot scatter matmul (all MXU,
        # no per-row masked stores); ln_pre folded in.
        # TODO(synk): rescaled_pos_emb bicubic path not exercised (token count matches pos_emb).
        pe = jnp.dot(patches_ref[...], convw_ref[...],
                     preferred_element_type=jnp.float32)               # (2*B*NP, D)
        x0 = jnp.dot(scat_ref[...], pe,
                     preferred_element_type=jnp.float32) + eb_ref[...]  # (ROWS, D)
        x_scr[...] = _ln(x0, lnpre_g_ref[...], lnpre_b_ref[...])

    # CLIP ResidualAttentionBlock l (pre-norm, QuickGELU MLP): fused QKV,
    # scale folded into the q weights, bf16 weights with f32 accumulation.
    x = x_scr[...]
    xn = _ln(x, ln1g_ref[...], ln1b_ref[...])
    qkv = jnp.dot(xn.astype(jnp.bfloat16), win_ref[...],
                  preferred_element_type=jnp.float32) + bin_ref[...]
    q = qkv[:, 0:D_VIS]
    k = qkv[:, D_VIS:2 * D_VIS]
    v = qkv[:, 2 * D_VIS:3 * D_VIS]
    ob = _attend(q, k, v, hmask_ref[...], H_VIS, addm_ref[...], mult=mult_ref[...])
    x = x + jnp.dot(ob.astype(jnp.bfloat16), wo_ref[...],
                    preferred_element_type=jnp.float32) + bo_ref[...]
    xn2 = _ln(x, ln2g_ref[...], ln2b_ref[...])
    hh = jnp.dot(xn2.astype(jnp.bfloat16), wfc_ref[...],
                 preferred_element_type=jnp.float32) + bfc_ref[...]
    hh = hh * jax.nn.sigmoid(1.702 * hh)                               # QuickGELU
    x = x + jnp.dot(hh.astype(jnp.bfloat16), wpj_ref[...],
                    preferred_element_type=jnp.float32) + bpj_ref[...]
    x_scr[...] = x

    # Keep only the EXTRACT-layer activations of the img_q pass (rows [0:BT]).
    for slot, lyr in enumerate(EXTRACT):
        @pl.when(l == lyr)
        def _store(slot=slot):
            acts_ref[slot] = x[0:BT, :]

    # visual_q tail gated to the last layer, masked (img_s) pass only.
    @pl.when(l == N_LAYERS - 1)
    def _tail():
        cls_n = _ln(x[BT:BT + B, :], lnpost_g_ref[...], lnpost_b_ref[...])
        vq_ref[...] = jnp.dot(cls_n, proj_ref[...],
                              preferred_element_type=jnp.float32)


def _run_encoder(kp, patches, mult):
    def cst(shape):
        n = len(shape)
        return pl.BlockSpec(shape, lambda l, _n=n: (0,) * _n)

    def per_layer(shape):
        n = len(shape)
        return pl.BlockSpec(shape, lambda l, _n=n: (l,) + (0,) * (_n - 1))

    in_specs = [
        cst((H_VIS, ROWS, ROWS)),             # mult cls-token mask
        cst((ROWS, ROWS)),                    # additive cross-block mask
        cst((2 * B * N_PATCH, CPP)),          # patches (both passes)
        cst((ROWS, 2 * B * N_PATCH)),         # one-hot patch->token scatter
        cst((CPP, D_VIS)),                    # conv1 weight (flattened, transposed)
        cst((ROWS, D_VIS)),                   # class + positional embedding slab
        cst((1, D_VIS)), cst((1, D_VIS)),     # ln_pre
        per_layer((None, 1, D_VIS)), per_layer((None, 1, D_VIS)),              # ln1
        per_layer((None, D_VIS, 3 * D_VIS)), per_layer((None, 1, 3 * D_VIS)),  # fused qkv
        per_layer((None, D_VIS, D_VIS)), per_layer((None, 1, D_VIS)),          # out proj
        per_layer((None, 1, D_VIS)), per_layer((None, 1, D_VIS)),              # ln2
        per_layer((None, D_VIS, MLP_VIS)), per_layer((None, 1, MLP_VIS)),      # mlp fc
        per_layer((None, MLP_VIS, D_VIS)), per_layer((None, 1, D_VIS)),        # mlp proj
        cst((1, D_VIS)), cst((1, D_VIS)),     # ln_post
        cst((D_VIS, COND_DIM)),               # visual proj
        cst((H_VIS, D_VIS)),                  # per-head lane masks
    ]
    out_specs = [
        pl.BlockSpec((NE, BT, D_VIS), lambda l: (0, 0, 0)),   # EXTRACT acts (resident)
        pl.BlockSpec((B, COND_DIM), lambda l: (0, 0)),        # visual_q of img_s
    ]
    out_shape = (jax.ShapeDtypeStruct((NE, BT, D_VIS), jnp.float32),
                 jax.ShapeDtypeStruct((B, COND_DIM), jnp.float32))
    return pl.pallas_call(
        _encoder_kernel,
        out_shape=out_shape,
        grid=(N_LAYERS,),
        in_specs=in_specs,
        out_specs=out_specs,
        scratch_shapes=[pltpu.VMEM((ROWS, D_VIS), jnp.float32)],
        compiler_params=pltpu.CompilerParams(dimension_semantics=("arbitrary",)),
    )(mult, kp['add_mask_enc'], patches, kp['patch_scatter'], kp['convw'],
      kp['embed_bias'], kp['ln_pre_g'], kp['ln_pre_b'],
      kp['ln1_g'], kp['ln1_b'], kp['w_in'], kp['b_in'],
      kp['wo'], kp['bo'], kp['ln2_g'], kp['ln2_b'],
      kp['wfc'], kp['bfc'], kp['wpj'], kp['bpj'],
      kp['ln_post_g'], kp['ln_post_b'], kp['proj'], kp['head_mask_vis'])


# ------------------------------ decoder kernel ------------------------------
def _decoder_kernel(acts_ref, cond_ref, addm_ref, sel_ref,
                    red_w_ref, red_b_ref, fmw_ref, fmb_ref, faw_ref, fab_ref,
                    dwin_ref, dbin_ref, dow_ref, dob_ref,
                    n1g_ref, n1b_ref, l1w_ref, l1b_ref, l2w_ref, l2b_ref,
                    n2g_ref, n2b_ref, tw_ref, tb_ref, hmask_ref, out_ref):
    addm = addm_ref[...]
    hmask = hmask_ref[...]

    a = None
    for i in range(NE):
        act = acts_ref[NE - 1 - i]            # rev_activations == False -> layers 9, 6, 3
        r = jnp.dot(act, red_w_ref[i], preferred_element_type=jnp.float32) + red_b_ref[i]
        a = r if a is None else a + r
        if i == COND_LAYER:
            # reduce_cond is None -> FiLM directly on the masked CLIP cond vector.
            # fm/fa for all B at once; broadcast to token rows via a one-hot
            # (BT, B) selector matmul (no per-batch strided stores).
            cond = cond_ref[...]
            fm = jnp.dot(cond, fmw_ref[...], preferred_element_type=jnp.float32) + fmb_ref[...]
            fa = jnp.dot(cond, faw_ref[...], preferred_element_type=jnp.float32) + fab_ref[...]
            a = (jnp.dot(sel_ref[...], fm, preferred_element_type=jnp.float32) * a
                 + jnp.dot(sel_ref[...], fa, preferred_element_type=jnp.float32))
        # nn.TransformerEncoderLayer (post-norm, relu); dropout = identity (eval)
        qkv = jnp.dot(a, dwin_ref[i], preferred_element_type=jnp.float32) + dbin_ref[i]
        q = qkv[:, 0:R_DIM]
        k = qkv[:, R_DIM:2 * R_DIM]
        v = qkv[:, 2 * R_DIM:3 * R_DIM]
        ob = _attend(q, k, v, hmask, H_DEC, addm)
        sa = jnp.dot(ob, dow_ref[i], preferred_element_type=jnp.float32) + dob_ref[i]
        a = _ln(a + sa, n1g_ref[i], n1b_ref[i])
        ff = jnp.dot(a, l1w_ref[i], preferred_element_type=jnp.float32) + l1b_ref[i]
        ff = jnp.maximum(ff, 0.0)
        ff = jnp.dot(ff, l2w_ref[i], preferred_element_type=jnp.float32) + l2b_ref[i]
        a = _ln(a + ff, n2g_ref[i], n2b_ref[i])

    # Drop cls tokens (contiguous rows [0:B]); ConvTranspose2d(R,1,K,stride=K)
    # as one (B*GG, R)@(R, K*K) matmul -> single lane-dense (B*GG, 256) store.
    out_ref[...] = jnp.dot(a[B:, :], tw_ref[...],
                           preferred_element_type=jnp.float32) + tb_ref[...]


def _run_decoder(kp, acts, vq):
    def cst(shape):
        n = len(shape)
        return pl.BlockSpec(shape, lambda i, _n=n: (0,) * _n)

    in_specs = [
        cst((NE, BT, D_VIS)),                 # EXTRACT acts of img_q
        cst((B, COND_DIM)),                   # cond = visual_q of masked img_s
        cst((BT, BT)),                        # additive cross-batch mask
        cst((BT, B)),                         # FiLM one-hot token->batch selector
        cst((NE, D_VIS, R_DIM)), cst((NE, 1, R_DIM)),
        cst((COND_DIM, R_DIM)), cst((1, R_DIM)),
        cst((COND_DIM, R_DIM)), cst((1, R_DIM)),
        cst((NE, R_DIM, 3 * R_DIM)), cst((NE, 1, 3 * R_DIM)),
        cst((NE, R_DIM, R_DIM)), cst((NE, 1, R_DIM)),
        cst((NE, 1, R_DIM)), cst((NE, 1, R_DIM)),
        cst((NE, R_DIM, FF_DEC)), cst((NE, 1, FF_DEC)),
        cst((NE, FF_DEC, R_DIM)), cst((NE, 1, R_DIM)),
        cst((NE, 1, R_DIM)), cst((NE, 1, R_DIM)),
        cst((R_DIM, KK)), cst((1, KK)),
        cst((H_DEC, R_DIM)),
    ]
    return pl.pallas_call(
        _decoder_kernel,
        out_shape=jax.ShapeDtypeStruct((B * N_PATCH, KK), jnp.float32),
        grid=(1,),
        in_specs=in_specs,
        out_specs=pl.BlockSpec((B * N_PATCH, KK), lambda i: (0, 0)),
        compiler_params=pltpu.CompilerParams(dimension_semantics=("arbitrary",)),
    )(acts, vq, kp['add_mask_dec'], kp['film_sel'],
      kp['red_w'], kp['red_b'],
      kp['film_mul_w'], kp['film_mul_b'], kp['film_add_w'], kp['film_add_b'],
      kp['din_w'], kp['din_b'], kp['do_w'], kp['do_b'],
      kp['n1_g'], kp['n1_b'], kp['l1_w'], kp['l1_b'], kp['l2_w'], kp['l2_b'],
      kp['n2_g'], kp['n2_b'], kp['trans_w'], kp['trans_b'], kp['head_mask_dec'])


# ------------------------------ forward wrapper ------------------------------
def _to_patches(img):
    xp = img.reshape(B, C_IN, GRID, PATCH, GRID, PATCH)
    xp = xp.transpose(0, 2, 4, 1, 3, 5)
    return xp.reshape(B * N_PATCH, CPP).astype(jnp.float32)


def _row_batch(n_rows):
    rr = jnp.arange(n_rows)
    return jnp.where(rr < B, rr, (rr - B) // N_PATCH)


def _build_cls_masks(seg_s):
    """Multiplicative pre-softmax cls-token masks, faithful to the reference:
    attn_output_weights[:, 0, 1:] *= attn_mask.repeat(n_heads, 1)
    (incl. the repeat row-order quirk: head-batch index i uses seg sample i % B).
    Covers the full row-stacked (2*BT, 2*BT) slab; pass 0 (img_q) is all ones."""
    # TODO(synk): nnf.interpolate(seg, (GRID, GRID), mode='nearest') is identity at these shapes.
    seg_flat = seg_s.reshape(B, N_PATCH).astype(jnp.float32)
    r = jnp.arange(ROWS)
    pas = r // BT
    rr = r % BT
    bat = jnp.where(rr < B, rr, (rr - B) // N_PATCH)
    p_idx = jnp.clip(rr - B, 0, B * N_PATCH - 1) % N_PATCH
    row_is = (pas == 1) & (rr < B)             # masked-pass cls query rows
    col_is = (pas == 1) & (rr >= B)            # masked-pass patch key cols
    apply = row_is[:, None] & col_is[None, :] & (bat[:, None] == bat[None, :])
    per_head = []
    for h in range(H_VIS):
        seg_rows = seg_flat[(bat * H_VIS + h) % B]      # (ROWS, NP)
        vals = seg_rows[:, p_idx]                       # (ROWS, ROWS)
        per_head.append(jnp.where(apply, vals, 1.0))
    return jnp.stack(per_head, axis=0)                  # (H, ROWS, ROWS)


def clipseg_masked_forward(kp, img_q, img_s, seg_s):
    """CLIPDensePredTMasked.forward(img_q, img_s, seg_s) -> (B, 1, IMG, IMG)."""
    patches = jnp.concatenate([_to_patches(img_q), _to_patches(img_s)], axis=0)
    mult = _build_cls_masks(seg_s)
    acts, vq = _run_encoder(kp, patches, mult)     # both visual passes, one kernel
    out = _run_decoder(kp, acts, vq)               # reduce+FiLM+blocks+trans_conv
    out = out.reshape(B, GRID, GRID, TCK, TCK).transpose(0, 1, 3, 2, 4)
    return out.reshape(B, 1, IMG, IMG)


# ------------------------------ parameter init ------------------------------
def init_params(key):
    keys = iter(jax.random.split(key, 256))

    def nrm(shape, scale=0.05):
        return scale * jax.random.normal(next(keys), shape, dtype=jnp.float32)

    ones = lambda n: jnp.ones((n,), jnp.float32)
    zeros = lambda n: jnp.zeros((n,), jnp.float32)

    layers = []
    for _ in range(N_LAYERS):
        layers.append(dict(
            ln1_g=ones(D_VIS), ln1_b=zeros(D_VIS),
            in_w=nrm((3 * D_VIS, D_VIS)), in_b=nrm((3 * D_VIS,)),
            out_w=nrm((D_VIS, D_VIS)), out_b=nrm((D_VIS,)),
            ln2_g=ones(D_VIS), ln2_b=zeros(D_VIS),
            fc_w=nrm((MLP_VIS, D_VIS)), fc_b=nrm((MLP_VIS,)),
            pj_w=nrm((D_VIS, MLP_VIS)), pj_b=nrm((D_VIS,)),
        ))
    clip = dict(
        conv1_w=nrm((D_VIS, C_IN, PATCH, PATCH)),
        class_emb=nrm((D_VIS,)),
        pos_emb=nrm((TOKENS, D_VIS)),
        ln_pre_g=ones(D_VIS), ln_pre_b=zeros(D_VIS),
        layers=layers,
        ln_post_g=ones(D_VIS), ln_post_b=zeros(D_VIS),
        proj=nrm((D_VIS, COND_DIM)),
    )
    reduces = [dict(w=nrm((R_DIM, D_VIS)), b=nrm((R_DIM,))) for _ in range(NE)]
    blocks = []
    for _ in range(NE):
        blocks.append(dict(
            in_w=nrm((3 * R_DIM, R_DIM)), in_b=nrm((3 * R_DIM,)),
            out_w=nrm((R_DIM, R_DIM)), out_b=nrm((R_DIM,)),
            l1_w=nrm((FF_DEC, R_DIM)), l1_b=nrm((FF_DEC,)),
            l2_w=nrm((R_DIM, FF_DEC)), l2_b=nrm((R_DIM,)),
            n1_g=ones(R_DIM), n1_b=zeros(R_DIM),
            n2_g=ones(R_DIM), n2_b=zeros(R_DIM),
        ))
    return dict(
        clip=clip, reduces=reduces, blocks=blocks,
        film_mul_w=nrm((R_DIM, COND_DIM)), film_mul_b=nrm((R_DIM,)),
        film_add_w=nrm((R_DIM, COND_DIM)), film_add_b=nrm((R_DIM,)),
        trans_w=nrm((R_DIM, 1, TCK, TCK)), trans_b=nrm((1,)),
    )


def _head_mask(n_heads, dim):
    hd = dim // n_heads
    lane = jnp.arange(dim)
    rows = [((lane >= h * hd) & (lane < (h + 1) * hd)).astype(jnp.float32)
            for h in range(n_heads)]
    return jnp.stack(rows, axis=0)


def _cross_block_mask_enc():
    r = jnp.arange(ROWS)
    rr = r % BT
    bat = jnp.where(rr < B, rr, (rr - B) // N_PATCH)
    blk = (r // BT) * B + bat
    return jnp.where(blk[:, None] == blk[None, :], 0.0, -1e30).astype(jnp.float32)


def _cross_batch_mask_dec():
    bat = _row_batch(BT)
    return jnp.where(bat[:, None] == bat[None, :], 0.0, -1e30).astype(jnp.float32)


def _film_selector():
    return jax.nn.one_hot(_row_batch(BT), B, dtype=jnp.float32)


def _patch_scatter():
    """(ROWS, 2*B*NP) one-hot placing patch embeddings at their cls-first rows."""
    r = jnp.arange(ROWS)
    rr = r % BT
    pas = r // BT
    src = pas * (B * N_PATCH) + (rr - B)
    is_patch = rr >= B
    cols = jnp.arange(2 * B * N_PATCH)
    return ((cols[None, :] == src[:, None]) & is_patch[:, None]).astype(jnp.float32)


def prepare_params(p):
    """One-time conversion: stack per-layer params, pre-transpose weights, fuse
    QKV (scale folded into q), build cls-first embed/mask/selector tables."""
    clip = p['clip']
    D = D_VIS
    scale_vis = float(D_VIS // H_VIS) ** -0.5
    scale_dec = float(R_DIM // H_DEC) ** -0.5

    def st(key):
        return jnp.stack([lyr[key] for lyr in clip['layers']], axis=0)

    in_w = st('in_w')                              # (L, 3D, D)
    in_b = st('in_b')                              # (L, 3D)
    w_in = jnp.swapaxes(in_w, 1, 2)                # (L, D, 3D): cols = [q | k | v]
    w_in = w_in.at[:, :, :D].multiply(scale_vis)   # fold attention scale into q
    b_in = in_b[:, None, :]
    b_in = b_in.at[:, :, :D].multiply(scale_vis)

    # cls-first embed bias slab (both passes): cls rows = class_emb + pos[0],
    # patch rows = pos[1 + p].
    cls_row = (clip['class_emb'] + clip['pos_emb'][0])[None, :]
    one_pass = jnp.concatenate([jnp.tile(cls_row, (B, 1)),
                                jnp.tile(clip['pos_emb'][1:], (B, 1))], axis=0)
    embed_bias = jnp.tile(one_pass, (2, 1))

    kp = dict(
        convw=clip['conv1_w'].reshape(D, CPP).T,
        embed_bias=embed_bias,
        patch_scatter=_patch_scatter(),
        ln_pre_g=clip['ln_pre_g'].reshape(1, D),
        ln_pre_b=clip['ln_pre_b'].reshape(1, D),
        ln1_g=st('ln1_g')[:, None, :], ln1_b=st('ln1_b')[:, None, :],
        w_in=w_in.astype(jnp.bfloat16), b_in=b_in,
        wo=jnp.swapaxes(st('out_w'), 1, 2).astype(jnp.bfloat16),
        bo=st('out_b')[:, None, :],
        ln2_g=st('ln2_g')[:, None, :], ln2_b=st('ln2_b')[:, None, :],
        wfc=jnp.swapaxes(st('fc_w'), 1, 2).astype(jnp.bfloat16),
        bfc=st('fc_b')[:, None, :],
        wpj=jnp.swapaxes(st('pj_w'), 1, 2).astype(jnp.bfloat16),
        bpj=st('pj_b')[:, None, :],
        ln_post_g=clip['ln_post_g'].reshape(1, D),
        ln_post_b=clip['ln_post_b'].reshape(1, D),
        proj=clip['proj'],
        head_mask_vis=_head_mask(H_VIS, D),
        head_mask_dec=_head_mask(H_DEC, R_DIM),
        add_mask_enc=_cross_block_mask_enc(),
        add_mask_dec=_cross_batch_mask_dec(),
        film_sel=_film_selector(),
        red_w=jnp.stack([jnp.transpose(r['w']) for r in p['reduces']], axis=0),
        red_b=jnp.stack([r['b'] for r in p['reduces']], axis=0)[:, None, :],
        film_mul_w=p['film_mul_w'].T, film_mul_b=p['film_mul_b'].reshape(1, R_DIM),
        film_add_w=p['film_add_w'].T, film_add_b=p['film_add_b'].reshape(1, R_DIM),
        trans_w=p['trans_w'].reshape(R_DIM, KK),
        trans_b=jnp.broadcast_to(p['trans_b'].reshape(1, 1), (1, KK)),
    )

    R = R_DIM
    din_w = jnp.stack([b['in_w'] for b in p['blocks']], axis=0)   # (NE, 3R, R)
    din_b = jnp.stack([b['in_b'] for b in p['blocks']], axis=0)   # (NE, 3R)
    dwin = jnp.swapaxes(din_w, 1, 2)                              # (NE, R, 3R)
    dwin = dwin.at[:, :, :R].multiply(scale_dec)
    dbin = din_b[:, None, :]
    dbin = dbin.at[:, :, :R].multiply(scale_dec)

    def stb(key):
        return jnp.stack([b[key] for b in p['blocks']], axis=0)

    kp.update(
        din_w=dwin, din_b=dbin,
        do_w=jnp.swapaxes(stb('out_w'), 1, 2), do_b=stb('out_b')[:, None, :],
        n1_g=stb('n1_g')[:, None, :], n1_b=stb('n1_b')[:, None, :],
        l1_w=jnp.swapaxes(stb('l1_w'), 1, 2), l1_b=stb('l1_b')[:, None, :],
        l2_w=jnp.swapaxes(stb('l2_w'), 1, 2), l2_b=stb('l2_b')[:, None, :],
        n2_g=stb('n2_g')[:, None, :], n2_b=stb('n2_b')[:, None, :],
    )
    return kp


if __name__ == "__main__":
    key = jax.random.PRNGKey(0)
    kparam, kq, ks, kseg = jax.random.split(key, 4)
    params = init_params(kparam)
    kp = prepare_params(params)      # once, outside the jitted forward
    img_q = jax.random.normal(kq, (B, C_IN, IMG, IMG), dtype=jnp.float32)
    img_s = jax.random.normal(ks, (B, C_IN, IMG, IMG), dtype=jnp.float32)
    seg_s = (jax.random.uniform(kseg, (B, GRID, GRID)) > 0.5).astype(jnp.float32)

    fwd = jax.jit(clipseg_masked_forward)
    out = jax.block_until_ready(fwd(kp, img_q, img_s, seg_s))
    assert out.shape == (B, 1, IMG, IMG), out.shape
    assert bool(jnp.all(jnp.isfinite(out)))
    print("KERNEL_OK")
</pallas_src>

<mosaic_0001>
module attributes {stable_mosaic.version = 11 : i64} {
  func.func @_encoder_kernel(%arg0: i32, %arg1: memref<4x20x20xf32, #tpu.memory_space<vmem>>, %arg2: memref<20x20xf32, #tpu.memory_space<vmem>>, %arg3: memref<16x768xf32, #tpu.memory_space<vmem>>, %arg4: memref<20x16xf32, #tpu.memory_space<vmem>>, %arg5: memref<768x32xf32, #tpu.memory_space<vmem>>, %arg6: memref<20x32xf32, #tpu.memory_space<vmem>>, %arg7: memref<1x32xf32, #tpu.memory_space<vmem>>, %arg8: memref<1x32xf32, #tpu.memory_space<vmem>>, %arg9: memref<1x1x32xf32, #tpu.memory_space<vmem>>, %arg10: memref<1x1x32xf32, #tpu.memory_space<vmem>>, %arg11: memref<1x32x96xbf16, #tpu.memory_space<vmem>>, %arg12: memref<1x1x96xf32, #tpu.memory_space<vmem>>, %arg13: memref<1x32x32xbf16, #tpu.memory_space<vmem>>, %arg14: memref<1x1x32xf32, #tpu.memory_space<vmem>>, %arg15: memref<1x1x32xf32, #tpu.memory_space<vmem>>, %arg16: memref<1x1x32xf32, #tpu.memory_space<vmem>>, %arg17: memref<1x32x128xbf16, #tpu.memory_space<vmem>>, %arg18: memref<1x1x128xf32, #tpu.memory_space<vmem>>, %arg19: memref<1x128x32xbf16, #tpu.memory_space<vmem>>, %arg20: memref<1x1x32xf32, #tpu.memory_space<vmem>>, %arg21: memref<1x32xf32, #tpu.memory_space<vmem>>, %arg22: memref<1x32xf32, #tpu.memory_space<vmem>>, %arg23: memref<32x32xf32, #tpu.memory_space<vmem>>, %arg24: memref<4x32xf32, #tpu.memory_space<vmem>>, %arg25: memref<3x10x32xf32, #tpu.memory_space<vmem>>, %arg26: memref<2x32xf32, #tpu.memory_space<vmem>>, %arg27: memref<20x32xf32, #tpu.memory_space<vmem>>) attributes {dimension_semantics = [#tpu.dimension_semantics<arbitrary>], iteration_bounds = array<i64: 10>, scalar_prefetch = 0 : i64, scratch_operands = 1 : i64, tpu.core_type = #tpu.core_type<tc>, window_params = [{pipeline_mode = #tpu.pipeline_mode<synchronous>, transform_indices = @transform_0, window_bounds = array<i64: 4, 20, 20>}, {pipeline_mode = #tpu.pipeline_mode<synchronous>, transform_indices = @transform_1, window_bounds = array<i64: 20, 20>}, {pipeline_mode = #tpu.pipeline_mode<synchronous>, transform_indices = @transform_2, window_bounds = array<i64: 16, 768>}, {pipeline_mode = #tpu.pipeline_mode<synchronous>, transform_indices = @transform_3, window_bounds = array<i64: 20, 16>}, {pipeline_mode = #tpu.pipeline_mode<synchronous>, transform_indices = @transform_4, window_bounds = array<i64: 768, 32>}, {pipeline_mode = #tpu.pipeline_mode<synchronous>, transform_indices = @transform_5, window_bounds = array<i64: 20, 32>}, {pipeline_mode = #tpu.pipeline_mode<synchronous>, transform_indices = @transform_6, window_bounds = array<i64: 1, 32>}, {pipeline_mode = #tpu.pipeline_mode<synchronous>, transform_indices = @transform_7, window_bounds = array<i64: 1, 32>}, {transform_indices = @transform_8, window_bounds = array<i64: 1, 1, 32>}, {transform_indices = @transform_9, window_bounds = array<i64: 1, 1, 32>}, {transform_indices = @transform_10, window_bounds = array<i64: 1, 32, 96>}, {transform_indices = @transform_11, window_bounds = array<i64: 1, 1, 96>}, {transform_indices = @transform_12, window_bounds = array<i64: 1, 32, 32>}, {transform_indices = @transform_13, window_bounds = array<i64: 1, 1, 32>}, {transform_indices = @transform_14, window_bounds = array<i64: 1, 1, 32>}, {transform_indices = @transform_15, window_bounds = array<i64: 1, 1, 32>}, {transform_indices = @transform_16, window_bounds = array<i64: 1, 32, 128>}, {transform_indices = @transform_17, window_bounds = array<i64: 1, 1, 128>}, {transform_indices = @transform_18, window_bounds = array<i64: 1, 128, 32>}, {transform_indices = @transform_19, window_bounds = array<i64: 1, 1, 32>}, {pipeline_mode = #tpu.pipeline_mode<synchronous>, transform_indices = @transform_20, window_bounds = array<i64: 1, 32>}, {pipeline_mode = #tpu.pipeline_mode<synchronous>, transform_indices = @transform_21, window_bounds = array<i64: 1, 32>}, {pipeline_mode = #tpu.pipeline_mode<synchronous>, transform_indices = @transform_22, window_bounds = array<i64: 32, 32>}, {pipeline_mode = #tpu.pipeline_mode<synchronous>, transform_indices = @transform_23, window_bounds = array<i64: 4, 32>}, {pipeline_mode = #tpu.pipeline_mode<synchronous>, transform_indices = @transform_24, window_bounds = array<i64: 3, 10, 32>}, {pipeline_mode = #tpu.pipeline_mode<synchronous>, transform_indices = @transform_25, window_bounds = array<i64: 2, 32>}]} {
    %c0_i32 = arith.constant 0 : i32
    %0 = arith.cmpi eq, %arg0, %c0_i32 : i32
    %1 = arith.extui %0 : i1 to i32
    %c0_i32_0 = arith.constant 0 : i32
    %2 = arith.cmpi ne, %1, %c0_i32_0 : i32
    scf.if %2 {
      %c0_84 = arith.constant 0 : index
      %c0_85 = arith.constant 0 : index
      %202 = vector.load %arg3[%c0_84, %c0_85] : memref<16x768xf32, #tpu.memory_space<vmem>>, vector<16x768xf32>
      %c0_86 = arith.constant 0 : index
      %c0_87 = arith.constant 0 : index
      %203 = vector.load %arg5[%c0_86, %c0_87] : memref<768x32xf32, #tpu.memory_space<vmem>>, vector<768x32xf32>
      %cst_88 = arith.constant dense<0.000000e+00> : vector<16x32xf32>
      %204 = tpu.matmul %202, %203, %cst_88 {dimension_numbers = #tpu.dot_dimension_numbers<[1], [0], [0], [1], [0, 0, 1, 1], [], []>} : vector<16x768xf32>, vector<768x32xf32>, vector<16x32xf32> -> vector<16x32xf32>
      %c0_89 = arith.constant 0 : index
      %c0_90 = arith.constant 0 : index
      %205 = vector.load %arg4[%c0_89, %c0_90] : memref<20x16xf32, #tpu.memory_space<vmem>>, vector<20x16xf32>
      %cst_91 = arith.constant dense<0.000000e+00> : vector<20x32xf32>
      %206 = tpu.matmul %205, %204, %cst_91 {dimension_numbers = #tpu.dot_dimension_numbers<[1], [0], [0], [1], [0, 0, 1, 1], [], []>} : vector<20x16xf32>, vector<16x32xf32>, vector<20x32xf32> -> vector<20x32xf32>
      %c0_92 = arith.constant 0 : index
      %c0_93 = arith.constant 0 : index
      %207 = vector.load %arg6[%c0_92, %c0_93] : memref<20x32xf32, #tpu.memory_space<vmem>>, vector<20x32xf32>
      %208 = arith.addf %206, %207 : vector<20x32xf32>
      %c0_94 = arith.constant 0 : index
      %c0_95 = arith.constant 0 : index
      %209 = vector.load %arg7[%c0_94, %c0_95] : memref<1x32xf32, #tpu.memory_space<vmem>>, vector<1x32xf32>
      %c0_96 = arith.constant 0 : index
      %c0_97 = arith.constant 0 : index
      %210 = vector.load %arg8[%c0_96, %c0_97] : memref<1x32xf32, #tpu.memory_space<vmem>>, vector<1x32xf32>
      %cst_98 = arith.constant dense<0.000000e+00> : vector<20xf32>
      %211 = vector.multi_reduction <add>, %208, %cst_98 [1] : vector<20x32xf32> to vector<20xf32>
      %212 = vector.shape_cast %211 : vector<20xf32> to vector<20x1xf32>
      %cst_99 = arith.constant 3.200000e+01 : f32
      %213 = vector.broadcast %cst_99 : f32 to vector<20x1xf32>
      %214 = arith.divf %212, %213 : vector<20x1xf32>
      %215 = vector.broadcast %214 : vector<20x1xf32> to vector<20x32xf32>
      %216 = arith.subf %208, %215 : vector<20x32xf32>
      %217 = arith.mulf %216, %216 : vector<20x32xf32>
      %cst_100 = arith.constant dense<0.000000e+00> : vector<20xf32>
      %218 = vector.multi_reduction <add>, %217, %cst_100 [1] : vector<20x32xf32> to vector<20xf32>
      %219 = vector.shape_cast %218 : vector<20xf32> to vector<20x1xf32>
      %cst_101 = arith.constant 3.200000e+01 : f32
      %220 = vector.broadcast %cst_101 : f32 to vector<20x1xf32>
      %221 = arith.divf %219, %220 : vector<20x1xf32>
      %cst_102 = arith.constant 9.99999974E-6 : f32
      %222 = vector.broadcast %cst_102 : f32 to vector<20x1xf32>
      %223 = arith.addf %221, %222 : vector<20x1xf32>
      %224 = math.rsqrt %223 : vector<20x1xf32>
      %225 = vector.broadcast %224 : vector<20x1xf32> to vector<20x32xf32>
      %226 = arith.mulf %216, %225 : vector<20x32xf32>
      %227 = vector.broadcast %209 : vector<1x32xf32> to vector<20x32xf32>
      %228 = arith.mulf %226, %227 : vector<20x32xf32>
      %229 = vector.broadcast %210 : vector<1x32xf32> to vector<20x32xf32>
      %230 = arith.addf %228, %229 : vector<20x32xf32>
      %c0_103 = arith.constant 0 : index
      %c0_104 = arith.constant 0 : index
      %231 = vector.load %arg27[%c0_103, %c0_104] : memref<20x32xf32, #tpu.memory_space<vmem>>, vector<20x32xf32>
      tpu.vector_store %arg27[%c0_103, %c0_104], %230 {strides = array<i32>} : memref<20x32xf32, #tpu.memory_space<vmem>>, vector<20x32xf32>,
    } else {
    }
    %c0 = arith.constant 0 : index
    %c0_1 = arith.constant 0 : index
    %3 = vector.load %arg27[%c0, %c0_1] : memref<20x32xf32, #tpu.memory_space<vmem>>, vector<20x32xf32>
    %c0_2 = arith.constant 0 : index
    %c0_3 = arith.constant 0 : index
    %c0_4 = arith.constant 0 : index
    %4 = vector.load %arg9[%c0_2, %c0_3, %c0_4] : memref<1x1x32xf32, #tpu.memory_space<vmem>>, vector<1x1x32xf32>
    %5 = vector.shape_cast %4 : vector<1x1x32xf32> to vector<1x32xf32>
    %c0_5 = arith.constant 0 : index
    %c0_6 = arith.constant 0 : index
    %c0_7 = arith.constant 0 : index
    %6 = vector.load %arg10[%c0_5, %c0_6, %c0_7] : memref<1x1x32xf32, #tpu.memory_space<vmem>>, vector<1x1x32xf32>
    %7 = vector.shape_cast %6 : vector<1x1x32xf32> to vector<1x32xf32>
    %cst = arith.constant dense<0.000000e+00> : vector<20xf32>
    %8 = vector.multi_reduction <add>, %3, %cst [1] : vector<20x32xf32> to vector<20xf32>
    %9 = vector.shape_cast %8 : vector<20xf32> to vector<20x1xf32>
    %cst_8 = arith.constant 3.200000e+01 : f32
    %10 = vector.broadcast %cst_8 : f32 to vector<20x1xf32>
    %11 = arith.divf %9, %10 : vector<20x1xf32>
    %12 = vector.broadcast %11 : vector<20x1xf32> to vector<20x32xf32>
    %13 = arith.subf %3, %12 : vector<20x32xf32>
    %14 = arith.mulf %13, %13 : vector<20x32xf32>
    %cst_9 = arith.constant dense<0.000000e+00> : vector<20xf32>
    %15 = vector.multi_reduction <add>, %14, %cst_9 [1] : vector<20x32xf32> to vector<20xf32>
    %16 = vector.shape_cast %15 : vector<20xf32> to vector<20x1xf32>
    %cst_10 = arith.constant 3.200000e+01 : f32
    %17 = vector.broadcast %cst_10 : f32 to vector<20x1xf32>
    %18 = arith.divf %16, %17 : vector<20x1xf32>
    %cst_11 = arith.constant 9.99999974E-6 : f32
    %19 = vector.broadcast %cst_11 : f32 to vector<20x1xf32>
    %20 = arith.addf %18, %19 : vector<20x1xf32>
    %21 = math.rsqrt %20 : vector<20x1xf32>
    %22 = vector.broadcast %21 : vector<20x1xf32> to vector<20x32xf32>
    %23 = arith.mulf %13, %22 : vector<20x32xf32>
    %24 = vector.broadcast %5 : vector<1x32xf32> to vector<20x32xf32>
    %25 = arith.mulf %23, %24 : vector<20x32xf32>
    %26 = vector.broadcast %7 : vector<1x32xf32> to vector<20x32xf32>
    %27 = arith.addf %25, %26 : vector<20x32xf32>
    %28 = arith.truncf %27 : vector<20x32xf32> to vector<20x32xbf16>
    %c0_12 = arith.constant 0 : index
    %c0_13 = arith.constant 0 : index
    %c0_14 = arith.constant 0 : index
    %29 = vector.load %arg11[%c0_12, %c0_13, %c0_14] : memref<1x32x96xbf16, #tpu.memory_space<vmem>>, vector<1x32x96xbf16>
    %30 = vector.shape_cast %29 : vector<1x32x96xbf16> to vector<32x96xbf16>
    %cst_15 = arith.constant dense<0.000000e+00> : vector<20x96xf32>
    %31 = tpu.matmul %28, %30, %cst_15 {dimension_numbers = #tpu.dot_dimension_numbers<[1], [0], [0], [1], [0, 0, 1, 1], [], []>} : vector<20x32xbf16>, vector<32x96xbf16>, vector<20x96xf32> -> vector<20x96xf32>
    %c0_16 = arith.constant 0 : index
    %c0_17 = arith.constant 0 : index
    %c0_18 = arith.constant 0 : index
    %32 = vector.load %arg12[%c0_16, %c0_17, %c0_18] : memref<1x1x96xf32, #tpu.memory_space<vmem>>, vector<1x1x96xf32>
    %33 = vector.shape_cast %32 : vector<1x1x96xf32> to vector<1x96xf32>
    %34 = vector.broadcast %33 : vector<1x96xf32> to vector<20x96xf32>
    %35 = arith.addf %31, %34 : vector<20x96xf32>
    %36 = vector.extract_strided_slice %35 {offsets = [0, 0], sizes = [20, 32], strides = [1, 1]} : vector<20x96xf32> to vector<20x32xf32>
    %37 = vector.extract_strided_slice %35 {offsets = [0, 32], sizes = [20, 32], strides = [1, 1]} : vector<20x96xf32> to vector<20x32xf32>
    %38 = vector.extract_strided_slice %35 {offsets = [0, 64], sizes = [20, 32], strides = [1, 1]} : vector<20x96xf32> to vector<20x32xf32>
    %c0_19 = arith.constant 0 : index
    %c0_20 = arith.constant 0 : index
    %39 = vector.load %arg24[%c0_19, %c0_20] : memref<4x32xf32, #tpu.memory_space<vmem>>, vector<4x32xf32>
    %c0_21 = arith.constant 0 : index
    %c0_22 = arith.constant 0 : index
    %40 = vector.load %arg2[%c0_21, %c0_22] : memref<20x20xf32, #tpu.memory_space<vmem>>, vector<20x20xf32>
    %c0_23 = arith.constant 0 : index
    %c0_24 = arith.constant 0 : index
    %c0_25 = arith.constant 0 : index
    %41 = vector.load %arg1[%c0_23, %c0_24, %c0_25] : memref<4x20x20xf32, #tpu.memory_space<vmem>>, vector<4x20x20xf32>
    %cst_26 = arith.constant 0.000000e+00 : f32
    %42 = vector.broadcast %cst_26 : f32 to vector<20x32xf32>
    %43 = vector.extract_strided_slice %39 {offsets = [0, 0], sizes = [1, 32], strides = [1, 1]} : vector<4x32xf32> to vector<1x32xf32>
    %44 = vector.broadcast %43 : vector<1x32xf32> to vector<20x32xf32>
    %45 = arith.mulf %36, %44 : vector<20x32xf32>
    %cst_27 = arith.constant dense<0.000000e+00> : vector<20x20xf32>
    %46 = tpu.matmul %45, %37, %cst_27 {dimension_numbers = #tpu.dot_dimension_numbers<[1], [1], [0], [0], [0, 0, 1, 0], [], []>} : vector<20x32xf32>, vector<20x32xf32>, vector<20x20xf32> -> vector<20x20xf32>
    %47 = vector.extract_strided_slice %41 {offsets = [0, 0, 0], sizes = [1, 20, 20], strides = [1, 1, 1]} : vector<4x20x20xf32> to vector<1x20x20xf32>
    %48 = vector.shape_cast %47 : vector<1x20x20xf32> to vector<20x20xf32>
    %49 = arith.mulf %46, %48 : vector<20x20xf32>
    %50 = arith.addf %49, %40 : vector<20x20xf32>
    %cst_28 = arith.constant dense<0xFF800000> : vector<20xf32>
    %51 = vector.multi_reduction <maximumf>, %50, %cst_28 [1] : vector<20x20xf32> to vector<20xf32>
    %52 = vector.shape_cast %51 : vector<20xf32> to vector<20x1xf32>
    %53 = vector.broadcast %52 : vector<20x1xf32> to vector<20x20xf32>
    %54 = arith.subf %50, %53 : vector<20x20xf32>
    %55 = math.exp %54 : vector<20x20xf32>
    %cst_29 = arith.constant dense<0.000000e+00> : vector<20xf32>
    %56 = vector.multi_reduction <add>, %55, %cst_29 [1] : vector<20x20xf32> to vector<20xf32>
    %57 = vector.shape_cast %56 : vector<20xf32> to vector<20x1xf32>
    %58 = tpu.reciprocal %57 {approx = true} : vector<20x1xf32> -> vector<20x1xf32>
    %59 = vector.broadcast %58 : vector<20x1xf32> to vector<20x20xf32>
    %60 = arith.mulf %55, %59 : vector<20x20xf32>
    %61 = vector.broadcast %43 : vector<1x32xf32> to vector<20x32xf32>
    %62 = arith.mulf %38, %61 : vector<20x32xf32>
    %cst_30 = arith.constant dense<0.000000e+00> : vector<20x32xf32>
    %63 = tpu.matmul %60, %62, %cst_30 {dimension_numbers = #tpu.dot_dimension_numbers<[1], [0], [0], [1], [0, 0, 1, 1], [], []>} : vector<20x20xf32>, vector<20x32xf32>, vector<20x32xf32> -> vector<20x32xf32>
    %64 = arith.addf %42, %63 : vector<20x32xf32>
    %65 = vector.extract_strided_slice %39 {offsets = [1, 0], sizes = [1, 32], strides = [1, 1]} : vector<4x32xf32> to vector<1x32xf32>
    %66 = vector.broadcast %65 : vector<1x32xf32> to vector<20x32xf32>
    %67 = arith.mulf %36, %66 : vector<20x32xf32>
    %cst_31 = arith.constant dense<0.000000e+00> : vector<20x20xf32>
    %68 = tpu.matmul %67, %37, %cst_31 {dimension_numbers = #tpu.dot_dimension_numbers<[1], [1], [0], [0], [0, 0, 1, 0], [], []>} : vector<20x32xf32>, vector<20x32xf32>, vector<20x20xf32> -> vector<20x20xf32>
    %69 = vector.extract_strided_slice %41 {offsets = [1, 0, 0], sizes = [1, 20, 20], strides = [1, 1, 1]} : vector<4x20x20xf32> to vector<1x20x20xf32>
    %70 = vector.shape_cast %69 : vector<1x20x20xf32> to vector<20x20xf32>
    %71 = arith.mulf %68, %70 : vector<20x20xf32>
    %72 = arith.addf %71, %40 : vector<20x20xf32>
    %cst_32 = arith.constant dense<0xFF800000> : vector<20xf32>
    %73 = vector.multi_reduction <maximumf>, %72, %cst_32 [1] : vector<20x20xf32> to vector<20xf32>
    %74 = vector.shape_cast %73 : vector<20xf32> to vector<20x1xf32>
    %75 = vector.broadcast %74 : vector<20x1xf32> to vector<20x20xf32>
    %76 = arith.subf %72, %75 : vector<20x20xf32>
    %77 = math.exp %76 : vector<20x20xf32>
    %cst_33 = arith.constant dense<0.000000e+00> : vector<20xf32>
    %78 = vector.multi_reduction <add>, %77, %cst_33 [1] : vector<20x20xf32> to vector<20xf32>
    %79 = vector.shape_cast %78 : vector<20xf32> to vector<20x1xf32>
    %80 = tpu.reciprocal %79 {approx = true} : vector<20x1xf32> -> vector<20x1xf32>
    %81 = vector.broadcast %80 : vector<20x1xf32> to vector<20x20xf32>
    %82 = arith.mulf %77, %81 : vector<20x20xf32>
    %83 = vector.broadcast %65 : vector<1x32xf32> to vector<20x32xf32>
    %84 = arith.mulf %38, %83 : vector<20x32xf32>
    %cst_34 = arith.constant dense<0.000000e+00> : vector<20x32xf32>
    %85 = tpu.matmul %82, %84, %cst_34 {dimension_numbers = #tpu.dot_dimension_numbers<[1], [0], [0], [1], [0, 0, 1, 1], [], []>} : vector<20x20xf32>, vector<20x32xf32>, vector<20x32xf32> -> vector<20x32xf32>
    %86 = arith.addf %64, %85 : vector<20x32xf32>
    %87 = vector.extract_strided_slice %39 {offsets = [2, 0], sizes = [1, 32], strides = [1, 1]} : vector<4x32xf32> to vector<1x32xf32>
    %88 = vector.broadcast %87 : vector<1x32xf32> to vector<20x32xf32>
    %89 = arith.mulf %36, %88 : vector<20x32xf32>
    %cst_35 = arith.constant dense<0.000000e+00> : vector<20x20xf32>
    %90 = tpu.matmul %89, %37, %cst_35 {dimension_numbers = #tpu.dot_dimension_numbers<[1], [1], [0], [0], [0, 0, 1, 0], [], []>} : vector<20x32xf32>, vector<20x32xf32>, vector<20x20xf32> -> vector<20x20xf32>
    %91 = vector.extract_strided_slice %41 {offsets = [2, 0, 0], sizes = [1, 20, 20], strides = [1, 1, 1]} : vector<4x20x20xf32> to vector<1x20x20xf32>
    %92 = vector.shape_cast %91 : vector<1x20x20xf32> to vector<20x20xf32>
    %93 = arith.mulf %90, %92 : vector<20x20xf32>
    %94 = arith.addf %93, %40 : vector<20x20xf32>
    %cst_36 = arith.constant dense<0xFF800000> : vector<20xf32>
    %95 = vector.multi_reduction <maximumf>, %94, %cst_36 [1] : vector<20x20xf32> to vector<20xf32>
    %96 = vector.shape_cast %95 : vector<20xf32> to vector<20x1xf32>
    %97 = vector.broadcast %96 : vector<20x1xf32> to vector<20x20xf32>
    %98 = arith.subf %94, %97 : vector<20x20xf32>
    %99 = math.exp %98 : vector<20x20xf32>
    %cst_37 = arith.constant dense<0.000000e+00> : vector<20xf32>
    %100 = vector.multi_reduction <add>, %99, %cst_37 [1] : vector<20x20xf32> to vector<20xf32>
    %101 = vector.shape_cast %100 : vector<20xf32> to vector<20x1xf32>
    %102 = tpu.reciprocal %101 {approx = true} : vector<20x1xf32> -> vector<20x1xf32>
    %103 = vector.broadcast %102 : vector<20x1xf32> to vector<20x20xf32>
    %104 = arith.mulf %99, %103 : vector<20x20xf32>
    %105 = vector.broadcast %87 : vector<1x32xf32> to vector<20x32xf32>
    %106 = arith.mulf %38, %105 : vector<20x32xf32>
    %cst_38 = arith.constant dense<0.000000e+00> : vector<20x32xf32>
    %107 = tpu.matmul %104, %106, %cst_38 {dimension_numbers = #tpu.dot_dimension_numbers<[1], [0], [0], [1], [0, 0, 1, 1], [], []>} : vector<20x20xf32>, vector<20x32xf32>, vector<20x32xf32> -> vector<20x32xf32>
    %108 = arith.addf %86, %107 : vector<20x32xf32>
    %109 = vector.extract_strided_slice %39 {offsets = [3, 0], sizes = [1, 32], strides = [1, 1]} : vector<4x32xf32> to vector<1x32xf32>
    %110 = vector.broadcast %109 : vector<1x32xf32> to vector<20x32xf32>
    %111 = arith.mulf %36, %110 : vector<20x32xf32>
    %cst_39 = arith.constant dense<0.000000e+00> : vector<20x20xf32>
    %112 = tpu.matmul %111, %37, %cst_39 {dimension_numbers = #tpu.dot_dimension_numbers<[1], [1], [0], [0], [0, 0, 1, 0], [], []>} : vector<20x32xf32>, vector<20x32xf32>, vector<20x20xf32> -> vector<20x20xf32>
    %113 = vector.extract_strided_slice %41 {offsets = [3, 0, 0], sizes = [1, 20, 20], strides = [1, 1, 1]} : vector<4x20x20xf32> to vector<1x20x20xf32>
    %114 = vector.shape_cast %113 : vector<1x20x20xf32> to vector<20x20xf32>
    %115 = arith.mulf %112, %114 : vector<20x20xf32>
    %116 = arith.addf %115, %40 : vector<20x20xf32>
    %cst_40 = arith.constant dense<0xFF800000> : vector<20xf32>
    %117 = vector.multi_reduction <maximumf>, %116, %cst_40 [1] : vector<20x20xf32> to vector<20xf32>
    %118 = vector.shape_cast %117 : vector<20xf32> to vector<20x1xf32>
    %119 = vector.broadcast %118 : vector<20x1xf32> to vector<20x20xf32>
    %120 = arith.subf %116, %119 : vector<20x20xf32>
    %121 = math.exp %120 : vector<20x20xf32>
    %cst_41 = arith.constant dense<0.000000e+00> : vector<20xf32>
    %122 = vector.multi_reduction <add>, %121, %cst_41 [1] : vector<20x20xf32> to vector<20xf32>
    %123 = vector.shape_cast %122 : vector<20xf32> to vector<20x1xf32>
    %124 = tpu.reciprocal %123 {approx = true} : vector<20x1xf32> -> vector<20x1xf32>
    %125 = vector.broadcast %124 : vector<20x1xf32> to vector<20x20xf32>
    %126 = arith.mulf %121, %125 : vector<20x20xf32>
    %127 = vector.broadcast %109 : vector<1x32xf32> to vector<20x32xf32>
    %128 = arith.mulf %38, %127 : vector<20x32xf32>
    %cst_42 = arith.constant dense<0.000000e+00> : vector<20x32xf32>
    %129 = tpu.matmul %126, %128, %cst_42 {dimension_numbers = #tpu.dot_dimension_numbers<[1], [0], [0], [1], [0, 0, 1, 1], [], []>} : vector<20x20xf32>, vector<20x32xf32>, vector<20x32xf32> -> vector<20x32xf32>
    %130 = arith.addf %108, %129 : vector<20x32xf32>
    %131 = arith.truncf %130 : vector<20x32xf32> to vector<20x32xbf16>
    %c0_43 = arith.constant 0 : index
    %c0_44 = arith.constant 0 : index
    %c0_45 = arith.constant 0 : index
    %132 = vector.load %arg13[%c0_43, %c0_44, %c0_45] : memref<1x32x32xbf16, #tpu.memory_space<vmem>>, vector<1x32x32xbf16>
    %133 = vector.shape_cast %132 : vector<1x32x32xbf16> to vector<32x32xbf16>
    %cst_46 = arith.constant dense<0.000000e+00> : vector<20x32xf32>
    %134 = tpu.matmul %131, %133, %cst_46 {dimension_numbers = #tpu.dot_dimension_numbers<[1], [0], [0], [1], [0, 0, 1, 1], [], []>} : vector<20x32xbf16>, vector<32x32xbf16>, vector<20x32xf32> -> vector<20x32xf32>
    %135 = arith.addf %3, %134 : vector<20x32xf32>
    %c0_47 = arith.constant 0 : index
    %c0_48 = arith.constant 0 : index
    %c0_49 = arith.constant 0 : index
    %136 = vector.load %arg14[%c0_47, %c0_48, %c0_49] : memref<1x1x32xf32, #tpu.memory_space<vmem>>, vector<1x1x32xf32>
    %137 = vector.shape_cast %136 : vector<1x1x32xf32> to vector<1x32xf32>
    %138 = vector.broadcast %137 : vector<1x32xf32> to vector<20x32xf32>
    %139 = arith.addf %135, %138 : vector<20x32xf32>
    %c0_50 = arith.constant 0 : index
    %c0_51 = arith.constant 0 : index
    %c0_52 = arith.constant 0 : index
    %140 = vector.load %arg15[%c0_50, %c0_51, %c0_52] : memref<1x1x32xf32, #tpu.memory_space<vmem>>, vector<1x1x32xf32>
    %141 = vector.shape_cast %140 : vector<1x1x32xf32> to vector<1x32xf32>
    %c0_53 = arith.constant 0 : index
    %c0_54 = arith.constant 0 : index
    %c0_55 = arith.constant 0 : index
    %142 = vector.load %arg16[%c0_53, %c0_54, %c0_55] : memref<1x1x32xf32, #tpu.memory_space<vmem>>, vector<1x1x32xf32>
    %143 = vector.shape_cast %142 : vector<1x1x32xf32> to vector<1x32xf32>
    %cst_56 = arith.constant dense<0.000000e+00> : vector<20xf32>
    %144 = vector.multi_reduction <add>, %139, %cst_56 [1] : vector<20x32xf32> to vector<20xf32>
    %145 = vector.shape_cast %144 : vector<20xf32> to vector<20x1xf32>
    %cst_57 = arith.constant 3.200000e+01 : f32
    %146 = vector.broadcast %cst_57 : f32 to vector<20x1xf32>
    %147 = arith.divf %145, %146 : vector<20x1xf32>
    %148 = vector.broadcast %147 : vector<20x1xf32> to vector<20x32xf32>
    %149 = arith.subf %139, %148 : vector<20x32xf32>
    %150 = arith.mulf %149, %149 : vector<20x32xf32>
    %cst_58 = arith.constant dense<0.000000e+00> : vector<20xf32>
    %151 = vector.multi_reduction <add>, %150, %cst_58 [1] : vector<20x32xf32> to vector<20xf32>
    %152 = vector.shape_cast %151 : vector<20xf32> to vector<20x1xf32>
    %cst_59 = arith.constant 3.200000e+01 : f32
    %153 = vector.broadcast %cst_59 : f32 to vector<20x1xf32>
    %154 = arith.divf %152, %153 : vector<20x1xf32>
    %cst_60 = arith.constant 9.99999974E-6 : f32
    %155 = vector.broadcast %cst_60 : f32 to vector<20x1xf32>
    %156 = arith.addf %154, %155 : vector<20x1xf32>
    %157 = math.rsqrt %156 : vector<20x1xf32>
    %158 = vector.broadcast %157 : vector<20x1xf32> to vector<20x32xf32>
    %159 = arith.mulf %149, %158 : vector<20x32xf32>
    %160 = vector.broadcast %141 : vector<1x32xf32> to vector<20x32xf32>
    %161 = arith.mulf %159, %160 : vector<20x32xf32>
    %162 = vector.broadcast %143 : vector<1x32xf32> to vector<20x32xf32>
    %163 = arith.addf %161, %162 : vector<20x32xf32>
    %164 = arith.truncf %163 : vector<20x32xf32> to vector<20x32xbf16>
    %c0_61 = arith.constant 0 : index
    %c0_62 = arith.constant 0 : index
    %c0_63 = arith.constant 0 : index
    %165 = vector.load %arg17[%c0_61, %c0_62, %c0_63] : memref<1x32x128xbf16, #tpu.memory_space<vmem>>, vector<1x32x128xbf16>
    %166 = vector.shape_cast %165 : vector<1x32x128xbf16> to vector<32x128xbf16>
    %cst_64 = arith.constant dense<0.000000e+00> : vector<20x128xf32>
    %167 = tpu.matmul %164, %166, %cst_64 {dimension_numbers = #tpu.dot_dimension_numbers<[1], [0], [0], [1], [0, 0, 1, 1], [], []>} : vector<20x32xbf16>, vector<32x128xbf16>, vector<20x128xf32> -> vector<20x128xf32>
    %c0_65 = arith.constant 0 : index
    %c0_66 = arith.constant 0 : index
    %c0_67 = arith.constant 0 : index
    %168 = vector.load %arg18[%c0_65, %c0_66, %c0_67] : memref<1x1x128xf32, #tpu.memory_space<vmem>>, vector<1x1x128xf32>
    %169 = vector.shape_cast %168 : vector<1x1x128xf32> to vector<1x128xf32>
    %170 = vector.broadcast %169 : vector<1x128xf32> to vector<20x128xf32>
    %171 = arith.addf %167, %170 : vector<20x128xf32>
    %cst_68 = arith.constant 1.702000e+00 : f32
    %172 = vector.broadcast %cst_68 : f32 to vector<20x128xf32>
    %173 = arith.mulf %172, %171 : vector<20x128xf32>
    %174 = arith.negf %173 : vector<20x128xf32>
    %175 = math.exp %174 : vector<20x128xf32>
    %cst_69 = arith.constant 1.000000e+00 : f32
    %176 = vector.broadcast %cst_69 : f32 to vector<20x128xf32>
    %177 = arith.addf %176, %175 : vector<20x128xf32>
    %178 = arith.divf %176, %177 : vector<20x128xf32>
    %179 = arith.mulf %171, %178 : vector<20x128xf32>
    %180 = arith.truncf %179 : vector<20x128xf32> to vector<20x128xbf16>
    %c0_70 = arith.constant 0 : index
    %c0_71 = arith.constant 0 : index
    %c0_72 = arith.constant 0 : index
    %181 = vector.load %arg19[%c0_70, %c0_71, %c0_72] : memref<1x128x32xbf16, #tpu.memory_space<vmem>>, vector<1x128x32xbf16>
    %182 = vector.shape_cast %181 : vector<1x128x32xbf16> to vector<128x32xbf16>
    %cst_73 = arith.constant dense<0.000000e+00> : vector<20x32xf32>
    %183 = tpu.matmul %180, %182, %cst_73 {dimension_numbers = #tpu.dot_dimension_numbers<[1], [0], [0], [1], [0, 0, 1, 1], [], []>} : vector<20x128xbf16>, vector<128x32xbf16>, vector<20x32xf32> -> vector<20x32xf32>
    %184 = arith.addf %139, %183 : vector<20x32xf32>
    %c0_74 = arith.constant 0 : index
    %c0_75 = arith.constant 0 : index
    %c0_76 = arith.constant 0 : index
    %185 = vector.load %arg20[%c0_74, %c0_75, %c0_76] : memref<1x1x32xf32, #tpu.memory_space<vmem>>, vector<1x1x32xf32>
    %186 = vector.shape_cast %185 : vector<1x1x32xf32> to vector<1x32xf32>
    %187 = vector.broadcast %186 : vector<1x32xf32> to vector<20x32xf32>
    %188 = arith.addf %184, %187 : vector<20x32xf32>
    %c0_77 = arith.constant 0 : index
    %c0_78 = arith.constant 0 : index
    %189 = vector.load %arg27[%c0_77, %c0_78] : memref<20x32xf32, #tpu.memory_space<vmem>>, vector<20x32xf32>
    tpu.vector_store %arg27[%c0_77, %c0_78], %188 {strides = array<i32>} : memref<20x32xf32, #tpu.memory_space<vmem>>, vector<20x32xf32>,
    %c3_i32 = arith.constant 3 : i32
    %190 = arith.cmpi eq, %arg0, %c3_i32 : i32
    %191 = arith.extui %190 : i1 to i32
    %c0_i32_79 = arith.constant 0 : i32
    %192 = arith.cmpi ne, %191, %c0_i32_79 : i32
    scf.if %192 {
      %202 = vector.extract_strided_slice %188 {offsets = [0, 0], sizes = [10, 32], strides = [1, 1]} : vector<20x32xf32> to vector<10x32xf32>
      %c0_84 = arith.constant 0 : index
      %c0_85 = arith.constant 0 : index
      %c0_86 = arith.constant 0 : index
      %203 = vector.load %arg25[%c0_84, %c0_85, %c0_86] : memref<3x10x32xf32, #tpu.memory_space<vmem>>, vector<1x10x32xf32>
      %204 = vector.shape_cast %203 : vector<1x10x32xf32> to vector<10x32xf32>
      %205 = vector.shape_cast %202 : vector<10x32xf32> to vector<1x10x32xf32>
      tpu.vector_store %arg25[%c0_84, %c0_85, %c0_86], %205 {strides = array<i32>} : memref<3x10x32xf32, #tpu.memory_space<vmem>>, vector<1x10x32xf32>,
    } else {
    }
    %c6_i32 = arith.constant 6 : i32
    %193 = arith.cmpi eq, %arg0, %c6_i32 : i32
    %194 = arith.extui %193 : i1 to i32
    %c0_i32_80 = arith.constant 0 : i32
    %195 = arith.cmpi ne, %194, %c0_i32_80 : i32
    scf.if %195 {
      %202 = vector.extract_strided_slice %188 {offsets = [0, 0], sizes = [10, 32], strides = [1, 1]} : vector<20x32xf32> to vector<10x32xf32>
      %c1 = arith.constant 1 : index
      %c0_84 = arith.constant 0 : index
      %c0_85 = arith.constant 0 : index
      %203 = vector.load %arg25[%c1, %c0_84, %c0_85] : memref<3x10x32xf32, #tpu.memory_space<vmem>>, vector<1x10x32xf32>
      %204 = vector.shape_cast %203 : vector<1x10x32xf32> to vector<10x32xf32>
      %205 = vector.shape_cast %202 : vector<10x32xf32> to vector<1x10x32xf32>
      tpu.vector_store %arg25[%c1, %c0_84, %c0_85], %205 {strides = array<i32>} : memref<3x10x32xf32, #tpu.memory_space<vmem>>, vector<1x10x32xf32>,
    } else {
    }
    %c9_i32 = arith.constant 9 : i32
    %196 = arith.cmpi eq, %arg0, %c9_i32 : i32
    %197 = arith.extui %196 : i1 to i32
    %c0_i32_81 = arith.constant 0 : i32
    %198 = arith.cmpi ne, %197, %c0_i32_81 : i32
    scf.if %198 {
      %202 = vector.extract_strided_slice %188 {offsets = [0, 0], sizes = [10, 32], strides = [1, 1]} : vector<20x32xf32> to vector<10x32xf32>
      %c2 = arith.constant 2 : index
      %c0_84 = arith.constant 0 : index
      %c0_85 = arith.constant 0 : index
      %203 = vector.load %arg25[%c2, %c0_84, %c0_85] : memref<3x10x32xf32, #tpu.memory_space<vmem>>, vector<1x10x32xf32>
      %204 = vector.shape_cast %203 : vector<1x10x32xf32> to vector<10x32xf32>
      %205 = vector.shape_cast %202 : vector<10x32xf32> to vector<1x10x32xf32>
      tpu.vector_store %arg25[%c2, %c0_84, %c0_85], %205 {strides = array<i32>} : memref<3x10x32xf32, #tpu.memory_space<vmem>>, vector<1x10x32xf32>,
    } else {
    }
    %c9_i32_82 = arith.constant 9 : i32
    %199 = arith.cmpi eq, %arg0, %c9_i32_82 : i32
    %200 = arith.extui %199 : i1 to i32
    %c0_i32_83 = arith.constant 0 : i32
    %201 = arith.cmpi ne, %200, %c0_i32_83 : i32
    scf.if %201 {
      %202 = vector.extract_strided_slice %188 {offsets = [10, 0], sizes = [2, 32], strides = [1, 1]} : vector<20x32xf32> to vector<2x32xf32>
      %c0_84 = arith.constant 0 : index
      %c0_85 = arith.constant 0 : index
      %203 = vector.load %arg21[%c0_84, %c0_85] : memref<1x32xf32, #tpu.memory_space<vmem>>, vector<1x32xf32>
      %c0_86 = arith.constant 0 : index
      %c0_87 = arith.constant 0 : index
      %204 = vector.load %arg22[%c0_86, %c0_87] : memref<1x32xf32, #tpu.memory_space<vmem>>, vector<1x32xf32>
      %cst_88 = arith.constant dense<0.000000e+00> : vector<2xf32>
      %205 = vector.multi_reduction <add>, %202, %cst_88 [1] : vector<2x32xf32> to vector<2xf32>
      %206 = vector.shape_cast %205 : vector<2xf32> to vector<2x1xf32>
      %cst_89 = arith.constant 3.200000e+01 : f32
      %207 = vector.broadcast %cst_89 : f32 to vector<2x1xf32>
      %208 = arith.divf %206, %207 : vector<2x1xf32>
      %209 = vector.broadcast %208 : vector<2x1xf32> to vector<2x32xf32>
      %210 = arith.subf %202, %209 : vector<2x32xf32>
      %211 = arith.mulf %210, %210 : vector<2x32xf32>
      %cst_90 = arith.constant dense<0.000000e+00> : vector<2xf32>
      %212 = vector.multi_reduction <add>, %211, %cst_90 [1] : vector<2x32xf32> to vector<2xf32>
      %213 = vector.shape_cast %212 : vector<2xf32> to vector<2x1xf32>
      %cst_91 = arith.constant 3.200000e+01 : f32
      %214 = vector.broadcast %cst_91 : f32 to vector<2x1xf32>
      %215 = arith.divf %213, %214 : vector<2x1xf32>
      %cst_92 = arith.constant 9.99999974E-6 : f32
      %216 = vector.broadcast %cst_92 : f32 to vector<2x1xf32>
      %217 = arith.addf %215, %216 : vector<2x1xf32>
      %218 = math.rsqrt %217 : vector<2x1xf32>
      %219 = vector.broadcast %218 : vector<2x1xf32> to vector<2x32xf32>
      %220 = arith.mulf %210, %219 : vector<2x32xf32>
      %221 = vector.broadcast %203 : vector<1x32xf32> to vector<2x32xf32>
      %222 = arith.mulf %220, %221 : vector<2x32xf32>
      %223 = vector.broadcast %204 : vector<1x32xf32> to vector<2x32xf32>
      %224 = arith.addf %222, %223 : vector<2x32xf32>
      %c0_93 = arith.constant 0 : index
      %c0_94 = arith.constant 0 : index
      %225 = vector.load %arg23[%c0_93, %c0_94] : memref<32x32xf32, #tpu.memory_space<vmem>>, vector<32x32xf32>
      %cst_95 = arith.constant dense<0.000000e+00> : vector<2x32xf32>
      %226 = tpu.matmul %224, %225, %cst_95 {dimension_numbers = #tpu.dot_dimension_numbers<[1], [0], [0], [1], [0, 0, 1, 1], [], []>} : vector<2x32xf32>, vector<32x32xf32>, vector<2x32xf32> -> vector<2x32xf32>
      %c0_96 = arith.constant 0 : index
      %c0_97 = arith.constant 0 : index
      %227 = vector.load %arg26[%c0_96, %c0_97] : memref<2x32xf32, #tpu.memory_space<vmem>>, vector<2x32xf32>
      tpu.vector_store %arg26[%c0_96, %c0_97], %226 {strides = array<i32>} : memref<2x32xf32, #tpu.memory_space<vmem>>, vector<2x32xf32>,
    } else {
    }
    return
  }
  func.func @transform_0(%arg0: i32) -> (i32, i32, i32) {
    %c0_i32 = arith.constant 0 : i32
    %c0_i32_0 = arith.constant 0 : i32
    %c0_i32_1 = arith.constant 0 : i32
    %c0_i32_2 = arith.constant 0 : i32
    return %c0_i32, %c0_i32_0, %c0_i32_1 : i32, i32, i32
  }
  func.func @transform_1(%arg0: i32) -> (i32, i32) {
    %c0_i32 = arith.constant 0 : i32
    %c0_i32_0 = arith.constant 0 : i32
    %c0_i32_1 = arith.constant 0 : i32
    return %c0_i32, %c0_i32_0 : i32, i32
  }
  func.func @transform_2(%arg0: i32) -> (i32, i32) {
    %c0_i32 = arith.constant 0 : i32
    %c0_i32_0 = arith.constant 0 : i32
    %c0_i32_1 = arith.constant 0 : i32
    return %c0_i32, %c0_i32_0 : i32, i32
  }
  func.func @transform_3(%arg0: i32) -> (i32, i32) {
    %c0_i32 = arith.constant 0 : i32
    %c0_i32_0 = arith.constant 0 : i32
    %c0_i32_1 = arith.constant 0 : i32
    return %c0_i32, %c0_i32_0 : i32, i32
  }
  func.func @transform_4(%arg0: i32) -> (i32, i32) {
    %c0_i32 = arith.constant 0 : i32
    %c0_i32_0 = arith.constant 0 : i32
    %c0_i32_1 = arith.constant 0 : i32
    return %c0_i32, %c0_i32_0 : i32, i32
  }
  func.func @transform_5(%arg0: i32) -> (i32, i32) {
    %c0_i32 = arith.constant 0 : i32
    %c0_i32_0 = arith.constant 0 : i32
    %c0_i32_1 = arith.constant 0 : i32
    return %c0_i32, %c0_i32_0 : i32, i32
  }
  func.func @transform_6(%arg0: i32) -> (i32, i32) {
    %c0_i32 = arith.constant 0 : i32
    %c0_i32_0 = arith.constant 0 : i32
    %c0_i32_1 = arith.constant 0 : i32
    return %c0_i32, %c0_i32_0 : i32, i32
  }
  func.func @transform_7(%arg0: i32) -> (i32, i32) {
    %c0_i32 = arith.constant 0 : i32
    %c0_i32_0 = arith.constant 0 : i32
    %c0_i32_1 = arith.constant 0 : i32
    return %c0_i32, %c0_i32_0 : i32, i32
  }
  func.func @transform_8(%arg0: i32) -> (i32, i32, i32) {
    %c0_i32 = arith.constant 0 : i32
    %c0_i32_0 = arith.constant 0 : i32
    %c0_i32_1 = arith.constant 0 : i32
    return %arg0, %c0_i32, %c0_i32_0 : i32, i32, i32
  }
  func.func @transform_9(%arg0: i32) -> (i32, i32, i32) {
    %c0_i32 = arith.constant 0 : i32
    %c0_i32_0 = arith.constant 0 : i32
    %c0_i32_1 = arith.constant 0 : i32
    return %arg0, %c0_i32, %c0_i32_0 : i32, i32, i32
  }
  func.func @transform_10(%arg0: i32) -> (i32, i32, i32) {
    %c0_i32 = arith.constant 0 : i32
    %c0_i32_0 = arith.constant 0 : i32
    %c0_i32_1 = arith.constant 0 : i32
    return %arg0, %c0_i32, %c0_i32_0 : i32, i32, i32
  }
  func.func @transform_11(%arg0: i32) -> (i32, i32, i32) {
    %c0_i32 = arith.constant 0 : i32
    %c0_i32_0 = arith.constant 0 : i32
    %c0_i32_1 = arith.constant 0 : i32
    return %arg0, %c0_i32, %c0_i32_0 : i32, i32, i32
  }
  func.func @transform_12(%arg0: i32) -> (i32, i32, i32) {
    %c0_i32 = arith.constant 0 : i32
    %c0_i32_0 = arith.constant 0 : i32
    %c0_i32_1 = arith.constant 0 : i32
    return %arg0, %c0_i32, %c0_i32_0 : i32, i32, i32
  }
  func.func @transform_13(%arg0: i32) -> (i32, i32, i32) {
    %c0_i32 = arith.constant 0 : i32
    %c0_i32_0 = arith.constant 0 : i32
    %c0_i32_1 = arith.constant 0 : i32
    return %arg0, %c0_i32, %c0_i32_0 : i32, i32, i32
  }
  func.func @transform_14(%arg0: i32) -> (i32, i32, i32) {
    %c0_i32 = arith.constant 0 : i32
    %c0_i32_0 = arith.constant 0 : i32
    %c0_i32_1 = arith.constant 0 : i32
    return %arg0, %c0_i32, %c0_i32_0 : i32, i32, i32
  }
  func.func @transform_15(%arg0: i32) -> (i32, i32, i32) {
    %c0_i32 = arith.constant 0 : i32
    %c0_i32_0 = arith.constant 0 : i32
    %c0_i32_1 = arith.constant 0 : i32
    return %arg0, %c0_i32, %c0_i32_0 : i32, i32, i32
  }
  func.func @transform_16(%arg0: i32) -> (i32, i32, i32) {
    %c0_i32 = arith.constant 0 : i32
    %c0_i32_0 = arith.constant 0 : i32
    %c0_i32_1 = arith.constant 0 : i32
    return %arg0, %c0_i32, %c0_i32_0 : i32, i32, i32
  }
  func.func @transform_17(%arg0: i32) -> (i32, i32, i32) {
    %c0_i32 = arith.constant 0 : i32
    %c0_i32_0 = arith.constant 0 : i32
    %c0_i32_1 = arith.constant 0 : i32
    return %arg0, %c0_i32, %c0_i32_0 : i32, i32, i32
  }
  func.func @transform_18(%arg0: i32) -> (i32, i32, i32) {
    %c0_i32 = arith.constant 0 : i32
    %c0_i32_0 = arith.constant 0 : i32
    %c0_i32_1 = arith.constant 0 : i32
    return %arg0, %c0_i32, %c0_i32_0 : i32, i32, i32
  }
  func.func @transform_19(%arg0: i32) -> (i32, i32, i32) {
    %c0_i32 = arith.constant 0 : i32
    %c0_i32_0 = arith.constant 0 : i32
    %c0_i32_1 = arith.constant 0 : i32
    return %arg0, %c0_i32, %c0_i32_0 : i32, i32, i32
  }
  func.func @transform_20(%arg0: i32) -> (i32, i32) {
    %c0_i32 = arith.constant 0 : i32
    %c0_i32_0 = arith.constant 0 : i32
    %c0_i32_1 = arith.constant 0 : i32
    return %c0_i32, %c0_i32_0 : i32, i32
  }
  func.func @transform_21(%arg0: i32) -> (i32, i32) {
    %c0_i32 = arith.constant 0 : i32
    %c0_i32_0 = arith.constant 0 : i32
    %c0_i32_1 = arith.constant 0 : i32
    return %c0_i32, %c0_i32_0 : i32, i32
  }
  func.func @transform_22(%arg0: i32) -> (i32, i32) {
    %c0_i32 = arith.constant 0 : i32
    %c0_i32_0 = arith.constant 0 : i32
    %c0_i32_1 = arith.constant 0 : i32
    return %c0_i32, %c0_i32_0 : i32, i32
  }
  func.func @transform_23(%arg0: i32) -> (i32, i32) {
    %c0_i32 = arith.constant 0 : i32
    %c0_i32_0 = arith.constant 0 : i32
    %c0_i32_1 = arith.constant 0 : i32
    return %c0_i32, %c0_i32_0 : i32, i32
  }
  func.func @transform_24(%arg0: i32) -> (i32, i32, i32) {
    %c0_i32 = arith.constant 0 : i32
    %c0_i32_0 = arith.constant 0 : i32
    %c0_i32_1 = arith.constant 0 : i32
    %c0_i32_2 = arith.constant 0 : i32
    return %c0_i32, %c0_i32_0, %c0_i32_1 : i32, i32, i32
  }
  func.func @transform_25(%arg0: i32) -> (i32, i32) {
    %c0_i32 = arith.constant 0 : i32
    %c0_i32_0 = arith.constant 0 : i32
    %c0_i32_1 = arith.constant 0 : i32
    return %c0_i32, %c0_i32_0 : i32, i32
  }
}

module attributes {stable_mosaic.version = 11 : i64} {
  func.func @_decoder_kernel(%arg0: i32, %arg1: memref<3x10x32xf32, #tpu.memory_space<vmem>>, %arg2: memref<2x32xf32, #tpu.memory_space<vmem>>, %arg3: memref<10x10xf32, #tpu.memory_space<vmem>>, %arg4: memref<10x2xf32, #tpu.memory_space<vmem>>, %arg5: memref<3x32x16xf32, #tpu.memory_space<vmem>>, %arg6: memref<3x1x16xf32, #tpu.memory_space<vmem>>, %arg7: memref<32x16xf32, #tpu.memory_space<vmem>>, %arg8: memref<1x16xf32, #tpu.memory_space<vmem>>, %arg9: memref<32x16xf32, #tpu.memory_space<vmem>>, %arg10: memref<1x16xf32, #tpu.memory_space<vmem>>, %arg11: memref<3x16x48xf32, #tpu.memory_space<vmem>>, %arg12: memref<3x1x48xf32, #tpu.memory_space<vmem>>, %arg13: memref<3x16x16xf32, #tpu.memory_space<vmem>>, %arg14: memref<3x1x16xf32, #tpu.memory_space<vmem>>, %arg15: memref<3x1x16xf32, #tpu.memory_space<vmem>>, %arg16: memref<3x1x16xf32, #tpu.memory_space<vmem>>, %arg17: memref<3x16x64xf32, #tpu.memory_space<vmem>>, %arg18: memref<3x1x64xf32, #tpu.memory_space<vmem>>, %arg19: memref<3x64x16xf32, #tpu.memory_space<vmem>>, %arg20: memref<3x1x16xf32, #tpu.memory_space<vmem>>, %arg21: memref<3x1x16xf32, #tpu.memory_space<vmem>>, %arg22: memref<3x1x16xf32, #tpu.memory_space<vmem>>, %arg23: memref<16x256xf32, #tpu.memory_space<vmem>>, %arg24: memref<1x256xf32, #tpu.memory_space<vmem>>, %arg25: memref<4x16xf32, #tpu.memory_space<vmem>>, %arg26: memref<8x256xf32, #tpu.memory_space<vmem>>) attributes {dimension_semantics = [#tpu.dimension_semantics<arbitrary>], iteration_bounds = array<i64: 1>, scalar_prefetch = 0 : i64, scratch_operands = 0 : i64, tpu.core_type = #tpu.core_type<tc>, window_params = [{pipeline_mode = #tpu.pipeline_mode<synchronous>, transform_indices = @transform_0, window_bounds = array<i64: 3, 10, 32>}, {pipeline_mode = #tpu.pipeline_mode<synchronous>, transform_indices = @transform_1, window_bounds = array<i64: 2, 32>}, {pipeline_mode = #tpu.pipeline_mode<synchronous>, transform_indices = @transform_2, window_bounds = array<i64: 10, 10>}, {pipeline_mode = #tpu.pipeline_mode<synchronous>, transform_indices = @transform_3, window_bounds = array<i64: 10, 2>}, {pipeline_mode = #tpu.pipeline_mode<synchronous>, transform_indices = @transform_4, window_bounds = array<i64: 3, 32, 16>}, {pipeline_mode = #tpu.pipeline_mode<synchronous>, transform_indices = @transform_5, window_bounds = array<i64: 3, 1, 16>}, {pipeline_mode = #tpu.pipeline_mode<synchronous>, transform_indices = @transform_6, window_bounds = array<i64: 32, 16>}, {pipeline_mode = #tpu.pipeline_mode<synchronous>, transform_indices = @transform_7, window_bounds = array<i64: 1, 16>}, {pipeline_mode = #tpu.pipeline_mode<synchronous>, transform_indices = @transform_8, window_bounds = array<i64: 32, 16>}, {pipeline_mode = #tpu.pipeline_mode<synchronous>, transform_indices = @transform_9, window_bounds = array<i64: 1, 16>}, {pipeline_mode = #tpu.pipeline_mode<synchronous>, transform_indices = @transform_10, window_bounds = array<i64: 3, 16, 48>}, {pipeline_mode = #tpu.pipeline_mode<synchronous>, transform_indices = @transform_11, window_bounds = array<i64: 3, 1, 48>}, {pipeline_mode = #tpu.pipeline_mode<synchronous>, transform_indices = @transform_12, window_bounds = array<i64: 3, 16, 16>}, {pipeline_mode = #tpu.pipeline_mode<synchronous>, transform_indices = @transform_13, window_bounds = array<i64: 3, 1, 16>}, {pipeline_mode = #tpu.pipeline_mode<synchronous>, transform_indices = @transform_14, window_bounds = array<i64: 3, 1, 16>}, {pipeline_mode = #tpu.pipeline_mode<synchronous>, transform_indices = @transform_15, window_bounds = array<i64: 3, 1, 16>}, {pipeline_mode = #tpu.pipeline_mode<synchronous>, transform_indices = @transform_16, window_bounds = array<i64: 3, 16, 64>}, {pipeline_mode = #tpu.pipeline_mode<synchronous>, transform_indices = @transform_17, window_bounds = array<i64: 3, 1, 64>}, {pipeline_mode = #tpu.pipeline_mode<synchronous>, transform_indices = @transform_18, window_bounds = array<i64: 3, 64, 16>}, {pipeline_mode = #tpu.pipeline_mode<synchronous>, transform_indices = @transform_19, window_bounds = array<i64: 3, 1, 16>}, {pipeline_mode = #tpu.pipeline_mode<synchronous>, transform_indices = @transform_20, window_bounds = array<i64: 3, 1, 16>}, {pipeline_mode = #tpu.pipeline_mode<synchronous>, transform_indices = @transform_21, window_bounds = array<i64: 3, 1, 16>}, {pipeline_mode = #tpu.pipeline_mode<synchronous>, transform_indices = @transform_22, window_bounds = array<i64: 16, 256>}, {pipeline_mode = #tpu.pipeline_mode<synchronous>, transform_indices = @transform_23, window_bounds = array<i64: 1, 256>}, {pipeline_mode = #tpu.pipeline_mode<synchronous>, transform_indices = @transform_24, window_bounds = array<i64: 4, 16>}, {pipeline_mode = #tpu.pipeline_mode<synchronous>, transform_indices = @transform_25, window_bounds = array<i64: 8, 256>}]} {
    %c0 = arith.constant 0 : index
    %c0_0 = arith.constant 0 : index
    %0 = vector.load %arg3[%c0, %c0_0] : memref<10x10xf32, #tpu.memory_space<vmem>>, vector<10x10xf32>
    %c0_1 = arith.constant 0 : index
    %c0_2 = arith.constant 0 : index
    %1 = vector.load %arg25[%c0_1, %c0_2] : memref<4x16xf32, #tpu.memory_space<vmem>>, vector<4x16xf32>
    %c2 = arith.constant 2 : index
    %c0_3 = arith.constant 0 : index
    %c0_4 = arith.constant 0 : index
    %2 = vector.load %arg1[%c2, %c0_3, %c0_4] : memref<3x10x32xf32, #tpu.memory_space<vmem>>, vector<1x10x32xf32>
    %3 = vector.shape_cast %2 : vector<1x10x32xf32> to vector<10x32xf32>
    %c0_5 = arith.constant 0 : index
    %c0_6 = arith.constant 0 : index
    %c0_7 = arith.constant 0 : index
    %4 = vector.load %arg5[%c0_5, %c0_6, %c0_7] : memref<3x32x16xf32, #tpu.memory_space<vmem>>, vector<1x32x16xf32>
    %5 = vector.shape_cast %4 : vector<1x32x16xf32> to vector<32x16xf32>
    %cst = arith.constant dense<0.000000e+00> : vector<10x16xf32>
    %6 = tpu.matmul %3, %5, %cst {dimension_numbers = #tpu.dot_dimension_numbers<[1], [0], [0], [1], [0, 0, 1, 1], [], []>} : vector<10x32xf32>, vector<32x16xf32>, vector<10x16xf32> -> vector<10x16xf32>
    %c0_8 = arith.constant 0 : index
    %c0_9 = arith.constant 0 : index
    %c0_10 = arith.constant 0 : index
    %7 = vector.load %arg6[%c0_8, %c0_9, %c0_10] : memref<3x1x16xf32, #tpu.memory_space<vmem>>, vector<1x1x16xf32>
    %8 = vector.shape_cast %7 : vector<1x1x16xf32> to vector<1x16xf32>
    %9 = vector.broadcast %8 : vector<1x16xf32> to vector<10x16xf32>
    %10 = arith.addf %6, %9 : vector<10x16xf32>
    %c0_11 = arith.constant 0 : index
    %c0_12 = arith.constant 0 : index
    %11 = vector.load %arg2[%c0_11, %c0_12] : memref<2x32xf32, #tpu.memory_space<vmem>>, vector<2x32xf32>
    %c0_13 = arith.constant 0 : index
    %c0_14 = arith.constant 0 : index
    %12 = vector.load %arg7[%c0_13, %c0_14] : memref<32x16xf32, #tpu.memory_space<vmem>>, vector<32x16xf32>
    %cst_15 = arith.constant dense<0.000000e+00> : vector<2x16xf32>
    %13 = tpu.matmul %11, %12, %cst_15 {dimension_numbers = #tpu.dot_dimension_numbers<[1], [0], [0], [1], [0, 0, 1, 1], [], []>} : vector<2x32xf32>, vector<32x16xf32>, vector<2x16xf32> -> vector<2x16xf32>
    %c0_16 = arith.constant 0 : index
    %c0_17 = arith.constant 0 : index
    %14 = vector.load %arg8[%c0_16, %c0_17] : memref<1x16xf32, #tpu.memory_space<vmem>>, vector<1x16xf32>
    %15 = vector.broadcast %14 : vector<1x16xf32> to vector<2x16xf32>
    %16 = arith.addf %13, %15 : vector<2x16xf32>
    %c0_18 = arith.constant 0 : index
    %c0_19 = arith.constant 0 : index
    %17 = vector.load %arg9[%c0_18, %c0_19] : memref<32x16xf32, #tpu.memory_space<vmem>>, vector<32x16xf32>
    %cst_20 = arith.constant dense<0.000000e+00> : vector<2x16xf32>
    %18 = tpu.matmul %11, %17, %cst_20 {dimension_numbers = #tpu.dot_dimension_numbers<[1], [0], [0], [1], [0, 0, 1, 1], [], []>} : vector<2x32xf32>, vector<32x16xf32>, vector<2x16xf32> -> vector<2x16xf32>
    %c0_21 = arith.constant 0 : index
    %c0_22 = arith.constant 0 : index
    %19 = vector.load %arg10[%c0_21, %c0_22] : memref<1x16xf32, #tpu.memory_space<vmem>>, vector<1x16xf32>
    %20 = vector.broadcast %19 : vector<1x16xf32> to vector<2x16xf32>
    %21 = arith.addf %18, %20 : vector<2x16xf32>
    %c0_23 = arith.constant 0 : index
    %c0_24 = arith.constant 0 : index
    %22 = vector.load %arg4[%c0_23, %c0_24] : memref<10x2xf32, #tpu.memory_space<vmem>>, vector<10x2xf32>
    %cst_25 = arith.constant dense<0.000000e+00> : vector<10x16xf32>
    %23 = tpu.matmul %22, %16, %cst_25 {dimension_numbers = #tpu.dot_dimension_numbers<[1], [0], [0], [1], [0, 0, 1, 1], [], []>} : vector<10x2xf32>, vector<2x16xf32>, vector<10x16xf32> -> vector<10x16xf32>
    %24 = arith.mulf %23, %10 : vector<10x16xf32>
    %c0_26 = arith.constant 0 : index
    %c0_27 = arith.constant 0 : index
    %25 = vector.load %arg4[%c0_26, %c0_27] : memref<10x2xf32, #tpu.memory_space<vmem>>, vector<10x2xf32>
    %cst_28 = arith.constant dense<0.000000e+00> : vector<10x16xf32>
    %26 = tpu.matmul %25, %21, %cst_28 {dimension_numbers = #tpu.dot_dimension_numbers<[1], [0], [0], [1], [0, 0, 1, 1], [], []>} : vector<10x2xf32>, vector<2x16xf32>, vector<10x16xf32> -> vector<10x16xf32>
    %27 = arith.addf %24, %26 : vector<10x16xf32>
    %c0_29 = arith.constant 0 : index
    %c0_30 = arith.constant 0 : index
    %c0_31 = arith.constant 0 : index
    %28 = vector.load %arg11[%c0_29, %c0_30, %c0_31] : memref<3x16x48xf32, #tpu.memory_space<vmem>>, vector<1x16x48xf32>
    %29 = vector.shape_cast %28 : vector<1x16x48xf32> to vector<16x48xf32>
    %cst_32 = arith.constant dense<0.000000e+00> : vector<10x48xf32>
    %30 = tpu.matmul %27, %29, %cst_32 {dimension_numbers = #tpu.dot_dimension_numbers<[1], [0], [0], [1], [0, 0, 1, 1], [], []>} : vector<10x16xf32>, vector<16x48xf32>, vector<10x48xf32> -> vector<10x48xf32>
    %c0_33 = arith.constant 0 : index
    %c0_34 = arith.constant 0 : index
    %c0_35 = arith.constant 0 : index
    %31 = vector.load %arg12[%c0_33, %c0_34, %c0_35] : memref<3x1x48xf32, #tpu.memory_space<vmem>>, vector<1x1x48xf32>
    %32 = vector.shape_cast %31 : vector<1x1x48xf32> to vector<1x48xf32>
    %33 = vector.broadcast %32 : vector<1x48xf32> to vector<10x48xf32>
    %34 = arith.addf %30, %33 : vector<10x48xf32>
    %35 = vector.extract_strided_slice %34 {offsets = [0, 0], sizes = [10, 16], strides = [1, 1]} : vector<10x48xf32> to vector<10x16xf32>
    %36 = vector.extract_strided_slice %34 {offsets = [0, 16], sizes = [10, 16], strides = [1, 1]} : vector<10x48xf32> to vector<10x16xf32>
    %37 = vector.extract_strided_slice %34 {offsets = [0, 32], sizes = [10, 16], strides = [1, 1]} : vector<10x48xf32> to vector<10x16xf32>
    %cst_36 = arith.constant 0.000000e+00 : f32
    %38 = vector.broadcast %cst_36 : f32 to vector<10x16xf32>
    %39 = vector.extract_strided_slice %1 {offsets = [0, 0], sizes = [1, 16], strides = [1, 1]} : vector<4x16xf32> to vector<1x16xf32>
    %40 = vector.broadcast %39 : vector<1x16xf32> to vector<10x16xf32>
    %41 = arith.mulf %35, %40 : vector<10x16xf32>
    %cst_37 = arith.constant dense<0.000000e+00> : vector<10x10xf32>
    %42 = tpu.matmul %41, %36, %cst_37 {dimension_numbers = #tpu.dot_dimension_numbers<[1], [1], [0], [0], [0, 0, 1, 0], [], []>} : vector<10x16xf32>, vector<10x16xf32>, vector<10x10xf32> -> vector<10x10xf32>
    %43 = arith.addf %42, %0 : vector<10x10xf32>
    %cst_38 = arith.constant dense<0xFF800000> : vector<10xf32>
    %44 = vector.multi_reduction <maximumf>, %43, %cst_38 [1] : vector<10x10xf32> to vector<10xf32>
    %45 = vector.shape_cast %44 : vector<10xf32> to vector<10x1xf32>
    %46 = vector.broadcast %45 : vector<10x1xf32> to vector<10x10xf32>
    %47 = arith.subf %43, %46 : vector<10x10xf32>
    %48 = math.exp %47 : vector<10x10xf32>
    %cst_39 = arith.constant dense<0.000000e+00> : vector<10xf32>
    %49 = vector.multi_reduction <add>, %48, %cst_39 [1] : vector<10x10xf32> to vector<10xf32>
    %50 = vector.shape_cast %49 : vector<10xf32> to vector<10x1xf32>
    %51 = tpu.reciprocal %50 {approx = true} : vector<10x1xf32> -> vector<10x1xf32>
    %52 = vector.broadcast %51 : vector<10x1xf32> to vector<10x10xf32>
    %53 = arith.mulf %48, %52 : vector<10x10xf32>
    %54 = vector.broadcast %39 : vector<1x16xf32> to vector<10x16xf32>
    %55 = arith.mulf %37, %54 : vector<10x16xf32>
    %cst_40 = arith.constant dense<0.000000e+00> : vector<10x16xf32>
    %56 = tpu.matmul %53, %55, %cst_40 {dimension_numbers = #tpu.dot_dimension_numbers<[1], [0], [0], [1], [0, 0, 1, 1], [], []>} : vector<10x10xf32>, vector<10x16xf32>, vector<10x16xf32> -> vector<10x16xf32>
    %57 = arith.addf %38, %56 : vector<10x16xf32>
    %58 = vector.extract_strided_slice %1 {offsets = [1, 0], sizes = [1, 16], strides = [1, 1]} : vector<4x16xf32> to vector<1x16xf32>
    %59 = vector.broadcast %58 : vector<1x16xf32> to vector<10x16xf32>
    %60 = arith.mulf %35, %59 : vector<10x16xf32>
    %cst_41 = arith.constant dense<0.000000e+00> : vector<10x10xf32>
    %61 = tpu.matmul %60, %36, %cst_41 {dimension_numbers = #tpu.dot_dimension_numbers<[1], [1], [0], [0], [0, 0, 1, 0], [], []>} : vector<10x16xf32>, vector<10x16xf32>, vector<10x10xf32> -> vector<10x10xf32>
    %62 = arith.addf %61, %0 : vector<10x10xf32>
    %cst_42 = arith.constant dense<0xFF800000> : vector<10xf32>
    %63 = vector.multi_reduction <maximumf>, %62, %cst_42 [1] : vector<10x10xf32> to vector<10xf32>
    %64 = vector.shape_cast %63 : vector<10xf32> to vector<10x1xf32>
    %65 = vector.broadcast %64 : vector<10x1xf32> to vector<10x10xf32>
    %66 = arith.subf %62, %65 : vector<10x10xf32>
    %67 = math.exp %66 : vector<10x10xf32>
    %cst_43 = arith.constant dense<0.000000e+00> : vector<10xf32>
    %68 = vector.multi_reduction <add>, %67, %cst_43 [1] : vector<10x10xf32> to vector<10xf32>
    %69 = vector.shape_cast %68 : vector<10xf32> to vector<10x1xf32>
    %70 = tpu.reciprocal %69 {approx = true} : vector<10x1xf32> -> vector<10x1xf32>
    %71 = vector.broadcast %70 : vector<10x1xf32> to vector<10x10xf32>
    %72 = arith.mulf %67, %71 : vector<10x10xf32>
    %73 = vector.broadcast %58 : vector<1x16xf32> to vector<10x16xf32>
    %74 = arith.mulf %37, %73 : vector<10x16xf32>
    %cst_44 = arith.constant dense<0.000000e+00> : vector<10x16xf32>
    %75 = tpu.matmul %72, %74, %cst_44 {dimension_numbers = #tpu.dot_dimension_numbers<[1], [0], [0], [1], [0, 0, 1, 1], [], []>} : vector<10x10xf32>, vector<10x16xf32>, vector<10x16xf32> -> vector<10x16xf32>
    %76 = arith.addf %57, %75 : vector<10x16xf32>
    %77 = vector.extract_strided_slice %1 {offsets = [2, 0], sizes = [1, 16], strides = [1, 1]} : vector<4x16xf32> to vector<1x16xf32>
    %78 = vector.broadcast %77 : vector<1x16xf32> to vector<10x16xf32>
    %79 = arith.mulf %35, %78 : vector<10x16xf32>
    %cst_45 = arith.constant dense<0.000000e+00> : vector<10x10xf32>
    %80 = tpu.matmul %79, %36, %cst_45 {dimension_numbers = #tpu.dot_dimension_numbers<[1], [1], [0], [0], [0, 0, 1, 0], [], []>} : vector<10x16xf32>, vector<10x16xf32>, vector<10x10xf32> -> vector<10x10xf32>
    %81 = arith.addf %80, %0 : vector<10x10xf32>
    %cst_46 = arith.constant dense<0xFF800000> : vector<10xf32>
    %82 = vector.multi_reduction <maximumf>, %81, %cst_46 [1] : vector<10x10xf32> to vector<10xf32>
    %83 = vector.shape_cast %82 : vector<10xf32> to vector<10x1xf32>
    %84 = vector.broadcast %83 : vector<10x1xf32> to vector<10x10xf32>
    %85 = arith.subf %81, %84 : vector<10x10xf32>
    %86 = math.exp %85 : vector<10x10xf32>
    %cst_47 = arith.constant dense<0.000000e+00> : vector<10xf32>
    %87 = vector.multi_reduction <add>, %86, %cst_47 [1] : vector<10x10xf32> to vector<10xf32>
    %88 = vector.shape_cast %87 : vector<10xf32> to vector<10x1xf32>
    %89 = tpu.reciprocal %88 {approx = true} : vector<10x1xf32> -> vector<10x1xf32>
    %90 = vector.broadcast %89 : vector<10x1xf32> to vector<10x10xf32>
    %91 = arith.mulf %86, %90 : vector<10x10xf32>
    %92 = vector.broadcast %77 : vector<1x16xf32> to vector<10x16xf32>
    %93 = arith.mulf %37, %92 : vector<10x16xf32>
    %cst_48 = arith.constant dense<0.000000e+00> : vector<10x16xf32>
    %94 = tpu.matmul %91, %93, %cst_48 {dimension_numbers = #tpu.dot_dimension_numbers<[1], [0], [0], [1], [0, 0, 1, 1], [], []>} : vector<10x10xf32>, vector<10x16xf32>, vector<10x16xf32> -> vector<10x16xf32>
    %95 = arith.addf %76, %94 : vector<10x16xf32>
    %96 = vector.extract_strided_slice %1 {offsets = [3, 0], sizes = [1, 16], strides = [1, 1]} : vector<4x16xf32> to vector<1x16xf32>
    %97 = vector.broadcast %96 : vector<1x16xf32> to vector<10x16xf32>
    %98 = arith.mulf %35, %97 : vector<10x16xf32>
    %cst_49 = arith.constant dense<0.000000e+00> : vector<10x10xf32>
    %99 = tpu.matmul %98, %36, %cst_49 {dimension_numbers = #tpu.dot_dimension_numbers<[1], [1], [0], [0], [0, 0, 1, 0], [], []>} : vector<10x16xf32>, vector<10x16xf32>, vector<10x10xf32> -> vector<10x10xf32>
    %100 = arith.addf %99, %0 : vector<10x10xf32>
    %cst_50 = arith.constant dense<0xFF800000> : vector<10xf32>
    %101 = vector.multi_reduction <maximumf>, %100, %cst_50 [1] : vector<10x10xf32> to vector<10xf32>
    %102 = vector.shape_cast %101 : vector<10xf32> to vector<10x1xf32>
    %103 = vector.broadcast %102 : vector<10x1xf32> to vector<10x10xf32>
    %104 = arith.subf %100, %103 : vector<10x10xf32>
    %105 = math.exp %104 : vector<10x10xf32>
    %cst_51 = arith.constant dense<0.000000e+00> : vector<10xf32>
    %106 = vector.multi_reduction <add>, %105, %cst_51 [1] : vector<10x10xf32> to vector<10xf32>
    %107 = vector.shape_cast %106 : vector<10xf32> to vector<10x1xf32>
    %108 = tpu.reciprocal %107 {approx = true} : vector<10x1xf32> -> vector<10x1xf32>
    %109 = vector.broadcast %108 : vector<10x1xf32> to vector<10x10xf32>
    %110 = arith.mulf %105, %109 : vector<10x10xf32>
    %111 = vector.broadcast %96 : vector<1x16xf32> to vector<10x16xf32>
    %112 = arith.mulf %37, %111 : vector<10x16xf32>
    %cst_52 = arith.constant dense<0.000000e+00> : vector<10x16xf32>
    %113 = tpu.matmul %110, %112, %cst_52 {dimension_numbers = #tpu.dot_dimension_numbers<[1], [0], [0], [1], [0, 0, 1, 1], [], []>} : vector<10x10xf32>, vector<10x16xf32>, vector<10x16xf32> -> vector<10x16xf32>
    %114 = arith.addf %95, %113 : vector<10x16xf32>
    %c0_53 = arith.constant 0 : index
    %c0_54 = arith.constant 0 : index
    %c0_55 = arith.constant 0 : index
    %115 = vector.load %arg13[%c0_53, %c0_54, %c0_55] : memref<3x16x16xf32, #tpu.memory_space<vmem>>, vector<1x16x16xf32>
    %116 = vector.shape_cast %115 : vector<1x16x16xf32> to vector<16x16xf32>
    %cst_56 = arith.constant dense<0.000000e+00> : vector<10x16xf32>
    %117 = tpu.matmul %114, %116, %cst_56 {dimension_numbers = #tpu.dot_dimension_numbers<[1], [0], [0], [1], [0, 0, 1, 1], [], []>} : vector<10x16xf32>, vector<16x16xf32>, vector<10x16xf32> -> vector<10x16xf32>
    %c0_57 = arith.constant 0 : index
    %c0_58 = arith.constant 0 : index
    %c0_59 = arith.constant 0 : index
    %118 = vector.load %arg14[%c0_57, %c0_58, %c0_59] : memref<3x1x16xf32, #tpu.memory_space<vmem>>, vector<1x1x16xf32>
    %119 = vector.shape_cast %118 : vector<1x1x16xf32> to vector<1x16xf32>
    %120 = vector.broadcast %119 : vector<1x16xf32> to vector<10x16xf32>
    %121 = arith.addf %117, %120 : vector<10x16xf32>
    %122 = arith.addf %27, %121 : vector<10x16xf32>
    %c0_60 = arith.constant 0 : index
    %c0_61 = arith.constant 0 : index
    %c0_62 = arith.constant 0 : index
    %123 = vector.load %arg15[%c0_60, %c0_61, %c0_62] : memref<3x1x16xf32, #tpu.memory_space<vmem>>, vector<1x1x16xf32>
    %124 = vector.shape_cast %123 : vector<1x1x16xf32> to vector<1x16xf32>
    %c0_63 = arith.constant 0 : index
    %c0_64 = arith.constant 0 : index
    %c0_65 = arith.constant 0 : index
    %125 = vector.load %arg16[%c0_63, %c0_64, %c0_65] : memref<3x1x16xf32, #tpu.memory_space<vmem>>, vector<1x1x16xf32>
    %126 = vector.shape_cast %125 : vector<1x1x16xf32> to vector<1x16xf32>
    %cst_66 = arith.constant dense<0.000000e+00> : vector<10xf32>
    %127 = vector.multi_reduction <add>, %122, %cst_66 [1] : vector<10x16xf32> to vector<10xf32>
    %128 = vector.shape_cast %127 : vector<10xf32> to vector<10x1xf32>
    %cst_67 = arith.constant 1.600000e+01 : f32
    %129 = vector.broadcast %cst_67 : f32 to vector<10x1xf32>
    %130 = arith.divf %128, %129 : vector<10x1xf32>
    %131 = vector.broadcast %130 : vector<10x1xf32> to vector<10x16xf32>
    %132 = arith.subf %122, %131 : vector<10x16xf32>
    %133 = arith.mulf %132, %132 : vector<10x16xf32>
    %cst_68 = arith.constant dense<0.000000e+00> : vector<10xf32>
    %134 = vector.multi_reduction <add>, %133, %cst_68 [1] : vector<10x16xf32> to vector<10xf32>
    %135 = vector.shape_cast %134 : vector<10xf32> to vector<10x1xf32>
    %cst_69 = arith.constant 1.600000e+01 : f32
    %136 = vector.broadcast %cst_69 : f32 to vector<10x1xf32>
    %137 = arith.divf %135, %136 : vector<10x1xf32>
    %cst_70 = arith.constant 9.99999974E-6 : f32
    %138 = vector.broadcast %cst_70 : f32 to vector<10x1xf32>
    %139 = arith.addf %137, %138 : vector<10x1xf32>
    %140 = math.rsqrt %139 : vector<10x1xf32>
    %141 = vector.broadcast %140 : vector<10x1xf32> to vector<10x16xf32>
    %142 = arith.mulf %132, %141 : vector<10x16xf32>
    %143 = vector.broadcast %124 : vector<1x16xf32> to vector<10x16xf32>
    %144 = arith.mulf %142, %143 : vector<10x16xf32>
    %145 = vector.broadcast %126 : vector<1x16xf32> to vector<10x16xf32>
    %146 = arith.addf %144, %145 : vector<10x16xf32>
    %c0_71 = arith.constant 0 : index
    %c0_72 = arith.constant 0 : index
    %c0_73 = arith.constant 0 : index
    %147 = vector.load %arg17[%c0_71, %c0_72, %c0_73] : memref<3x16x64xf32, #tpu.memory_space<vmem>>, vector<1x16x64xf32>
    %148 = vector.shape_cast %147 : vector<1x16x64xf32> to vector<16x64xf32>
    %cst_74 = arith.constant dense<0.000000e+00> : vector<10x64xf32>
    %149 = tpu.matmul %146, %148, %cst_74 {dimension_numbers = #tpu.dot_dimension_numbers<[1], [0], [0], [1], [0, 0, 1, 1], [], []>} : vector<10x16xf32>, vector<16x64xf32>, vector<10x64xf32> -> vector<10x64xf32>
    %c0_75 = arith.constant 0 : index
    %c0_76 = arith.constant 0 : index
    %c0_77 = arith.constant 0 : index
    %150 = vector.load %arg18[%c0_75, %c0_76, %c0_77] : memref<3x1x64xf32, #tpu.memory_space<vmem>>, vector<1x1x64xf32>
    %151 = vector.shape_cast %150 : vector<1x1x64xf32> to vector<1x64xf32>
    %152 = vector.broadcast %151 : vector<1x64xf32> to vector<10x64xf32>
    %153 = arith.addf %149, %152 : vector<10x64xf32>
    %cst_78 = arith.constant 0.000000e+00 : f32
    %154 = vector.broadcast %cst_78 : f32 to vector<10x64xf32>
    %155 = arith.maximumf %153, %154 : vector<10x64xf32>
    %c0_79 = arith.constant 0 : index
    %c0_80 = arith.constant 0 : index
    %c0_81 = arith.constant 0 : index
    %156 = vector.load %arg19[%c0_79, %c0_80, %c0_81] : memref<3x64x16xf32, #tpu.memory_space<vmem>>, vector<1x64x16xf32>
    %157 = vector.shape_cast %156 : vector<1x64x16xf32> to vector<64x16xf32>
    %cst_82 = arith.constant dense<0.000000e+00> : vector<10x16xf32>
    %158 = tpu.matmul %155, %157, %cst_82 {dimension_numbers = #tpu.dot_dimension_numbers<[1], [0], [0], [1], [0, 0, 1, 1], [], []>} : vector<10x64xf32>, vector<64x16xf32>, vector<10x16xf32> -> vector<10x16xf32>
    %c0_83 = arith.constant 0 : index
    %c0_84 = arith.constant 0 : index
    %c0_85 = arith.constant 0 : index
    %159 = vector.load %arg20[%c0_83, %c0_84, %c0_85] : memref<3x1x16xf32, #tpu.memory_space<vmem>>, vector<1x1x16xf32>
    %160 = vector.shape_cast %159 : vector<1x1x16xf32> to vector<1x16xf32>
    %161 = vector.broadcast %160 : vector<1x16xf32> to vector<10x16xf32>
    %162 = arith.addf %158, %161 : vector<10x16xf32>
    %163 = arith.addf %146, %162 : vector<10x16xf32>
    %c0_86 = arith.constant 0 : index
    %c0_87 = arith.constant 0 : index
    %c0_88 = arith.constant 0 : index
    %164 = vector.load %arg21[%c0_86, %c0_87, %c0_88] : memref<3x1x16xf32, #tpu.memory_space<vmem>>, vector<1x1x16xf32>
    %165 = vector.shape_cast %164 : vector<1x1x16xf32> to vector<1x16xf32>
    %c0_89 = arith.constant 0 : index
    %c0_90 = arith.constant 0 : index
    %c0_91 = arith.constant 0 : index
    %166 = vector.load %arg22[%c0_89, %c0_90, %c0_91] : memref<3x1x16xf32, #tpu.memory_space<vmem>>, vector<1x1x16xf32>
    %167 = vector.shape_cast %166 : vector<1x1x16xf32> to vector<1x16xf32>
    %cst_92 = arith.constant dense<0.000000e+00> : vector<10xf32>
    %168 = vector.multi_reduction <add>, %163, %cst_92 [1] : vector<10x16xf32> to vector<10xf32>
    %169 = vector.shape_cast %168 : vector<10xf32> to vector<10x1xf32>
    %cst_93 = arith.constant 1.600000e+01 : f32
    %170 = vector.broadcast %cst_93 : f32 to vector<10x1xf32>
    %171 = arith.divf %169, %170 : vector<10x1xf32>
    %172 = vector.broadcast %171 : vector<10x1xf32> to vector<10x16xf32>
    %173 = arith.subf %163, %172 : vector<10x16xf32>
    %174 = arith.mulf %173, %173 : vector<10x16xf32>
    %cst_94 = arith.constant dense<0.000000e+00> : vector<10xf32>
    %175 = vector.multi_reduction <add>, %174, %cst_94 [1] : vector<10x16xf32> to vector<10xf32>
    %176 = vector.shape_cast %175 : vector<10xf32> to vector<10x1xf32>
    %cst_95 = arith.constant 1.600000e+01 : f32
    %177 = vector.broadcast %cst_95 : f32 to vector<10x1xf32>
    %178 = arith.divf %176, %177 : vector<10x1xf32>
    %cst_96 = arith.constant 9.99999974E-6 : f32
    %179 = vector.broadcast %cst_96 : f32 to vector<10x1xf32>
    %180 = arith.addf %178, %179 : vector<10x1xf32>
    %181 = math.rsqrt %180 : vector<10x1xf32>
    %182 = vector.broadcast %181 : vector<10x1xf32> to vector<10x16xf32>
    %183 = arith.mulf %173, %182 : vector<10x16xf32>
    %184 = vector.broadcast %165 : vector<1x16xf32> to vector<10x16xf32>
    %185 = arith.mulf %183, %184 : vector<10x16xf32>
    %186 = vector.broadcast %167 : vector<1x16xf32> to vector<10x16xf32>
    %187 = arith.addf %185, %186 : vector<10x16xf32>
    %c1 = arith.constant 1 : index
    %c0_97 = arith.constant 0 : index
    %c0_98 = arith.constant 0 : index
    %188 = vector.load %arg1[%c1, %c0_97, %c0_98] : memref<3x10x32xf32, #tpu.memory_space<vmem>>, vector<1x10x32xf32>
    %189 = vector.shape_cast %188 : vector<1x10x32xf32> to vector<10x32xf32>
    %c1_99 = arith.constant 1 : index
    %c0_100 = arith.constant 0 : index
    %c0_101 = arith.constant 0 : index
    %190 = vector.load %arg5[%c1_99, %c0_100, %c0_101] : memref<3x32x16xf32, #tpu.memory_space<vmem>>, vector<1x32x16xf32>
    %191 = vector.shape_cast %190 : vector<1x32x16xf32> to vector<32x16xf32>
    %cst_102 = arith.constant dense<0.000000e+00> : vector<10x16xf32>
    %192 = tpu.matmul %189, %191, %cst_102 {dimension_numbers = #tpu.dot_dimension_numbers<[1], [0], [0], [1], [0, 0, 1, 1], [], []>} : vector<10x32xf32>, vector<32x16xf32>, vector<10x16xf32> -> vector<10x16xf32>
    %c1_103 = arith.constant 1 : index
    %c0_104 = arith.constant 0 : index
    %c0_105 = arith.constant 0 : index
    %193 = vector.load %arg6[%c1_103, %c0_104, %c0_105] : memref<3x1x16xf32, #tpu.memory_space<vmem>>, vector<1x1x16xf32>
    %194 = vector.shape_cast %193 : vector<1x1x16xf32> to vector<1x16xf32>
    %195 = vector.broadcast %194 : vector<1x16xf32> to vector<10x16xf32>
    %196 = arith.addf %192, %195 : vector<10x16xf32>
    %197 = arith.addf %187, %196 : vector<10x16xf32>
    %c1_106 = arith.constant 1 : index
    %c0_107 = arith.constant 0 : index
    %c0_108 = arith.constant 0 : index
    %198 = vector.load %arg11[%c1_106, %c0_107, %c0_108] : memref<3x16x48xf32, #tpu.memory_space<vmem>>, vector<1x16x48xf32>
    %199 = vector.shape_cast %198 : vector<1x16x48xf32> to vector<16x48xf32>
    %cst_109 = arith.constant dense<0.000000e+00> : vector<10x48xf32>
    %200 = tpu.matmul %197, %199, %cst_109 {dimension_numbers = #tpu.dot_dimension_numbers<[1], [0], [0], [1], [0, 0, 1, 1], [], []>} : vector<10x16xf32>, vector<16x48xf32>, vector<10x48xf32> -> vector<10x48xf32>
    %c1_110 = arith.constant 1 : index
    %c0_111 = arith.constant 0 : index
    %c0_112 = arith.constant 0 : index
    %201 = vector.load %arg12[%c1_110, %c0_111, %c0_112] : memref<3x1x48xf32, #tpu.memory_space<vmem>>, vector<1x1x48xf32>
    %202 = vector.shape_cast %201 : vector<1x1x48xf32> to vector<1x48xf32>
    %203 = vector.broadcast %202 : vector<1x48xf32> to vector<10x48xf32>
    %204 = arith.addf %200, %203 : vector<10x48xf32>
    %205 = vector.extract_strided_slice %204 {offsets = [0, 0], sizes = [10, 16], strides = [1, 1]} : vector<10x48xf32> to vector<10x16xf32>
    %206 = vector.extract_strided_slice %204 {offsets = [0, 16], sizes = [10, 16], strides = [1, 1]} : vector<10x48xf32> to vector<10x16xf32>
    %207 = vector.extract_strided_slice %204 {offsets = [0, 32], sizes = [10, 16], strides = [1, 1]} : vector<10x48xf32> to vector<10x16xf32>
    %cst_113 = arith.constant 0.000000e+00 : f32
    %208 = vector.broadcast %cst_113 : f32 to vector<10x16xf32>
    %209 = vector.extract_strided_slice %1 {offsets = [0, 0], sizes = [1, 16], strides = [1, 1]} : vector<4x16xf32> to vector<1x16xf32>
    %210 = vector.broadcast %209 : vector<1x16xf32> to vector<10x16xf32>
    %211 = arith.mulf %205, %210 : vector<10x16xf32>
    %cst_114 = arith.constant dense<0.000000e+00> : vector<10x10xf32>
    %212 = tpu.matmul %211, %206, %cst_114 {dimension_numbers = #tpu.dot_dimension_numbers<[1], [1], [0], [0], [0, 0, 1, 0], [], []>} : vector<10x16xf32>, vector<10x16xf32>, vector<10x10xf32> -> vector<10x10xf32>
    %213 = arith.addf %212, %0 : vector<10x10xf32>
    %cst_115 = arith.constant dense<0xFF800000> : vector<10xf32>
    %214 = vector.multi_reduction <maximumf>, %213, %cst_115 [1] : vector<10x10xf32> to vector<10xf32>
    %215 = vector.shape_cast %214 : vector<10xf32> to vector<10x1xf32>
    %216 = vector.broadcast %215 : vector<10x1xf32> to vector<10x10xf32>
    %217 = arith.subf %213, %216 : vector<10x10xf32>
    %218 = math.exp %217 : vector<10x10xf32>
    %cst_116 = arith.constant dense<0.000000e+00> : vector<10xf32>
    %219 = vector.multi_reduction <add>, %218, %cst_116 [1] : vector<10x10xf32> to vector<10xf32>
    %220 = vector.shape_cast %219 : vector<10xf32> to vector<10x1xf32>
    %221 = tpu.reciprocal %220 {approx = true} : vector<10x1xf32> -> vector<10x1xf32>
    %222 = vector.broadcast %221 : vector<10x1xf32> to vector<10x10xf32>
    %223 = arith.mulf %218, %222 : vector<10x10xf32>
    %224 = vector.broadcast %209 : vector<1x16xf32> to vector<10x16xf32>
    %225 = arith.mulf %207, %224 : vector<10x16xf32>
    %cst_117 = arith.constant dense<0.000000e+00> : vector<10x16xf32>
    %226 = tpu.matmul %223, %225, %cst_117 {dimension_numbers = #tpu.dot_dimension_numbers<[1], [0], [0], [1], [0, 0, 1, 1], [], []>} : vector<10x10xf32>, vector<10x16xf32>, vector<10x16xf32> -> vector<10x16xf32>
    %227 = arith.addf %208, %226 : vector<10x16xf32>
    %228 = vector.extract_strided_slice %1 {offsets = [1, 0], sizes = [1, 16], strides = [1, 1]} : vector<4x16xf32> to vector<1x16xf32>
    %229 = vector.broadcast %228 : vector<1x16xf32> to vector<10x16xf32>
    %230 = arith.mulf %205, %229 : vector<10x16xf32>
    %cst_118 = arith.constant dense<0.000000e+00> : vector<10x10xf32>
    %231 = tpu.matmul %230, %206, %cst_118 {dimension_numbers = #tpu.dot_dimension_numbers<[1], [1], [0], [0], [0, 0, 1, 0], [], []>} : vector<10x16xf32>, vector<10x16xf32>, vector<10x10xf32> -> vector<10x10xf32>
    %232 = arith.addf %231, %0 : vector<10x10xf32>
    %cst_119 = arith.constant dense<0xFF800000> : vector<10xf32>
    %233 = vector.multi_reduction <maximumf>, %232, %cst_119 [1] : vector<10x10xf32> to vector<10xf32>
    %234 = vector.shape_cast %233 : vector<10xf32> to vector<10x1xf32>
    %235 = vector.broadcast %234 : vector<10x1xf32> to vector<10x10xf32>
    %236 = arith.subf %232, %235 : vector<10x10xf32>
    %237 = math.exp %236 : vector<10x10xf32>
    %cst_120 = arith.constant dense<0.000000e+00> : vector<10xf32>
    %238 = vector.multi_reduction <add>, %237, %cst_120 [1] : vector<10x10xf32> to vector<10xf32>
    %239 = vector.shape_cast %238 : vector<10xf32> to vector<10x1xf32>
    %240 = tpu.reciprocal %239 {approx = true} : vector<10x1xf32> -> vector<10x1xf32>
    %241 = vector.broadcast %240 : vector<10x1xf32> to vector<10x10xf32>
    %242 = arith.mulf %237, %241 : vector<10x10xf32>
    %243 = vector.broadcast %228 : vector<1x16xf32> to vector<10x16xf32>
    %244 = arith.mulf %207, %243 : vector<10x16xf32>
    %cst_121 = arith.constant dense<0.000000e+00> : vector<10x16xf32>
    %245 = tpu.matmul %242, %244, %cst_121 {dimension_numbers = #tpu.dot_dimension_numbers<[1], [0], [0], [1], [0, 0, 1, 1], [], []>} : vector<10x10xf32>, vector<10x16xf32>, vector<10x16xf32> -> vector<10x16xf32>
    %246 = arith.addf %227, %245 : vector<10x16xf32>
    %247 = vector.extract_strided_slice %1 {offsets = [2, 0], sizes = [1, 16], strides = [1, 1]} : vector<4x16xf32> to vector<1x16xf32>
    %248 = vector.broadcast %247 : vector<1x16xf32> to vector<10x16xf32>
    %249 = arith.mulf %205, %248 : vector<10x16xf32>
    %cst_122 = arith.constant dense<0.000000e+00> : vector<10x10xf32>
    %250 = tpu.matmul %249, %206, %cst_122 {dimension_numbers = #tpu.dot_dimension_numbers<[1], [1], [0], [0], [0, 0, 1, 0], [], []>} : vector<10x16xf32>, vector<10x16xf32>, vector<10x10xf32> -> vector<10x10xf32>
    %251 = arith.addf %250, %0 : vector<10x10xf32>
    %cst_123 = arith.constant dense<0xFF800000> : vector<10xf32>
    %252 = vector.multi_reduction <maximumf>, %251, %cst_123 [1] : vector<10x10xf32> to vector<10xf32>
    %253 = vector.shape_cast %252 : vector<10xf32> to vector<10x1xf32>
    %254 = vector.broadcast %253 : vector<10x1xf32> to vector<10x10xf32>
    %255 = arith.subf %251, %254 : vector<10x10xf32>
    %256 = math.exp %255 : vector<10x10xf32>
    %cst_124 = arith.constant dense<0.000000e+00> : vector<10xf32>
    %257 = vector.multi_reduction <add>, %256, %cst_124 [1] : vector<10x10xf32> to vector<10xf32>
    %258 = vector.shape_cast %257 : vector<10xf32> to vector<10x1xf32>
    %259 = tpu.reciprocal %258 {approx = true} : vector<10x1xf32> -> vector<10x1xf32>
    %260 = vector.broadcast %259 : vector<10x1xf32> to vector<10x10xf32>
    %261 = arith.mulf %256, %260 : vector<10x10xf32>
    %262 = vector.broadcast %247 : vector<1x16xf32> to vector<10x16xf32>
    %263 = arith.mulf %207, %262 : vector<10x16xf32>
    %cst_125 = arith.constant dense<0.000000e+00> : vector<10x16xf32>
    %264 = tpu.matmul %261, %263, %cst_125 {dimension_numbers = #tpu.dot_dimension_numbers<[1], [0], [0], [1], [0, 0, 1, 1], [], []>} : vector<10x10xf32>, vector<10x16xf32>, vector<10x16xf32> -> vector<10x16xf32>
    %265 = arith.addf %246, %264 : vector<10x16xf32>
    %266 = vector.extract_strided_slice %1 {offsets = [3, 0], sizes = [1, 16], strides = [1, 1]} : vector<4x16xf32> to vector<1x16xf32>
    %267 = vector.broadcast %266 : vector<1x16xf32> to vector<10x16xf32>
    %268 = arith.mulf %205, %267 : vector<10x16xf32>
    %cst_126 = arith.constant dense<0.000000e+00> : vector<10x10xf32>
    %269 = tpu.matmul %268, %206, %cst_126 {dimension_numbers = #tpu.dot_dimension_numbers<[1], [1], [0], [0], [0, 0, 1, 0], [], []>} : vector<10x16xf32>, vector<10x16xf32>, vector<10x10xf32> -> vector<10x10xf32>
    %270 = arith.addf %269, %0 : vector<10x10xf32>
    %cst_127 = arith.constant dense<0xFF800000> : vector<10xf32>
    %271 = vector.multi_reduction <maximumf>, %270, %cst_127 [1] : vector<10x10xf32> to vector<10xf32>
    %272 = vector.shape_cast %271 : vector<10xf32> to vector<10x1xf32>
    %273 = vector.broadcast %272 : vector<10x1xf32> to vector<10x10xf32>
    %274 = arith.subf %270, %273 : vector<10x10xf32>
    %275 = math.exp %274 : vector<10x10xf32>
    %cst_128 = arith.constant dense<0.000000e+00> : vector<10xf32>
    %276 = vector.multi_reduction <add>, %275, %cst_128 [1] : vector<10x10xf32> to vector<10xf32>
    %277 = vector.shape_cast %276 : vector<10xf32> to vector<10x1xf32>
    %278 = tpu.reciprocal %277 {approx = true} : vector<10x1xf32> -> vector<10x1xf32>
    %279 = vector.broadcast %278 : vector<10x1xf32> to vector<10x10xf32>
    %280 = arith.mulf %275, %279 : vector<10x10xf32>
    %281 = vector.broadcast %266 : vector<1x16xf32> to vector<10x16xf32>
    %282 = arith.mulf %207, %281 : vector<10x16xf32>
    %cst_129 = arith.constant dense<0.000000e+00> : vector<10x16xf32>
    %283 = tpu.matmul %280, %282, %cst_129 {dimension_numbers = #tpu.dot_dimension_numbers<[1], [0], [0], [1], [0, 0, 1, 1], [], []>} : vector<10x10xf32>, vector<10x16xf32>, vector<10x16xf32> -> vector<10x16xf32>
    %284 = arith.addf %265, %283 : vector<10x16xf32>
    %c1_130 = arith.constant 1 : index
    %c0_131 = arith.constant 0 : index
    %c0_132 = arith.constant 0 : index
    %285 = vector.load %arg13[%c1_130, %c0_131, %c0_132] : memref<3x16x16xf32, #tpu.memory_space<vmem>>, vector<1x16x16xf32>
    %286 = vector.shape_cast %285 : vector<1x16x16xf32> to vector<16x16xf32>
    %cst_133 = arith.constant dense<0.000000e+00> : vector<10x16xf32>
    %287 = tpu.matmul %284, %286, %cst_133 {dimension_numbers = #tpu.dot_dimension_numbers<[1], [0], [0], [1], [0, 0, 1, 1], [], []>} : vector<10x16xf32>, vector<16x16xf32>, vector<10x16xf32> -> vector<10x16xf32>
    %c1_134 = arith.constant 1 : index
    %c0_135 = arith.constant 0 : index
    %c0_136 = arith.constant 0 : index
    %288 = vector.load %arg14[%c1_134, %c0_135, %c0_136] : memref<3x1x16xf32, #tpu.memory_space<vmem>>, vector<1x1x16xf32>
    %289 = vector.shape_cast %288 : vector<1x1x16xf32> to vector<1x16xf32>
    %290 = vector.broadcast %289 : vector<1x16xf32> to vector<10x16xf32>
    %291 = arith.addf %287, %290 : vector<10x16xf32>
    %292 = arith.addf %197, %291 : vector<10x16xf32>
    %c1_137 = arith.constant 1 : index
    %c0_138 = arith.constant 0 : index
    %c0_139 = arith.constant 0 : index
    %293 = vector.load %arg15[%c1_137, %c0_138, %c0_139] : memref<3x1x16xf32, #tpu.memory_space<vmem>>, vector<1x1x16xf32>
    %294 = vector.shape_cast %293 : vector<1x1x16xf32> to vector<1x16xf32>
    %c1_140 = arith.constant 1 : index
    %c0_141 = arith.constant 0 : index
    %c0_142 = arith.constant 0 : index
    %295 = vector.load %arg16[%c1_140, %c0_141, %c0_142] : memref<3x1x16xf32, #tpu.memory_space<vmem>>, vector<1x1x16xf32>
    %296 = vector.shape_cast %295 : vector<1x1x16xf32> to vector<1x16xf32>
    %cst_143 = arith.constant dense<0.000000e+00> : vector<10xf32>
    %297 = vector.multi_reduction <add>, %292, %cst_143 [1] : vector<10x16xf32> to vector<10xf32>
    %298 = vector.shape_cast %297 : vector<10xf32> to vector<10x1xf32>
    %cst_144 = arith.constant 1.600000e+01 : f32
    %299 = vector.broadcast %cst_144 : f32 to vector<10x1xf32>
    %300 = arith.divf %298, %299 : vector<10x1xf32>
    %301 = vector.broadcast %300 : vector<10x1xf32> to vector<10x16xf32>
    %302 = arith.subf %292, %301 : vector<10x16xf32>
    %303 = arith.mulf %302, %302 : vector<10x16xf32>
    %cst_145 = arith.constant dense<0.000000e+00> : vector<10xf32>
    %304 = vector.multi_reduction <add>, %303, %cst_145 [1] : vector<10x16xf32> to vector<10xf32>
    %305 = vector.shape_cast %304 : vector<10xf32> to vector<10x1xf32>
    %cst_146 = arith.constant 1.600000e+01 : f32
    %306 = vector.broadcast %cst_146 : f32 to vector<10x1xf32>
    %307 = arith.divf %305, %306 : vector<10x1xf32>
    %cst_147 = arith.constant 9.99999974E-6 : f32
    %308 = vector.broadcast %cst_147 : f32 to vector<10x1xf32>
    %309 = arith.addf %307, %308 : vector<10x1xf32>
    %310 = math.rsqrt %309 : vector<10x1xf32>
    %311 = vector.broadcast %310 : vector<10x1xf32> to vector<10x16xf32>
    %312 = arith.mulf %302, %311 : vector<10x16xf32>
    %313 = vector.broadcast %294 : vector<1x16xf32> to vector<10x16xf32>
    %314 = arith.mulf %312, %313 : vector<10x16xf32>
    %315 = vector.broadcast %296 : vector<1x16xf32> to vector<10x16xf32>
    %316 = arith.addf %314, %315 : vector<10x16xf32>
    %c1_148 = arith.constant 1 : index
    %c0_149 = arith.constant 0 : index
    %c0_150 = arith.constant 0 : index
    %317 = vector.load %arg17[%c1_148, %c0_149, %c0_150] : memref<3x16x64xf32, #tpu.memory_space<vmem>>, vector<1x16x64xf32>
    %318 = vector.shape_cast %317 : vector<1x16x64xf32> to vector<16x64xf32>
    %cst_151 = arith.constant dense<0.000000e+00> : vector<10x64xf32>
    %319 = tpu.matmul %316, %318, %cst_151 {dimension_numbers = #tpu.dot_dimension_numbers<[1], [0], [0], [1], [0, 0, 1, 1], [], []>} : vector<10x16xf32>, vector<16x64xf32>, vector<10x64xf32> -> vector<10x64xf32>
    %c1_152 = arith.constant 1 : index
    %c0_153 = arith.constant 0 : index
    %c0_154 = arith.constant 0 : index
    %320 = vector.load %arg18[%c1_152, %c0_153, %c0_154] : memref<3x1x64xf32, #tpu.memory_space<vmem>>, vector<1x1x64xf32>
    %321 = vector.shape_cast %320 : vector<1x1x64xf32> to vector<1x64xf32>
    %322 = vector.broadcast %321 : vector<1x64xf32> to vector<10x64xf32>
    %323 = arith.addf %319, %322 : vector<10x64xf32>
    %cst_155 = arith.constant 0.000000e+00 : f32
    %324 = vector.broadcast %cst_155 : f32 to vector<10x64xf32>
    %325 = arith.maximumf %323, %324 : vector<10x64xf32>
    %c1_156 = arith.constant 1 : index
    %c0_157 = arith.constant 0 : index
    %c0_158 = arith.constant 0 : index
    %326 = vector.load %arg19[%c1_156, %c0_157, %c0_158] : memref<3x64x16xf32, #tpu.memory_space<vmem>>, vector<1x64x16xf32>
    %327 = vector.shape_cast %326 : vector<1x64x16xf32> to vector<64x16xf32>
    %cst_159 = arith.constant dense<0.000000e+00> : vector<10x16xf32>
    %328 = tpu.matmul %325, %327, %cst_159 {dimension_numbers = #tpu.dot_dimension_numbers<[1], [0], [0], [1], [0, 0, 1, 1], [], []>} : vector<10x64xf32>, vector<64x16xf32>, vector<10x16xf32> -> vector<10x16xf32>
    %c1_160 = arith.constant 1 : index
    %c0_161 = arith.constant 0 : index
    %c0_162 = arith.constant 0 : index
    %329 = vector.load %arg20[%c1_160, %c0_161, %c0_162] : memref<3x1x16xf32, #tpu.memory_space<vmem>>, vector<1x1x16xf32>
    %330 = vector.shape_cast %329 : vector<1x1x16xf32> to vector<1x16xf32>
    %331 = vector.broadcast %330 : vector<1x16xf32> to vector<10x16xf32>
    %332 = arith.addf %328, %331 : vector<10x16xf32>
    %333 = arith.addf %316, %332 : vector<10x16xf32>
    %c1_163 = arith.constant 1 : index
    %c0_164 = arith.constant 0 : index
    %c0_165 = arith.constant 0 : index
    %334 = vector.load %arg21[%c1_163, %c0_164, %c0_165] : memref<3x1x16xf32, #tpu.memory_space<vmem>>, vector<1x1x16xf32>
    %335 = vector.shape_cast %334 : vector<1x1x16xf32> to vector<1x16xf32>
    %c1_166 = arith.constant 1 : index
    %c0_167 = arith.constant 0 : index
    %c0_168 = arith.constant 0 : index
    %336 = vector.load %arg22[%c1_166, %c0_167, %c0_168] : memref<3x1x16xf32, #tpu.memory_space<vmem>>, vector<1x1x16xf32>
    %337 = vector.shape_cast %336 : vector<1x1x16xf32> to vector<1x16xf32>
    %cst_169 = arith.constant dense<0.000000e+00> : vector<10xf32>
    %338 = vector.multi_reduction <add>, %333, %cst_169 [1] : vector<10x16xf32> to vector<10xf32>
    %339 = vector.shape_cast %338 : vector<10xf32> to vector<10x1xf32>
    %cst_170 = arith.constant 1.600000e+01 : f32
    %340 = vector.broadcast %cst_170 : f32 to vector<10x1xf32>
    %341 = arith.divf %339, %340 : vector<10x1xf32>
    %342 = vector.broadcast %341 : vector<10x1xf32> to vector<10x16xf32>
    %343 = arith.subf %333, %342 : vector<10x16xf32>
    %344 = arith.mulf %343, %343 : vector<10x16xf32>
    %cst_171 = arith.constant dense<0.000000e+00> : vector<10xf32>
    %345 = vector.multi_reduction <add>, %344, %cst_171 [1] : vector<10x16xf32> to vector<10xf32>
    %346 = vector.shape_cast %345 : vector<10xf32> to vector<10x1xf32>
    %cst_172 = arith.constant 1.600000e+01 : f32
    %347 = vector.broadcast %cst_172 : f32 to vector<10x1xf32>
    %348 = arith.divf %346, %347 : vector<10x1xf32>
    %cst_173 = arith.constant 9.99999974E-6 : f32
    %349 = vector.broadcast %cst_173 : f32 to vector<10x1xf32>
    %350 = arith.addf %348, %349 : vector<10x1xf32>
    %351 = math.rsqrt %350 : vector<10x1xf32>
    %352 = vector.broadcast %351 : vector<10x1xf32> to vector<10x16xf32>
    %353 = arith.mulf %343, %352 : vector<10x16xf32>
    %354 = vector.broadcast %335 : vector<1x16xf32> to vector<10x16xf32>
    %355 = arith.mulf %353, %354 : vector<10x16xf32>
    %356 = vector.broadcast %337 : vector<1x16xf32> to vector<10x16xf32>
    %357 = arith.addf %355, %356 : vector<10x16xf32>
    %c0_174 = arith.constant 0 : index
    %c0_175 = arith.constant 0 : index
    %c0_176 = arith.constant 0 : index
    %358 = vector.load %arg1[%c0_174, %c0_175, %c0_176] : memref<3x10x32xf32, #tpu.memory_space<vmem>>, vector<1x10x32xf32>
    %359 = vector.shape_cast %358 : vector<1x10x32xf32> to vector<10x32xf32>
    %c2_177 = arith.constant 2 : index
    %c0_178 = arith.constant 0 : index
    %c0_179 = arith.constant 0 : index
    %360 = vector.load %arg5[%c2_177, %c0_178, %c0_179] : memref<3x32x16xf32, #tpu.memory_space<vmem>>, vector<1x32x16xf32>
    %361 = vector.shape_cast %360 : vector<1x32x16xf32> to vector<32x16xf32>
    %cst_180 = arith.constant dense<0.000000e+00> : vector<10x16xf32>
    %362 = tpu.matmul %359, %361, %cst_180 {dimension_numbers = #tpu.dot_dimension_numbers<[1], [0], [0], [1], [0, 0, 1, 1], [], []>} : vector<10x32xf32>, vector<32x16xf32>, vector<10x16xf32> -> vector<10x16xf32>
    %c2_181 = arith.constant 2 : index
    %c0_182 = arith.constant 0 : index
    %c0_183 = arith.constant 0 : index
    %363 = vector.load %arg6[%c2_181, %c0_182, %c0_183] : memref<3x1x16xf32, #tpu.memory_space<vmem>>, vector<1x1x16xf32>
    %364 = vector.shape_cast %363 : vector<1x1x16xf32> to vector<1x16xf32>
    %365 = vector.broadcast %364 : vector<1x16xf32> to vector<10x16xf32>
    %366 = arith.addf %362, %365 : vector<10x16xf32>
    %367 = arith.addf %357, %366 : vector<10x16xf32>
    %c2_184 = arith.constant 2 : index
    %c0_185 = arith.constant 0 : index
    %c0_186 = arith.constant 0 : index
    %368 = vector.load %arg11[%c2_184, %c0_185, %c0_186] : memref<3x16x48xf32, #tpu.memory_space<vmem>>, vector<1x16x48xf32>
    %369 = vector.shape_cast %368 : vector<1x16x48xf32> to vector<16x48xf32>
    %cst_187 = arith.constant dense<0.000000e+00> : vector<10x48xf32>
    %370 = tpu.matmul %367, %369, %cst_187 {dimension_numbers = #tpu.dot_dimension_numbers<[1], [0], [0], [1], [0, 0, 1, 1], [], []>} : vector<10x16xf32>, vector<16x48xf32>, vector<10x48xf32> -> vector<10x48xf32>
    %c2_188 = arith.constant 2 : index
    %c0_189 = arith.constant 0 : index
    %c0_190 = arith.constant 0 : index
    %371 = vector.load %arg12[%c2_188, %c0_189, %c0_190] : memref<3x1x48xf32, #tpu.memory_space<vmem>>, vector<1x1x48xf32>
    %372 = vector.shape_cast %371 : vector<1x1x48xf32> to vector<1x48xf32>
    %373 = vector.broadcast %372 : vector<1x48xf32> to vector<10x48xf32>
    %374 = arith.addf %370, %373 : vector<10x48xf32>
    %375 = vector.extract_strided_slice %374 {offsets = [0, 0], sizes = [10, 16], strides = [1, 1]} : vector<10x48xf32> to vector<10x16xf32>
    %376 = vector.extract_strided_slice %374 {offsets = [0, 16], sizes = [10, 16], strides = [1, 1]} : vector<10x48xf32> to vector<10x16xf32>
    %377 = vector.extract_strided_slice %374 {offsets = [0, 32], sizes = [10, 16], strides = [1, 1]} : vector<10x48xf32> to vector<10x16xf32>
    %cst_191 = arith.constant 0.000000e+00 : f32
    %378 = vector.broadcast %cst_191 : f32 to vector<10x16xf32>
    %379 = vector.extract_strided_slice %1 {offsets = [0, 0], sizes = [1, 16], strides = [1, 1]} : vector<4x16xf32> to vector<1x16xf32>
    %380 = vector.broadcast %379 : vector<1x16xf32> to vector<10x16xf32>
    %381 = arith.mulf %375, %380 : vector<10x16xf32>
    %cst_192 = arith.constant dense<0.000000e+00> : vector<10x10xf32>
    %382 = tpu.matmul %381, %376, %cst_192 {dimension_numbers = #tpu.dot_dimension_numbers<[1], [1], [0], [0], [0, 0, 1, 0], [], []>} : vector<10x16xf32>, vector<10x16xf32>, vector<10x10xf32> -> vector<10x10xf32>
    %383 = arith.addf %382, %0 : vector<10x10xf32>
    %cst_193 = arith.constant dense<0xFF800000> : vector<10xf32>
    %384 = vector.multi_reduction <maximumf>, %383, %cst_193 [1] : vector<10x10xf32> to vector<10xf32>
    %385 = vector.shape_cast %384 : vector<10xf32> to vector<10x1xf32>
    %386 = vector.broadcast %385 : vector<10x1xf32> to vector<10x10xf32>
    %387 = arith.subf %383, %386 : vector<10x10xf32>
    %388 = math.exp %387 : vector<10x10xf32>
    %cst_194 = arith.constant dense<0.000000e+00> : vector<10xf32>
    %389 = vector.multi_reduction <add>, %388, %cst_194 [1] : vector<10x10xf32> to vector<10xf32>
    %390 = vector.shape_cast %389 : vector<10xf32> to vector<10x1xf32>
    %391 = tpu.reciprocal %390 {approx = true} : vector<10x1xf32> -> vector<10x1xf32>
    %392 = vector.broadcast %391 : vector<10x1xf32> to vector<10x10xf32>
    %393 = arith.mulf %388, %392 : vector<10x10xf32>
    %394 = vector.broadcast %379 : vector<1x16xf32> to vector<10x16xf32>
    %395 = arith.mulf %377, %394 : vector<10x16xf32>
    %cst_195 = arith.constant dense<0.000000e+00> : vector<10x16xf32>
    %396 = tpu.matmul %393, %395, %cst_195 {dimension_numbers = #tpu.dot_dimension_numbers<[1], [0], [0], [1], [0, 0, 1, 1], [], []>} : vector<10x10xf32>, vector<10x16xf32>, vector<10x16xf32> -> vector<10x16xf32>
    %397 = arith.addf %378, %396 : vector<10x16xf32>
    %398 = vector.extract_strided_slice %1 {offsets = [1, 0], sizes = [1, 16], strides = [1, 1]} : vector<4x16xf32> to vector<1x16xf32>
    %399 = vector.broadcast %398 : vector<1x16xf32> to vector<10x16xf32>
    %400 = arith.mulf %375, %399 : vector<10x16xf32>
    %cst_196 = arith.constant dense<0.000000e+00> : vector<10x10xf32>
    %401 = tpu.matmul %400, %376, %cst_196 {dimension_numbers = #tpu.dot_dimension_numbers<[1], [1], [0], [0], [0, 0, 1, 0], [], []>} : vector<10x16xf32>, vector<10x16xf32>, vector<10x10xf32> -> vector<10x10xf32>
    %402 = arith.addf %401, %0 : vector<10x10xf32>
    %cst_197 = arith.constant dense<0xFF800000> : vector<10xf32>
    %403 = vector.multi_reduction <maximumf>, %402, %cst_197 [1] : vector<10x10xf32> to vector<10xf32>
    %404 = vector.shape_cast %403 : vector<10xf32> to vector<10x1xf32>
    %405 = vector.broadcast %404 : vector<10x1xf32> to vector<10x10xf32>
    %406 = arith.subf %402, %405 : vector<10x10xf32>
    %407 = math.exp %406 : vector<10x10xf32>
    %cst_198 = arith.constant dense<0.000000e+00> : vector<10xf32>
    %408 = vector.multi_reduction <add>, %407, %cst_198 [1] : vector<10x10xf32> to vector<10xf32>
    %409 = vector.shape_cast %408 : vector<10xf32> to vector<10x1xf32>
    %410 = tpu.reciprocal %409 {approx = true} : vector<10x1xf32> -> vector<10x1xf32>
    %411 = vector.broadcast %410 : vector<10x1xf32> to vector<10x10xf32>
    %412 = arith.mulf %407, %411 : vector<10x10xf32>
    %413 = vector.broadcast %398 : vector<1x16xf32> to vector<10x16xf32>
    %414 = arith.mulf %377, %413 : vector<10x16xf32>
    %cst_199 = arith.constant dense<0.000000e+00> : vector<10x16xf32>
    %415 = tpu.matmul %412, %414, %cst_199 {dimension_numbers = #tpu.dot_dimension_numbers<[1], [0], [0], [1], [0, 0, 1, 1], [], []>} : vector<10x10xf32>, vector<10x16xf32>, vector<10x16xf32> -> vector<10x16xf32>
    %416 = arith.addf %397, %415 : vector<10x16xf32>
    %417 = vector.extract_strided_slice %1 {offsets = [2, 0], sizes = [1, 16], strides = [1, 1]} : vector<4x16xf32> to vector<1x16xf32>
    %418 = vector.broadcast %417 : vector<1x16xf32> to vector<10x16xf32>
    %419 = arith.mulf %375, %418 : vector<10x16xf32>
    %cst_200 = arith.constant dense<0.000000e+00> : vector<10x10xf32>
    %420 = tpu.matmul %419, %376, %cst_200 {dimension_numbers = #tpu.dot_dimension_numbers<[1], [1], [0], [0], [0, 0, 1, 0], [], []>} : vector<10x16xf32>, vector<10x16xf32>, vector<10x10xf32> -> vector<10x10xf32>
    %421 = arith.addf %420, %0 : vector<10x10xf32>
    %cst_201 = arith.constant dense<0xFF800000> : vector<10xf32>
    %422 = vector.multi_reduction <maximumf>, %421, %cst_201 [1] : vector<10x10xf32> to vector<10xf32>
    %423 = vector.shape_cast %422 : vector<10xf32> to vector<10x1xf32>
    %424 = vector.broadcast %423 : vector<10x1xf32> to vector<10x10xf32>
    %425 = arith.subf %421, %424 : vector<10x10xf32>
    %426 = math.exp %425 : vector<10x10xf32>
    %cst_202 = arith.constant dense<0.000000e+00> : vector<10xf32>
    %427 = vector.multi_reduction <add>, %426, %cst_202 [1] : vector<10x10xf32> to vector<10xf32>
    %428 = vector.shape_cast %427 : vector<10xf32> to vector<10x1xf32>
    %429 = tpu.reciprocal %428 {approx = true} : vector<10x1xf32> -> vector<10x1xf32>
    %430 = vector.broadcast %429 : vector<10x1xf32> to vector<10x10xf32>
    %431 = arith.mulf %426, %430 : vector<10x10xf32>
    %432 = vector.broadcast %417 : vector<1x16xf32> to vector<10x16xf32>
    %433 = arith.mulf %377, %432 : vector<10x16xf32>
    %cst_203 = arith.constant dense<0.000000e+00> : vector<10x16xf32>
    %434 = tpu.matmul %431, %433, %cst_203 {dimension_numbers = #tpu.dot_dimension_numbers<[1], [0], [0], [1], [0, 0, 1, 1], [], []>} : vector<10x10xf32>, vector<10x16xf32>, vector<10x16xf32> -> vector<10x16xf32>
    %435 = arith.addf %416, %434 : vector<10x16xf32>
    %436 = vector.extract_strided_slice %1 {offsets = [3, 0], sizes = [1, 16], strides = [1, 1]} : vector<4x16xf32> to vector<1x16xf32>
    %437 = vector.broadcast %436 : vector<1x16xf32> to vector<10x16xf32>
    %438 = arith.mulf %375, %437 : vector<10x16xf32>
    %cst_204 = arith.constant dense<0.000000e+00> : vector<10x10xf32>
    %439 = tpu.matmul %438, %376, %cst_204 {dimension_numbers = #tpu.dot_dimension_numbers<[1], [1], [0], [0], [0, 0, 1, 0], [], []>} : vector<10x16xf32>, vector<10x16xf32>, vector<10x10xf32> -> vector<10x10xf32>
    %440 = arith.addf %439, %0 : vector<10x10xf32>
    %cst_205 = arith.constant dense<0xFF800000> : vector<10xf32>
    %441 = vector.multi_reduction <maximumf>, %440, %cst_205 [1] : vector<10x10xf32> to vector<10xf32>
    %442 = vector.shape_cast %441 : vector<10xf32> to vector<10x1xf32>
    %443 = vector.broadcast %442 : vector<10x1xf32> to vector<10x10xf32>
    %444 = arith.subf %440, %443 : vector<10x10xf32>
    %445 = math.exp %444 : vector<10x10xf32>
    %cst_206 = arith.constant dense<0.000000e+00> : vector<10xf32>
    %446 = vector.multi_reduction <add>, %445, %cst_206 [1] : vector<10x10xf32> to vector<10xf32>
    %447 = vector.shape_cast %446 : vector<10xf32> to vector<10x1xf32>
    %448 = tpu.reciprocal %447 {approx = true} : vector<10x1xf32> -> vector<10x1xf32>
    %449 = vector.broadcast %448 : vector<10x1xf32> to vector<10x10xf32>
    %450 = arith.mulf %445, %449 : vector<10x10xf32>
    %451 = vector.broadcast %436 : vector<1x16xf32> to vector<10x16xf32>
    %452 = arith.mulf %377, %451 : vector<10x16xf32>
    %cst_207 = arith.constant dense<0.000000e+00> : vector<10x16xf32>
    %453 = tpu.matmul %450, %452, %cst_207 {dimension_numbers = #tpu.dot_dimension_numbers<[1], [0], [0], [1], [0, 0, 1, 1], [], []>} : vector<10x10xf32>, vector<10x16xf32>, vector<10x16xf32> -> vector<10x16xf32>
    %454 = arith.addf %435, %453 : vector<10x16xf32>
    %c2_208 = arith.constant 2 : index
    %c0_209 = arith.constant 0 : index
    %c0_210 = arith.constant 0 : index
    %455 = vector.load %arg13[%c2_208, %c0_209, %c0_210] : memref<3x16x16xf32, #tpu.memory_space<vmem>>, vector<1x16x16xf32>
    %456 = vector.shape_cast %455 : vector<1x16x16xf32> to vector<16x16xf32>
    %cst_211 = arith.constant dense<0.000000e+00> : vector<10x16xf32>
    %457 = tpu.matmul %454, %456, %cst_211 {dimension_numbers = #tpu.dot_dimension_numbers<[1], [0], [0], [1], [0, 0, 1, 1], [], []>} : vector<10x16xf32>, vector<16x16xf32>, vector<10x16xf32> -> vector<10x16xf32>
    %c2_212 = arith.constant 2 : index
    %c0_213 = arith.constant 0 : index
    %c0_214 = arith.constant 0 : index
    %458 = vector.load %arg14[%c2_212, %c0_213, %c0_214] : memref<3x1x16xf32, #tpu.memory_space<vmem>>, vector<1x1x16xf32>
    %459 = vector.shape_cast %458 : vector<1x1x16xf32> to vector<1x16xf32>
    %460 = vector.broadcast %459 : vector<1x16xf32> to vector<10x16xf32>
    %461 = arith.addf %457, %460 : vector<10x16xf32>
    %462 = arith.addf %367, %461 : vector<10x16xf32>
    %c2_215 = arith.constant 2 : index
    %c0_216 = arith.constant 0 : index
    %c0_217 = arith.constant 0 : index
    %463 = vector.load %arg15[%c2_215, %c0_216, %c0_217] : memref<3x1x16xf32, #tpu.memory_space<vmem>>, vector<1x1x16xf32>
    %464 = vector.shape_cast %463 : vector<1x1x16xf32> to vector<1x16xf32>
    %c2_218 = arith.constant 2 : index
    %c0_219 = arith.constant 0 : index
    %c0_220 = arith.constant 0 : index
    %465 = vector.load %arg16[%c2_218, %c0_219, %c0_220] : memref<3x1x16xf32, #tpu.memory_space<vmem>>, vector<1x1x16xf32>
    %466 = vector.shape_cast %465 : vector<1x1x16xf32> to vector<1x16xf32>
    %cst_221 = arith.constant dense<0.000000e+00> : vector<10xf32>
    %467 = vector.multi_reduction <add>, %462, %cst_221 [1] : vector<10x16xf32> to vector<10xf32>
    %468 = vector.shape_cast %467 : vector<10xf32> to vector<10x1xf32>
    %cst_222 = arith.constant 1.600000e+01 : f32
    %469 = vector.broadcast %cst_222 : f32 to vector<10x1xf32>
    %470 = arith.divf %468, %469 : vector<10x1xf32>
    %471 = vector.broadcast %470 : vector<10x1xf32> to vector<10x16xf32>
    %472 = arith.subf %462, %471 : vector<10x16xf32>
    %473 = arith.mulf %472, %472 : vector<10x16xf32>
    %cst_223 = arith.constant dense<0.000000e+00> : vector<10xf32>
    %474 = vector.multi_reduction <add>, %473, %cst_223 [1] : vector<10x16xf32> to vector<10xf32>
    %475 = vector.shape_cast %474 : vector<10xf32> to vector<10x1xf32>
    %cst_224 = arith.constant 1.600000e+01 : f32
    %476 = vector.broadcast %cst_224 : f32 to vector<10x1xf32>
    %477 = arith.divf %475, %476 : vector<10x1xf32>
    %cst_225 = arith.constant 9.99999974E-6 : f32
    %478 = vector.broadcast %cst_225 : f32 to vector<10x1xf32>
    %479 = arith.addf %477, %478 : vector<10x1xf32>
    %480 = math.rsqrt %479 : vector<10x1xf32>
    %481 = vector.broadcast %480 : vector<10x1xf32> to vector<10x16xf32>
    %482 = arith.mulf %472, %481 : vector<10x16xf32>
    %483 = vector.broadcast %464 : vector<1x16xf32> to vector<10x16xf32>
    %484 = arith.mulf %482, %483 : vector<10x16xf32>
    %485 = vector.broadcast %466 : vector<1x16xf32> to vector<10x16xf32>
    %486 = arith.addf %484, %485 : vector<10x16xf32>
    %c2_226 = arith.constant 2 : index
    %c0_227 = arith.constant 0 : index
    %c0_228 = arith.constant 0 : index
    %487 = vector.load %arg17[%c2_226, %c0_227, %c0_228] : memref<3x16x64xf32, #tpu.memory_space<vmem>>, vector<1x16x64xf32>
    %488 = vector.shape_cast %487 : vector<1x16x64xf32> to vector<16x64xf32>
    %cst_229 = arith.constant dense<0.000000e+00> : vector<10x64xf32>
    %489 = tpu.matmul %486, %488, %cst_229 {dimension_numbers = #tpu.dot_dimension_numbers<[1], [0], [0], [1], [0, 0, 1, 1], [], []>} : vector<10x16xf32>, vector<16x64xf32>, vector<10x64xf32> -> vector<10x64xf32>
    %c2_230 = arith.constant 2 : index
    %c0_231 = arith.constant 0 : index
    %c0_232 = arith.constant 0 : index
    %490 = vector.load %arg18[%c2_230, %c0_231, %c0_232] : memref<3x1x64xf32, #tpu.memory_space<vmem>>, vector<1x1x64xf32>
    %491 = vector.shape_cast %490 : vector<1x1x64xf32> to vector<1x64xf32>
    %492 = vector.broadcast %491 : vector<1x64xf32> to vector<10x64xf32>
    %493 = arith.addf %489, %492 : vector<10x64xf32>
    %cst_233 = arith.constant 0.000000e+00 : f32
    %494 = vector.broadcast %cst_233 : f32 to vector<10x64xf32>
    %495 = arith.maximumf %493, %494 : vector<10x64xf32>
    %c2_234 = arith.constant 2 : index
    %c0_235 = arith.constant 0 : index
    %c0_236 = arith.constant 0 : index
    %496 = vector.load %arg19[%c2_234, %c0_235, %c0_236] : memref<3x64x16xf32, #tpu.memory_space<vmem>>, vector<1x64x16xf32>
    %497 = vector.shape_cast %496 : vector<1x64x16xf32> to vector<64x16xf32>
    %cst_237 = arith.constant dense<0.000000e+00> : vector<10x16xf32>
    %498 = tpu.matmul %495, %497, %cst_237 {dimension_numbers = #tpu.dot_dimension_numbers<[1], [0], [0], [1], [0, 0, 1, 1], [], []>} : vector<10x64xf32>, vector<64x16xf32>, vector<10x16xf32> -> vector<10x16xf32>
    %c2_238 = arith.constant 2 : index
    %c0_239 = arith.constant 0 : index
    %c0_240 = arith.constant 0 : index
    %499 = vector.load %arg20[%c2_238, %c0_239, %c0_240] : memref<3x1x16xf32, #tpu.memory_space<vmem>>, vector<1x1x16xf32>
    %500 = vector.shape_cast %499 : vector<1x1x16xf32> to vector<1x16xf32>
    %501 = vector.broadcast %500 : vector<1x16xf32> to vector<10x16xf32>
    %502 = arith.addf %498, %501 : vector<10x16xf32>
    %503 = arith.addf %486, %502 : vector<10x16xf32>
    %c2_241 = arith.constant 2 : index
    %c0_242 = arith.constant 0 : index
    %c0_243 = arith.constant 0 : index
    %504 = vector.load %arg21[%c2_241, %c0_242, %c0_243] : memref<3x1x16xf32, #tpu.memory_space<vmem>>, vector<1x1x16xf32>
    %505 = vector.shape_cast %504 : vector<1x1x16xf32> to vector<1x16xf32>
    %c2_244 = arith.constant 2 : index
    %c0_245 = arith.constant 0 : index
    %c0_246 = arith.constant 0 : index
    %506 = vector.load %arg22[%c2_244, %c0_245, %c0_246] : memref<3x1x16xf32, #tpu.memory_space<vmem>>, vector<1x1x16xf32>
    %507 = vector.shape_cast %506 : vector<1x1x16xf32> to vector<1x16xf32>
    %cst_247 = arith.constant dense<0.000000e+00> : vector<10xf32>
    %508 = vector.multi_reduction <add>, %503, %cst_247 [1] : vector<10x16xf32> to vector<10xf32>
    %509 = vector.shape_cast %508 : vector<10xf32> to vector<10x1xf32>
    %cst_248 = arith.constant 1.600000e+01 : f32
    %510 = vector.broadcast %cst_248 : f32 to vector<10x1xf32>
    %511 = arith.divf %509, %510 : vector<10x1xf32>
    %512 = vector.broadcast %511 : vector<10x1xf32> to vector<10x16xf32>
    %513 = arith.subf %503, %512 : vector<10x16xf32>
    %514 = arith.mulf %513, %513 : vector<10x16xf32>
    %cst_249 = arith.constant dense<0.000000e+00> : vector<10xf32>
    %515 = vector.multi_reduction <add>, %514, %cst_249 [1] : vector<10x16xf32> to vector<10xf32>
    %516 = vector.shape_cast %515 : vector<10xf32> to vector<10x1xf32>
    %cst_250 = arith.constant 1.600000e+01 : f32
    %517 = vector.broadcast %cst_250 : f32 to vector<10x1xf32>
    %518 = arith.divf %516, %517 : vector<10x1xf32>
    %cst_251 = arith.constant 9.99999974E-6 : f32
    %519 = vector.broadcast %cst_251 : f32 to vector<10x1xf32>
    %520 = arith.addf %518, %519 : vector<10x1xf32>
    %521 = math.rsqrt %520 : vector<10x1xf32>
    %522 = vector.broadcast %521 : vector<10x1xf32> to vector<10x16xf32>
    %523 = arith.mulf %513, %522 : vector<10x16xf32>
    %524 = vector.broadcast %505 : vector<1x16xf32> to vector<10x16xf32>
    %525 = arith.mulf %523, %524 : vector<10x16xf32>
    %526 = vector.broadcast %507 : vector<1x16xf32> to vector<10x16xf32>
    %527 = arith.addf %525, %526 : vector<10x16xf32>
    %528 = vector.extract_strided_slice %527 {offsets = [2, 0], sizes = [8, 16], strides = [1, 1]} : vector<10x16xf32> to vector<8x16xf32>
    %c0_252 = arith.constant 0 : index
    %c0_253 = arith.constant 0 : index
    %529 = vector.load %arg23[%c0_252, %c0_253] : memref<16x256xf32, #tpu.memory_space<vmem>>, vector<16x256xf32>
    %cst_254 = arith.constant dense<0.000000e+00> : vector<8x256xf32>
    %530 = tpu.matmul %528, %529, %cst_254 {dimension_numbers = #tpu.dot_dimension_numbers<[1], [0], [0], [1], [0, 0, 1, 1], [], []>} : vector<8x16xf32>, vector<16x256xf32>, vector<8x256xf32> -> vector<8x256xf32>
    %c0_255 = arith.constant 0 : index
    %c0_256 = arith.constant 0 : index
    %531 = vector.load %arg24[%c0_255, %c0_256] : memref<1x256xf32, #tpu.memory_space<vmem>>, vector<1x256xf32>
    %532 = vector.broadcast %531 : vector<1x256xf32> to vector<8x256xf32>
    %533 = arith.addf %530, %532 : vector<8x256xf32>
    %c0_257 = arith.constant 0 : index
    %c0_258 = arith.constant 0 : index
    %534 = vector.load %arg26[%c0_257, %c0_258] : memref<8x256xf32, #tpu.memory_space<vmem>>, vector<8x256xf32>
    tpu.vector_store %arg26[%c0_257, %c0_258], %533 {strides = array<i32>} : memref<8x256xf32, #tpu.memory_space<vmem>>, vector<8x256xf32>,
    return
  }
  func.func @transform_0(%arg0: i32) -> (i32, i32, i32) {
    %c0_i32 = arith.constant 0 : i32
    %c0_i32_0 = arith.constant 0 : i32
    %c0_i32_1 = arith.constant 0 : i32
    %c0_i32_2 = arith.constant 0 : i32
    return %c0_i32, %c0_i32_0, %c0_i32_1 : i32, i32, i32
  }
  func.func @transform_1(%arg0: i32) -> (i32, i32) {
    %c0_i32 = arith.constant 0 : i32
    %c0_i32_0 = arith.constant 0 : i32
    %c0_i32_1 = arith.constant 0 : i32
    return %c0_i32, %c0_i32_0 : i32, i32
  }
  func.func @transform_2(%arg0: i32) -> (i32, i32) {
    %c0_i32 = arith.constant 0 : i32
    %c0_i32_0 = arith.constant 0 : i32
    %c0_i32_1 = arith.constant 0 : i32
    return %c0_i32, %c0_i32_0 : i32, i32
  }
  func.func @transform_3(%arg0: i32) -> (i32, i32) {
    %c0_i32 = arith.constant 0 : i32
    %c0_i32_0 = arith.constant 0 : i32
    %c0_i32_1 = arith.constant 0 : i32
    return %c0_i32, %c0_i32_0 : i32, i32
  }
  func.func @transform_4(%arg0: i32) -> (i32, i32, i32) {
    %c0_i32 = arith.constant 0 : i32
    %c0_i32_0 = arith.constant 0 : i32
    %c0_i32_1 = arith.constant 0 : i32
    %c0_i32_2 = arith.constant 0 : i32
    return %c0_i32, %c0_i32_0, %c0_i32_1 : i32, i32, i32
  }
  func.func @transform_5(%arg0: i32) -> (i32, i32, i32) {
    %c0_i32 = arith.constant 0 : i32
    %c0_i32_0 = arith.constant 0 : i32
    %c0_i32_1 = arith.constant 0 : i32
    %c0_i32_2 = arith.constant 0 : i32
    return %c0_i32, %c0_i32_0, %c0_i32_1 : i32, i32, i32
  }
  func.func @transform_6(%arg0: i32) -> (i32, i32) {
    %c0_i32 = arith.constant 0 : i32
    %c0_i32_0 = arith.constant 0 : i32
    %c0_i32_1 = arith.constant 0 : i32
    return %c0_i32, %c0_i32_0 : i32, i32
  }
  func.func @transform_7(%arg0: i32) -> (i32, i32) {
    %c0_i32 = arith.constant 0 : i32
    %c0_i32_0 = arith.constant 0 : i32
    %c0_i32_1 = arith.constant 0 : i32
    return %c0_i32, %c0_i32_0 : i32, i32
  }
  func.func @transform_8(%arg0: i32) -> (i32, i32) {
    %c0_i32 = arith.constant 0 : i32
    %c0_i32_0 = arith.constant 0 : i32
    %c0_i32_1 = arith.constant 0 : i32
    return %c0_i32, %c0_i32_0 : i32, i32
  }
  func.func @transform_9(%arg0: i32) -> (i32, i32) {
    %c0_i32 = arith.constant 0 : i32
    %c0_i32_0 = arith.constant 0 : i32
    %c0_i32_1 = arith.constant 0 : i32
    return %c0_i32, %c0_i32_0 : i32, i32
  }
  func.func @transform_10(%arg0: i32) -> (i32, i32, i32) {
    %c0_i32 = arith.constant 0 : i32
    %c0_i32_0 = arith.constant 0 : i32
    %c0_i32_1 = arith.constant 0 : i32
    %c0_i32_2 = arith.constant 0 : i32
    return %c0_i32, %c0_i32_0, %c0_i32_1 : i32, i32, i32
  }
  func.func @transform_11(%arg0: i32) -> (i32, i32, i32) {
    %c0_i32 = arith.constant 0 : i32
    %c0_i32_0 = arith.constant 0 : i32
    %c0_i32_1 = arith.constant 0 : i32
    %c0_i32_2 = arith.constant 0 : i32
    return %c0_i32, %c0_i32_0, %c0_i32_1 : i32, i32, i32
  }
  func.func @transform_12(%arg0: i32) -> (i32, i32, i32) {
    %c0_i32 = arith.constant 0 : i32
    %c0_i32_0 = arith.constant 0 : i32
    %c0_i32_1 = arith.constant 0 : i32
    %c0_i32_2 = arith.constant 0 : i32
    return %c0_i32, %c0_i32_0, %c0_i32_1 : i32, i32, i32
  }
  func.func @transform_13(%arg0: i32) -> (i32, i32, i32) {
    %c0_i32 = arith.constant 0 : i32
    %c0_i32_0 = arith.constant 0 : i32
    %c0_i32_1 = arith.constant 0 : i32
    %c0_i32_2 = arith.constant 0 : i32
    return %c0_i32, %c0_i32_0, %c0_i32_1 : i32, i32, i32
  }
  func.func @transform_14(%arg0: i32) -> (i32, i32, i32) {
    %c0_i32 = arith.constant 0 : i32
    %c0_i32_0 = arith.constant 0 : i32
    %c0_i32_1 = arith.constant 0 : i32
    %c0_i32_2 = arith.constant 0 : i32
    return %c0_i32, %c0_i32_0, %c0_i32_1 : i32, i32, i32
  }
  func.func @transform_15(%arg0: i32) -> (i32, i32, i32) {
    %c0_i32 = arith.constant 0 : i32
    %c0_i32_0 = arith.constant 0 : i32
    %c0_i32_1 = arith.constant 0 : i32
    %c0_i32_2 = arith.constant 0 : i32
    return %c0_i32, %c0_i32_0, %c0_i32_1 : i32, i32, i32
  }
  func.func @transform_16(%arg0: i32) -> (i32, i32, i32) {
    %c0_i32 = arith.constant 0 : i32
    %c0_i32_0 = arith.constant 0 : i32
    %c0_i32_1 = arith.constant 0 : i32
    %c0_i32_2 = arith.constant 0 : i32
    return %c0_i32, %c0_i32_0, %c0_i32_1 : i32, i32, i32
  }
  func.func @transform_17(%arg0: i32) -> (i32, i32, i32) {
    %c0_i32 = arith.constant 0 : i32
    %c0_i32_0 = arith.constant 0 : i32
    %c0_i32_1 = arith.constant 0 : i32
    %c0_i32_2 = arith.constant 0 : i32
    return %c0_i32, %c0_i32_0, %c0_i32_1 : i32, i32, i32
  }
  func.func @transform_18(%arg0: i32) -> (i32, i32, i32) {
    %c0_i32 = arith.constant 0 : i32
    %c0_i32_0 = arith.constant 0 : i32
    %c0_i32_1 = arith.constant 0 : i32
    %c0_i32_2 = arith.constant 0 : i32
    return %c0_i32, %c0_i32_0, %c0_i32_1 : i32, i32, i32
  }
  func.func @transform_19(%arg0: i32) -> (i32, i32, i32) {
    %c0_i32 = arith.constant 0 : i32
    %c0_i32_0 = arith.constant 0 : i32
    %c0_i32_1 = arith.constant 0 : i32
    %c0_i32_2 = arith.constant 0 : i32
    return %c0_i32, %c0_i32_0, %c0_i32_1 : i32, i32, i32
  }
  func.func @transform_20(%arg0: i32) -> (i32, i32, i32) {
    %c0_i32 = arith.constant 0 : i32
    %c0_i32_0 = arith.constant 0 : i32
    %c0_i32_1 = arith.constant 0 : i32
    %c0_i32_2 = arith.constant 0 : i32
    return %c0_i32, %c0_i32_0, %c0_i32_1 : i32, i32, i32
  }
  func.func @transform_21(%arg0: i32) -> (i32, i32, i32) {
    %c0_i32 = arith.constant 0 : i32
    %c0_i32_0 = arith.constant 0 : i32
    %c0_i32_1 = arith.constant 0 : i32
    %c0_i32_2 = arith.constant 0 : i32
    return %c0_i32, %c0_i32_0, %c0_i32_1 : i32, i32, i32
  }
  func.func @transform_22(%arg0: i32) -> (i32, i32) {
    %c0_i32 = arith.constant 0 : i32
    %c0_i32_0 = arith.constant 0 : i32
    %c0_i32_1 = arith.constant 0 : i32
    return %c0_i32, %c0_i32_0 : i32, i32
  }
  func.func @transform_23(%arg0: i32) -> (i32, i32) {
    %c0_i32 = arith.constant 0 : i32
    %c0_i32_0 = arith.constant 0 : i32
    %c0_i32_1 = arith.constant 0 : i32
    return %c0_i32, %c0_i32_0 : i32, i32
  }
  func.func @transform_24(%arg0: i32) -> (i32, i32) {
    %c0_i32 = arith.constant 0 : i32
    %c0_i32_0 = arith.constant 0 : i32
    %c0_i32_1 = arith.constant 0 : i32
    return %c0_i32, %c0_i32_0 : i32, i32
  }
  func.func @transform_25(%arg0: i32) -> (i32, i32) {
    %c0_i32 = arith.constant 0 : i32
    %c0_i32_0 = arith.constant 0 : i32
    %c0_i32_1 = arith.constant 0 : i32
    return %c0_i32, %c0_i32_0 : i32, i32
  }
}

</mosaic_0001>

<llo_original>
// kernel: clipseg_masked_forward.2
$region0: #{clipseg_masked_forward.2}
  #allocation0 [shape = 'u32[]', space=smem, size = 0x4, offset = 0x4, fixed_abs, tag = 'smem constant byte address 0x4 - core index']
  #allocation1 [shape = 'u32[144,128]{1,0:T(1,128)}', space=vmem, size = 0x12000, scoped, tag = 'internal scratch']
  #allocation2 [shape = 'f32[20,32]{1,0:T(8,128)}', space=vmem, size = 0x3000, scoped, tag = 'scratch operand']
  %s0 = inlined_call_operand.vmem [shape: f32[4,20,20], index: 0, kind: input, shape index: {}]
  %s1 = inlined_call_operand.vmem [shape: f32[20,20], index: 1, kind: input, shape index: {}]
  %s2 = inlined_call_operand.vmem [shape: f32[16,768], index: 2, kind: input, shape index: {}]
  %s3 = inlined_call_operand.vmem [shape: f32[20,16], index: 3, kind: input, shape index: {}]
  %s4 = inlined_call_operand.vmem [shape: f32[768,32], index: 4, kind: input, shape index: {}]
  %s5 = inlined_call_operand.vmem [shape: f32[20,32], index: 5, kind: input, shape index: {}]
  %s6 = inlined_call_operand.vmem [shape: f32[1,32], index: 6, kind: input, shape index: {}]
  %s7 = inlined_call_operand.vmem [shape: f32[1,32], index: 7, kind: input, shape index: {}]
  %s8 = inlined_call_operand.vmem [shape: f32[10,1,32], index: 8, kind: input, shape index: {}]
  %s9 = inlined_call_operand.vmem [shape: f32[10,1,32], index: 9, kind: input, shape index: {}]
  %s10 = inlined_call_operand.vmem [shape: bf16[10,32,96], index: 10, kind: input, shape index: {}]
  %s11 = inlined_call_operand.vmem [shape: f32[10,1,96], index: 11, kind: input, shape index: {}]
  %s12 = inlined_call_operand.vmem [shape: bf16[10,32,32], index: 12, kind: input, shape index: {}]
  %s13 = inlined_call_operand.vmem [shape: f32[10,1,32], index: 13, kind: input, shape index: {}]
  %s14 = inlined_call_operand.vmem [shape: f32[10,1,32], index: 14, kind: input, shape index: {}]
  %s15 = inlined_call_operand.vmem [shape: f32[10,1,32], index: 15, kind: input, shape index: {}]
  %s16 = inlined_call_operand.vmem [shape: bf16[10,32,128], index: 16, kind: input, shape index: {}]
  %s17 = inlined_call_operand.vmem [shape: f32[10,1,128], index: 17, kind: input, shape index: {}]
  %s18 = inlined_call_operand.vmem [shape: bf16[10,128,32], index: 18, kind: input, shape index: {}]
  %s19 = inlined_call_operand.vmem [shape: f32[10,1,32], index: 19, kind: input, shape index: {}]
  %s20 = inlined_call_operand.vmem [shape: f32[1,32], index: 20, kind: input, shape index: {}]
  %s21 = inlined_call_operand.vmem [shape: f32[1,32], index: 21, kind: input, shape index: {}]
  %s22 = inlined_call_operand.vmem [shape: f32[32,32], index: 22, kind: input, shape index: {}]
  %s23 = inlined_call_operand.vmem [shape: f32[4,32], index: 23, kind: input, shape index: {}]
  %s24 = inlined_call_operand.vmem [shape: f32[3,10,32], index: 24, kind: output, shape index: {0}]
  %s25 = inlined_call_operand.vmem [shape: f32[2,32], index: 25, kind: output, shape index: {1}]
  %26 = xla_tuple %s24, %s25
  %s27 = sld [smem:[#allocation0]]
  $region153: #{clipseg_masked_forward.2} parent=0
    _
  %s29 = ssub.s32 1, %s27
  %s30 = scalar_select 0, %s29, %s27
  loop: start=0, step=1, limit=12
  $region2: #{clipseg_masked_forward.2} parent=0 // loop_pre_header
    _
  $region3: #{clipseg_masked_forward.2} parent=0 // loop_header
    %s32 = sphi 0, %s36
    %p33 = scmp.ge.s32.totalorder %s32, 12
    %s40 = sphi 0, %s40
    %s42 = sphi 0, %s40
    %s43 = sphi 0, %s42
    %s57 = sphi 0, %s43
    %s61 = sphi 0, %s61
    %s63 = sphi 0, %s61
    %s64 = sphi 0, %s63
    %s78 = sphi 0, %s64
    %s82 = sphi 0, %s82
    %s84 = sphi 0, %s82
    %s85 = sphi 0, %s84
    %s99 = sphi 0, %s85
    %s103 = sphi 0, %s103
    %s105 = sphi 0, %s103
    %s106 = sphi 0, %s105
    %s120 = sphi 0, %s106
    %s124 = sphi 0, %s124
    %s126 = sphi 0, %s124
    %s127 = sphi 0, %s126
    %s141 = sphi 0, %s127
    %s145 = sphi 0, %s145
    %s147 = sphi 0, %s145
    %s148 = sphi 0, %s147
    %s162 = sphi 0, %s148
    %s166 = sphi 0, %s166
    %s168 = sphi 0, %s166
    %s169 = sphi 0, %s168
    %s183 = sphi 0, %s169
    %s187 = sphi 0, %s187
    %s189 = sphi 0, %s187
    %s190 = sphi 0, %s189
    %s204 = sphi 0, %s190
    %s210 = sphi 0, %s212
    %s213 = sphi 0, %s210
    %s214 = sphi 0, %s213
    %s230 = sphi 0, %s214
    %s236 = sphi 0, %s238
    %s239 = sphi 0, %s236
    %s240 = sphi 0, %s239
    %s256 = sphi 0, %s240
    %s262 = sphi 0, %s264
    %s265 = sphi 0, %s262
    %s266 = sphi 0, %s265
    %s282 = sphi 0, %s266
    %s288 = sphi 0, %s290
    %s291 = sphi 0, %s288
    %s292 = sphi 0, %s291
    %s308 = sphi 0, %s292
    %s314 = sphi 0, %s316
    %s317 = sphi 0, %s314
    %s318 = sphi 0, %s317
    %s334 = sphi 0, %s318
    %s340 = sphi 0, %s342
    %s343 = sphi 0, %s340
    %s344 = sphi 0, %s343
    %s360 = sphi 0, %s344
    %s366 = sphi 0, %s368
    %s369 = sphi 0, %s366
    %s370 = sphi 0, %s369
    %s386 = sphi 0, %s370
    %s392 = sphi 0, %s394
    %s395 = sphi 0, %s392
    %s396 = sphi 0, %s395
    %s412 = sphi 0, %s396
    %s418 = sphi 0, %s420
    %s421 = sphi 0, %s418
    %s422 = sphi 0, %s421
    %s438 = sphi 0, %s422
    %s444 = sphi 0, %s446
    %s447 = sphi 0, %s444
    %s448 = sphi 0, %s447
    %s464 = sphi 0, %s448
    %s470 = sphi 0, %s472
    %s473 = sphi 0, %s470
    %s474 = sphi 0, %s473
    %s490 = sphi 0, %s474
    %s496 = sphi 0, %s498
    %s499 = sphi 0, %s496
    %s500 = sphi 0, %s499
    %s516 = sphi 0, %s500
    %s520 = sphi 0, %s520
    %s522 = sphi 0, %s520
    %s523 = sphi 0, %s522
    %s537 = sphi 0, %s523
    %s541 = sphi 0, %s541
    %s543 = sphi 0, %s541
    %s544 = sphi 0, %s543
    %s558 = sphi 0, %s544
    %s562 = sphi 0, %s562
    %s564 = sphi 0, %s562
    %s565 = sphi 0, %s564
    %s579 = sphi 0, %s565
    %s583 = sphi 0, %s583
    %s585 = sphi 0, %s583
    %s586 = sphi 0, %s585
    %s600 = sphi 0, %s586
    %s604 = sphi 0, %s604
    %s606 = sphi 0, %s604
    %s607 = sphi 0, %s606
    %s621 = sphi 0, %s607
    %s625 = sphi 0, %s625
    %s627 = sphi 0, %s625
    %s628 = sphi 0, %s627
    %s642 = sphi 0, %s628
  $region4: #{clipseg_masked_forward.2} parent=0 // loop_header_branch
    %35 = sbr.rel (%p33) target = $region8
  $region5: #{clipseg_masked_forward.2} parent=0 // loop_body
    %s37 = ssub.s32 %s32, 1
    %s38 = ssub.s32 %s32, 2
    %s39 = sadd.s32 %s32, 1
    %s41 = sadd.s32 %s40, 1
    %p44 = scmp.eq.s32.totalorder %s32, 9
    %p45 = scmp.ne.s32.totalorder %s40, %s42
    %p46 = scmp.eq.s32.totalorder %s32, 0
    %p47 = por %p45, %p46
    %p48 = scmp.ne.s32.totalorder %s40, %s42
    %p49 = scmp.eq.s32.totalorder %s37, 9
    %p50 = por %p48, %p49
    %p51 = scmp.ne.s32.totalorder %s42, %s43
    %p52 = scmp.eq.s32.totalorder %s37, 0
    %p53 = por %p51, %p52
    %p54 = scmp.ne.s32.totalorder %s42, %s43
    %p55 = scmp.eq.s32.totalorder %s38, 9
    %p56 = por %p54, %p55
    %p58 = scmp.ne.s32.totalorder %s43, %s57
    %p59 = scmp.eq.s32.totalorder %s38, 0
    %p60 = por %p58, %p59
    %s62 = sadd.s32 %s61, 1
    %p65 = scmp.eq.s32.totalorder %s32, 9
    %p66 = scmp.ne.s32.totalorder %s61, %s63
    %p67 = scmp.eq.s32.totalorder %s32, 0
    %p68 = por %p66, %p67
    %p69 = scmp.ne.s32.totalorder %s61, %s63
    %p70 = scmp.eq.s32.totalorder %s37, 9
    %p71 = por %p69, %p70
    %p72 = scmp.ne.s32.totalorder %s63, %s64
    %p73 = scmp.eq.s32.totalorder %s37, 0
    %p74 = por %p72, %p73
    %p75 = scmp.ne.s32.totalorder %s63, %s64
    %p76 = scmp.eq.s32.totalorder %s38, 9
    %p77 = por %p75, %p76
    %p79 = scmp.ne.s32.totalorder %s64, %s78
    %p80 = scmp.eq.s32.totalorder %s38, 0
    %p81 = por %p79, %p80
    %s83 = sadd.s32 %s82, 1
    %p86 = scmp.eq.s32.totalorder %s32, 9
    %p87 = scmp.ne.s32.totalorder %s82, %s84
    %p88 = scmp.eq.s32.totalorder %s32, 0
    %p89 = por %p87, %p88
    %p90 = scmp.ne.s32.totalorder %s82, %s84
    %p91 = scmp.eq.s32.totalorder %s37, 9
    %p92 = por %p90, %p91
    %p93 = scmp.ne.s32.totalorder %s84, %s85
    %p94 = scmp.eq.s32.totalorder %s37, 0
    %p95 = por %p93, %p94
    %p96 = scmp.ne.s32.totalorder %s84, %s85
    %p97 = scmp.eq.s32.totalorder %s38, 9
    %p98 = por %p96, %p97
    %p100 = scmp.ne.s32.totalorder %s85, %s99
    %p101 = scmp.eq.s32.totalorder %s38, 0
    %p102 = por %p100, %p101
    %s104 = sadd.s32 %s103, 1
    %p107 = scmp.eq.s32.totalorder %s32, 9
    %p108 = scmp.ne.s32.totalorder %s103, %s105
    %p109 = scmp.eq.s32.totalorder %s32, 0
    %p110 = por %p108, %p109
    %p111 = scmp.ne.s32.totalorder %s103, %s105
    %p112 = scmp.eq.s32.totalorder %s37, 9
    %p113 = por %p111, %p112
    %p114 = scmp.ne.s32.totalorder %s105, %s106
    %p115 = scmp.eq.s32.totalorder %s37, 0
    %p116 = por %p114, %p115
    %p117 = scmp.ne.s32.totalorder %s105, %s106
    %p118 = scmp.eq.s32.totalorder %s38, 9
    %p119 = por %p117, %p118
    %p121 = scmp.ne.s32.totalorder %s106, %s120
    %p122 = scmp.eq.s32.totalorder %s38, 0
    %p123 = por %p121, %p122
    %s125 = sadd.s32 %s124, 1
    %p128 = scmp.eq.s32.totalorder %s32, 9
    %p129 = scmp.ne.s32.totalorder %s124, %s126
    %p130 = scmp.eq.s32.totalorder %s32, 0
    %p131 = por %p129, %p130
    %p132 = scmp.ne.s32.totalorder %s124, %s126
    %p133 = scmp.eq.s32.totalorder %s37, 9
    %p134 = por %p132, %p133
    %p135 = scmp.ne.s32.totalorder %s126, %s127
    %p136 = scmp.eq.s32.totalorder %s37, 0
    %p137 = por %p135, %p136
    %p138 = scmp.ne.s32.totalorder %s126, %s127
    %p139 = scmp.eq.s32.totalorder %s38, 9
    %p140 = por %p138, %p139
    %p142 = scmp.ne.s32.totalorder %s127, %s141
    %p143 = scmp.eq.s32.totalorder %s38, 0
    %p144 = por %p142, %p143
    %s146 = sadd.s32 %s145, 1
    %p149 = scmp.eq.s32.totalorder %s32, 9
    %p150 = scmp.ne.s32.totalorder %s145, %s147
    %p151 = scmp.eq.s32.totalorder %s32, 0
    %p152 = por %p150, %p151
    %p153 = scmp.ne.s32.totalorder %s145, %s147
    %p154 = scmp.eq.s32.totalorder %s37, 9
    %p155 = por %p153, %p154
    %p156 = scmp.ne.s32.totalorder %s147, %s148
    %p157 = scmp.eq.s32.totalorder %s37, 0
    %p158 = por %p156, %p157
    %p159 = scmp.ne.s32.totalorder %s147, %s148
    %p160 = scmp.eq.s32.totalorder %s38, 9
    %p161 = por %p159, %p160
    %p163 = scmp.ne.s32.totalorder %s148, %s162
    %p164 = scmp.eq.s32.totalorder %s38, 0
    %p165 = por %p163, %p164
    %s167 = sadd.s32 %s166, 1
    %p170 = scmp.eq.s32.totalorder %s32, 9
    %p171 = scmp.ne.s32.totalorder %s166, %s168
    %p172 = scmp.eq.s32.totalorder %s32, 0
    %p173 = por %p171, %p172
    %p174 = scmp.ne.s32.totalorder %s166, %s168
    %p175 = scmp.eq.s32.totalorder %s37, 9
    %p176 = por %p174, %p175
    %p177 = scmp.ne.s32.totalorder %s168, %s169
    %p178 = scmp.eq.s32.totalorder %s37, 0
    %p179 = por %p177, %p178
    %p180 = scmp.ne.s32.totalorder %s168, %s169
    %p181 = scmp.eq.s32.totalorder %s38, 9
    %p182 = por %p180, %p181
    %p184 = scmp.ne.s32.totalorder %s169, %s183
    %p185 = scmp.eq.s32.totalorder %s38, 0
    %p186 = por %p184, %p185
    %s188 = sadd.s32 %s187, 1
    %p191 = scmp.eq.s32.totalorder %s32, 9
    %p192 = scmp.ne.s32.totalorder %s187, %s189
    %p193 = scmp.eq.s32.totalorder %s32, 0
    %p194 = por %p192, %p193
    %p195 = scmp.ne.s32.totalorder %s187, %s189
    %p196 = scmp.eq.s32.totalorder %s37, 9
    %p197 = por %p195, %p196
    %p198 = scmp.ne.s32.totalorder %s189, %s190
    %p199 = scmp.eq.s32.totalorder %s37, 0
    %p200 = por %p198, %p199
    %p201 = scmp.ne.s32.totalorder %s189, %s190
    %p202 = scmp.eq.s32.totalorder %s38, 9
    %p203 = por %p201, %p202
    %p205 = scmp.ne.s32.totalorder %s190, %s204
    %p206 = scmp.eq.s32.totalorder %s38, 0
    %p207 = por %p205, %p206
    %s208 = ssub.s32 %s32, %s39
    %p209 = scmp.eq.s32.totalorder %s208, 0
    %s211 = sadd.s32 %s210, 1
    %s212 = scalar_select %p209, %s210, %s211
    %p215 = pneg %p209
    %p216 = scmp.eq.s32.totalorder %s32, 9
    %p217 = por %p215, %p216
    %p218 = scmp.ne.s32.totalorder %s210, %s213
    %p219 = scmp.eq.s32.totalorder %s32, 0
    %p220 = por %p218, %p219
    %p221 = scmp.ne.s32.totalorder %s210, %s213
    %p222 = scmp.eq.s32.totalorder %s37, 9
    %p223 = por %p221, %p222
    %p224 = scmp.ne.s32.totalorder %s213, %s214
    %p225 = scmp.eq.s32.totalorder %s37, 0
    %p226 = por %p224, %p225
    %p227 = scmp.ne.s32.totalorder %s213, %s214
    %p228 = scmp.eq.s32.totalorder %s38, 9
    %p229 = por %p227, %p228
    %p231 = scmp.ne.s32.totalorder %s214, %s230
    %p232 = scmp.eq.s32.totalorder %s38, 0
    %p233 = por %p231, %p232
    %s234 = ssub.s32 %s32, %s39
    %p235 = scmp.eq.s32.totalorder %s234, 0
    %s237 = sadd.s32 %s236, 1
    %s238 = scalar_select %p235, %s236, %s237
    %p241 = pneg %p235
    %p242 = scmp.eq.s32.totalorder %s32, 9
    %p243 = por %p241, %p242
    %p244 = scmp.ne.s32.totalorder %s236, %s239
    %p245 = scmp.eq.s32.totalorder %s32, 0
    %p246 = por %p244, %p245
    %p247 = scmp.ne.s32.totalorder %s236, %s239
    %p248 = scmp.eq.s32.totalorder %s37, 9
    %p249 = por %p247, %p248
    %p250 = scmp.ne.s32.totalorder %s239, %s240
    %p251 = scmp.eq.s32.totalorder %s37, 0
    %p252 = por %p250, %p251
    %p253 = scmp.ne.s32.totalorder %s239, %s240
    %p254 = scmp.eq.s32.totalorder %s38, 9
    %p255 = por %p253, %p254
    %p257 = scmp.ne.s32.totalorder %s240, %s256
    %p258 = scmp.eq.s32.totalorder %s38, 0
    %p259 = por %p257, %p258
    %s260 = ssub.s32 %s32, %s39
    %p261 = scmp.eq.s32.totalorder %s260, 0
    %s263 = sadd.s32 %s262, 1
    %s264 = scalar_select %p261, %s262, %s263
    %p267 = pneg %p261
    %p268 = scmp.eq.s32.totalorder %s32, 9
    %p269 = por %p267, %p268
    %p270 = scmp.ne.s32.totalorder %s262, %s265
    %p271 = scmp.eq.s32.totalorder %s32, 0
    %p272 = por %p270, %p271
    %p273 = scmp.ne.s32.totalorder %s262, %s265
    %p274 = scmp.eq.s32.totalorder %s37, 9
    %p275 = por %p273, %p274
    %p276 = scmp.ne.s32.totalorder %s265, %s266
    %p277 = scmp.eq.s32.totalorder %s37, 0
    %p278 = por %p276, %p277
    %p279 = scmp.ne.s32.totalorder %s265, %s266
    %p280 = scmp.eq.s32.totalorder %s38, 9
    %p281 = por %p279, %p280
    %p283 = scmp.ne.s32.totalorder %s266, %s282
    %p284 = scmp.eq.s32.totalorder %s38, 0
    %p285 = por %p283, %p284
    %s286 = ssub.s32 %s32, %s39
    %p287 = scmp.eq.s32.totalorder %s286, 0
    %s289 = sadd.s32 %s288, 1
    %s290 = scalar_select %p287, %s288, %s289
    %p293 = pneg %p287
    %p294 = scmp.eq.s32.totalorder %s32, 9
    %p295 = por %p293, %p294
    %p296 = scmp.ne.s32.totalorder %s288, %s291
    %p297 = scmp.eq.s32.totalorder %s32, 0
    %p298 = por %p296, %p297
    %p299 = scmp.ne.s32.totalorder %s288, %s291
    %p300 = scmp.eq.s32.totalorder %s37, 9
    %p301 = por %p299, %p300
    %p302 = scmp.ne.s32.totalorder %s291, %s292
    %p303 = scmp.eq.s32.totalorder %s37, 0
    %p304 = por %p302, %p303
    %p305 = scmp.ne.s32.totalorder %s291, %s292
    %p306 = scmp.eq.s32.totalorder %s38, 9
    %p307 = por %p305, %p306
    %p309 = scmp.ne.s32.totalorder %s292, %s308
    %p310 = scmp.eq.s32.totalorder %s38, 0
    %p311 = por %p309, %p310
    %s312 = ssub.s32 %s32, %s39
    %p313 = scmp.eq.s32.totalorder %s312, 0
    %s315 = sadd.s32 %s314, 1
    %s316 = scalar_select %p313, %s314, %s315
    %p319 = pneg %p313
    %p320 = scmp.eq.s32.totalorder %s32, 9
    %p321 = por %p319, %p320
    %p322 = scmp.ne.s32.totalorder %s314, %s317
    %p323 = scmp.eq.s32.totalorder %s32, 0
    %p324 = por %p322, %p323
    %p325 = scmp.ne.s32.totalorder %s314, %s317
    %p326 = scmp.eq.s32.totalorder %s37, 9
    %p327 = por %p325, %p326
    %p328 = scmp.ne.s32.totalorder %s317, %s318
    %p329 = scmp.eq.s32.totalorder %s37, 0
    %p330 = por %p328, %p329
    %p331 = scmp.ne.s32.totalorder %s317, %s318
    %p332 = scmp.eq.s32.totalorder %s38, 9
    %p333 = por %p331, %p332
    %p335 = scmp.ne.s32.totalorder %s318, %s334
    %p336 = scmp.eq.s32.totalorder %s38, 0
    %p337 = por %p335, %p336
    %s338 = ssub.s32 %s32, %s39
    %p339 = scmp.eq.s32.totalorder %s338, 0
    %s341 = sadd.s32 %s340, 1
    %s342 = scalar_select %p339, %s340, %s341
    %p345 = pneg %p339
    %p346 = scmp.eq.s32.totalorder %s32, 9
    %p347 = por %p345, %p346
    %p348 = scmp.ne.s32.totalorder %s340, %s343
    %p349 = scmp.eq.s32.totalorder %s32, 0
    %p350 = por %p348, %p349
    %p351 = scmp.ne.s32.totalorder %s340, %s343
    %p352 = scmp.eq.s32.totalorder %s37, 9
    %p353 = por %p351, %p352
    %p354 = scmp.ne.s32.totalorder %s343, %s344
    %p355 = scmp.eq.s32.totalorder %s37, 0
    %p356 = por %p354, %p355
    %p357 = scmp.ne.s32.totalorder %s343, %s344
    %p358 = scmp.eq.s32.totalorder %s38, 9
    %p359 = por %p357, %p358
    %p361 = scmp.ne.s32.totalorder %s344, %s360
    %p362 = scmp.eq.s32.totalorder %s38, 0
    %p363 = por %p361, %p362
    %s364 = ssub.s32 %s32, %s39
    %p365 = scmp.eq.s32.totalorder %s364, 0
    %s367 = sadd.s32 %s366, 1
    %s368 = scalar_select %p365, %s366, %s367
    %p371 = pneg %p365
    %p372 = scmp.eq.s32.totalorder %s32, 9
    %p373 = por %p371, %p372
    %p374 = scmp.ne.s32.totalorder %s366, %s369
    %p375 = scmp.eq.s32.totalorder %s32, 0
    %p376 = por %p374, %p375
    %p377 = scmp.ne.s32.totalorder %s366, %s369
    %p378 = scmp.eq.s32.totalorder %s37, 9
    %p379 = por %p377, %p378
    %p380 = scmp.ne.s32.totalorder %s369, %s370
    %p381 = scmp.eq.s32.totalorder %s37, 0
    %p382 = por %p380, %p381
    %p383 = scmp.ne.s32.totalorder %s369, %s370
    %p384 = scmp.eq.s32.totalorder %s38, 9
    %p385 = por %p383, %p384
    %p387 = scmp.ne.s32.totalorder %s370, %s386
    %p388 = scmp.eq.s32.totalorder %s38, 0
    %p389 = por %p387, %p388
    %s390 = ssub.s32 %s32, %s39
    %p391 = scmp.eq.s32.totalorder %s390, 0
    %s393 = sadd.s32 %s392, 1
    %s394 = scalar_select %p391, %s392, %s393
    %p397 = pneg %p391
    %p398 = scmp.eq.s32.totalorder %s32, 9
    %p399 = por %p397, %p398
    %p400 = scmp.ne.s32.totalorder %s392, %s395
    %p401 = scmp.eq.s32.totalorder %s32, 0
    %p402 = por %p400, %p401
    %p403 = scmp.ne.s32.totalorder %s392, %s395
    %p404 = scmp.eq.s32.totalorder %s37, 9
    %p405 = por %p403, %p404
    %p406 = scmp.ne.s32.totalorder %s395, %s396
    %p407 = scmp.eq.s32.totalorder %s37, 0
    %p408 = por %p406, %p407
    %p409 = scmp.ne.s32.totalorder %s395, %s396
    %p410 = scmp.eq.s32.totalorder %s38, 9
    %p411 = por %p409, %p410
    %p413 = scmp.ne.s32.totalorder %s396, %s412
    %p414 = scmp.eq.s32.totalorder %s38, 0
    %p415 = por %p413, %p414
    %s416 = ssub.s32 %s32, %s39
    %p417 = scmp.eq.s32.totalorder %s416, 0
    %s419 = sadd.s32 %s418, 1
    %s420 = scalar_select %p417, %s418, %s419
    %p423 = pneg %p417
    %p424 = scmp.eq.s32.totalorder %s32, 9
    %p425 = por %p423, %p424
    %p426 = scmp.ne.s32.totalorder %s418, %s421
    %p427 = scmp.eq.s32.totalorder %s32, 0
    %p428 = por %p426, %p427
    %p429 = scmp.ne.s32.totalorder %s418, %s421
    %p430 = scmp.eq.s32.totalorder %s37, 9
    %p431 = por %p429, %p430
    %p432 = scmp.ne.s32.totalorder %s421, %s422
    %p433 = scmp.eq.s32.totalorder %s37, 0
    %p434 = por %p432, %p433
    %p435 = scmp.ne.s32.totalorder %s421, %s422
    %p436 = scmp.eq.s32.totalorder %s38, 9
    %p437 = por %p435, %p436
    %p439 = scmp.ne.s32.totalorder %s422, %s438
    %p440 = scmp.eq.s32.totalorder %s38, 0
    %p441 = por %p439, %p440
    %s442 = ssub.s32 %s32, %s39
    %p443 = scmp.eq.s32.totalorder %s442, 0
    %s445 = sadd.s32 %s444, 1
    %s446 = scalar_select %p443, %s444, %s445
    %p449 = pneg %p443
    %p450 = scmp.eq.s32.totalorder %s32, 9
    %p451 = por %p449, %p450
    %p452 = scmp.ne.s32.totalorder %s444, %s447
    %p453 = scmp.eq.s32.totalorder %s32, 0
    %p454 = por %p452, %p453
    %p455 = scmp.ne.s32.totalorder %s444, %s447
    %p456 = scmp.eq.s32.totalorder %s37, 9
    %p457 = por %p455, %p456
    %p458 = scmp.ne.s32.totalorder %s447, %s448
    %p459 = scmp.eq.s32.totalorder %s37, 0
    %p460 = por %p458, %p459
    %p461 = scmp.ne.s32.totalorder %s447, %s448
    %p462 = scmp.eq.s32.totalorder %s38, 9
    %p463 = por %p461, %p462
    %p465 = scmp.ne.s32.totalorder %s448, %s464
    %p466 = scmp.eq.s32.totalorder %s38, 0
    %p467 = por %p465, %p466
    %s468 = ssub.s32 %s32, %s39
    %p469 = scmp.eq.s32.totalorder %s468, 0
    %s471 = sadd.s32 %s470, 1
    %s472 = scalar_select %p469, %s470, %s471
    %p475 = pneg %p469
    %p476 = scmp.eq.s32.totalorder %s32, 9
    %p477 = por %p475, %p476
    %p478 = scmp.ne.s32.totalorder %s470, %s473
    %p479 = scmp.eq.s32.totalorder %s32, 0
    %p480 = por %p478, %p479
    %p481 = scmp.ne.s32.totalorder %s470, %s473
    %p482 = scmp.eq.s32.totalorder %s37, 9
    %p483 = por %p481, %p482
    %p484 = scmp.ne.s32.totalorder %s473, %s474
    %p485 = scmp.eq.s32.totalorder %s37, 0
    %p486 = por %p484, %p485
    %p487 = scmp.ne.s32.totalorder %s473, %s474
    %p488 = scmp.eq.s32.totalorder %s38, 9
    %p489 = por %p487, %p488
    %p491 = scmp.ne.s32.totalorder %s474, %s490
    %p492 = scmp.eq.s32.totalorder %s38, 0
    %p493 = por %p491, %p492
    %s494 = ssub.s32 %s32, %s39
    %p495 = scmp.eq.s32.totalorder %s494, 0
    %s497 = sadd.s32 %s496, 1
    %s498 = scalar_select %p495, %s496, %s497
    %p501 = pneg %p495
    %p502 = scmp.eq.s32.totalorder %s32, 9
    %p503 = por %p501, %p502
    %p504 = scmp.ne.s32.totalorder %s496, %s499
    %p505 = scmp.eq.s32.totalorder %s32, 0
    %p506 = por %p504, %p505
    %p507 = scmp.ne.s32.totalorder %s496, %s499
    %p508 = scmp.eq.s32.totalorder %s37, 9
    %p509 = por %p507, %p508
    %p510 = scmp.ne.s32.totalorder %s499, %s500
    %p511 = scmp.eq.s32.totalorder %s37, 0
    %p512 = por %p510, %p511
    %p513 = scmp.ne.s32.totalorder %s499, %s500
    %p514 = scmp.eq.s32.totalorder %s38, 9
    %p515 = por %p513, %p514
    %p517 = scmp.ne.s32.totalorder %s500, %s516
    %p518 = scmp.eq.s32.totalorder %s38, 0
    %p519 = por %p517, %p518
    %s521 = sadd.s32 %s520, 1
    %p524 = scmp.eq.s32.totalorder %s32, 9
    %p525 = scmp.ne.s32.totalorder %s520, %s522
    %p526 = scmp.eq.s32.totalorder %s32, 0
    %p527 = por %p525, %p526
    %p528 = scmp.ne.s32.totalorder %s520, %s522
    %p529 = scmp.eq.s32.totalorder %s37, 9
    %p530 = por %p528, %p529
    %p531 = scmp.ne.s32.totalorder %s522, %s523
    %p532 = scmp.eq.s32.totalorder %s37, 0
    %p533 = por %p531, %p532
    %p534 = scmp.ne.s32.totalorder %s522, %s523
    %p535 = scmp.eq.s32.totalorder %s38, 9
    %p536 = por %p534, %p535
    %p538 = scmp.ne.s32.totalorder %s523, %s537
    %p539 = scmp.eq.s32.totalorder %s38, 0
    %p540 = por %p538, %p539
    %s542 = sadd.s32 %s541, 1
    %p545 = scmp.eq.s32.totalorder %s32, 9
    %p546 = scmp.ne.s32.totalorder %s541, %s543
    %p547 = scmp.eq.s32.totalorder %s32, 0
    %p548 = por %p546, %p547
    %p549 = scmp.ne.s32.totalorder %s541, %s543
    %p550 = scmp.eq.s32.totalorder %s37, 9
    %p551 = por %p549, %p550
    %p552 = scmp.ne.s32.totalorder %s543, %s544
    %p553 = scmp.eq.s32.totalorder %s37, 0
    %p554 = por %p552, %p553
    %p555 = scmp.ne.s32.totalorder %s543, %s544
    %p556 = scmp.eq.s32.totalorder %s38, 9
    %p557 = por %p555, %p556
    %p559 = scmp.ne.s32.totalorder %s544, %s558
    %p560 = scmp.eq.s32.totalorder %s38, 0
    %p561 = por %p559, %p560
    %s563 = sadd.s32 %s562, 1
    %p566 = scmp.eq.s32.totalorder %s32, 9
    %p567 = scmp.ne.s32.totalorder %s562, %s564
    %p568 = scmp.eq.s32.totalorder %s32, 0
    %p569 = por %p567, %p568
    %p570 = scmp.ne.s32.totalorder %s562, %s564
    %p571 = scmp.eq.s32.totalorder %s37, 9
    %p572 = por %p570, %p571
    %p573 = scmp.ne.s32.totalorder %s564, %s565
    %p574 = scmp.eq.s32.totalorder %s37, 0
    %p575 = por %p573, %p574
    %p576 = scmp.ne.s32.totalorder %s564, %s565
    %p577 = scmp.eq.s32.totalorder %s38, 9
    %p578 = por %p576, %p577
    %p580 = scmp.ne.s32.totalorder %s565, %s579
    %p581 = scmp.eq.s32.totalorder %s38, 0
    %p582 = por %p580, %p581
    %s584 = sadd.s32 %s583, 1
    %p587 = scmp.eq.s32.totalorder %s32, 9
    %p588 = scmp.ne.s32.totalorder %s583, %s585
    %p589 = scmp.eq.s32.totalorder %s32, 0
    %p590 = por %p588, %p589
    %p591 = scmp.ne.s32.totalorder %s583, %s585
    %p592 = scmp.eq.s32.totalorder %s37, 9
    %p593 = por %p591, %p592
    %p594 = scmp.ne.s32.totalorder %s585, %s586
    %p595 = scmp.eq.s32.totalorder %s37, 0
    %p596 = por %p594, %p595
    %p597 = scmp.ne.s32.totalorder %s585, %s586
    %p598 = scmp.eq.s32.totalorder %s38, 9
    %p599 = por %p597, %p598
    %p601 = scmp.ne.s32.totalorder %s586, %s600
    %p602 = scmp.eq.s32.totalorder %s38, 0
    %p603 = por %p601, %p602
    %s605 = sadd.s32 %s604, 1
    %p608 = scmp.eq.s32.totalorder %s32, 9
    %p609 = scmp.ne.s32.totalorder %s604, %s606
    %p610 = scmp.eq.s32.totalorder %s32, 0
    %p611 = por %p609, %p610
    %p612 = scmp.ne.s32.totalorder %s604, %s606
    %p613 = scmp.eq.s32.totalorder %s37, 9
    %p614 = por %p612, %p613
    %p615 = scmp.ne.s32.totalorder %s606, %s607
    %p616 = scmp.eq.s32.totalorder %s37, 0
    %p617 = por %p615, %p616
    %p618 = scmp.ne.s32.totalorder %s606, %s607
    %p619 = scmp.eq.s32.totalorder %s38, 9
    %p620 = por %p618, %p619
    %p622 = scmp.ne.s32.totalorder %s607, %s621
    %p623 = scmp.eq.s32.totalorder %s38, 0
    %p624 = por %p622, %p623
    %s626 = sadd.s32 %s625, 1
    %p629 = scmp.eq.s32.totalorder %s32, 9
    %p630 = scmp.ne.s32.totalorder %s625, %s627
    %p631 = scmp.eq.s32.totalorder %s32, 0
    %p632 = por %p630, %p631
    %p633 = scmp.ne.s32.totalorder %s625, %s627
    %p634 = scmp.eq.s32.totalorder %s37, 9
    %p635 = por %p633, %p634
    %p636 = scmp.ne.s32.totalorder %s627, %s628
    %p637 = scmp.eq.s32.totalorder %s37, 0
    %p638 = por %p636, %p637
    %p639 = scmp.ne.s32.totalorder %s627, %s628
    %p640 = scmp.eq.s32.totalorder %s38, 9
    %p641 = por %p639, %p640
    %p643 = scmp.ne.s32.totalorder %s628, %s642
    %p644 = scmp.eq.s32.totalorder %s38, 0
    %p645 = por %p643, %p644
    %p646 = scmp.le.s32.totalorder 1, %s32
    %p647 = scmp.lt.s32.totalorder %s32, 11
    %p648 = pnand %p646, %p647
    %p649 = pneg %p648
    // Predicated region
    $region9: #{clipseg_masked_forward.2} parent=5 // pred_check
      _
    $region10: #{clipseg_masked_forward.2} parent=5 // pred_check_branch
      %651 = sbr.rel (%p648) target = $region12
    $region11: #{clipseg_masked_forward.2} parent=5 // pred_region
      %s652 = ssub.s32 %s32, 1
      // Predicated region
      $region13: #{clipseg_masked_forward.2} parent=11 // pred_check
        %p653 = pneg %p53
      $region14: #{clipseg_masked_forward.2} parent=11 // pred_check_branch
        %655 = sbr.rel (%p653) target = $region16
      $region15: #{clipseg_masked_forward.2} parent=11 // pred_region
        _
      $region16: #{clipseg_masked_forward.2} parent=11 // pred_fallthru
        _
      // Predicated region
      $region17: #{clipseg_masked_forward.2} parent=11 // pred_check
        %p656 = pneg %p74
      $region18: #{clipseg_masked_forward.2} parent=11 // pred_check_branch
        %658 = sbr.rel (%p656) target = $region20
      $region19: #{clipseg_masked_forward.2} parent=11 // pred_region
        _
      $region20: #{clipseg_masked_forward.2} parent=11 // pred_fallthru
        _
      // Predicated region
      $region21: #{clipseg_masked_forward.2} parent=11 // pred_check
        %p659 = pneg %p95
      $region22: #{clipseg_masked_forward.2} parent=11 // pred_check_branch
        %661 = sbr.rel (%p659) target = $region24
      $region23: #{clipseg_masked_forward.2} parent=11 // pred_region
        _
      $region24: #{clipseg_masked_forward.2} parent=11 // pred_fallthru
        _
      // Predicated region
      $region25: #{clipseg_masked_forward.2} parent=11 // pred_check
        %p662 = pneg %p116
      $region26: #{clipseg_masked_forward.2} parent=11 // pred_check_branch
        %664 = sbr.rel (%p662) target = $region28
      $region27: #{clipseg_masked_forward.2} parent=11 // pred_region
        _
      $region28: #{clipseg_masked_forward.2} parent=11 // pred_fallthru
        _
      // Predicated region
      $region29: #{clipseg_masked_forward.2} parent=11 // pred_check
        %p665 = pneg %p137
      $region30: #{clipseg_masked_forward.2} parent=11 // pred_check_branch
        %667 = sbr.rel (%p665) target = $region32
      $region31: #{clipseg_masked_forward.2} parent=11 // pred_region
        _
      $region32: #{clipseg_masked_forward.2} parent=11 // pred_fallthru
        _
      // Predicated region
      $region33: #{clipseg_masked_forward.2} parent=11 // pred_check
        %p668 = pneg %p158
      $region34: #{clipseg_masked_forward.2} parent=11 // pred_check_branch
        %670 = sbr.rel (%p668) target = $region36
      $region35: #{clipseg_masked_forward.2} parent=11 // pred_region
        _
      $region36: #{clipseg_masked_forward.2} parent=11 // pred_fallthru
        _
      // Predicated region
      $region37: #{clipseg_masked_forward.2} parent=11 // pred_check
        %p671 = pneg %p179
      $region38: #{clipseg_masked_forward.2} parent=11 // pred_check_branch
        %673 = sbr.rel (%p671) target = $region40
      $region39: #{clipseg_masked_forward.2} parent=11 // pred_region
        _
      $region40: #{clipseg_masked_forward.2} parent=11 // pred_fallthru
        _
      // Predicated region
      $region41: #{clipseg_masked_forward.2} parent=11 // pred_check
        %p674 = pneg %p200
      $region42: #{clipseg_masked_forward.2} parent=11 // pred_check_branch
        %676 = sbr.rel (%p674) target = $region44
      $region43: #{clipseg_masked_forward.2} parent=11 // pred_region
        _
      $region44: #{clipseg_masked_forward.2} parent=11 // pred_fallthru
        _
      // Predicated region
      $region45: #{clipseg_masked_forward.2} parent=11 // pred_check
        %p677 = pneg %p533
      $region46: #{clipseg_masked_forward.2} parent=11 // pred_check_branch
        %679 = sbr.rel (%p677) target = $region48
      $region47: #{clipseg_masked_forward.2} parent=11 // pred_region
        _
      $region48: #{clipseg_masked_forward.2} parent=11 // pred_fallthru
        _
      // Predicated region
      $region49: #{clipseg_masked_forward.2} parent=11 // pred_check
        %p680 = pneg %p554
      $region50: #{clipseg_masked_forward.2} parent=11 // pred_check_branch
        %682 = sbr.rel (%p680) target = $region52
      $region51: #{clipseg_masked_forward.2} parent=11 // pred_region
        _
      $region52: #{clipseg_masked_forward.2} parent=11 // pred_fallthru
        _
      // Predicated region
      $region53: #{clipseg_masked_forward.2} parent=11 // pred_check
        %p683 = pneg %p575
      $region54: #{clipseg_masked_forward.2} parent=11 // pred_check_branch
        %685 = sbr.rel (%p683) target = $region56
      $region55: #{clipseg_masked_forward.2} parent=11 // pred_region
        _
      $region56: #{clipseg_masked_forward.2} parent=11 // pred_fallthru
        _
      // Predicated region
      $region57: #{clipseg_masked_forward.2} parent=11 // pred_check
        %p686 = pneg %p596
      $region58: #{clipseg_masked_forward.2} parent=11 // pred_check_branch
        %688 = sbr.rel (%p686) target = $region60
      $region59: #{clipseg_masked_forward.2} parent=11 // pred_region
        _
      $region60: #{clipseg_masked_forward.2} parent=11 // pred_fallthru
        _
    $region12: #{clipseg_masked_forward.2} parent=5 // pred_fallthru
      _
    %p689 = scmp.lt.s32.totalorder %s32, 10
    // Predicated region
    $region61: #{clipseg_masked_forward.2} parent=5 // pred_check
      %p690 = pneg %p689
    $region62: #{clipseg_masked_forward.2} parent=5 // pred_check_branch
      %692 = sbr.rel (%p690) target = $region64
    $region63: #{clipseg_masked_forward.2} parent=5 // pred_region
      // Predicated region
      $region65: #{clipseg_masked_forward.2} parent=63 // pred_check
        %p693 = pneg %p220
      $region66: #{clipseg_masked_forward.2} parent=63 // pred_check_branch
        %695 = sbr.rel (%p693) target = $region68
      $region67: #{clipseg_masked_forward.2} parent=63 // pred_region
        %p696 = scmp.lt.s32.totalorder %s32, 9
        %s697 = scalar_select %p696, %s32, 9
        %s698 = scalar_lea.vmem %s8, %s697
      $region68: #{clipseg_masked_forward.2} parent=63 // pred_fallthru
        _
      // Predicated region
      $region69: #{clipseg_masked_forward.2} parent=63 // pred_check
        %p699 = pneg %p246
      $region70: #{clipseg_masked_forward.2} parent=63 // pred_check_branch
        %701 = sbr.rel (%p699) target = $region72
      $region71: #{clipseg_masked_forward.2} parent=63 // pred_region
        %p702 = scmp.lt.s32.totalorder %s32, 9
        %s703 = scalar_select %p702, %s32, 9
        %s704 = scalar_lea.vmem %s9, %s703
      $region72: #{clipseg_masked_forward.2} parent=63 // pred_fallthru
        _
      // Predicated region
      $region73: #{clipseg_masked_forward.2} parent=63 // pred_check
        %p705 = pneg %p272
      $region74: #{clipseg_masked_forward.2} parent=63 // pred_check_branch
        %707 = sbr.rel (%p705) target = $region76
      $region75: #{clipseg_masked_forward.2} parent=63 // pred_region
        %p708 = scmp.lt.s32.totalorder %s32, 9
        %s709 = scalar_select %p708, %s32, 9
        %s710 = smul.addr %s709, 4
        %s711 = smul.addr %s710, 4
        %s712 = scalar_lea.vmem %s10, %s711
      $region76: #{clipseg_masked_forward.2} parent=63 // pred_fallthru
        _
      // Predicated region
      $region77: #{clipseg_masked_forward.2} parent=63 // pred_check
        %p713 = pneg %p298
      $region78: #{clipseg_masked_forward.2} parent=63 // pred_check_branch
        %715 = sbr.rel (%p713) target = $region80
      $region79: #{clipseg_masked_forward.2} parent=63 // pred_region
        %p716 = scmp.lt.s32.totalorder %s32, 9
        %s717 = scalar_select %p716, %s32, 9
        %s718 = scalar_lea.vmem %s11, %s717
      $region80: #{clipseg_masked_forward.2} parent=63 // pred_fallthru
        _
      // Predicated region
      $region81: #{clipseg_masked_forward.2} parent=63 // pred_check
        %p719 = pneg %p324
      $region82: #{clipseg_masked_forward.2} parent=63 // pred_check_branch
        %721 = sbr.rel (%p719) target = $region84
      $region83: #{clipseg_masked_forward.2} parent=63 // pred_region
        %p722 = scmp.lt.s32.totalorder %s32, 9
        %s723 = scalar_select %p722, %s32, 9
        %s724 = smul.addr %s723, 4
        %s725 = smul.addr %s724, 4
        %s726 = scalar_lea.vmem %s12, %s725
      $region84: #{clipseg_masked_forward.2} parent=63 // pred_fallthru
        _
      // Predicated region
      $region85: #{clipseg_masked_forward.2} parent=63 // pred_check
        %p727 = pneg %p350
      $region86: #{clipseg_masked_forward.2} parent=63 // pred_check_branch
        %729 = sbr.rel (%p727) target = $region88
      $region87: #{clipseg_masked_forward.2} parent=63 // pred_region
        %p730 = scmp.lt.s32.totalorder %s32, 9
        %s731 = scalar_select %p730, %s32, 9
        %s732 = scalar_lea.vmem %s13, %s731
      $region88: #{clipseg_masked_forward.2} parent=63 // pred_fallthru
        _
      // Predicated region
      $region89: #{clipseg_masked_forward.2} parent=63 // pred_check
        %p733 = pneg %p376
      $region90: #{clipseg_masked_forward.2} parent=63 // pred_check_branch
        %735 = sbr.rel (%p733) target = $region92
      $region91: #{clipseg_masked_forward.2} parent=63 // pred_region
        %p736 = scmp.lt.s32.totalorder %s32, 9
        %s737 = scalar_select %p736, %s32, 9
        %s738 = scalar_lea.vmem %s14, %s737
      $region92: #{clipseg_masked_forward.2} parent=63 // pred_fallthru
        _
      // Predicated region
      $region93: #{clipseg_masked_forward.2} parent=63 // pred_check
        %p739 = pneg %p402
      $region94: #{clipseg_masked_forward.2} parent=63 // pred_check_branch
        %741 = sbr.rel (%p739) target = $region96
      $region95: #{clipseg_masked_forward.2} parent=63 // pred_region
        %p742 = scmp.lt.s32.totalorder %s32, 9
        %s743 = scalar_select %p742, %s32, 9
        %s744 = scalar_lea.vmem %s15, %s743
      $region96: #{clipseg_masked_forward.2} parent=63 // pred_fallthru
        _
      // Predicated region
      $region97: #{clipseg_masked_forward.2} parent=63 // pred_check
        %p745 = pneg %p428
      $region98: #{clipseg_masked_forward.2} parent=63 // pred_check_branch
        %747 = sbr.rel (%p745) target = $region100
      $region99: #{clipseg_masked_forward.2} parent=63 // pred_region
        %p748 = scmp.lt.s32.totalorder %s32, 9
        %s749 = scalar_select %p748, %s32, 9
        %s750 = smul.addr %s749, 4
        %s751 = smul.addr %s750, 4
        %s752 = scalar_lea.vmem %s16, %s751
      $region100: #{clipseg_masked_forward.2} parent=63 // pred_fallthru
        _
      // Predicated region
      $region101: #{clipseg_masked_forward.2} parent=63 // pred_check
        %p753 = pneg %p454
      $region102: #{clipseg_masked_forward.2} parent=63 // pred_check_branch
        %755 = sbr.rel (%p753) target = $region104
      $region103: #{clipseg_masked_forward.2} parent=63 // pred_region
        %p756 = scmp.lt.s32.totalorder %s32, 9
        %s757 = scalar_select %p756, %s32, 9
        %s758 = scalar_lea.vmem %s17, %s757
      $region104: #{clipseg_masked_forward.2} parent=63 // pred_fallthru
        _
      // Predicated region
      $region105: #{clipseg_masked_forward.2} parent=63 // pred_check
        %p759 = pneg %p480
      $region106: #{clipseg_masked_forward.2} parent=63 // pred_check_branch
        %761 = sbr.rel (%p759) target = $region108
      $region107: #{clipseg_masked_forward.2} parent=63 // pred_region
        %p762 = scmp.lt.s32.totalorder %s32, 9
        %s763 = scalar_select %p762, %s32, 9
        %s764 = smul.addr %s763, 16
        %s765 = smul.addr %s764, 4
        %s766 = scalar_lea.vmem %s18, %s765
      $region108: #{clipseg_masked_forward.2} parent=63 // pred_fallthru
        _
      // Predicated region
      $region109: #{clipseg_masked_forward.2} parent=63 // pred_check
        %p767 = pneg %p506
      $region110: #{clipseg_masked_forward.2} parent=63 // pred_check_branch
        %769 = sbr.rel (%p767) target = $region112
      $region111: #{clipseg_masked_forward.2} parent=63 // pred_region
        %p770 = scmp.lt.s32.totalorder %s32, 9
        %s771 = scalar_select %p770, %s32, 9
        %s772 = scalar_lea.vmem %s19, %s771
      $region112: #{clipseg_masked_forward.2} parent=63 // pred_fallthru
        _
    $region64: #{clipseg_masked_forward.2} parent=5 // pred_fallthru
      _
    %p773 = scmp.le.s32.totalorder 1, %s32
    %p774 = scmp.lt.s32.totalorder %s32, 11
    %p775 = pnand %p773, %p774
    %p776 = pneg %p775
    // Predicated region
    $region113: #{clipseg_masked_forward.2} parent=5 // pred_check
      _
    $region114: #{clipseg_masked_forward.2} parent=5 // pred_check_branch
      %778 = sbr.rel (%p775) target = $region116
    $region115: #{clipseg_masked_forward.2} parent=5 // pred_region
      %s779 = ssub.s32 %s32, 1
      %p780 = pneg %p53
      %p781 = pneg %p50
      %p782 = pneg %p74
      %p783 = pneg %p71
      %p784 = pneg %p95
      %p785 = pneg %p92
      %p786 = pneg %p116
      %p787 = pneg %p113
      %p788 = pneg %p137
      %p789 = pneg %p134
      %p790 = pneg %p158
      %p791 = pneg %p155
      %p792 = pneg %p179
      %p793 = pneg %p176
      %p794 = pneg %p200
      %p795 = pneg %p197
      %p796 = scmp.lt.s32.totalorder %s37, 9
      %s797 = scalar_select %p796, %s37, 9
      %s798 = scalar_lea.vmem %s8, %s797
      %p799 = pneg %p226
      %p800 = pneg %p223
      %p801 = scmp.lt.s32.totalorder %s37, 9
      %s802 = scalar_select %p801, %s37, 9
      %s803 = scalar_lea.vmem %s9, %s802
      %p804 = pneg %p252
      %p805 = pneg %p249
      %p806 = scmp.lt.s32.totalorder %s37, 9
      %s807 = scalar_select %p806, %s37, 9
      %s808 = smul.addr %s807, 4
      %s809 = smul.addr %s808, 4
      %s810 = scalar_lea.vmem %s10, %s809
      %p811 = pneg %p278
      %p812 = pneg %p275
      %p813 = scmp.lt.s32.totalorder %s37, 9
      %s814 = scalar_select %p813, %s37, 9
      %s815 = scalar_lea.vmem %s11, %s814
      %p816 = pneg %p304
      %p817 = pneg %p301
      %p818 = scmp.lt.s32.totalorder %s37, 9
      %s819 = scalar_select %p818, %s37, 9
      %s820 = smul.addr %s819, 4
      %s821 = smul.addr %s820, 4
      %s822 = scalar_lea.vmem %s12, %s821
      %p823 = pneg %p330
      %p824 = pneg %p327
      %p825 = scmp.lt.s32.totalorder %s37, 9
      %s826 = scalar_select %p825, %s37, 9
      %s827 = scalar_lea.vmem %s13, %s826
      %p828 = pneg %p356
      %p829 = pneg %p353
      %p830 = scmp.lt.s32.totalorder %s37, 9
      %s831 = scalar_select %p830, %s37, 9
      %s832 = scalar_lea.vmem %s14, %s831
      %p833 = pneg %p382
      %p834 = pneg %p379
      %p835 = scmp.lt.s32.totalorder %s37, 9
      %s836 = scalar_select %p835, %s37, 9
      %s837 = scalar_lea.vmem %s15, %s836
      %p838 = pneg %p408
      %p839 = pneg %p405
      %p840 = scmp.lt.s32.totalorder %s37, 9
      %s841 = scalar_select %p840, %s37, 9
      %s842 = smul.addr %s841, 4
      %s843 = smul.addr %s842, 4
      %s844 = scalar_lea.vmem %s16, %s843
      %p845 = pneg %p434
      %p846 = pneg %p431
      %p847 = scmp.lt.s32.totalorder %s37, 9
      %s848 = scalar_select %p847, %s37, 9
      %s849 = scalar_lea.vmem %s17, %s848
      %p850 = pneg %p460
      %p851 = pneg %p457
      %p852 = scmp.lt.s32.totalorder %s37, 9
      %s853 = scalar_select %p852, %s37, 9
      %s854 = smul.addr %s853, 16
      %s855 = smul.addr %s854, 4
      %s856 = scalar_lea.vmem %s18, %s855
      %p857 = pneg %p486
      %p858 = pneg %p483
      %p859 = scmp.lt.s32.totalorder %s37, 9
      %s860 = scalar_select %p859, %s37, 9
      %s861 = scalar_lea.vmem %s19, %s860
      %p862 = pneg %p512
      %p863 = pneg %p509
      %p864 = pneg %p533
      %p865 = pneg %p530
      %p866 = pneg %p554
      %p867 = pneg %p551
      %p868 = pneg %p575
      %p869 = pneg %p572
      %p870 = pneg %p596
      %p871 = pneg %p593
      %p872 = pneg %p617
      %p873 = pneg %p614
      %p874 = pneg %p638
      %p875 = pneg %p635
      %p876 = scmp.lt.s32.totalorder %s37, 9
      %s877 = scalar_select %p876, %s37, 9
      %s878 = scalar_lea.vmem %s8, %s877
      %p879 = scmp.lt.s32.totalorder %s37, 9
      %s880 = scalar_select %p879, %s37, 9
      %s881 = scalar_lea.vmem %s9, %s880
      %p882 = scmp.lt.s32.totalorder %s37, 9
      %s883 = scalar_select %p882, %s37, 9
      %s884 = smul.addr %s883, 4
      %s885 = smul.addr %s884, 4
      %s886 = scalar_lea.vmem %s10, %s885
      %p887 = scmp.lt.s32.totalorder %s37, 9
      %s888 = scalar_select %p887, %s37, 9
      %s889 = scalar_lea.vmem %s11, %s888
      %p890 = scmp.lt.s32.totalorder %s37, 9
      %s891 = scalar_select %p890, %s37, 9
      %s892 = smul.addr %s891, 4
      %s893 = smul.addr %s892, 4
      %s894 = scalar_lea.vmem %s12, %s893
      %p895 = scmp.lt.s32.totalorder %s37, 9
      %s896 = scalar_select %p895, %s37, 9
      %s897 = scalar_lea.vmem %s13, %s896
      %p898 = scmp.lt.s32.totalorder %s37, 9
      %s899 = scalar_select %p898, %s37, 9
      %s900 = scalar_lea.vmem %s14, %s899
      %p901 = scmp.lt.s32.totalorder %s37, 9
      %s902 = scalar_select %p901, %s37, 9
      %s903 = scalar_lea.vmem %s15, %s902
      %p904 = scmp.lt.s32.totalorder %s37, 9
      %s905 = scalar_select %p904, %s37, 9
      %s906 = smul.addr %s905, 4
      %s907 = smul.addr %s906, 4
      %s908 = scalar_lea.vmem %s16, %s907
      %p909 = scmp.lt.s32.totalorder %s37, 9
      %s910 = scalar_select %p909, %s37, 9
      %s911 = scalar_lea.vmem %s17, %s910
      %p912 = scmp.lt.s32.totalorder %s37, 9
      %s913 = scalar_select %p912, %s37, 9
      %s914 = smul.addr %s913, 16
      %s915 = smul.addr %s914, 4
      %s916 = scalar_lea.vmem %s18, %s915
      %p917 = scmp.lt.s32.totalorder %s37, 9
      %s918 = scalar_select %p917, %s37, 9
      %s919 = scalar_lea.vmem %s19, %s918
      %p921 = scmp.eq.s32.totalorder %s37, 0
      // Predicated region
      $region117: #{clipseg_masked_forward.2} parent=115 // pred_check
        %p922 = pneg %p921
      $region118: #{clipseg_masked_forward.2} parent=115 // pred_check_branch
        %924 = sbr.rel (%p922) target = $region120
      $region119: #{clipseg_masked_forward.2} parent=115 // pred_region
        %v925 = vld [vmem:[%s2] sm:$0xff]
        %v926 = vld [vmem:[%s2 + $0x8] sm:$0xff]
        %v927 = vld [vmem:[%s2 + $0x10] sm:$0xff]
        %v928 = vld [vmem:[%s2 + $0x18] sm:$0xff]
        %v929 = vld [vmem:[%s2 + $0x20] sm:$0xff]
        %v930 = vld [vmem:[%s2 + $0x28] sm:$0xff]
        %v931 = vld [vmem:[%s2 + $0x30] sm:$0xff]
        %v932 = vld [vmem:[%s2 + $0x38] sm:$0xff]
        %v933 = vld [vmem:[%s2 + $0x40] sm:$0xff]
        %v934 = vld [vmem:[%s2 + $0x48] sm:$0xff]
        %v935 = vld [vmem:[%s2 + $0x50] sm:$0xff]
        %v936 = vld [vmem:[%s2 + $0x58] sm:$0xff]
        %v937 = vld [vmem:[%s4] sm:$0xff]
        %v938 = vld [vmem:[%s4 + $0x8] sm:$0xff]
        %v939 = vld [vmem:[%s4 + $0x10] sm:$0xff]
        %v940 = vld [vmem:[%s4 + $0x18] sm:$0xff]
        %v941 = vld [vmem:[%s4 + $0x20] sm:$0xff]
        %v942 = vld [vmem:[%s4 + $0x28] sm:$0xff]
        %v943 = vld [vmem:[%s4 + $0x30] sm:$0xff]
        %v944 = vld [vmem:[%s4 + $0x38] sm:$0xff]
        %v945 = vld [vmem:[%s4 + $0x40] sm:$0xff]
        %v946 = vld [vmem:[%s4 + $0x48] sm:$0xff]
        %v947 = vld [vmem:[%s4 + $0x50] sm:$0xff]
        %v948 = vld [vmem:[%s4 + $0x58] sm:$0xff]
        %v949 = vld [vmem:[%s4 + $0x60] sm:$0xff]
        %v950 = vld [vmem:[%s4 + $0x68] sm:$0xff]
        %v951 = vld [vmem:[%s4 + $0x70] sm:$0xff]
        %v952 = vld [vmem:[%s4 + $0x78] sm:$0xff]
        %v953 = vld [vmem:[%s4 + $0x80] sm:$0xff]
        %v954 = vld [vmem:[%s4 + $0x88] sm:$0xff]
        %v955 = vld [vmem:[%s4 + $0x90] sm:$0xff]
        %v956 = vld [vmem:[%s4 + $0x98] sm:$0xff]
        %v957 = vld [vmem:[%s4 + $0xa0] sm:$0xff]
        %v958 = vld [vmem:[%s4 + $0xa8] sm:$0xff]
        %v959 = vld [vmem:[%s4 + $0xb0] sm:$0xff]
        %v960 = vld [vmem:[%s4 + $0xb8] sm:$0xff]
        %v961 = vld [vmem:[%s4 + $0xc0] sm:$0xff]
        %v962 = vld [vmem:[%s4 + $0xc8] sm:$0xff]
        %v963 = vld [vmem:[%s4 + $0xd0] sm:$0xff]
        %v964 = vld [vmem:[%s4 + $0xd8] sm:$0xff]
        %v965 = vld [vmem:[%s4 + $0xe0] sm:$0xff]
        %v966 = vld [vmem:[%s4 + $0xe8] sm:$0xff]
        %v967 = vld [vmem:[%s4 + $0xf0] sm:$0xff]
        %v968 = vld [vmem:[%s4 + $0xf8] sm:$0xff]
        %v969 = vld [vmem:[%s4 + $0x100] sm:$0xff]
        %v970 = vld [vmem:[%s4 + $0x108] sm:$0xff]
        %v971 = vld [vmem:[%s4 + $0x110] sm:$0xff]
        %v972 = vld [vmem:[%s4 + $0x118] sm:$0xff]
        %v973 = vld [vmem:[%s4 + $0x120] sm:$0xff]
        %v974 = vld [vmem:[%s4 + $0x128] sm:$0xff]
        %v975 = vld [vmem:[%s4 + $0x130] sm:$0xff]
        %v976 = vld [vmem:[%s4 + $0x138] sm:$0xff]
        %v977 = vld [vmem:[%s4 + $0x140] sm:$0xff]
        %v978 = vld [vmem:[%s4 + $0x148] sm:$0xff]
        %v979 = vld [vmem:[%s4 + $0x150] sm:$0xff]
        %v980 = vld [vmem:[%s4 + $0x158] sm:$0xff]
        %v981 = vld [vmem:[%s4 + $0x160] sm:$0xff]
        %v982 = vld [vmem:[%s4 + $0x168] sm:$0xff]
        %v983 = vld [vmem:[%s4 + $0x170] sm:$0xff]
        %v984 = vld [vmem:[%s4 + $0x178] sm:$0xff]
        %v985 = vld [vmem:[%s4 + $0x180] sm:$0xff]
        %v986 = vld [vmem:[%s4 + $0x188] sm:$0xff]
        %v987 = vld [vmem:[%s4 + $0x190] sm:$0xff]
        %v988 = vld [vmem:[%s4 + $0x198] sm:$0xff]
        %v989 = vld [vmem:[%s4 + $0x1a0] sm:$0xff]
        %v990 = vld [vmem:[%s4 + $0x1a8] sm:$0xff]
        %v991 = vld [vmem:[%s4 + $0x1b0] sm:$0xff]
        %v992 = vld [vmem:[%s4 + $0x1b8] sm:$0xff]
        %v993 = vld [vmem:[%s4 + $0x1c0] sm:$0xff]
        %v994 = vld [vmem:[%s4 + $0x1c8] sm:$0xff]
        %v995 = vld [vmem:[%s4 + $0x1d0] sm:$0xff]
        %v996 = vld [vmem:[%s4 + $0x1d8] sm:$0xff]
        %v997 = vld [vmem:[%s4 + $0x1e0] sm:$0xff]
        %v998 = vld [vmem:[%s4 + $0x1e8] sm:$0xff]
        %v999 = vld [vmem:[%s4 + $0x1f0] sm:$0xff]
        %v1000 = vld [vmem:[%s4 + $0x1f8] sm:$0xff]
        %v1001 = vld [vmem:[%s4 + $0x200] sm:$0xff]
        %v1002 = vld [vmem:[%s4 + $0x208] sm:$0xff]
        %v1003 = vld [vmem:[%s4 + $0x210] sm:$0xff]
        %v1004 = vld [vmem:[%s4 + $0x218] sm:$0xff]
        %v1005 = vld [vmem:[%s4 + $0x220] sm:$0xff]
        %v1006 = vld [vmem:[%s4 + $0x228] sm:$0xff]
        %v1007 = vld [vmem:[%s4 + $0x230] sm:$0xff]
        %v1008 = vld [vmem:[%s4 + $0x238] sm:$0xff]
        %v1009 = vld [vmem:[%s4 + $0x240] sm:$0xff]
        %v1010 = vld [vmem:[%s4 + $0x248] sm:$0xff]
        %v1011 = vld [vmem:[%s4 + $0x250] sm:$0xff]
        %v1012 = vld [vmem:[%s4 + $0x258] sm:$0xff]
        %v1013 = vld [vmem:[%s4 + $0x260] sm:$0xff]
        %v1014 = vld [vmem:[%s4 + $0x268] sm:$0xff]
        %v1015 = vld [vmem:[%s4 + $0x270] sm:$0xff]
        %v1016 = vld [vmem:[%s4 + $0x278] sm:$0xff]
        %v1017 = vld [vmem:[%s4 + $0x280] sm:$0xff]
        %v1018 = vld [vmem:[%s4 + $0x288] sm:$0xff]
        %v1019 = vld [vmem:[%s4 + $0x290] sm:$0xff]
        %v1020 = vld [vmem:[%s4 + $0x298] sm:$0xff]
        %v1021 = vld [vmem:[%s4 + $0x2a0] sm:$0xff]
        %v1022 = vld [vmem:[%s4 + $0x2a8] sm:$0xff]
        %v1023 = vld [vmem:[%s4 + $0x2b0] sm:$0xff]
        %v1024 = vld [vmem:[%s4 + $0x2b8] sm:$0xff]
        %v1025 = vld [vmem:[%s4 + $0x2c0] sm:$0xff]
        %v1026 = vld [vmem:[%s4 + $0x2c8] sm:$0xff]
        %v1027 = vld [vmem:[%s4 + $0x2d0] sm:$0xff]
        %v1028 = vld [vmem:[%s4 + $0x2d8] sm:$0xff]
        %v1029 = vld [vmem:[%s4 + $0x2e0] sm:$0xff]
        %v1030 = vld [vmem:[%s4 + $0x2e8] sm:$0xff]
        %v1031 = vld [vmem:[%s4 + $0x2f0] sm:$0xff]
        %v1032 = vld [vmem:[%s4 + $0x2f8] sm:$0xff]
        %1033 = vmatprep.subr.mxu0 0.0
        %1034 = vmatpush1.msra.mxu0 %v952
        %1035 = vmatprep.subr.mxu0 0.0
        %1036 = vmatpush1.msra.mxu0 %v951
        %1037 = vmatprep.subr.mxu0 0.0
        %1038 = vmatpush1.msra.mxu0 %v950
        %1039 = vmatprep.subr.mxu0 0.0
        %1040 = vmatpush1.msra.mxu0 %v949
        %1041 = vmatprep.subr.mxu0 0.0
        %1042 = vmatpush1.msra.mxu0 %v948
        %1043 = vmatprep.subr.mxu0 0.0
        %1044 = vmatpush1.msra.mxu0 %v947
        %1045 = vmatprep.subr.mxu0 0.0
        %1046 = vmatpush1.msra.mxu0 %v946
        %1047 = vmatprep.subr.mxu0 0.0
        %1048 = vmatpush1.msra.mxu0 %v945
        %1049 = vmatprep.subr.mxu0 0.0
        %1050 = vmatpush1.msra.mxu0 %v944
        %1051 = vmatprep.subr.mxu0 0.0
        %1052 = vmatpush1.msra.mxu0 %v943
        %1053 = vmatprep.subr.mxu0 0.0
        %1054 = vmatpush1.msra.mxu0 %v942
        %1055 = vmatprep.subr.mxu0 0.0
        %1056 = vmatpush1.msra.mxu0 %v941
        %1057 = vmatprep.subr.mxu0 0.0
        %1058 = vmatpush1.msra.mxu0 %v940
        %1059 = vmatprep.subr.mxu0 0.0
        %1060 = vmatpush1.msra.mxu0 %v939
        %1061 = vmatprep.subr.mxu0 0.0
        %1062 = vmatpush1.msra.mxu0 %v938
        %1063 = vmatprep.subr.mxu0 0.0
        %1064 = vmatpush1.msra.mxu0 %v937
        %1065 = vmatprep.subr.mxu0 0.0
        %1066 = vmatpush2.msra.mxu0 %v968
        %1067 = vmatprep.subr.mxu0 0.0
        %1068 = vmatpush2.msra.mxu0 %v967
        %1069 = vmatprep.subr.mxu0 0.0
        %1070 = vmatpush2.msra.mxu0 %v966
        %1071 = vmatprep.subr.mxu0 0.0
        %1072 = vmatpush2.msra.mxu0 %v965
        %1073 = vmatprep.subr.mxu0 0.0
        %1074 = vmatpush2.msra.mxu0 %v964
        %1075 = vmatprep.subr.mxu0 0.0
        %1076 = vmatpush2.msra.mxu0 %v963
        %1077 = vmatprep.subr.mxu0 0.0
        %1078 = vmatpush2.msra.mxu0 %v962
        %1079 = vmatprep.subr.mxu0 0.0
        %1080 = vmatpush2.msra.mxu0 %v961
        %1081 = vmatprep.subr.mxu0 0.0
        %1082 = vmatpush2.msra.mxu0 %v960
        %1083 = vmatprep.subr.mxu0 0.0
        %1084 = vmatpush2.msra.mxu0 %v959
        %1085 = vmatprep.subr.mxu0 0.0
        %1086 = vmatpush2.msra.mxu0 %v958
        %1087 = vmatprep.subr.mxu0 0.0
        %1088 = vmatpush2.msra.mxu0 %v957
        %1089 = vmatprep.subr.mxu0 0.0
        %1090 = vmatpush2.msra.mxu0 %v956
        %1091 = vmatprep.subr.mxu0 0.0
        %1092 = vmatpush2.msra.mxu0 %v955
        %1093 = vmatprep.subr.mxu0 0.0
        %1094 = vmatpush2.msra.mxu0 %v954
        %1095 = vmatprep.subr.mxu0 0.0
        %1096 = vmatpush2.msra.mxu0 %v953
        %1097 = vmatprep.mubr.f32.mxu0 %v926
        %1098 = vmatmul.mubr.f32.gmra.mxu0 %v925
        %v1099 = vpop.f32.mrf.mxu0
        %v1100 = vadd.f32 0.0, %v1099
        %v1101 = vpop.f32.mrf.mxu0
        %1102 = vmatprep.mubr.f32.mxu0 %v932
        %1103 = vmatmul.mubr.f32.gmra.mxu0 %v931
        %v1104 = vpop.f32.mrf.mxu0
        %v1105 = vadd.f32 0.0, %v1104
        %v1106 = vpop.f32.mrf.mxu0
        %1107 = vdwg.mxu0
        %1108 = vmatprep.subr.mxu0 0.0
        %1109 = vmatpush1.msra.mxu0 %v984
        %1110 = vmatprep.subr.mxu0 0.0
        %1111 = vmatpush1.msra.mxu0 %v983
        %1112 = vmatprep.subr.mxu0 0.0
        %1113 = vmatpush1.msra.mxu0 %v982
        %1114 = vmatprep.subr.mxu0 0.0
        %1115 = vmatpush1.msra.mxu0 %v981
        %1116 = vmatprep.subr.mxu0 0.0
        %1117 = vmatpush1.msra.mxu0 %v980
        %1118 = vmatprep.subr.mxu0 0.0
        %1119 = vmatpush1.msra.mxu0 %v979
        %1120 = vmatprep.subr.mxu0 0.0
        %1121 = vmatpush1.msra.mxu0 %v978
        %1122 = vmatprep.subr.mxu0 0.0
        %1123 = vmatpush1.msra.mxu0 %v977
        %1124 = vmatprep.subr.mxu0 0.0
        %1125 = vmatpush1.msra.mxu0 %v976
        %1126 = vmatprep.subr.mxu0 0.0
        %1127 = vmatpush1.msra.mxu0 %v975
        %1128 = vmatprep.subr.mxu0 0.0
        %1129 = vmatpush1.msra.mxu0 %v974
        %1130 = vmatprep.subr.mxu0 0.0
        %1131 = vmatpush1.msra.mxu0 %v973
        %1132 = vmatprep.subr.mxu0 0.0
        %1133 = vmatpush1.msra.mxu0 %v972
        %1134 = vmatprep.subr.mxu0 0.0
        %1135 = vmatpush1.msra.mxu0 %v971
        %1136 = vmatprep.subr.mxu0 0.0
        %1137 = vmatpush1.msra.mxu0 %v970
        %1138 = vmatprep.subr.mxu0 0.0
        %1139 = vmatpush1.msra.mxu0 %v969
        %1140 = vmatprep.subr.mxu0 0.0
        %1141 = vmatpush2.msra.mxu0 %v1000
        %1142 = vmatprep.subr.mxu0 0.0
        %1143 = vmatpush2.msra.mxu0 %v999
        %1144 = vmatprep.subr.mxu0 0.0
        %1145 = vmatpush2.msra.mxu0 %v998
        %1146 = vmatprep.subr.mxu0 0.0
        %1147 = vmatpush2.msra.mxu0 %v997
        %1148 = vmatprep.subr.mxu0 0.0
        %1149 = vmatpush2.msra.mxu0 %v996
        %1150 = vmatprep.subr.mxu0 0.0
        %1151 = vmatpush2.msra.mxu0 %v995
        %1152 = vmatprep.subr.mxu0 0.0
        %1153 = vmatpush2.msra.mxu0 %v994
        %1154 = vmatprep.subr.mxu0 0.0
        %1155 = vmatpush2.msra.mxu0 %v993
        %1156 = vmatprep.subr.mxu0 0.0
        %1157 = vmatpush2.msra.mxu0 %v992
        %1158 = vmatprep.subr.mxu0 0.0
        %1159 = vmatpush2.msra.mxu0 %v991
        %1160 = vmatprep.subr.mxu0 0.0
        %1161 = vmatpush2.msra.mxu0 %v990
        %1162 = vmatprep.subr.mxu0 0.0
        %1163 = vmatpush2.msra.mxu0 %v989
        %1164 = vmatprep.subr.mxu0 0.0
        %1165 = vmatpush2.msra.mxu0 %v988
        %1166 = vmatprep.subr.mxu0 0.0
        %1167 = vmatpush2.msra.mxu0 %v987
        %1168 = vmatprep.subr.mxu0 0.0
        %1169 = vmatpush2.msra.mxu0 %v986
        %1170 = vmatprep.subr.mxu0 0.0
        %1171 = vmatpush2.msra.mxu0 %v985
        %1172 = vmatprep.mubr.f32.mxu0 %v928
        %1173 = vmatmul.mubr.f32.gmra.mxu0 %v927
        %v1174 = vpop.f32.mrf.mxu0
        %v1175 = vadd.f32 %v1100, %v1174
        %v1176 = vpop.f32.mrf.mxu0
        %1177 = vmatprep.mubr.f32.mxu0 %v934
        %1178 = vmatmul.mubr.f32.gmra.mxu0 %v933
        %v1179 = vpop.f32.mrf.mxu0
        %v1180 = vadd.f32 %v1105, %v1179
        %v1181 = vpop.f32.mrf.mxu0
        %1182 = vdwg.mxu0
        %1183 = vmatprep.subr.mxu0 0.0
        %1184 = vmatpush1.msra.mxu0 %v1016
        %1185 = vmatprep.subr.mxu0 0.0
        %1186 = vmatpush1.msra.mxu0 %v1015
        %1187 = vmatprep.subr.mxu0 0.0
        %1188 = vmatpush1.msra.mxu0 %v1014
        %1189 = vmatprep.subr.mxu0 0.0
        %1190 = vmatpush1.msra.mxu0 %v1013
        %1191 = vmatprep.subr.mxu0 0.0
        %1192 = vmatpush1.msra.mxu0 %v1012
        %1193 = vmatprep.subr.mxu0 0.0
        %1194 = vmatpush1.msra.mxu0 %v1011
        %1195 = vmatprep.subr.mxu0 0.0
        %1196 = vmatpush1.msra.mxu0 %v1010
        %1197 = vmatprep.subr.mxu0 0.0
        %1198 = vmatpush1.msra.mxu0 %v1009
        %1199 = vmatprep.subr.mxu0 0.0
        %1200 = vmatpush1.msra.mxu0 %v1008
        %1201 = vmatprep.subr.mxu0 0.0
        %1202 = vmatpush1.msra.mxu0 %v1007
        %1203 = vmatprep.subr.mxu0 0.0
        %1204 = vmatpush1.msra.mxu0 %v1006
        %1205 = vmatprep.subr.mxu0 0.0
        %1206 = vmatpush1.msra.mxu0 %v1005
        %1207 = vmatprep.subr.mxu0 0.0
        %1208 = vmatpush1.msra.mxu0 %v1004
        %1209 = vmatprep.subr.mxu0 0.0
        %1210 = vmatpush1.msra.mxu0 %v1003
        %1211 = vmatprep.subr.mxu0 0.0
        %1212 = vmatpush1.msra.mxu0 %v1002
        %1213 = vmatprep.subr.mxu0 0.0
        %1214 = vmatpush1.msra.mxu0 %v1001
        %1215 = vmatprep.subr.mxu0 0.0
        %1216 = vmatpush2.msra.mxu0 %v1032
        %1217 = vmatprep.subr.mxu0 0.0
        %1218 = vmatpush2.msra.mxu0 %v1031
        %1219 = vmatprep.subr.mxu0 0.0
        %1220 = vmatpush2.msra.mxu0 %v1030
        %1221 = vmatprep.subr.mxu0 0.0
        %1222 = vmatpush2.msra.mxu0 %v1029
        %1223 = vmatprep.subr.mxu0 0.0
        %1224 = vmatpush2.msra.mxu0 %v1028
        %1225 = vmatprep.subr.mxu0 0.0
        %1226 = vmatpush2.msra.mxu0 %v1027
        %1227 = vmatprep.subr.mxu0 0.0
        %1228 = vmatpush2.msra.mxu0 %v1026
        %1229 = vmatprep.subr.mxu0 0.0
        %1230 = vmatpush2.msra.mxu0 %v1025
        %1231 = vmatprep.subr.mxu0 0.0
        %1232 = vmatpush2.msra.mxu0 %v1024
        %1233 = vmatprep.subr.mxu0 0.0
        %1234 = vmatpush2.msra.mxu0 %v1023
        %1235 = vmatprep.subr.mxu0 0.0
        %1236 = vmatpush2.msra.mxu0 %v1022
        %1237 = vmatprep.subr.mxu0 0.0
        %1238 = vmatpush2.msra.mxu0 %v1021
        %1239 = vmatprep.subr.mxu0 0.0
        %1240 = vmatpush2.msra.mxu0 %v1020
        %1241 = vmatprep.subr.mxu0 0.0
        %1242 = vmatpush2.msra.mxu0 %v1019
        %1243 = vmatprep.subr.mxu0 0.0
        %1244 = vmatpush2.msra.mxu0 %v1018
        %1245 = vmatprep.subr.mxu0 0.0
        %1246 = vmatpush2.msra.mxu0 %v1017
        %1247 = vmatprep.mubr.f32.mxu0 %v930
        %1248 = vmatmul.mubr.f32.gmra.mxu0 %v929
        %v1249 = vpop.f32.mrf.mxu0
        %v1250 = vadd.f32 %v1175, %v1249
        %v1251 = vpop.f32.mrf.mxu0
        %1252 = vmatprep.mubr.f32.mxu0 %v936
        %1253 = vmatmul.mubr.f32.gmra.mxu0 %v935
        %v1254 = vpop.f32.mrf.mxu0
        %v1255 = vadd.f32 %v1180, %v1254
        %v1256 = vpop.f32.mrf.mxu0
        %1257 = vdwg.mxu0
        %v1258 = vld [vmem:[%s3] sm:$0xff]
        %v1259 = vld [vmem:[%s3 + $0x8] sm:$0xff]
        %v1260 = vld [vmem:[%s3 + $0x10] sm:$0xf]
        %v1261 = vld [vmem:[%s5] sm:$0xff]
        %v1262 = vld [vmem:[%s5 + $0x8] sm:$0xff]
        %v1263 = vld [vmem:[%s5 + $0x10] sm:$0xf]
        %vm1264 = vcmask 130048
        %v1266 = vsel %vm1264, %v1258, 0
        %v1269 = vsel %vm1264, %v1259, 0
        %v1272 = vsel %vm1264, %v1260, 0
        %1274 = vmatprep.subr.mxu0 0.0
        %1275 = vmatpush1.msra.mxu0 0.0
        %1276 = vmatprep.subr.mxu0 0.0
        %1277 = vmatpush1.msra.mxu0 0.0
        %1278 = vmatprep.subr.mxu0 0.0
        %1279 = vmatpush1.msra.mxu0 0.0
        %1280 = vmatprep.subr.mxu0 0.0
        %1281 = vmatpush1.msra.mxu0 0.0
        %1282 = vmatprep.subr.mxu0 0.0
        %1283 = vmatpush1.msra.mxu0 0.0
        %1284 = vmatprep.subr.mxu0 0.0
        %1285 = vmatpush1.msra.mxu0 0.0
        %1286 = vmatprep.subr.mxu0 0.0
        %1287 = vmatpush1.msra.mxu0 0.0
        %1288 = vmatprep.subr.mxu0 0.0
        %1289 = vmatpush1.msra.mxu0 0.0
        %1290 = vmatprep.subr.mxu0 0.0
        %1291 = vmatpush1.msra.mxu0 0.0
        %1292 = vmatprep.subr.mxu0 0.0
        %1293 = vmatpush1.msra.mxu0 0.0
        %1294 = vmatprep.subr.mxu0 0.0
        %1295 = vmatpush1.msra.mxu0 0.0
        %1296 = vmatprep.subr.mxu0 0.0
        %1297 = vmatpush1.msra.mxu0 0.0
        %1298 = vmatprep.subr.mxu0 0.0
        %1299 = vmatpush1.msra.mxu0 0.0
        %1300 = vmatprep.subr.mxu0 0.0
        %1301 = vmatpush1.msra.mxu0 0.0
        %1302 = vmatprep.subr.mxu0 0.0
        %1303 = vmatpush1.msra.mxu0 %v1255
        %1304 = vmatprep.subr.mxu0 0.0
        %1305 = vmatpush1.msra.mxu0 %v1250
        %1306 = vmatprep.subr.mxu0 0.0
        %1307 = vmatpush2.msra.mxu0 0.0
        %1308 = vmatprep.subr.mxu0 0.0
        %1309 = vmatpush2.msra.mxu0 0.0
        %1310 = vmatprep.subr.mxu0 0.0
        %1311 = vmatpush2.msra.mxu0 0.0
        %1312 = vmatprep.subr.mxu0 0.0
        %1313 = vmatpush2.msra.mxu0 0.0
        %1314 = vmatprep.subr.mxu0 0.0
        %1315 = vmatpush2.msra.mxu0 0.0
        %1316 = vmatprep.subr.mxu0 0.0
        %1317 = vmatpush2.msra.mxu0 0.0
        %1318 = vmatprep.subr.mxu0 0.0
        %1319 = vmatpush2.msra.mxu0 0.0
        %1320 = vmatprep.subr.mxu0 0.0
        %1321 = vmatpush2.msra.mxu0 0.0
        %1322 = vmatprep.subr.mxu0 0.0
        %1323 = vmatpush2.msra.mxu0 0.0
        %1324 = vmatprep.subr.mxu0 0.0
        %1325 = vmatpush2.msra.mxu0 0.0
        %1326 = vmatprep.subr.mxu0 0.0
        %1327 = vmatpush2.msra.mxu0 0.0
        %1328 = vmatprep.subr.mxu0 0.0
        %1329 = vmatpush2.msra.mxu0 0.0
        %1330 = vmatprep.subr.mxu0 0.0
        %1331 = vmatpush2.msra.mxu0 0.0
        %1332 = vmatprep.subr.mxu0 0.0
        %1333 = vmatpush2.msra.mxu0 0.0
        %1334 = vmatprep.subr.mxu0 0.0
        %1335 = vmatpush2.msra.mxu0 0.0
        %1336 = vmatprep.subr.mxu0 0.0
        %1337 = vmatpush2.msra.mxu0 0.0
        %1338 = vmatprep.mubr.f32.mxu0 0.0
        %1339 = vmatmul.mubr.f32.gmra.mxu0 %v1266
        %v1340 = vpop.f32.mrf.mxu0
        %v1341 = vadd.f32 %v1261, %v1340
        %v1342 = vpop.f32.mrf.mxu0
        %1343 = vmatprep.mubr.f32.mxu0 0.0
        %1344 = vmatmul.mubr.f32.gmra.mxu0 %v1269
        %v1345 = vpop.f32.mrf.mxu0
        %v1346 = vadd.f32 %v1262, %v1345
        %v1347 = vpop.f32.mrf.mxu0
        %1348 = vmatprep.mubr.f32.mxu0 0.0
        %1349 = vmatmul.mubr.f32.gmra.mxu0 %v1272
        %v1350 = vpop.f32.mrf.mxu0
        %v1351 = vadd.f32 %v1263, %v1350
        %v1352 = vpop.f32.mrf.mxu0
        %1353 = vdwg.mxu0
        %v1354 = vld [vmem:[%s6] sm:$0x1]
        %v1355 = vld [vmem:[%s7] sm:$0x1]
        %vm1356 = vcmask 261120
        %v1357 = vsel %vm1356, %v1341, 0.0
        %1358 = vadd.xlane.f32.xlu0 %v1357
        %v1359 = vpop.xlane.xlu0 %1358
        %v1360 = vsel %vm1356, %v1346, 0.0
        %1361 = vadd.xlane.f32.xlu0 %v1360
        %v1362 = vpop.xlane.xlu0 %1361
        %vm1363 = vcmask 257024
        %v1364 = vsel %vm1363, %v1351, 0.0
        %1365 = vadd.xlane.f32.xlu0 %v1364
        %v1366 = vpop.xlane.xlu0 %1365
        %v1367 = vrcp.pop 32.0
        %v1368 = vmul.f32 %v1359, %v1367
        %v1369 = vmul.f32 %v1362, %v1367
        %v1370 = vmul.f32 %v1366, %v1367
        %v1371 = vsub.f32 %v1341, %v1368
        %v1372 = vsub.f32 %v1346, %v1369
        %v1373 = vsub.f32 %v1351, %v1370
        %v1374 = vmul.f32 %v1371, %v1371
        %v1375 = vmul.f32 %v1372, %v1372
        %v1376 = vmul.f32 %v1373, %v1373
        %v1377 = vsel %vm1356, %v1374, 0.0
        %1378 = vadd.xlane.f32.xlu0 %v1377
        %v1379 = vpop.xlane.xlu0 %1378
        %v1380 = vsel %vm1356, %v1375, 0.0
        %1381 = vadd.xlane.f32.xlu0 %v1380
        %v1382 = vpop.xlane.xlu0 %1381
        %v1383 = vsel %vm1363, %v1376, 0.0
        %1384 = vadd.xlane.f32.xlu0 %v1383
        %v1385 = vpop.xlane.xlu0 %1384
        %v1386 = vmul.f32 %v1379, %v1367
        %v1387 = vmul.f32 %v1382, %v1367
        %v1388 = vmul.f32 %v1385, %v1367
        %v1389 = vadd.f32 %v1386, 1e-05
        %v1390 = vadd.f32 %v1387, 1e-05
        %v1391 = vadd.f32 %v1388, 1e-05
        %v1392 = vrsqrt.pop %v1389
        %v1393 = vrsqrt.pop %v1390
        %v1394 = vrsqrt.pop %v1391
        %v1395 = vmul.f32 %v1371, %v1392
        %v1396 = vmul.f32 %v1372, %v1393
        %v1397 = vmul.f32 %v1373, %v1394
        %v1399 = vlaneseq
        %v1400 = vshrl.u32 %v1399, 7
        %v1401 = vsub.s32 0, %v1400
        %v1402 = vrot.slane %v1354, %v1401
        %v1404 = vmul.f32 %v1395, %v1402
        %v1405 = vmul.f32 %v1396, %v1402
        %v1406 = vmul.f32 %v1397, %v1402
        %v1408 = vlaneseq
        %v1409 = vshrl.u32 %v1408, 7
        %v1410 = vsub.s32 0, %v1409
        %v1411 = vrot.slane %v1355, %v1410
        %v1413 = vadd.f32 %v1404, %v1411
        %v1414 = vadd.f32 %v1405, %v1411
        %v1415 = vadd.f32 %v1406, %v1411
        %1416 = vst.msk [vmem:[#allocation2] sm:$0xff] %vm1356, %v1413
        %1417 = vst.msk [vmem:[#allocation2 + $0x8] sm:$0xff] %vm1356, %v1414
        %1418 = vst.msk [vmem:[#allocation2 + $0x10] sm:$0xf] %vm1363, %v1415
      $region120: #{clipseg_masked_forward.2} parent=115 // pred_fallthru
        _
      %v1419 = vld [vmem:[#allocation2] sm:$0xff]
      %v1420 = vld [vmem:[#allocation2 + $0x8] sm:$0xff]
      %v1421 = vld [vmem:[#allocation2 + $0x10] sm:$0xf]
      %v1422 = vld [vmem:[%s878] sm:$0x1]
      %v1423 = vld [vmem:[%s881] sm:$0x1]
      %vm1424 = vcmask 261120
      %v1425 = vsel %vm1424, %v1419, 0.0
      %1426 = vadd.xlane.f32.xlu0 %v1425
      %v1427 = vpop.xlane.xlu0 %1426
      %v1428 = vsel %vm1424, %v1420, 0.0
      %1429 = vadd.xlane.f32.xlu0 %v1428
      %v1430 = vpop.xlane.xlu0 %1429
      %vm1431 = vcmask 257024
      %v1432 = vsel %vm1431, %v1421, 0.0
      %1433 = vadd.xlane.f32.xlu0 %v1432
      %v1434 = vpop.xlane.xlu0 %1433
      %v1435 = vrcp.pop 32.0
      %v1436 = vmul.f32 %v1427, %v1435
      %v1437 = vmul.f32 %v1430, %v1435
      %v1438 = vmul.f32 %v1434, %v1435
      %v1439 = vsub.f32 %v1419, %v1436
      %v1440 = vsub.f32 %v1420, %v1437
      %v1441 = vsub.f32 %v1421, %v1438
      %v1442 = vmul.f32 %v1439, %v1439
      %v1443 = vmul.f32 %v1440, %v1440
      %v1444 = vmul.f32 %v1441, %v1441
      %v1445 = vsel %vm1424, %v1442, 0.0
      %1446 = vadd.xlane.f32.xlu0 %v1445
      %v1447 = vpop.xlane.xlu0 %1446
      %v1448 = vsel %vm1424, %v1443, 0.0
      %1449 = vadd.xlane.f32.xlu0 %v1448
      %v1450 = vpop.xlane.xlu0 %1449
      %v1451 = vsel %vm1431, %v1444, 0.0
      %1452 = vadd.xlane.f32.xlu0 %v1451
      %v1453 = vpop.xlane.xlu0 %1452
      %v1454 = vmul.f32 %v1447, %v1435
      %v1455 = vmul.f32 %v1450, %v1435
      %v1456 = vmul.f32 %v1453, %v1435
      %v1457 = vadd.f32 %v1454, 1e-05
      %v1458 = vadd.f32 %v1455, 1e-05
      %v1459 = vadd.f32 %v1456, 1e-05
      %v1460 = vrsqrt.pop %v1457
      %v1461 = vrsqrt.pop %v1458
      %v1462 = vrsqrt.pop %v1459
      %v1463 = vmul.f32 %v1439, %v1460
      %v1464 = vmul.f32 %v1440, %v1461
      %v1465 = vmul.f32 %v1441, %v1462
      %v1467 = vlaneseq
      %v1468 = vshrl.u32 %v1467, 7
      %v1469 = vsub.s32 0, %v1468
      %v1470 = vrot.slane %v1422, %v1469
      %v1472 = vmul.f32 %v1463, %v1470
      %v1473 = vmul.f32 %v1464, %v1470
      %v1474 = vmul.f32 %v1465, %v1470
      %v1476 = vlaneseq
      %v1477 = vshrl.u32 %v1476, 7
      %v1478 = vsub.s32 0, %v1477
      %v1479 = vrot.slane %v1423, %v1478
      %v1481 = vadd.f32 %v1472, %v1479
      %v1482 = vadd.f32 %v1473, %v1479
      %v1483 = vadd.f32 %v1474, %v1479
      %v1484 = vpack.c.bf16 %v1482, %v1481
      %v1485 = vpack.c.bf16 %v1483, %v1483
      %v1486 = vld [vmem:[%s886] sm:$0xf]
      %v1487 = vld [vmem:[%s886 + $0x4] sm:$0xf]
      %v1488 = vld [vmem:[%s886 + $0x8] sm:$0xf]
      %v1489 = vld [vmem:[%s886 + $0xc] sm:$0xf]
      %v1490 = vld [vmem:[%s889] sm:$0x1]
      %v1492 = vlaneseq
      %v1493 = vshrl.u32 %v1492, 7
      %v1494 = vsub.s32 0, %v1493
      %v1495 = vrot.slane %v1490, %v1494
      %v1501 = vunpack.c.l.b16 %v1486
      %v1502 = vunpack.c.l.b16 %v1487
      %v1503 = vunpack.c.l.b16 %v1488
      %v1504 = vunpack.c.l.b16 %v1489
      %v1505 = vpack.c.b16 %v1502, %v1501
      %v1506 = vpack.c.b16 %v1504, %v1503
      %v1510 = vsel %vm1424, %v1484, 0
      %v1513 = vsel %vm1424, %v1485, 0
      %1515 = vmatprep.subr.bf16.mxu0 0
      %1516 = vmatpush1.bf16.msra.mxu0 0
      %1517 = vmatprep.subr.bf16.mxu0 0
      %1518 = vmatpush1.bf16.msra.mxu0 0
      %1519 = vmatprep.subr.bf16.mxu0 0
      %1520 = vmatpush1.bf16.msra.mxu0 0
      %1521 = vmatprep.subr.bf16.mxu0 0
      %1522 = vmatpush1.bf16.msra.mxu0 0
      %1523 = vmatprep.subr.bf16.mxu0 0
      %1524 = vmatpush1.bf16.msra.mxu0 0
      %1525 = vmatprep.subr.bf16.mxu0 0
      %1526 = vmatpush1.bf16.msra.mxu0 0
      %1527 = vmatprep.subr.bf16.mxu0 0
      %1528 = vmatpush1.bf16.msra.mxu0 %v1506
      %1529 = vmatprep.subr.bf16.mxu0 0
      %1530 = vmatpush1.bf16.msra.mxu0 %v1505
      %1531 = vmatprep.subr.bf16.mxu0 0
      %1532 = vmatpush2.bf16.msra.mxu0 0
      %1533 = vmatprep.subr.bf16.mxu0 0
      %1534 = vmatpush2.bf16.msra.mxu0 0
      %1535 = vmatprep.subr.bf16.mxu0 0
      %1536 = vmatpush2.bf16.msra.mxu0 0
      %1537 = vmatprep.subr.bf16.mxu0 0
      %1538 = vmatpush2.bf16.msra.mxu0 0
      %1539 = vmatprep.subr.bf16.mxu0 0
      %1540 = vmatpush2.bf16.msra.mxu0 0
      %1541 = vmatprep.subr.bf16.mxu0 0
      %1542 = vmatpush2.bf16.msra.mxu0 0
      %1543 = vmatprep.subr.bf16.mxu0 0
      %1544 = vmatpush2.bf16.msra.mxu0 0
      %1545 = vmatprep.subr.bf16.mxu0 0
      %1546 = vmatpush2.bf16.msra.mxu0 0
      %1547 = vmatprep.mubr.bf16.mxu0 0
      %1548 = vmatmul.mubr.bf16.gmra.mxu0 %v1510
      %v1549 = vpop.f32.mrf.mxu0
      %v1550 = vadd.f32 %v1495, %v1549
      %v1551 = vpop.f32.mrf.mxu0
      %v1552 = vpop.f32.mrf.mxu0
      %v1553 = vadd.f32 %v1495, %v1552
      %v1554 = vpop.f32.mrf.mxu0
      %1555 = vmatprep.mubr.bf16.mxu0 0
      %1556 = vmatmul.mubr.bf16.gmra.mxu0 %v1513
      %v1557 = vpop.f32.mrf.mxu0
      %v1558 = vadd.f32 %v1495, %v1557
      %v1559 = vpop.f32.mrf.mxu0
      %v1560 = vpop.f32.mrf.mxu0
      %v1561 = vpop.f32.mrf.mxu0
      %1562 = vdwg.mxu0
      %v1563 = vld [vmem:[%s23] sm:$0xf]
      %v1564 = vld [vmem:[%s1] sm:$0xff]
      %v1565 = vld [vmem:[%s1 + $0x8] sm:$0xff]
      %v1566 = vld [vmem:[%s1 + $0x10] sm:$0xf]
      %v1567 = vld [vmem:[%s0] sm:$0xff]
      %v1568 = vld [vmem:[%s0 + $0x8] sm:$0xff]
      %v1569 = vld [vmem:[%s0 + $0x10] sm:$0xf]
      %v1570 = vld [vmem:[%s0 + $0x18] sm:$0xff]
      %v1571 = vld [vmem:[%s0 + $0x20] sm:$0xff]
      %v1572 = vld [vmem:[%s0 + $0x28] sm:$0xf]
      %v1573 = vld [vmem:[%s0 + $0x30] sm:$0xff]
      %v1574 = vld [vmem:[%s0 + $0x38] sm:$0xff]
      %v1575 = vld [vmem:[%s0 + $0x40] sm:$0xf]
      %v1576 = vld [vmem:[%s0 + $0x48] sm:$0xff]
      %v1577 = vld [vmem:[%s0 + $0x50] sm:$0xff]
      %v1578 = vld [vmem:[%s0 + $0x58] sm:$0xf]
      %v1579 = vlaneseq
      %v1580 = vshrl.u32 %v1579, 7
      %v1581 = vsub.s32 0, %v1580
      %v1582 = vrot.slane %v1563, %v1581
      %v1583 = vmul.f32 %v1550, %v1582
      %v1584 = vmul.f32 %v1553, %v1582
      %v1585 = vmul.f32 %v1558, %v1582
      %1589 = vrot.lane.b32.xlu0 %v1550, 96
      %v1590 = vpop.permute.xlu0 %1589
      %1591 = vrot.lane.b32.xlu0 %v1553, 96
      %v1592 = vpop.permute.xlu0 %1591
      %1593 = vrot.lane.b32.xlu0 %v1558, 96
      %v1594 = vpop.permute.xlu0 %1593
      %v1596 = vsel %vm1424, %v1583, 0
      %v1599 = vsel %vm1424, %v1584, 0
      %v1602 = vsel %vm1424, %v1585, 0
      %v1604 = vsel %vm1424, %v1590, 0
      %v1606 = vsel %vm1424, %v1592, 0
      %v1608 = vsel %vm1424, %v1594, 0
      %1610 = vmatprep.subr.mxu0 0.0
      %1611 = vmatpush1.xpose.msra.mxu0 0.0
      %1612 = vmatprep.subr.mxu0 0.0
      %1613 = vmatpush1.xpose.msra.mxu0 0.0
      %1614 = vmatprep.subr.mxu0 0.0
      %1615 = vmatpush1.xpose.msra.mxu0 0.0
      %1616 = vmatprep.subr.mxu0 0.0
      %1617 = vmatpush1.xpose.msra.mxu0 0.0
      %1618 = vmatprep.subr.mxu0 0.0
      %1619 = vmatpush1.xpose.msra.mxu0 0.0
      %1620 = vmatprep.subr.mxu0 0.0
      %1621 = vmatpush1.xpose.msra.mxu0 0.0
      %1622 = vmatprep.subr.mxu0 0.0
      %1623 = vmatpush1.xpose.msra.mxu0 0.0
      %1624 = vmatprep.subr.mxu0 0.0
      %1625 = vmatpush1.xpose.msra.mxu0 0.0
      %1626 = vmatprep.subr.mxu0 0.0
      %1627 = vmatpush1.xpose.msra.mxu0 0.0
      %1628 = vmatprep.subr.mxu0 0.0
      %1629 = vmatpush1.xpose.msra.mxu0 0.0
      %1630 = vmatprep.subr.mxu0 0.0
      %1631 = vmatpush1.xpose.msra.mxu0 0.0
      %1632 = vmatprep.subr.mxu0 0.0
      %1633 = vmatpush1.xpose.msra.mxu0 0.0
      %1634 = vmatprep.subr.mxu0 0.0
      %1635 = vmatpush1.xpose.msra.mxu0 0.0
      %1636 = vmatprep.subr.mxu0 0.0
      %1637 = vmatpush1.xpose.msra.mxu0 %v1608
      %1638 = vmatprep.subr.mxu0 0.0
      %1639 = vmatpush1.xpose.msra.mxu0 %v1606
      %1640 = vmatprep.subr.mxu0 0.0
      %1641 = vmatpush1.xpose.msra.mxu0 %v1604
      %1642 = vmatprep.subr.mxu0 0.0
      %1643 = vmatpush2.xpose.msra.mxu0 0.0
      %1644 = vmatprep.subr.mxu0 0.0
      %1645 = vmatpush2.xpose.msra.mxu0 0.0
      %1646 = vmatprep.subr.mxu0 0.0
      %1647 = vmatpush2.xpose.msra.mxu0 0.0
      %1648 = vmatprep.subr.mxu0 0.0
      %1649 = vmatpush2.xpose.msra.mxu0 0.0
      %1650 = vmatprep.subr.mxu0 0.0
      %1651 = vmatpush2.xpose.msra.mxu0 0.0
      %1652 = vmatprep.subr.mxu0 0.0
      %1653 = vmatpush2.xpose.msra.mxu0 0.0
      %1654 = vmatprep.subr.mxu0 0.0
      %1655 = vmatpush2.xpose.msra.mxu0 0.0
      %1656 = vmatprep.subr.mxu0 0.0
      %1657 = vmatpush2.xpose.msra.mxu0 0.0
      %1658 = vmatprep.subr.mxu0 0.0
      %1659 = vmatpush2.xpose.msra.mxu0 0.0
      %1660 = vmatprep.subr.mxu0 0.0
      %1661 = vmatpush2.xpose.msra.mxu0 0.0
      %1662 = vmatprep.subr.mxu0 0.0
      %1663 = vmatpush2.xpose.msra.mxu0 0.0
      %1664 = vmatprep.subr.mxu0 0.0
      %1665 = vmatpush2.xpose.msra.mxu0 0.0
      %1666 = vmatprep.subr.mxu0 0.0
      %1667 = vmatpush2.xpose.msra.mxu0 0.0
      %1668 = vmatprep.subr.mxu0 0.0
      %1669 = vmatpush2.xpose.msra.mxu0 0.0
      %1670 = vmatprep.subr.mxu0 0.0
      %1671 = vmatpush2.xpose.msra.mxu0 0.0
      %1672 = vmatprep.subr.mxu0 0.0
      %1673 = vmatpush2.xpose.msra.mxu0 0.0
      %1674 = vmatprep.mubr.f32.mxu0 0.0
      %1675 = vmatmul.mubr.f32.gmra.mxu0 %v1596
      %v1676 = vpop.f32.mrf.mxu0
      %v1677 = vadd.f32 0.0, %v1676
      %v1678 = vpop.f32.mrf.mxu0
      %1679 = vmatprep.mubr.f32.mxu0 0.0
      %1680 = vmatmul.mubr.f32.gmra.mxu0 %v1599
      %v1681 = vpop.f32.mrf.mxu0
      %v1682 = vadd.f32 0.0, %v1681
      %v1683 = vpop.f32.mrf.mxu0
      %1684 = vmatprep.mubr.f32.mxu0 0.0
      %1685 = vmatmul.mubr.f32.gmra.mxu0 %v1602
      %v1686 = vpop.f32.mrf.mxu0
      %v1687 = vadd.f32 0.0, %v1686
      %v1688 = vpop.f32.mrf.mxu0
      %1689 = vdwg.mxu0
      %v1690 = vmul.f32 %v1677, %v1567
      %v1691 = vmul.f32 %v1682, %v1568
      %v1692 = vmul.f32 %v1687, %v1569
      %v1693 = vadd.f32 %v1690, %v1564
      %v1694 = vadd.f32 %v1691, %v1565
      %v1695 = vadd.f32 %v1692, %v1566
      %vm1696 = vcmask 162816
      %v1697 = vsel %vm1696, %v1693, -inf
      %1698 = vmax.xlane.f32.xlu0 %v1697
      %v1699 = vpop.xlane.xlu0 %1698
      %v1700 = vsel %vm1696, %v1694, -inf
      %1701 = vmax.xlane.f32.xlu0 %v1700
      %v1702 = vpop.xlane.xlu0 %1701
      %vm1703 = vcmask 158720
      %v1704 = vsel %vm1703, %v1695, -inf
      %1705 = vmax.xlane.f32.xlu0 %v1704
      %v1706 = vpop.xlane.xlu0 %1705
      %v1707 = vsub.f32 %v1693, %v1699
      %v1708 = vsub.f32 %v1694, %v1702
      %v1709 = vsub.f32 %v1695, %v1706
      %v1710 = vmul.f32 %v1707, 1.442695
      %v1711 = vpow.pop %v1710
      %v1712 = vmul.f32 %v1708, 1.442695
      %v1713 = vpow.pop %v1712
      %v1714 = vmul.f32 %v1709, 1.442695
      %v1715 = vpow.pop %v1714
      %v1716 = vsel %vm1696, %v1711, 0.0
      %1717 = vadd.xlane.f32.xlu0 %v1716
      %v1718 = vpop.xlane.xlu0 %1717
      %v1719 = vsel %vm1696, %v1713, 0.0
      %1720 = vadd.xlane.f32.xlu0 %v1719
      %v1721 = vpop.xlane.xlu0 %1720
      %v1722 = vsel %vm1703, %v1715, 0.0
      %1723 = vadd.xlane.f32.xlu0 %v1722
      %v1724 = vpop.xlane.xlu0 %1723
      %v1725 = vrcp.pop %v1718
      %v1726 = vrcp.pop %v1721
      %v1727 = vrcp.pop %v1724
      %v1728 = vmul.f32 %v1711, %v1725
      %v1729 = vmul.f32 %v1713, %v1726
      %v1730 = vmul.f32 %v1715, %v1727
      %1732 = vrot.lane.b32.xlu0 %v1582, 64
      %v1733 = vpop.permute.xlu0 %1732
      %v1735 = vmul.f32 %v1550, %v1733
      %v1736 = vmul.f32 %v1553, %v1733
      %v1737 = vmul.f32 %v1558, %v1733
      %v1738 = vlaneseq
      %v1739 = vshrl.u32 %v1738, 7
      %v1740 = vsub.s32 1, %v1739
      %v1741 = vrot.slane %v1563, %v1740
      %v1742 = vmul.f32 %v1550, %v1741
      %v1743 = vmul.f32 %v1553, %v1741
      %v1744 = vmul.f32 %v1558, %v1741
      %v1746 = vsel %vm1424, %v1742, 0
      %v1749 = vsel %vm1424, %v1743, 0
      %v1752 = vsel %vm1424, %v1744, 0
      %1754 = vmatprep.subr.mxu0 0.0
      %1755 = vmatpush1.xpose.msra.mxu0 0.0
      %1756 = vmatprep.subr.mxu0 0.0
      %1757 = vmatpush1.xpose.msra.mxu0 0.0
      %1758 = vmatprep.subr.mxu0 0.0
      %1759 = vmatpush1.xpose.msra.mxu0 0.0
      %1760 = vmatprep.subr.mxu0 0.0
      %1761 = vmatpush1.xpose.msra.mxu0 0.0
      %1762 = vmatprep.subr.mxu0 0.0
      %1763 = vmatpush1.xpose.msra.mxu0 0.0
      %1764 = vmatprep.subr.mxu0 0.0
      %1765 = vmatpush1.xpose.msra.mxu0 0.0
      %1766 = vmatprep.subr.mxu0 0.0
      %1767 = vmatpush1.xpose.msra.mxu0 0.0
      %1768 = vmatprep.subr.mxu0 0.0
      %1769 = vmatpush1.xpose.msra.mxu0 0.0
      %1770 = vmatprep.subr.mxu0 0.0
      %1771 = vmatpush1.xpose.msra.mxu0 0.0
      %1772 = vmatprep.subr.mxu0 0.0
      %1773 = vmatpush1.xpose.msra.mxu0 0.0
      %1774 = vmatprep.subr.mxu0 0.0
      %1775 = vmatpush1.xpose.msra.mxu0 0.0
      %1776 = vmatprep.subr.mxu0 0.0
      %1777 = vmatpush1.xpose.msra.mxu0 0.0
      %1778 = vmatprep.subr.mxu0 0.0
      %1779 = vmatpush1.xpose.msra.mxu0 0.0
      %1780 = vmatprep.subr.mxu0 0.0
      %1781 = vmatpush1.xpose.msra.mxu0 %v1608
      %1782 = vmatprep.subr.mxu0 0.0
      %1783 = vmatpush1.xpose.msra.mxu0 %v1606
      %1784 = vmatprep.subr.mxu0 0.0
      %1785 = vmatpush1.xpose.msra.mxu0 %v1604
      %1786 = vmatprep.subr.mxu0 0.0
      %1787 = vmatpush2.xpose.msra.mxu0 0.0
      %1788 = vmatprep.subr.mxu0 0.0
      %1789 = vmatpush2.xpose.msra.mxu0 0.0
      %1790 = vmatprep.subr.mxu0 0.0
      %1791 = vmatpush2.xpose.msra.mxu0 0.0
      %1792 = vmatprep.subr.mxu0 0.0
      %1793 = vmatpush2.xpose.msra.mxu0 0.0
      %1794 = vmatprep.subr.mxu0 0.0
      %1795 = vmatpush2.xpose.msra.mxu0 0.0
      %1796 = vmatprep.subr.mxu0 0.0
      %1797 = vmatpush2.xpose.msra.mxu0 0.0
      %1798 = vmatprep.subr.mxu0 0.0
      %1799 = vmatpush2.xpose.msra.mxu0 0.0
      %1800 = vmatprep.subr.mxu0 0.0
      %1801 = vmatpush2.xpose.msra.mxu0 0.0
      %1802 = vmatprep.subr.mxu0 0.0
      %1803 = vmatpush2.xpose.msra.mxu0 0.0
      %1804 = vmatprep.subr.mxu0 0.0
      %1805 = vmatpush2.xpose.msra.mxu0 0.0
      %1806 = vmatprep.subr.mxu0 0.0
      %1807 = vmatpush2.xpose.msra.mxu0 0.0
      %1808 = vmatprep.subr.mxu0 0.0
      %1809 = vmatpush2.xpose.msra.mxu0 0.0
      %1810 = vmatprep.subr.mxu0 0.0
      %1811 = vmatpush2.xpose.msra.mxu0 0.0
      %1812 = vmatprep.subr.mxu0 0.0
      %1813 = vmatpush2.xpose.msra.mxu0 0.0
      %1814 = vmatprep.subr.mxu0 0.0
      %1815 = vmatpush2.xpose.msra.mxu0 0.0
      %1816 = vmatprep.subr.mxu0 0.0
      %1817 = vmatpush2.xpose.msra.mxu0 0.0
      %1818 = vmatprep.mubr.f32.mxu0 0.0
      %1819 = vmatmul.mubr.f32.gmra.mxu0 %v1746
      %v1820 = vpop.f32.mrf.mxu0
      %v1821 = vadd.f32 0.0, %v1820
      %v1822 = vpop.f32.mrf.mxu0
      %1823 = vmatprep.mubr.f32.mxu0 0.0
      %1824 = vmatmul.mubr.f32.gmra.mxu0 %v1749
      %v1825 = vpop.f32.mrf.mxu0
      %v1826 = vadd.f32 0.0, %v1825
      %v1827 = vpop.f32.mrf.mxu0
      %1828 = vmatprep.mubr.f32.mxu0 0.0
      %1829 = vmatmul.mubr.f32.gmra.mxu0 %v1752
      %v1830 = vpop.f32.mrf.mxu0
      %v1831 = vadd.f32 0.0, %v1830
      %v1832 = vpop.f32.mrf.mxu0
      %1833 = vdwg.mxu0
      %v1834 = vmul.f32 %v1821, %v1570
      %v1835 = vmul.f32 %v1826, %v1571
      %v1836 = vmul.f32 %v1831, %v1572
      %v1837 = vadd.f32 %v1834, %v1564
      %v1838 = vadd.f32 %v1835, %v1565
      %v1839 = vadd.f32 %v1836, %v1566
      %v1840 = vsel %vm1696, %v1837, -inf
      %1841 = vmax.xlane.f32.xlu0 %v1840
      %v1842 = vpop.xlane.xlu0 %1841
      %v1843 = vsel %vm1696, %v1838, -inf
      %1844 = vmax.xlane.f32.xlu0 %v1843
      %v1845 = vpop.xlane.xlu0 %1844
      %v1846 = vsel %vm1703, %v1839, -inf
      %1847 = vmax.xlane.f32.xlu0 %v1846
      %v1848 = vpop.xlane.xlu0 %1847
      %v1849 = vsub.f32 %v1837, %v1842
      %v1850 = vsub.f32 %v1838, %v1845
      %v1851 = vsub.f32 %v1839, %v1848
      %v1852 = vmul.f32 %v1849, 1.442695
      %v1853 = vpow.pop %v1852
      %v1854 = vmul.f32 %v1850, 1.442695
      %v1855 = vpow.pop %v1854
      %v1856 = vmul.f32 %v1851, 1.442695
      %v1857 = vpow.pop %v1856
      %v1858 = vsel %vm1696, %v1853, 0.0
      %1859 = vadd.xlane.f32.xlu0 %v1858
      %v1860 = vpop.xlane.xlu0 %1859
      %v1861 = vsel %vm1696, %v1855, 0.0
      %1862 = vadd.xlane.f32.xlu0 %v1861
      %v1863 = vpop.xlane.xlu0 %1862
      %v1864 = vsel %vm1703, %v1857, 0.0
      %1865 = vadd.xlane.f32.xlu0 %v1864
      %v1866 = vpop.xlane.xlu0 %1865
      %v1867 = vrcp.pop %v1860
      %v1868 = vrcp.pop %v1863
      %v1869 = vrcp.pop %v1866
      %v1870 = vmul.f32 %v1853, %v1867
      %v1871 = vmul.f32 %v1855, %v1868
      %v1872 = vmul.f32 %v1857, %v1869
      %1874 = vrot.lane.b32.xlu0 %v1741, 64
      %v1875 = vpop.permute.xlu0 %1874
      %v1877 = vmul.f32 %v1550, %v1875
      %v1878 = vmul.f32 %v1553, %v1875
      %v1879 = vmul.f32 %v1558, %v1875
      %1883 = vrot.lane.b32.xlu0 %v1877, 64
      %v1884 = vpop.permute.xlu0 %1883
      %1885 = vrot.lane.b32.xlu0 %v1878, 64
      %v1886 = vpop.permute.xlu0 %1885
      %1887 = vrot.lane.b32.xlu0 %v1879, 64
      %v1888 = vpop.permute.xlu0 %1887
      %v1892 = vsel %vm1696, %v1870, 0
      %v1895 = vsel %vm1696, %v1871, 0
      %v1898 = vsel %vm1696, %v1872, 0
      %vm1900 = vcmask 1043456
      %v1901 = vsel %vm1900, %v1888, 0
      %1903 = vmatprep.subr.mxu0 0.0
      %1904 = vmatpush1.msra.mxu0 0.0
      %1905 = vmatprep.subr.mxu0 0.0
      %1906 = vmatpush1.msra.mxu0 0.0
      %1907 = vmatprep.subr.mxu0 0.0
      %1908 = vmatpush1.msra.mxu0 0.0
      %1909 = vmatprep.subr.mxu0 0.0
      %1910 = vmatpush1.msra.mxu0 0.0
      %1911 = vmatprep.subr.mxu0 0.0
      %1912 = vmatpush1.msra.mxu0 0.0
      %1913 = vmatprep.subr.mxu0 0.0
      %1914 = vmatpush1.msra.mxu0 0.0
      %1915 = vmatprep.subr.mxu0 0.0
      %1916 = vmatpush1.msra.mxu0 0.0
      %1917 = vmatprep.subr.mxu0 0.0
      %1918 = vmatpush1.msra.mxu0 0.0
      %1919 = vmatprep.subr.mxu0 0.0
      %1920 = vmatpush1.msra.mxu0 0.0
      %1921 = vmatprep.subr.mxu0 0.0
      %1922 = vmatpush1.msra.mxu0 0.0
      %1923 = vmatprep.subr.mxu0 0.0
      %1924 = vmatpush1.msra.mxu0 0.0
      %1925 = vmatprep.subr.mxu0 0.0
      %1926 = vmatpush1.msra.mxu0 0.0
      %1927 = vmatprep.subr.mxu0 0.0
      %1928 = vmatpush1.msra.mxu0 0.0
      %1929 = vmatprep.subr.mxu0 0.0
      %1930 = vmatpush1.msra.mxu0 %v1901
      %1931 = vmatprep.subr.mxu0 0.0
      %1932 = vmatpush1.msra.mxu0 %v1886
      %1933 = vmatprep.subr.mxu0 0.0
      %1934 = vmatpush1.msra.mxu0 %v1884
      %1935 = vmatprep.subr.mxu0 0.0
      %1936 = vmatpush2.msra.mxu0 0.0
      %1937 = vmatprep.subr.mxu0 0.0
      %1938 = vmatpush2.msra.mxu0 0.0
      %1939 = vmatprep.subr.mxu0 0.0
      %1940 = vmatpush2.msra.mxu0 0.0
      %1941 = vmatprep.subr.mxu0 0.0
      %1942 = vmatpush2.msra.mxu0 0.0
      %1943 = vmatprep.subr.mxu0 0.0
      %1944 = vmatpush2.msra.mxu0 0.0
      %1945 = vmatprep.subr.mxu0 0.0
      %1946 = vmatpush2.msra.mxu0 0.0
      %1947 = vmatprep.subr.mxu0 0.0
      %1948 = vmatpush2.msra.mxu0 0.0
      %1949 = vmatprep.subr.mxu0 0.0
      %1950 = vmatpush2.msra.mxu0 0.0
      %1951 = vmatprep.subr.mxu0 0.0
      %1952 = vmatpush2.msra.mxu0 0.0
      %1953 = vmatprep.subr.mxu0 0.0
      %1954 = vmatpush2.msra.mxu0 0.0
      %1955 = vmatprep.subr.mxu0 0.0
      %1956 = vmatpush2.msra.mxu0 0.0
      %1957 = vmatprep.subr.mxu0 0.0
      %1958 = vmatpush2.msra.mxu0 0.0
      %1959 = vmatprep.subr.mxu0 0.0
      %1960 = vmatpush2.msra.mxu0 0.0
      %1961 = vmatprep.subr.mxu0 0.0
      %1962 = vmatpush2.msra.mxu0 0.0
      %1963 = vmatprep.subr.mxu0 0.0
      %1964 = vmatpush2.msra.mxu0 0.0
      %1965 = vmatprep.subr.mxu0 0.0
      %1966 = vmatpush2.msra.mxu0 0.0
      %1967 = vmatprep.mubr.f32.mxu0 0.0
      %1968 = vmatmul.mubr.f32.gmra.mxu0 %v1892
      %v1969 = vpop.f32.mrf.mxu0
      %v1970 = vadd.f32 0.0, %v1969
      %v1971 = vpop.f32.mrf.mxu0
      %1972 = vmatprep.mubr.f32.mxu0 0.0
      %1973 = vmatmul.mubr.f32.gmra.mxu0 %v1895
      %v1974 = vpop.f32.mrf.mxu0
      %v1975 = vadd.f32 0.0, %v1974
      %v1976 = vpop.f32.mrf.mxu0
      %1977 = vmatprep.mubr.f32.mxu0 0.0
      %1978 = vmatmul.mubr.f32.gmra.mxu0 %v1898
      %v1979 = vpop.f32.mrf.mxu0
      %v1980 = vadd.f32 0.0, %v1979
      %v1981 = vpop.f32.mrf.mxu0
      %1982 = vdwg.mxu0
      %1986 = vrot.lane.b32.xlu0 %v1735, 64
      %v1987 = vpop.permute.xlu0 %1986
      %1988 = vrot.lane.b32.xlu0 %v1736, 64
      %v1989 = vpop.permute.xlu0 %1988
      %1990 = vrot.lane.b32.xlu0 %v1737, 64
      %v1991 = vpop.permute.xlu0 %1990
      %v1995 = vsel %vm1696, %v1728, 0
      %v1998 = vsel %vm1696, %v1729, 0
      %v2001 = vsel %vm1696, %v1730, 0
      %v2003 = vsel %vm1900, %v1991, 0
      %2005 = vmatprep.subr.mxu0 0.0
      %2006 = vmatpush1.msra.mxu0 0.0
      %2007 = vmatprep.subr.mxu0 0.0
      %2008 = vmatpush1.msra.mxu0 0.0
      %2009 = vmatprep.subr.mxu0 0.0
      %2010 = vmatpush1.msra.mxu0 0.0
      %2011 = vmatprep.subr.mxu0 0.0
      %2012 = vmatpush1.msra.mxu0 0.0
      %2013 = vmatprep.subr.mxu0 0.0
      %2014 = vmatpush1.msra.mxu0 0.0
      %2015 = vmatprep.subr.mxu0 0.0
      %2016 = vmatpush1.msra.mxu0 0.0
      %2017 = vmatprep.subr.mxu0 0.0
      %2018 = vmatpush1.msra.mxu0 0.0
      %2019 = vmatprep.subr.mxu0 0.0
      %2020 = vmatpush1.msra.mxu0 0.0
      %2021 = vmatprep.subr.mxu0 0.0
      %2022 = vmatpush1.msra.mxu0 0.0
      %2023 = vmatprep.subr.mxu0 0.0
      %2024 = vmatpush1.msra.mxu0 0.0
      %2025 = vmatprep.subr.mxu0 0.0
      %2026 = vmatpush1.msra.mxu0 0.0
      %2027 = vmatprep.subr.mxu0 0.0
      %2028 = vmatpush1.msra.mxu0 0.0
      %2029 = vmatprep.subr.mxu0 0.0
      %2030 = vmatpush1.msra.mxu0 0.0
      %2031 = vmatprep.subr.mxu0 0.0
      %2032 = vmatpush1.msra.mxu0 %v2003
      %2033 = vmatprep.subr.mxu0 0.0
      %2034 = vmatpush1.msra.mxu0 %v1989
      %2035 = vmatprep.subr.mxu0 0.0
      %2036 = vmatpush1.msra.mxu0 %v1987
      %2037 = vmatprep.subr.mxu0 0.0
      %2038 = vmatpush2.msra.mxu0 0.0
      %2039 = vmatprep.subr.mxu0 0.0
      %2040 = vmatpush2.msra.mxu0 0.0
      %2041 = vmatprep.subr.mxu0 0.0
      %2042 = vmatpush2.msra.mxu0 0.0
      %2043 = vmatprep.subr.mxu0 0.0
      %2044 = vmatpush2.msra.mxu0 0.0
      %2045 = vmatprep.subr.mxu0 0.0
      %2046 = vmatpush2.msra.mxu0 0.0
      %2047 = vmatprep.subr.mxu0 0.0
      %2048 = vmatpush2.msra.mxu0 0.0
      %2049 = vmatprep.subr.mxu0 0.0
      %2050 = vmatpush2.msra.mxu0 0.0
      %2051 = vmatprep.subr.mxu0 0.0
      %2052 = vmatpush2.msra.mxu0 0.0
      %2053 = vmatprep.subr.mxu0 0.0
      %2054 = vmatpush2.msra.mxu0 0.0
      %2055 = vmatprep.subr.mxu0 0.0
      %2056 = vmatpush2.msra.mxu0 0.0
      %2057 = vmatprep.subr.mxu0 0.0
      %2058 = vmatpush2.msra.mxu0 0.0
      %2059 = vmatprep.subr.mxu0 0.0
      %2060 = vmatpush2.msra.mxu0 0.0
      %2061 = vmatprep.subr.mxu0 0.0
      %2062 = vmatpush2.msra.mxu0 0.0
      %2063 = vmatprep.subr.mxu0 0.0
      %2064 = vmatpush2.msra.mxu0 0.0
      %2065 = vmatprep.subr.mxu0 0.0
      %2066 = vmatpush2.msra.mxu0 0.0
      %2067 = vmatprep.subr.mxu0 0.0
      %2068 = vmatpush2.msra.mxu0 0.0
      %2069 = vmatprep.mubr.f32.mxu0 0.0
      %2070 = vmatmul.mubr.f32.gmra.mxu0 %v1995
      %v2071 = vpop.f32.mrf.mxu0
      %v2072 = vadd.f32 %v1970, %v2071
      %v2073 = vpop.f32.mrf.mxu0
      %2074 = vmatprep.mubr.f32.mxu0 0.0
      %2075 = vmatmul.mubr.f32.gmra.mxu0 %v1998
      %v2076 = vpop.f32.mrf.mxu0
      %v2077 = vadd.f32 %v1975, %v2076
      %v2078 = vpop.f32.mrf.mxu0
      %2079 = vmatprep.mubr.f32.mxu0 0.0
      %2080 = vmatmul.mubr.f32.gmra.mxu0 %v2001
      %v2081 = vpop.f32.mrf.mxu0
      %v2082 = vadd.f32 %v1980, %v2081
      %v2083 = vpop.f32.mrf.mxu0
      %2084 = vdwg.mxu0
      %v2085 = vlaneseq
      %v2086 = vshrl.u32 %v2085, 7
      %v2087 = vsub.s32 2, %v2086
      %v2088 = vrot.slane %v1563, %v2087
      %v2089 = vmul.f32 %v1550, %v2088
      %v2090 = vmul.f32 %v1553, %v2088
      %v2091 = vmul.f32 %v1558, %v2088
      %v2093 = vsel %vm1424, %v2089, 0
      %v2096 = vsel %vm1424, %v2090, 0
      %v2099 = vsel %vm1424, %v2091, 0
      %2101 = vmatprep.subr.mxu0 0.0
      %2102 = vmatpush1.xpose.msra.mxu0 0.0
      %2103 = vmatprep.subr.mxu0 0.0
      %2104 = vmatpush1.xpose.msra.mxu0 0.0
      %2105 = vmatprep.subr.mxu0 0.0
      %2106 = vmatpush1.xpose.msra.mxu0 0.0
      %2107 = vmatprep.subr.mxu0 0.0
      %2108 = vmatpush1.xpose.msra.mxu0 0.0
      %2109 = vmatprep.subr.mxu0 0.0
      %2110 = vmatpush1.xpose.msra.mxu0 0.0
      %2111 = vmatprep.subr.mxu0 0.0
      %2112 = vmatpush1.xpose.msra.mxu0 0.0
      %2113 = vmatprep.subr.mxu0 0.0
      %2114 = vmatpush1.xpose.msra.mxu0 0.0
      %2115 = vmatprep.subr.mxu0 0.0
      %2116 = vmatpush1.xpose.msra.mxu0 0.0
      %2117 = vmatprep.subr.mxu0 0.0
      %2118 = vmatpush1.xpose.msra.mxu0 0.0
      %2119 = vmatprep.subr.mxu0 0.0
      %2120 = vmatpush1.xpose.msra.mxu0 0.0
      %2121 = vmatprep.subr.mxu0 0.0
      %2122 = vmatpush1.xpose.msra.mxu0 0.0
      %2123 = vmatprep.subr.mxu0 0.0
      %2124 = vmatpush1.xpose.msra.mxu0 0.0
      %2125 = vmatprep.subr.mxu0 0.0
      %2126 = vmatpush1.xpose.msra.mxu0 0.0
      %2127 = vmatprep.subr.mxu0 0.0
      %2128 = vmatpush1.xpose.msra.mxu0 %v1608
      %2129 = vmatprep.subr.mxu0 0.0
      %2130 = vmatpush1.xpose.msra.mxu0 %v1606
      %2131 = vmatprep.subr.mxu0 0.0
      %2132 = vmatpush1.xpose.msra.mxu0 %v1604
      %2133 = vmatprep.subr.mxu0 0.0
      %2134 = vmatpush2.xpose.msra.mxu0 0.0
      %2135 = vmatprep.subr.mxu0 0.0
      %2136 = vmatpush2.xpose.msra.mxu0 0.0
      %2137 = vmatprep.subr.mxu0 0.0
      %2138 = vmatpush2.xpose.msra.mxu0 0.0
      %2139 = vmatprep.subr.mxu0 0.0
      %2140 = vmatpush2.xpose.msra.mxu0 0.0
      %2141 = vmatprep.subr.mxu0 0.0
      %2142 = vmatpush2.xpose.msra.mxu0 0.0
      %2143 = vmatprep.subr.mxu0 0.0
      %2144 = vmatpush2.xpose.msra.mxu0 0.0
      %2145 = vmatprep.subr.mxu0 0.0
      %2146 = vmatpush2.xpose.msra.mxu0 0.0
      %2147 = vmatprep.subr.mxu0 0.0
      %2148 = vmatpush2.xpose.msra.mxu0 0.0
      %2149 = vmatprep.subr.mxu0 0.0
      %2150 = vmatpush2.xpose.msra.mxu0 0.0
      %2151 = vmatprep.subr.mxu0 0.0
      %2152 = vmatpush2.xpose.msra.mxu0 0.0
      %2153 = vmatprep.subr.mxu0 0.0
      %2154 = vmatpush2.xpose.msra.mxu0 0.0
      %2155 = vmatprep.subr.mxu0 0.0
      %2156 = vmatpush2.xpose.msra.mxu0 0.0
      %2157 = vmatprep.subr.mxu0 0.0
      %2158 = vmatpush2.xpose.msra.mxu0 0.0
      %2159 = vmatprep.subr.mxu0 0.0
      %2160 = vmatpush2.xpose.msra.mxu0 0.0
      %2161 = vmatprep.subr.mxu0 0.0
      %2162 = vmatpush2.xpose.msra.mxu0 0.0
      %2163 = vmatprep.subr.mxu0 0.0
      %2164 = vmatpush2.xpose.msra.mxu0 0.0
      %2165 = vmatprep.mubr.f32.mxu0 0.0
      %2166 = vmatmul.mubr.f32.gmra.mxu0 %v2093
      %v2167 = vpop.f32.mrf.mxu0
      %v2168 = vadd.f32 0.0, %v2167
      %v2169 = vpop.f32.mrf.mxu0
      %2170 = vmatprep.mubr.f32.mxu0 0.0
      %2171 = vmatmul.mubr.f32.gmra.mxu0 %v2096
      %v2172 = vpop.f32.mrf.mxu0
      %v2173 = vadd.f32 0.0, %v2172
      %v2174 = vpop.f32.mrf.mxu0
      %2175 = vmatprep.mubr.f32.mxu0 0.0
      %2176 = vmatmul.mubr.f32.gmra.mxu0 %v2099
      %v2177 = vpop.f32.mrf.mxu0
      %v2178 = vadd.f32 0.0, %v2177
      %v2179 = vpop.f32.mrf.mxu0
      %2180 = vdwg.mxu0
      %v2181 = vmul.f32 %v2168, %v1573
      %v2182 = vmul.f32 %v2173, %v1574
      %v2183 = vmul.f32 %v2178, %v1575
      %v2184 = vadd.f32 %v2181, %v1564
      %v2185 = vadd.f32 %v2182, %v1565
      %v2186 = vadd.f32 %v2183, %v1566
      %v2187 = vsel %vm1696, %v2184, -inf
      %2188 = vmax.xlane.f32.xlu0 %v2187
      %v2189 = vpop.xlane.xlu0 %2188
      %v2190 = vsel %vm1696, %v2185, -inf
      %2191 = vmax.xlane.f32.xlu0 %v2190
      %v2192 = vpop.xlane.xlu0 %2191
      %v2193 = vsel %vm1703, %v2186, -inf
      %2194 = vmax.xlane.f32.xlu0 %v2193
      %v2195 = vpop.xlane.xlu0 %2194
      %v2196 = vsub.f32 %v2184, %v2189
      %v2197 = vsub.f32 %v2185, %v2192
      %v2198 = vsub.f32 %v2186, %v2195
      %v2199 = vmul.f32 %v2196, 1.442695
      %v2200 = vpow.pop %v2199
      %v2201 = vmul.f32 %v2197, 1.442695
      %v2202 = vpow.pop %v2201
      %v2203 = vmul.f32 %v2198, 1.442695
      %v2204 = vpow.pop %v2203
      %v2205 = vsel %vm1696, %v2200, 0.0
      %2206 = vadd.xlane.f32.xlu0 %v2205
      %v2207 = vpop.xlane.xlu0 %2206
      %v2208 = vsel %vm1696, %v2202, 0.0
      %2209 = vadd.xlane.f32.xlu0 %v2208
      %v2210 = vpop.xlane.xlu0 %2209
      %v2211 = vsel %vm1703, %v2204, 0.0
      %2212 = vadd.xlane.f32.xlu0 %v2211
      %v2213 = vpop.xlane.xlu0 %2212
      %v2214 = vrcp.pop %v2207
      %v2215 = vrcp.pop %v2210
      %v2216 = vrcp.pop %v2213
      %v2217 = vmul.f32 %v2200, %v2214
      %v2218 = vmul.f32 %v2202, %v2215
      %v2219 = vmul.f32 %v2204, %v2216
      %2221 = vrot.lane.b32.xlu0 %v2088, 64
      %v2222 = vpop.permute.xlu0 %2221
      %v2224 = vmul.f32 %v1550, %v2222
      %v2225 = vmul.f32 %v1553, %v2222
      %v2226 = vmul.f32 %v1558, %v2222
      %2230 = vrot.lane.b32.xlu0 %v2224, 64
      %v2231 = vpop.permute.xlu0 %2230
      %2232 = vrot.lane.b32.xlu0 %v2225, 64
      %v2233 = vpop.permute.xlu0 %2232
      %2234 = vrot.lane.b32.xlu0 %v2226, 64
      %v2235 = vpop.permute.xlu0 %2234
      %v2239 = vsel %vm1696, %v2217, 0
      %v2242 = vsel %vm1696, %v2218, 0
      %v2245 = vsel %vm1696, %v2219, 0
      %v2247 = vsel %vm1900, %v2235, 0
      %2249 = vmatprep.subr.mxu0 0.0
      %2250 = vmatpush1.msra.mxu0 0.0
      %2251 = vmatprep.subr.mxu0 0.0
      %2252 = vmatpush1.msra.mxu0 0.0
      %2253 = vmatprep.subr.mxu0 0.0
      %2254 = vmatpush1.msra.mxu0 0.0
      %2255 = vmatprep.subr.mxu0 0.0
      %2256 = vmatpush1.msra.mxu0 0.0
      %2257 = vmatprep.subr.mxu0 0.0
      %2258 = vmatpush1.msra.mxu0 0.0
      %2259 = vmatprep.subr.mxu0 0.0
      %2260 = vmatpush1.msra.mxu0 0.0
      %2261 = vmatprep.subr.mxu0 0.0
      %2262 = vmatpush1.msra.mxu0 0.0
      %2263 = vmatprep.subr.mxu0 0.0
      %2264 = vmatpush1.msra.mxu0 0.0
      %2265 = vmatprep.subr.mxu0 0.0
      %2266 = vmatpush1.msra.mxu0 0.0
      %2267 = vmatprep.subr.mxu0 0.0
      %2268 = vmatpush1.msra.mxu0 0.0
      %2269 = vmatprep.subr.mxu0 0.0
      %2270 = vmatpush1.msra.mxu0 0.0
      %2271 = vmatprep.subr.mxu0 0.0
      %2272 = vmatpush1.msra.mxu0 0.0
      %2273 = vmatprep.subr.mxu0 0.0
      %2274 = vmatpush1.msra.mxu0 0.0
      %2275 = vmatprep.subr.mxu0 0.0
      %2276 = vmatpush1.msra.mxu0 %v2247
      %2277 = vmatprep.subr.mxu0 0.0
      %2278 = vmatpush1.msra.mxu0 %v2233
      %2279 = vmatprep.subr.mxu0 0.0
      %2280 = vmatpush1.msra.mxu0 %v2231
      %2281 = vmatprep.subr.mxu0 0.0
      %2282 = vmatpush2.msra.mxu0 0.0
      %2283 = vmatprep.subr.mxu0 0.0
      %2284 = vmatpush2.msra.mxu0 0.0
      %2285 = vmatprep.subr.mxu0 0.0
      %2286 = vmatpush2.msra.mxu0 0.0
      %2287 = vmatprep.subr.mxu0 0.0
      %2288 = vmatpush2.msra.mxu0 0.0
      %2289 = vmatprep.subr.mxu0 0.0
      %2290 = vmatpush2.msra.mxu0 0.0
      %2291 = vmatprep.subr.mxu0 0.0
      %2292 = vmatpush2.msra.mxu0 0.0
      %2293 = vmatprep.subr.mxu0 0.0
      %2294 = vmatpush2.msra.mxu0 0.0
      %2295 = vmatprep.subr.mxu0 0.0
      %2296 = vmatpush2.msra.mxu0 0.0
      %2297 = vmatprep.subr.mxu0 0.0
      %2298 = vmatpush2.msra.mxu0 0.0
      %2299 = vmatprep.subr.mxu0 0.0
      %2300 = vmatpush2.msra.mxu0 0.0
      %2301 = vmatprep.subr.mxu0 0.0
      %2302 = vmatpush2.msra.mxu0 0.0
      %2303 = vmatprep.subr.mxu0 0.0
      %2304 = vmatpush2.msra.mxu0 0.0
      %2305 = vmatprep.subr.mxu0 0.0
      %2306 = vmatpush2.msra.mxu0 0.0
      %2307 = vmatprep.subr.mxu0 0.0
      %2308 = vmatpush2.msra.mxu0 0.0
      %2309 = vmatprep.subr.mxu0 0.0
      %2310 = vmatpush2.msra.mxu0 0.0
      %2311 = vmatprep.subr.mxu0 0.0
      %2312 = vmatpush2.msra.mxu0 0.0
      %2313 = vmatprep.mubr.f32.mxu0 0.0
      %2314 = vmatmul.mubr.f32.gmra.mxu0 %v2239
      %v2315 = vpop.f32.mrf.mxu0
      %v2316 = vadd.f32 0.0, %v2315
      %v2317 = vpop.f32.mrf.mxu0
      %2318 = vmatprep.mubr.f32.mxu0 0.0
      %2319 = vmatmul.mubr.f32.gmra.mxu0 %v2242
      %v2320 = vpop.f32.mrf.mxu0
      %v2321 = vadd.f32 0.0, %v2320
      %v2322 = vpop.f32.mrf.mxu0
      %2323 = vmatprep.mubr.f32.mxu0 0.0
      %2324 = vmatmul.mubr.f32.gmra.mxu0 %v2245
      %v2325 = vpop.f32.mrf.mxu0
      %v2326 = vadd.f32 0.0, %v2325
      %v2327 = vpop.f32.mrf.mxu0
      %2328 = vdwg.mxu0
      %v2329 = vadd.f32 %v2072, %v2316
      %v2330 = vadd.f32 %v2077, %v2321
      %v2331 = vadd.f32 %v2082, %v2326
      %v2332 = vlaneseq
      %v2333 = vshrl.u32 %v2332, 7
      %v2334 = vsub.s32 3, %v2333
      %v2335 = vrot.slane %v1563, %v2334
      %v2336 = vmul.f32 %v1550, %v2335
      %v2337 = vmul.f32 %v1553, %v2335
      %v2338 = vmul.f32 %v1558, %v2335
      %v2340 = vsel %vm1424, %v2336, 0
      %v2343 = vsel %vm1424, %v2337, 0
      %v2346 = vsel %vm1424, %v2338, 0
      %2348 = vmatprep.subr.mxu0 0.0
      %2349 = vmatpush1.xpose.msra.mxu0 0.0
      %2350 = vmatprep.subr.mxu0 0.0
      %2351 = vmatpush1.xpose.msra.mxu0 0.0
      %2352 = vmatprep.subr.mxu0 0.0
      %2353 = vmatpush1.xpose.msra.mxu0 0.0
      %2354 = vmatprep.subr.mxu0 0.0
      %2355 = vmatpush1.xpose.msra.mxu0 0.0
      %2356 = vmatprep.subr.mxu0 0.0
      %2357 = vmatpush1.xpose.msra.mxu0 0.0
      %2358 = vmatprep.subr.mxu0 0.0
      %2359 = vmatpush1.xpose.msra.mxu0 0.0
      %2360 = vmatprep.subr.mxu0 0.0
      %2361 = vmatpush1.xpose.msra.mxu0 0.0
      %2362 = vmatprep.subr.mxu0 0.0
      %2363 = vmatpush1.xpose.msra.mxu0 0.0
      %2364 = vmatprep.subr.mxu0 0.0
      %2365 = vmatpush1.xpose.msra.mxu0 0.0
      %2366 = vmatprep.subr.mxu0 0.0
      %2367 = vmatpush1.xpose.msra.mxu0 0.0
      %2368 = vmatprep.subr.mxu0 0.0
      %2369 = vmatpush1.xpose.msra.mxu0 0.0
      %2370 = vmatprep.subr.mxu0 0.0
      %2371 = vmatpush1.xpose.msra.mxu0 0.0
      %2372 = vmatprep.subr.mxu0 0.0
      %2373 = vmatpush1.xpose.msra.mxu0 0.0
      %2374 = vmatprep.subr.mxu0 0.0
      %2375 = vmatpush1.xpose.msra.mxu0 %v1608
      %2376 = vmatprep.subr.mxu0 0.0
      %2377 = vmatpush1.xpose.msra.mxu0 %v1606
      %2378 = vmatprep.subr.mxu0 0.0
      %2379 = vmatpush1.xpose.msra.mxu0 %v1604
      %2380 = vmatprep.subr.mxu0 0.0
      %2381 = vmatpush2.xpose.msra.mxu0 0.0
      %2382 = vmatprep.subr.mxu0 0.0
      %2383 = vmatpush2.xpose.msra.mxu0 0.0
      %2384 = vmatprep.subr.mxu0 0.0
      %2385 = vmatpush2.xpose.msra.mxu0 0.0
      %2386 = vmatprep.subr.mxu0 0.0
      %2387 = vmatpush2.xpose.msra.mxu0 0.0
      %2388 = vmatprep.subr.mxu0 0.0
      %2389 = vmatpush2.xpose.msra.mxu0 0.0
      %2390 = vmatprep.subr.mxu0 0.0
      %2391 = vmatpush2.xpose.msra.mxu0 0.0
      %2392 = vmatprep.subr.mxu0 0.0
      %2393 = vmatpush2.xpose.msra.mxu0 0.0
      %2394 = vmatprep.subr.mxu0 0.0
      %2395 = vmatpush2.xpose.msra.mxu0 0.0
      %2396 = vmatprep.subr.mxu0 0.0
      %2397 = vmatpush2.xpose.msra.mxu0 0.0
      %2398 = vmatprep.subr.mxu0 0.0
      %2399 = vmatpush2.xpose.msra.mxu0 0.0
      %2400 = vmatprep.subr.mxu0 0.0
      %2401 = vmatpush2.xpose.msra.mxu0 0.0
      %2402 = vmatprep.subr.mxu0 0.0
      %2403 = vmatpush2.xpose.msra.mxu0 0.0
      %2404 = vmatprep.subr.mxu0 0.0
      %2405 = vmatpush2.xpose.msra.mxu0 0.0
      %2406 = vmatprep.subr.mxu0 0.0
      %2407 = vmatpush2.xpose.msra.mxu0 0.0
      %2408 = vmatprep.subr.mxu0 0.0
      %2409 = vmatpush2.xpose.msra.mxu0 0.0
      %2410 = vmatprep.subr.mxu0 0.0
      %2411 = vmatpush2.xpose.msra.mxu0 0.0
      %2412 = vmatprep.mubr.f32.mxu0 0.0
      %2413 = vmatmul.mubr.f32.gmra.mxu0 %v2340
      %v2414 = vpop.f32.mrf.mxu0
      %v2415 = vadd.f32 0.0, %v2414
      %v2416 = vpop.f32.mrf.mxu0
      %2417 = vmatprep.mubr.f32.mxu0 0.0
      %2418 = vmatmul.mubr.f32.gmra.mxu0 %v2343
      %v2419 = vpop.f32.mrf.mxu0
      %v2420 = vadd.f32 0.0, %v2419
      %v2421 = vpop.f32.mrf.mxu0
      %2422 = vmatprep.mubr.f32.mxu0 0.0
      %2423 = vmatmul.mubr.f32.gmra.mxu0 %v2346
      %v2424 = vpop.f32.mrf.mxu0
      %v2425 = vadd.f32 0.0, %v2424
      %v2426 = vpop.f32.mrf.mxu0
      %2427 = vdwg.mxu0
      %v2428 = vmul.f32 %v2415, %v1576
      %v2429 = vmul.f32 %v2420, %v1577
      %v2430 = vmul.f32 %v2425, %v1578
      %v2431 = vadd.f32 %v2428, %v1564
      %v2432 = vadd.f32 %v2429, %v1565
      %v2433 = vadd.f32 %v2430, %v1566
      %v2434 = vsel %vm1696, %v2431, -inf
      %2435 = vmax.xlane.f32.xlu0 %v2434
      %v2436 = vpop.xlane.xlu0 %2435
      %v2437 = vsel %vm1696, %v2432, -inf
      %2438 = vmax.xlane.f32.xlu0 %v2437
      %v2439 = vpop.xlane.xlu0 %2438
      %v2440 = vsel %vm1703, %v2433, -inf
      %2441 = vmax.xlane.f32.xlu0 %v2440
      %v2442 = vpop.xlane.xlu0 %2441
      %v2443 = vsub.f32 %v2431, %v2436
      %v2444 = vsub.f32 %v2432, %v2439
      %v2445 = vsub.f32 %v2433, %v2442
      %v2446 = vmul.f32 %v2443, 1.442695
      %v2447 = vpow.pop %v2446
      %v2448 = vmul.f32 %v2444, 1.442695
      %v2449 = vpow.pop %v2448
      %v2450 = vmul.f32 %v2445, 1.442695
      %v2451 = vpow.pop %v2450
      %v2452 = vsel %vm1696, %v2447, 0.0
      %2453 = vadd.xlane.f32.xlu0 %v2452
      %v2454 = vpop.xlane.xlu0 %2453
      %v2455 = vsel %vm1696, %v2449, 0.0
      %2456 = vadd.xlane.f32.xlu0 %v2455
      %v2457 = vpop.xlane.xlu0 %2456
      %v2458 = vsel %vm1703, %v2451, 0.0
      %2459 = vadd.xlane.f32.xlu0 %v2458
      %v2460 = vpop.xlane.xlu0 %2459
      %v2461 = vrcp.pop %v2454
      %v2462 = vrcp.pop %v2457
      %v2463 = vrcp.pop %v2460
      %v2464 = vmul.f32 %v2447, %v2461
      %v2465 = vmul.f32 %v2449, %v2462
      %v2466 = vmul.f32 %v2451, %v2463
      %2468 = vrot.lane.b32.xlu0 %v2335, 64
      %v2469 = vpop.permute.xlu0 %2468
      %v2471 = vmul.f32 %v1550, %v2469
      %v2472 = vmul.f32 %v1553, %v2469
      %v2473 = vmul.f32 %v1558, %v2469
      %2477 = vrot.lane.b32.xlu0 %v2471, 64
      %v2478 = vpop.permute.xlu0 %2477
      %2479 = vrot.lane.b32.xlu0 %v2472, 64
      %v2480 = vpop.permute.xlu0 %2479
      %2481 = vrot.lane.b32.xlu0 %v2473, 64
      %v2482 = vpop.permute.xlu0 %2481
      %v2486 = vsel %vm1696, %v2464, 0
      %v2489 = vsel %vm1696, %v2465, 0
      %v2492 = vsel %vm1696, %v2466, 0
      %v2494 = vsel %vm1900, %v2482, 0
      %2496 = vmatprep.subr.mxu0 0.0
      %2497 = vmatpush1.msra.mxu0 0.0
      %2498 = vmatprep.subr.mxu0 0.0
      %2499 = vmatpush1.msra.mxu0 0.0
      %2500 = vmatprep.subr.mxu0 0.0
      %2501 = vmatpush1.msra.mxu0 0.0
      %2502 = vmatprep.subr.mxu0 0.0
      %2503 = vmatpush1.msra.mxu0 0.0
      %2504 = vmatprep.subr.mxu0 0.0
      %2505 = vmatpush1.msra.mxu0 0.0
      %2506 = vmatprep.subr.mxu0 0.0
      %2507 = vmatpush1.msra.mxu0 0.0
      %2508 = vmatprep.subr.mxu0 0.0
      %2509 = vmatpush1.msra.mxu0 0.0
      %2510 = vmatprep.subr.mxu0 0.0
      %2511 = vmatpush1.msra.mxu0 0.0
      %2512 = vmatprep.subr.mxu0 0.0
      %2513 = vmatpush1.msra.mxu0 0.0
      %2514 = vmatprep.subr.mxu0 0.0
      %2515 = vmatpush1.msra.mxu0 0.0
      %2516 = vmatprep.subr.mxu0 0.0
      %2517 = vmatpush1.msra.mxu0 0.0
      %2518 = vmatprep.subr.mxu0 0.0
      %2519 = vmatpush1.msra.mxu0 0.0
      %2520 = vmatprep.subr.mxu0 0.0
      %2521 = vmatpush1.msra.mxu0 0.0
      %2522 = vmatprep.subr.mxu0 0.0
      %2523 = vmatpush1.msra.mxu0 %v2494
      %2524 = vmatprep.subr.mxu0 0.0
      %2525 = vmatpush1.msra.mxu0 %v2480
      %2526 = vmatprep.subr.mxu0 0.0
      %2527 = vmatpush1.msra.mxu0 %v2478
      %2528 = vmatprep.subr.mxu0 0.0
      %2529 = vmatpush2.msra.mxu0 0.0
      %2530 = vmatprep.subr.mxu0 0.0
      %2531 = vmatpush2.msra.mxu0 0.0
      %2532 = vmatprep.subr.mxu0 0.0
      %2533 = vmatpush2.msra.mxu0 0.0
      %2534 = vmatprep.subr.mxu0 0.0
      %2535 = vmatpush2.msra.mxu0 0.0
      %2536 = vmatprep.subr.mxu0 0.0
      %2537 = vmatpush2.msra.mxu0 0.0
      %2538 = vmatprep.subr.mxu0 0.0
      %2539 = vmatpush2.msra.mxu0 0.0
      %2540 = vmatprep.subr.mxu0 0.0
      %2541 = vmatpush2.msra.mxu0 0.0
      %2542 = vmatprep.subr.mxu0 0.0
      %2543 = vmatpush2.msra.mxu0 0.0
      %2544 = vmatprep.subr.mxu0 0.0
      %2545 = vmatpush2.msra.mxu0 0.0
      %2546 = vmatprep.subr.mxu0 0.0
      %2547 = vmatpush2.msra.mxu0 0.0
      %2548 = vmatprep.subr.mxu0 0.0
      %2549 = vmatpush2.msra.mxu0 0.0
      %2550 = vmatprep.subr.mxu0 0.0
      %2551 = vmatpush2.msra.mxu0 0.0
      %2552 = vmatprep.subr.mxu0 0.0
      %2553 = vmatpush2.msra.mxu0 0.0
      %2554 = vmatprep.subr.mxu0 0.0
      %2555 = vmatpush2.msra.mxu0 0.0
      %2556 = vmatprep.subr.mxu0 0.0
      %2557 = vmatpush2.msra.mxu0 0.0
      %2558 = vmatprep.subr.mxu0 0.0
      %2559 = vmatpush2.msra.mxu0 0.0
      %2560 = vmatprep.mubr.f32.mxu0 0.0
      %2561 = vmatmul.mubr.f32.gmra.mxu0 %v2486
      %v2562 = vpop.f32.mrf.mxu0
      %v2563 = vadd.f32 0.0, %v2562
      %v2564 = vpop.f32.mrf.mxu0
      %2565 = vmatprep.mubr.f32.mxu0 0.0
      %2566 = vmatmul.mubr.f32.gmra.mxu0 %v2489
      %v2567 = vpop.f32.mrf.mxu0
      %v2568 = vadd.f32 0.0, %v2567
      %v2569 = vpop.f32.mrf.mxu0
      %2570 = vmatprep.mubr.f32.mxu0 0.0
      %2571 = vmatmul.mubr.f32.gmra.mxu0 %v2492
      %v2572 = vpop.f32.mrf.mxu0
      %v2573 = vadd.f32 0.0, %v2572
      %v2574 = vpop.f32.mrf.mxu0
      %2575 = vdwg.mxu0
      %v2576 = vadd.f32 %v2329, %v2563
      %v2577 = vadd.f32 %v2330, %v2568
      %v2578 = vadd.f32 %v2331, %v2573
      %v2579 = vpack.c.bf16 %v2577, %v2576
      %v2580 = vpack.c.bf16 %v2578, %v2578
      %v2581 = vld [vmem:[%s894] sm:$0xf]
      %v2582 = vld [vmem:[%s894 + $0x4] sm:$0xf]
      %v2583 = vld [vmem:[%s894 + $0x8] sm:$0xf]
      %v2584 = vld [vmem:[%s894 + $0xc] sm:$0xf]
      %v2589 = vunpack.c.l.b16 %v2581
      %v2590 = vunpack.c.l.b16 %v2582
      %v2591 = vunpack.c.l.b16 %v2583
      %v2592 = vunpack.c.l.b16 %v2584
      %v2593 = vpack.c.b16 %v2590, %v2589
      %v2594 = vpack.c.b16 %v2592, %v2591
      %v2598 = vsel %vm1424, %v2579, 0
      %v2601 = vsel %vm1424, %v2580, 0
      %2603 = vmatprep.subr.bf16.mxu0 0
      %2604 = vmatpush1.bf16.msra.mxu0 0
      %2605 = vmatprep.subr.bf16.mxu0 0
      %2606 = vmatpush1.bf16.msra.mxu0 0
      %2607 = vmatprep.subr.bf16.mxu0 0
      %2608 = vmatpush1.bf16.msra.mxu0 0
      %2609 = vmatprep.subr.bf16.mxu0 0
      %2610 = vmatpush1.bf16.msra.mxu0 0
      %2611 = vmatprep.subr.bf16.mxu0 0
      %2612 = vmatpush1.bf16.msra.mxu0 0
      %2613 = vmatprep.subr.bf16.mxu0 0
      %2614 = vmatpush1.bf16.msra.mxu0 0
      %2615 = vmatprep.subr.bf16.mxu0 0
      %2616 = vmatpush1.bf16.msra.mxu0 %v2594
      %2617 = vmatprep.subr.bf16.mxu0 0
      %2618 = vmatpush1.bf16.msra.mxu0 %v2593
      %2619 = vmatprep.subr.bf16.mxu0 0
      %2620 = vmatpush2.bf16.msra.mxu0 0
      %2621 = vmatprep.subr.bf16.mxu0 0
      %2622 = vmatpush2.bf16.msra.mxu0 0
      %2623 = vmatprep.subr.bf16.mxu0 0
      %2624 = vmatpush2.bf16.msra.mxu0 0
      %2625 = vmatprep.subr.bf16.mxu0 0
      %2626 = vmatpush2.bf16.msra.mxu0 0
      %2627 = vmatprep.subr.bf16.mxu0 0
      %2628 = vmatpush2.bf16.msra.mxu0 0
      %2629 = vmatprep.subr.bf16.mxu0 0
      %2630 = vmatpush2.bf16.msra.mxu0 0
      %2631 = vmatprep.subr.bf16.mxu0 0
      %2632 = vmatpush2.bf16.msra.mxu0 0
      %2633 = vmatprep.subr.bf16.mxu0 0
      %2634 = vmatpush2.bf16.msra.mxu0 0
      %2635 = vmatprep.mubr.bf16.mxu0 0
      %2636 = vmatmul.mubr.bf16.gmra.mxu0 %v2598
      %v2637 = vpop.f32.mrf.mxu0
      %v2638 = vadd.f32 0.0, %v2637
      %v2639 = vpop.f32.mrf.mxu0
      %v2640 = vpop.f32.mrf.mxu0
      %v2641 = vadd.f32 0.0, %v2640
      %v2642 = vpop.f32.mrf.mxu0
      %2643 = vmatprep.mubr.bf16.mxu0 0
      %2644 = vmatmul.mubr.bf16.gmra.mxu0 %v2601
      %v2645 = vpop.f32.mrf.mxu0
      %v2646 = vadd.f32 0.0, %v2645
      %v2647 = vpop.f32.mrf.mxu0
      %v2648 = vpop.f32.mrf.mxu0
      %v2649 = vpop.f32.mrf.mxu0
      %2650 = vdwg.mxu0
      %v2651 = vadd.f32 %v1419, %v2638
      %v2652 = vadd.f32 %v1420, %v2641
      %v2653 = vadd.f32 %v1421, %v2646
      %v2654 = vld [vmem:[%s897] sm:$0x1]
      %v2656 = vlaneseq
      %v2657 = vshrl.u32 %v2656, 7
      %v2658 = vsub.s32 0, %v2657
      %v2659 = vrot.slane %v2654, %v2658
      %v2661 = vadd.f32 %v2651, %v2659
      %v2662 = vadd.f32 %v2652, %v2659
      %v2663 = vadd.f32 %v2653, %v2659
      %v2664 = vld [vmem:[%s900] sm:$0x1]
      %v2665 = vld [vmem:[%s903] sm:$0x1]
      %v2666 = vsel %vm1424, %v2661, 0.0
      %2667 = vadd.xlane.f32.xlu0 %v2666
      %v2668 = vpop.xlane.xlu0 %2667
      %v2669 = vsel %vm1424, %v2662, 0.0
      %2670 = vadd.xlane.f32.xlu0 %v2669
      %v2671 = vpop.xlane.xlu0 %2670
      %v2672 = vsel %vm1431, %v2663, 0.0
      %2673 = vadd.xlane.f32.xlu0 %v2672
      %v2674 = vpop.xlane.xlu0 %2673
      %v2675 = vmul.f32 %v2668, %v1435
      %v2676 = vmul.f32 %v2671, %v1435
      %v2677 = vmul.f32 %v2674, %v1435
      %v2678 = vsub.f32 %v2661, %v2675
      %v2679 = vsub.f32 %v2662, %v2676
      %v2680 = vsub.f32 %v2663, %v2677
      %v2681 = vmul.f32 %v2678, %v2678
      %v2682 = vmul.f32 %v2679, %v2679
      %v2683 = vmul.f32 %v2680, %v2680
      %v2684 = vsel %vm1424, %v2681, 0.0
      %2685 = vadd.xlane.f32.xlu0 %v2684
      %v2686 = vpop.xlane.xlu0 %2685
      %v2687 = vsel %vm1424, %v2682, 0.0
      %2688 = vadd.xlane.f32.xlu0 %v2687
      %v2689 = vpop.xlane.xlu0 %2688
      %v2690 = vsel %vm1431, %v2683, 0.0
      %2691 = vadd.xlane.f32.xlu0 %v2690
      %v2692 = vpop.xlane.xlu0 %2691
      %v2693 = vmul.f32 %v2686, %v1435
      %v2694 = vmul.f32 %v2689, %v1435
      %v2695 = vmul.f32 %v2692, %v1435
      %v2696 = vadd.f32 %v2693, 1e-05
      %v2697 = vadd.f32 %v2694, 1e-05
      %v2698 = vadd.f32 %v2695, 1e-05
      %v2699 = vrsqrt.pop %v2696
      %v2700 = vrsqrt.pop %v2697
      %v2701 = vrsqrt.pop %v2698
      %v2702 = vmul.f32 %v2678, %v2699
      %v2703 = vmul.f32 %v2679, %v2700
      %v2704 = vmul.f32 %v2680, %v2701
      %v2706 = vlaneseq
      %v2707 = vshrl.u32 %v2706, 7
      %v2708 = vsub.s32 0, %v2707
      %v2709 = vrot.slane %v2664, %v2708
      %v2711 = vmul.f32 %v2702, %v2709
      %v2712 = vmul.f32 %v2703, %v2709
      %v2713 = vmul.f32 %v2704, %v2709
      %v2715 = vlaneseq
      %v2716 = vshrl.u32 %v2715, 7
      %v2717 = vsub.s32 0, %v2716
      %v2718 = vrot.slane %v2665, %v2717
      %v2720 = vadd.f32 %v2711, %v2718
      %v2721 = vadd.f32 %v2712, %v2718
      %v2722 = vadd.f32 %v2713, %v2718
      %v2723 = vpack.c.bf16 %v2721, %v2720
      %v2724 = vpack.c.bf16 %v2722, %v2722
      %v2725 = vld [vmem:[%s908] sm:$0xf]
      %v2726 = vld [vmem:[%s908 + $0x4] sm:$0xf]
      %v2727 = vld [vmem:[%s908 + $0x8] sm:$0xf]
      %v2728 = vld [vmem:[%s908 + $0xc] sm:$0xf]
      %v2729 = vld [vmem:[%s911] sm:$0x1]
      %v2731 = vlaneseq
      %v2732 = vshrl.u32 %v2731, 7
      %v2733 = vsub.s32 0, %v2732
      %v2734 = vrot.slane %v2729, %v2733
      %v2740 = vunpack.c.l.b16 %v2725
      %v2741 = vunpack.c.l.b16 %v2726
      %v2742 = vunpack.c.l.b16 %v2727
      %v2743 = vunpack.c.l.b16 %v2728
      %v2744 = vpack.c.b16 %v2741, %v2740
      %v2745 = vpack.c.b16 %v2743, %v2742
      %v2749 = vsel %vm1424, %v2723, 0
      %v2752 = vsel %vm1424, %v2724, 0
      %2754 = vmatprep.subr.bf16.mxu0 0
      %2755 = vmatpush1.bf16.msra.mxu0 0
      %2756 = vmatprep.subr.bf16.mxu0 0
      %2757 = vmatpush1.bf16.msra.mxu0 0
      %2758 = vmatprep.subr.bf16.mxu0 0
      %2759 = vmatpush1.bf16.msra.mxu0 0
      %2760 = vmatprep.subr.bf16.mxu0 0
      %2761 = vmatpush1.bf16.msra.mxu0 0
      %2762 = vmatprep.subr.bf16.mxu0 0
      %2763 = vmatpush1.bf16.msra.mxu0 0
      %2764 = vmatprep.subr.bf16.mxu0 0
      %2765 = vmatpush1.bf16.msra.mxu0 0
      %2766 = vmatprep.subr.bf16.mxu0 0
      %2767 = vmatpush1.bf16.msra.mxu0 %v2745
      %2768 = vmatprep.subr.bf16.mxu0 0
      %2769 = vmatpush1.bf16.msra.mxu0 %v2744
      %2770 = vmatprep.subr.bf16.mxu0 0
      %2771 = vmatpush2.bf16.msra.mxu0 0
      %2772 = vmatprep.subr.bf16.mxu0 0
      %2773 = vmatpush2.bf16.msra.mxu0 0
      %2774 = vmatprep.subr.bf16.mxu0 0
      %2775 = vmatpush2.bf16.msra.mxu0 0
      %2776 = vmatprep.subr.bf16.mxu0 0
      %2777 = vmatpush2.bf16.msra.mxu0 0
      %2778 = vmatprep.subr.bf16.mxu0 0
      %2779 = vmatpush2.bf16.msra.mxu0 0
      %2780 = vmatprep.subr.bf16.mxu0 0
      %2781 = vmatpush2.bf16.msra.mxu0 0
      %2782 = vmatprep.subr.bf16.mxu0 0
      %2783 = vmatpush2.bf16.msra.mxu0 0
      %2784 = vmatprep.subr.bf16.mxu0 0
      %2785 = vmatpush2.bf16.msra.mxu0 0
      %2786 = vmatprep.mubr.bf16.mxu0 0
      %2787 = vmatmul.mubr.bf16.gmra.mxu0 %v2749
      %v2788 = vpop.f32.mrf.mxu0
      %v2789 = vadd.f32 %v2734, %v2788
      %v2790 = vpop.f32.mrf.mxu0
      %v2791 = vpop.f32.mrf.mxu0
      %v2792 = vadd.f32 %v2734, %v2791
      %v2793 = vpop.f32.mrf.mxu0
      %2794 = vmatprep.mubr.bf16.mxu0 0
      %2795 = vmatmul.mubr.bf16.gmra.mxu0 %v2752
      %v2796 = vpop.f32.mrf.mxu0
      %v2797 = vadd.f32 %v2734, %v2796
      %v2798 = vpop.f32.mrf.mxu0
      %v2799 = vpop.f32.mrf.mxu0
      %v2800 = vpop.f32.mrf.mxu0
      %2801 = vdwg.mxu0
      %v2802 = vmul.f32 %v2789, 1.702
      %v2803 = vmul.f32 %v2792, 1.702
      %v2804 = vmul.f32 %v2797, 1.702
      %v2805 = vxor.u32 %v2802, 2147483648
      %v2806 = vxor.u32 %v2803, 2147483648
      %v2807 = vxor.u32 %v2804, 2147483648
      %v2808 = vmul.f32 %v2805, 1.442695
      %v2809 = vpow.pop %v2808
      %v2810 = vmul.f32 %v2806, 1.442695
      %v2811 = vpow.pop %v2810
      %v2812 = vmul.f32 %v2807, 1.442695
      %v2813 = vpow.pop %v2812
      %v2814 = vadd.f32 %v2809, 1.0
      %v2815 = vadd.f32 %v2811, 1.0
      %v2816 = vadd.f32 %v2813, 1.0
      %v2817 = vrcp.pop %v2814
      %v2818 = vmul.f32 1.0, %v2817
      %v2819 = vrcp.pop %v2815
      %v2820 = vmul.f32 1.0, %v2819
      %v2821 = vrcp.pop %v2816
      %v2822 = vmul.f32 1.0, %v2821
      %v2823 = vmul.f32 %v2789, %v2818
      %v2824 = vmul.f32 %v2792, %v2820
      %v2825 = vmul.f32 %v2797, %v2822
      %v2826 = vpack.c.bf16 %v2824, %v2823
      %v2827 = vpack.c.bf16 %v2825, %v2825
      %v2828 = vld [vmem:[%s916] sm:$0xf]
      %v2829 = vld [vmem:[%s916 + $0x4] sm:$0xf]
      %v2830 = vld [vmem:[%s916 + $0x8] sm:$0xf]
      %v2831 = vld [vmem:[%s916 + $0xc] sm:$0xf]
      %v2832 = vld [vmem:[%s916 + $0x10] sm:$0xf]
      %v2833 = vld [vmem:[%s916 + $0x14] sm:$0xf]
      %v2834 = vld [vmem:[%s916 + $0x18] sm:$0xf]
      %v2835 = vld [vmem:[%s916 + $0x1c] sm:$0xf]
      %v2836 = vld [vmem:[%s916 + $0x20] sm:$0xf]
      %v2837 = vld [vmem:[%s916 + $0x24] sm:$0xf]
      %v2838 = vld [vmem:[%s916 + $0x28] sm:$0xf]
      %v2839 = vld [vmem:[%s916 + $0x2c] sm:$0xf]
      %v2840 = vld [vmem:[%s916 + $0x30] sm:$0xf]
      %v2841 = vld [vmem:[%s916 + $0x34] sm:$0xf]
      %v2842 = vld [vmem:[%s916 + $0x38] sm:$0xf]
      %v2843 = vld [vmem:[%s916 + $0x3c] sm:$0xf]
      %v2860 = vunpack.c.l.b16 %v2828
      %v2861 = vunpack.c.l.b16 %v2829
      %v2862 = vunpack.c.l.b16 %v2830
      %v2863 = vunpack.c.l.b16 %v2831
      %v2864 = vunpack.c.l.b16 %v2832
      %v2865 = vunpack.c.l.b16 %v2833
      %v2866 = vunpack.c.l.b16 %v2834
      %v2867 = vunpack.c.l.b16 %v2835
      %v2868 = vunpack.c.l.b16 %v2836
      %v2869 = vunpack.c.l.b16 %v2837
      %v2870 = vunpack.c.l.b16 %v2838
      %v2871 = vunpack.c.l.b16 %v2839
      %v2872 = vunpack.c.l.b16 %v2840
      %v2873 = vunpack.c.l.b16 %v2841
      %v2874 = vunpack.c.l.b16 %v2842
      %v2875 = vunpack.c.l.b16 %v2843
      %v2876 = vpack.c.b16 %v2861, %v2860
      %v2877 = vpack.c.b16 %v2863, %v2862
      %v2878 = vpack.c.b16 %v2865, %v2864
      %v2879 = vpack.c.b16 %v2867, %v2866
      %v2880 = vpack.c.b16 %v2869, %v2868
      %v2881 = vpack.c.b16 %v2871, %v2870
      %v2882 = vpack.c.b16 %v2873, %v2872
      %v2883 = vpack.c.b16 %v2875, %v2874
      %2892 = vmatprep.subr.bf16.mxu0 0
      %2893 = vmatpush1.bf16.msra.mxu0 %v2883
      %2894 = vmatprep.subr.bf16.mxu0 0
      %2895 = vmatpush1.bf16.msra.mxu0 %v2882
      %2896 = vmatprep.subr.bf16.mxu0 0
      %2897 = vmatpush1.bf16.msra.mxu0 %v2881
      %2898 = vmatprep.subr.bf16.mxu0 0
      %2899 = vmatpush1.bf16.msra.mxu0 %v2880
      %2900 = vmatprep.subr.bf16.mxu0 0
      %2901 = vmatpush1.bf16.msra.mxu0 %v2879
      %2902 = vmatprep.subr.bf16.mxu0 0
      %2903 = vmatpush1.bf16.msra.mxu0 %v2878
      %2904 = vmatprep.subr.bf16.mxu0 0
      %2905 = vmatpush1.bf16.msra.mxu0 %v2877
      %2906 = vmatprep.subr.bf16.mxu0 0
      %2907 = vmatpush1.bf16.msra.mxu0 %v2876
      %2908 = vmatprep.subr.bf16.mxu0 0
      %2909 = vmatpush2.bf16.msra.mxu0 0
      %2910 = vmatprep.subr.bf16.mxu0 0
      %2911 = vmatpush2.bf16.msra.mxu0 0
      %2912 = vmatprep.subr.bf16.mxu0 0
      %2913 = vmatpush2.bf16.msra.mxu0 0
      %2914 = vmatprep.subr.bf16.mxu0 0
      %2915 = vmatpush2.bf16.msra.mxu0 0
      %2916 = vmatprep.subr.bf16.mxu0 0
      %2917 = vmatpush2.bf16.msra.mxu0 0
      %2918 = vmatprep.subr.bf16.mxu0 0
      %2919 = vmatpush2.bf16.msra.mxu0 0
      %2920 = vmatprep.subr.bf16.mxu0 0
      %2921 = vmatpush2.bf16.msra.mxu0 0
      %2922 = vmatprep.subr.bf16.mxu0 0
      %2923 = vmatpush2.bf16.msra.mxu0 0
      %2924 = vmatprep.mubr.bf16.mxu0 0
      %2925 = vmatmul.mubr.bf16.gmra.mxu0 %v2826
      %v2926 = vpop.f32.mrf.mxu0
      %v2927 = vadd.f32 0.0, %v2926
      %v2928 = vpop.f32.mrf.mxu0
      %v2929 = vpop.f32.mrf.mxu0
      %v2930 = vadd.f32 0.0, %v2929
      %v2931 = vpop.f32.mrf.mxu0
      %2932 = vmatprep.mubr.bf16.mxu0 0
      %2933 = vmatmul.mubr.bf16.gmra.mxu0 %v2827
      %v2934 = vpop.f32.mrf.mxu0
      %v2935 = vadd.f32 0.0, %v2934
      %v2936 = vpop.f32.mrf.mxu0
      %v2937 = vpop.f32.mrf.mxu0
      %v2938 = vpop.f32.mrf.mxu0
      %2939 = vdwg.mxu0
      %v2940 = vadd.f32 %v2661, %v2927
      %v2941 = vadd.f32 %v2662, %v2930
      %v2942 = vadd.f32 %v2663, %v2935
      %v2943 = vld [vmem:[%s919] sm:$0x1]
      %v2945 = vlaneseq
      %v2946 = vshrl.u32 %v2945, 7
      %v2947 = vsub.s32 0, %v2946
      %v2948 = vrot.slane %v2943, %v2947
      %v2950 = vadd.f32 %v2940, %v2948
      %v2951 = vadd.f32 %v2941, %v2948
      %v2952 = vadd.f32 %v2942, %v2948
      %2953 = vst.msk [vmem:[#allocation2] sm:$0xff] %vm1424, %v2950
      %2954 = vst.msk [vmem:[#allocation2 + $0x8] sm:$0xff] %vm1424, %v2951
      %2955 = vst.msk [vmem:[#allocation2 + $0x10] sm:$0xf] %vm1431, %v2952
      %p2956 = scmp.eq.s32.totalorder %s37, 3
      // Predicated region
      $region121: #{clipseg_masked_forward.2} parent=115 // pred_check
        %p2957 = pneg %p2956
      $region122: #{clipseg_masked_forward.2} parent=115 // pred_check_branch
        %2959 = sbr.rel (%p2957) target = $region124
      $region123: #{clipseg_masked_forward.2} parent=115 // pred_region
        %2960 = vst.msk [vmem:[%s24] sm:$0xff] %vm1424, %v2950
        %vm2961 = vcmask 254976
        %2962 = vst.msk [vmem:[%s24 + $0x8] sm:$0x3] %vm2961, %v2951
      $region124: #{clipseg_masked_forward.2} parent=115 // pred_fallthru
        _
      %p2963 = scmp.eq.s32.totalorder %s37, 6
      // Predicated region
      $region125: #{clipseg_masked_forward.2} parent=115 // pred_check
        %p2964 = pneg %p2963
      $region126: #{clipseg_masked_forward.2} parent=115 // pred_check_branch
        %2966 = sbr.rel (%p2964) target = $region128
      $region127: #{clipseg_masked_forward.2} parent=115 // pred_region
        %s2967 = scalar_lea.vmem %s24, 16
        %2968 = vst.msk [vmem:[%s2967] sm:$0xff] %vm1424, %v2950
        %vm2969 = vcmask 254976
        %2970 = vst.msk [vmem:[%s2967 + $0x8] sm:$0x3] %vm2969, %v2951
      $region128: #{clipseg_masked_forward.2} parent=115 // pred_fallthru
        _
      %p2971 = scmp.eq.s32.totalorder %s37, 9
      // Predicated region
      $region129: #{clipseg_masked_forward.2} parent=115 // pred_check
        %p2972 = pneg %p2971
      $region130: #{clipseg_masked_forward.2} parent=115 // pred_check_branch
        %2974 = sbr.rel (%p2972) target = $region132
      $region131: #{clipseg_masked_forward.2} parent=115 // pred_region
        %s2975 = scalar_lea.vmem %s24, 32
        %2976 = vst.msk [vmem:[%s2975] sm:$0xff] %vm1424, %v2950
        %vm2977 = vcmask 254976
        %2978 = vst.msk [vmem:[%s2975 + $0x8] sm:$0x3] %vm2977, %v2951
        %v2979 = vld [vmem:[%s20] sm:$0x1]
        %v2980 = vld [vmem:[%s21] sm:$0x1]
        %vm2981 = vcmask 257026
        %v2982 = vsel %vm2981, %v2951, 0.0
        %2983 = vadd.xlane.f32.xlu0 %v2982
        %v2984 = vpop.xlane.xlu0 %2983
        %v2985 = vmul.f32 %v2984, %v1435
        %v2986 = vsub.f32 %v2951, %v2985
        %v2987 = vmul.f32 %v2986, %v2986
        %v2988 = vsel %vm2981, %v2987, 0.0
        %2989 = vadd.xlane.f32.xlu0 %v2988
        %v2990 = vpop.xlane.xlu0 %2989
        %v2991 = vmul.f32 %v2990, %v1435
        %v2992 = vadd.f32 %v2991, 1e-05
        %v2993 = vrsqrt.pop %v2992
        %v2994 = vmul.f32 %v2986, %v2993
        %v2996 = vlaneseq
        %v2997 = vshrl.u32 %v2996, 7
        %v2998 = vsub.s32 0, %v2997
        %v2999 = vrot.slane %v2979, %v2998
        %v3001 = vmul.f32 %v2994, %v2999
        %v3003 = vlaneseq
        %v3004 = vshrl.u32 %v3003, 7
        %v3005 = vsub.s32 0, %v3004
        %v3006 = vrot.slane %v2980, %v3005
        %v3008 = vadd.f32 %v3001, %v3006
        %v3009 = vld [vmem:[%s22] sm:$0xff]
        %v3010 = vld [vmem:[%s22 + $0x8] sm:$0xff]
        %v3011 = vld [vmem:[%s22 + $0x10] sm:$0xff]
        %v3012 = vld [vmem:[%s22 + $0x18] sm:$0xff]
        %v3014 = vrot.slane %v3008, 2
        %v3015 = vsel %vm1424, %v3014, 0
        %3017 = vmatprep.subr.mxu0 0.0
        %3018 = vmatpush1.msra.mxu0 0.0
        %3019 = vmatprep.subr.mxu0 0.0
        %3020 = vmatpush1.msra.mxu0 0.0
        %3021 = vmatprep.subr.mxu0 0.0
        %3022 = vmatpush1.msra.mxu0 0.0
        %3023 = vmatprep.subr.mxu0 0.0
        %3024 = vmatpush1.msra.mxu0 0.0
        %3025 = vmatprep.subr.mxu0 0.0
        %3026 = vmatpush1.msra.mxu0 0.0
        %3027 = vmatprep.subr.mxu0 0.0
        %3028 = vmatpush1.msra.mxu0 0.0
        %3029 = vmatprep.subr.mxu0 0.0
        %3030 = vmatpush1.msra.mxu0 0.0
        %3031 = vmatprep.subr.mxu0 0.0
        %3032 = vmatpush1.msra.mxu0 0.0
        %3033 = vmatprep.subr.mxu0 0.0
        %3034 = vmatpush1.msra.mxu0 0.0
        %3035 = vmatprep.subr.mxu0 0.0
        %3036 = vmatpush1.msra.mxu0 0.0
        %3037 = vmatprep.subr.mxu0 0.0
        %3038 = vmatpush1.msra.mxu0 0.0
        %3039 = vmatprep.subr.mxu0 0.0
        %3040 = vmatpush1.msra.mxu0 0.0
        %3041 = vmatprep.subr.mxu0 0.0
        %3042 = vmatpush1.msra.mxu0 %v3012
        %3043 = vmatprep.subr.mxu0 0.0
        %3044 = vmatpush1.msra.mxu0 %v3011
        %3045 = vmatprep.subr.mxu0 0.0
        %3046 = vmatpush1.msra.mxu0 %v3010
        %3047 = vmatprep.subr.mxu0 0.0
        %3048 = vmatpush1.msra.mxu0 %v3009
        %3049 = vmatprep.subr.mxu0 0.0
        %3050 = vmatpush2.msra.mxu0 0.0
        %3051 = vmatprep.subr.mxu0 0.0
        %3052 = vmatpush2.msra.mxu0 0.0
        %3053 = vmatprep.subr.mxu0 0.0
        %3054 = vmatpush2.msra.mxu0 0.0
        %3055 = vmatprep.subr.mxu0 0.0
        %3056 = vmatpush2.msra.mxu0 0.0
        %3057 = vmatprep.subr.mxu0 0.0
        %3058 = vmatpush2.msra.mxu0 0.0
        %3059 = vmatprep.subr.mxu0 0.0
        %3060 = vmatpush2.msra.mxu0 0.0
        %3061 = vmatprep.subr.mxu0 0.0
        %3062 = vmatpush2.msra.mxu0 0.0
        %3063 = vmatprep.subr.mxu0 0.0
        %3064 = vmatpush2.msra.mxu0 0.0
        %3065 = vmatprep.subr.mxu0 0.0
        %3066 = vmatpush2.msra.mxu0 0.0
        %3067 = vmatprep.subr.mxu0 0.0
        %3068 = vmatpush2.msra.mxu0 0.0
        %3069 = vmatprep.subr.mxu0 0.0
        %3070 = vmatpush2.msra.mxu0 0.0
        %3071 = vmatprep.subr.mxu0 0.0
        %3072 = vmatpush2.msra.mxu0 0.0
        %3073 = vmatprep.subr.mxu0 0.0
        %3074 = vmatpush2.msra.mxu0 0.0
        %3075 = vmatprep.subr.mxu0 0.0
        %3076 = vmatpush2.msra.mxu0 0.0
        %3077 = vmatprep.subr.mxu0 0.0
        %3078 = vmatpush2.msra.mxu0 0.0
        %3079 = vmatprep.subr.mxu0 0.0
        %3080 = vmatpush2.msra.mxu0 0.0
        %3081 = vmatprep.mubr.f32.mxu0 0.0
        %3082 = vmatmul.mubr.f32.gmra.mxu0 %v3015
        %v3083 = vpop.f32.mrf.mxu0
        %v3084 = vadd.f32 0.0, %v3083
        %v3085 = vpop.f32.mrf.mxu0
        %3086 = vdwg.mxu0
        %3087 = vst.msk [vmem:[%s25] sm:$0x3] %vm2977, %v3084
      $region132: #{clipseg_masked_forward.2} parent=115 // pred_fallthru
        _
      // Predicated region
      $region133: #{clipseg_masked_forward.2} parent=115 // pred_check
        %p3088 = pneg %p614
      $region134: #{clipseg_masked_forward.2} parent=115 // pred_check_branch
        %3090 = sbr.rel (%p3088) target = $region136
      $region135: #{clipseg_masked_forward.2} parent=115 // pred_region
        _
      $region136: #{clipseg_masked_forward.2} parent=115 // pred_fallthru
        _
      // Predicated region
      $region137: #{clipseg_masked_forward.2} parent=115 // pred_check
        %p3091 = pneg %p635
      $region138: #{clipseg_masked_forward.2} parent=115 // pred_check_branch
        %3093 = sbr.rel (%p3091) target = $region140
      $region139: #{clipseg_masked_forward.2} parent=115 // pred_region
        _
      $region140: #{clipseg_masked_forward.2} parent=115 // pred_fallthru
        _
      // Predicated region
      $region141: #{clipseg_masked_forward.2} parent=115 // pred_check
        %p3094 = pneg %p614
      $region142: #{clipseg_masked_forward.2} parent=115 // pred_check_branch
        %3096 = sbr.rel (%p3094) target = $region144
      $region143: #{clipseg_masked_forward.2} parent=115 // pred_region
        _
      $region144: #{clipseg_masked_forward.2} parent=115 // pred_fallthru
        _
      // Predicated region
      $region145: #{clipseg_masked_forward.2} parent=115 // pred_check
        %p3097 = pneg %p635
      $region146: #{clipseg_masked_forward.2} parent=115 // pred_check_branch
        %3099 = sbr.rel (%p3097) target = $region148
      $region147: #{clipseg_masked_forward.2} parent=115 // pred_region
        _
      $region148: #{clipseg_masked_forward.2} parent=115 // pred_fallthru
        _
    $region116: #{clipseg_masked_forward.2} parent=5 // pred_fallthru
      _
    %p3100 = scmp.le.s32.totalorder 2, %s32
    // Predicated region
    $region149: #{clipseg_masked_forward.2} parent=5 // pred_check
      %p3101 = pneg %p3100
    $region150: #{clipseg_masked_forward.2} parent=5 // pred_check_branch
      %3103 = sbr.rel (%p3101) target = $region152
    $region151: #{clipseg_masked_forward.2} parent=5 // pred_region
      %s3104 = ssub.s32 %s32, 2
    $region152: #{clipseg_masked_forward.2} parent=5 // pred_fallthru
      _
  $region6: #{clipseg_masked_forward.2} parent=0 // loop_footer
    %s36 = sadd.s32 1, %s32
  $region7: #{clipseg_masked_forward.2} parent=0 // loop_footer_branch
    %31 = sbr.rel target = $region3
  $region8: #{clipseg_masked_forward.2} parent=0 // loop_exit
    _

// kernel: clipseg_masked_forward.3
$region0: #{clipseg_masked_forward.3}
  #allocation0 [shape = 'u32[]', space=smem, size = 0x4, offset = 0x4, fixed_abs, tag = 'smem constant byte address 0x4 - core index']
  #allocation1 [shape = 'u32[144,128]{1,0:T(1,128)}', space=vmem, size = 0x12000, scoped, tag = 'internal scratch']
  %s0 = inlined_call_operand.vmem [shape: f32[3,10,32], index: 0, kind: input, shape index: {}]
  %s1 = inlined_call_operand.vmem [shape: f32[2,32], index: 1, kind: input, shape index: {}]
  %s2 = inlined_call_operand.vmem [shape: f32[10,10], index: 2, kind: input, shape index: {}]
  %s3 = inlined_call_operand.vmem [shape: f32[10,2], index: 3, kind: input, shape index: {}]
  %s4 = inlined_call_operand.vmem [shape: f32[3,32,16], index: 4, kind: input, shape index: {}]
  %s5 = inlined_call_operand.vmem [shape: f32[3,1,16], index: 5, kind: input, shape index: {}]
  %s6 = inlined_call_operand.vmem [shape: f32[32,16], index: 6, kind: input, shape index: {}]
  %s7 = inlined_call_operand.vmem [shape: f32[1,16], index: 7, kind: input, shape index: {}]
  %s8 = inlined_call_operand.vmem [shape: f32[32,16], index: 8, kind: input, shape index: {}]
  %s9 = inlined_call_operand.vmem [shape: f32[1,16], index: 9, kind: input, shape index: {}]
  %s10 = inlined_call_operand.vmem [shape: f32[3,16,48], index: 10, kind: input, shape index: {}]
  %s11 = inlined_call_operand.vmem [shape: f32[3,1,48], index: 11, kind: input, shape index: {}]
  %s12 = inlined_call_operand.vmem [shape: f32[3,16,16], index: 12, kind: input, shape index: {}]
  %s13 = inlined_call_operand.vmem [shape: f32[3,1,16], index: 13, kind: input, shape index: {}]
  %s14 = inlined_call_operand.vmem [shape: f32[3,1,16], index: 14, kind: input, shape index: {}]
  %s15 = inlined_call_operand.vmem [shape: f32[3,1,16], index: 15, kind: input, shape index: {}]
  %s16 = inlined_call_operand.vmem [shape: f32[3,16,64], index: 16, kind: input, shape index: {}]
  %s17 = inlined_call_operand.vmem [shape: f32[3,1,64], index: 17, kind: input, shape index: {}]
  %s18 = inlined_call_operand.vmem [shape: f32[3,64,16], index: 18, kind: input, shape index: {}]
  %s19 = inlined_call_operand.vmem [shape: f32[3,1,16], index: 19, kind: input, shape index: {}]
  %s20 = inlined_call_operand.vmem [shape: f32[3,1,16], index: 20, kind: input, shape index: {}]
  %s21 = inlined_call_operand.vmem [shape: f32[3,1,16], index: 21, kind: input, shape index: {}]
  %s22 = inlined_call_operand.vmem [shape: f32[16,256], index: 22, kind: input, shape index: {}]
  %s23 = inlined_call_operand.vmem [shape: f32[1,256], index: 23, kind: input, shape index: {}]
  %s24 = inlined_call_operand.vmem [shape: f32[4,16], index: 24, kind: input, shape index: {}]
  %s25 = inlined_call_operand.vmem [shape: f32[8,256], index: 25, kind: output, shape index: {}]
  %s26 = sld [smem:[#allocation0]]
  $region110: #{clipseg_masked_forward.3} parent=0
    _
  %s28 = ssub.s32 1, %s26
  %s29 = scalar_select 0, %s28, %s26
  // Predicated region
  $region2: #{clipseg_masked_forward.3} parent=0 // pred_check
    _
  $region3: #{clipseg_masked_forward.3} parent=0 // pred_check_branch
    %31 = sbr.rel (0) target = $region5
  $region4: #{clipseg_masked_forward.3} parent=0 // pred_region
    _
  $region5: #{clipseg_masked_forward.3} parent=0 // pred_fallthru
    _
  // Predicated region
  $region6: #{clipseg_masked_forward.3} parent=0 // pred_check
    _
  $region7: #{clipseg_masked_forward.3} parent=0 // pred_check_branch
    %33 = sbr.rel (0) target = $region9
  $region8: #{clipseg_masked_forward.3} parent=0 // pred_region
    _
  $region9: #{clipseg_masked_forward.3} parent=0 // pred_fallthru
    _
  // Predicated region
  $region10: #{clipseg_masked_forward.3} parent=0 // pred_check
    _
  $region11: #{clipseg_masked_forward.3} parent=0 // pred_check_branch
    %35 = sbr.rel (0) target = $region13
  $region12: #{clipseg_masked_forward.3} parent=0 // pred_region
    _
  $region13: #{clipseg_masked_forward.3} parent=0 // pred_fallthru
    _
  // Predicated region
  $region14: #{clipseg_masked_forward.3} parent=0 // pred_check
    _
  $region15: #{clipseg_masked_forward.3} parent=0 // pred_check_branch
    %37 = sbr.rel (0) target = $region17
  $region16: #{clipseg_masked_forward.3} parent=0 // pred_region
    _
  $region17: #{clipseg_masked_forward.3} parent=0 // pred_fallthru
    _
  // Predicated region
  $region18: #{clipseg_masked_forward.3} parent=0 // pred_check
    _
  $region19: #{clipseg_masked_forward.3} parent=0 // pred_check_branch
    %39 = sbr.rel (0) target = $region21
  $region20: #{clipseg_masked_forward.3} parent=0 // pred_region
    _
  $region21: #{clipseg_masked_forward.3} parent=0 // pred_fallthru
    _
  // Predicated region
  $region22: #{clipseg_masked_forward.3} parent=0 // pred_check
    _
  $region23: #{clipseg_masked_forward.3} parent=0 // pred_check_branch
    %41 = sbr.rel (0) target = $region25
  $region24: #{clipseg_masked_forward.3} parent=0 // pred_region
    _
  $region25: #{clipseg_masked_forward.3} parent=0 // pred_fallthru
    _
  // Predicated region
  $region26: #{clipseg_masked_forward.3} parent=0 // pred_check
    _
  $region27: #{clipseg_masked_forward.3} parent=0 // pred_check_branch
    %43 = sbr.rel (0) target = $region29
  $region28: #{clipseg_masked_forward.3} parent=0 // pred_region
    _
  $region29: #{clipseg_masked_forward.3} parent=0 // pred_fallthru
    _
  // Predicated region
  $region30: #{clipseg_masked_forward.3} parent=0 // pred_check
    _
  $region31: #{clipseg_masked_forward.3} parent=0 // pred_check_branch
    %45 = sbr.rel (0) target = $region33
  $region32: #{clipseg_masked_forward.3} parent=0 // pred_region
    _
  $region33: #{clipseg_masked_forward.3} parent=0 // pred_fallthru
    _
  // Predicated region
  $region34: #{clipseg_masked_forward.3} parent=0 // pred_check
    _
  $region35: #{clipseg_masked_forward.3} parent=0 // pred_check_branch
    %47 = sbr.rel (0) target = $region37
  $region36: #{clipseg_masked_forward.3} parent=0 // pred_region
    _
  $region37: #{clipseg_masked_forward.3} parent=0 // pred_fallthru
    _
  // Predicated region
  $region38: #{clipseg_masked_forward.3} parent=0 // pred_check
    _
  $region39: #{clipseg_masked_forward.3} parent=0 // pred_check_branch
    %49 = sbr.rel (0) target = $region41
  $region40: #{clipseg_masked_forward.3} parent=0 // pred_region
    _
  $region41: #{clipseg_masked_forward.3} parent=0 // pred_fallthru
    _
  // Predicated region
  $region42: #{clipseg_masked_forward.3} parent=0 // pred_check
    _
  $region43: #{clipseg_masked_forward.3} parent=0 // pred_check_branch
    %51 = sbr.rel (0) target = $region45
  $region44: #{clipseg_masked_forward.3} parent=0 // pred_region
    _
  $region45: #{clipseg_masked_forward.3} parent=0 // pred_fallthru
    _
  // Predicated region
  $region46: #{clipseg_masked_forward.3} parent=0 // pred_check
    _
  $region47: #{clipseg_masked_forward.3} parent=0 // pred_check_branch
    %53 = sbr.rel (0) target = $region49
  $region48: #{clipseg_masked_forward.3} parent=0 // pred_region
    _
  $region49: #{clipseg_masked_forward.3} parent=0 // pred_fallthru
    _
  // Predicated region
  $region50: #{clipseg_masked_forward.3} parent=0 // pred_check
    _
  $region51: #{clipseg_masked_forward.3} parent=0 // pred_check_branch
    %55 = sbr.rel (0) target = $region53
  $region52: #{clipseg_masked_forward.3} parent=0 // pred_region
    _
  $region53: #{clipseg_masked_forward.3} parent=0 // pred_fallthru
    _
  // Predicated region
  $region54: #{clipseg_masked_forward.3} parent=0 // pred_check
    _
  $region55: #{clipseg_masked_forward.3} parent=0 // pred_check_branch
    %57 = sbr.rel (0) target = $region57
  $region56: #{clipseg_masked_forward.3} parent=0 // pred_region
    _
  $region57: #{clipseg_masked_forward.3} parent=0 // pred_fallthru
    _
  // Predicated region
  $region58: #{clipseg_masked_forward.3} parent=0 // pred_check
    _
  $region59: #{clipseg_masked_forward.3} parent=0 // pred_check_branch
    %59 = sbr.rel (0) target = $region61
  $region60: #{clipseg_masked_forward.3} parent=0 // pred_region
    _
  $region61: #{clipseg_masked_forward.3} parent=0 // pred_fallthru
    _
  // Predicated region
  $region62: #{clipseg_masked_forward.3} parent=0 // pred_check
    _
  $region63: #{clipseg_masked_forward.3} parent=0 // pred_check_branch
    %61 = sbr.rel (0) target = $region65
  $region64: #{clipseg_masked_forward.3} parent=0 // pred_region
    _
  $region65: #{clipseg_masked_forward.3} parent=0 // pred_fallthru
    _
  // Predicated region
  $region66: #{clipseg_masked_forward.3} parent=0 // pred_check
    _
  $region67: #{clipseg_masked_forward.3} parent=0 // pred_check_branch
    %63 = sbr.rel (0) target = $region69
  $region68: #{clipseg_masked_forward.3} parent=0 // pred_region
    _
  $region69: #{clipseg_masked_forward.3} parent=0 // pred_fallthru
    _
  // Predicated region
  $region70: #{clipseg_masked_forward.3} parent=0 // pred_check
    _
  $region71: #{clipseg_masked_forward.3} parent=0 // pred_check_branch
    %65 = sbr.rel (0) target = $region73
  $region72: #{clipseg_masked_forward.3} parent=0 // pred_region
    _
  $region73: #{clipseg_masked_forward.3} parent=0 // pred_fallthru
    _
  // Predicated region
  $region74: #{clipseg_masked_forward.3} parent=0 // pred_check
    _
  $region75: #{clipseg_masked_forward.3} parent=0 // pred_check_branch
    %67 = sbr.rel (0) target = $region77
  $region76: #{clipseg_masked_forward.3} parent=0 // pred_region
    _
  $region77: #{clipseg_masked_forward.3} parent=0 // pred_fallthru
    _
  // Predicated region
  $region78: #{clipseg_masked_forward.3} parent=0 // pred_check
    _
  $region79: #{clipseg_masked_forward.3} parent=0 // pred_check_branch
    %69 = sbr.rel (0) target = $region81
  $region80: #{clipseg_masked_forward.3} parent=0 // pred_region
    _
  $region81: #{clipseg_masked_forward.3} parent=0 // pred_fallthru
    _
  // Predicated region
  $region82: #{clipseg_masked_forward.3} parent=0 // pred_check
    _
  $region83: #{clipseg_masked_forward.3} parent=0 // pred_check_branch
    %71 = sbr.rel (0) target = $region85
  $region84: #{clipseg_masked_forward.3} parent=0 // pred_region
    _
  $region85: #{clipseg_masked_forward.3} parent=0 // pred_fallthru
    _
  // Predicated region
  $region86: #{clipseg_masked_forward.3} parent=0 // pred_check
    _
  $region87: #{clipseg_masked_forward.3} parent=0 // pred_check_branch
    %73 = sbr.rel (0) target = $region89
  $region88: #{clipseg_masked_forward.3} parent=0 // pred_region
    _
  $region89: #{clipseg_masked_forward.3} parent=0 // pred_fallthru
    _
  // Predicated region
  $region90: #{clipseg_masked_forward.3} parent=0 // pred_check
    _
  $region91: #{clipseg_masked_forward.3} parent=0 // pred_check_branch
    %75 = sbr.rel (0) target = $region93
  $region92: #{clipseg_masked_forward.3} parent=0 // pred_region
    _
  $region93: #{clipseg_masked_forward.3} parent=0 // pred_fallthru
    _
  // Predicated region
  $region94: #{clipseg_masked_forward.3} parent=0 // pred_check
    _
  $region95: #{clipseg_masked_forward.3} parent=0 // pred_check_branch
    %77 = sbr.rel (0) target = $region97
  $region96: #{clipseg_masked_forward.3} parent=0 // pred_region
    _
  $region97: #{clipseg_masked_forward.3} parent=0 // pred_fallthru
    _
  // Predicated region
  $region98: #{clipseg_masked_forward.3} parent=0 // pred_check
    _
  $region99: #{clipseg_masked_forward.3} parent=0 // pred_check_branch
    %79 = sbr.rel (0) target = $region101
  $region100: #{clipseg_masked_forward.3} parent=0 // pred_region
    _
  $region101: #{clipseg_masked_forward.3} parent=0 // pred_fallthru
    _
  %v80 = vld [vmem:[%s2] sm:$0xff]
  %v81 = vld [vmem:[%s2 + $0x8] sm:$0x3]
  %v82 = vld [vmem:[%s24] sm:$0xf]
  %s83 = scalar_lea.vmem %s0, 32
  %v84 = vld [vmem:[%s83] sm:$0xff]
  %v85 = vld [vmem:[%s83 + $0x8] sm:$0x3]
  %v86 = vld [vmem:[%s4] sm:$0xff]
  %v87 = vld [vmem:[%s4 + $0x8] sm:$0xff]
  %v88 = vld [vmem:[%s4 + $0x10] sm:$0xff]
  %v89 = vld [vmem:[%s4 + $0x18] sm:$0xff]
  %v90 = vld [vmem:[%s5] sm:$0x1]
  %v92 = vlaneseq
  %v93 = vshrl.u32 %v92, 7
  %v94 = vsub.s32 0, %v93
  %v95 = vrot.slane %v90, %v94
  %vm97 = vcmask 261120
  %v99 = vsel %vm97, %v84, 0
  %v102 = vsel %vm97, %v85, 0
  %104 = vmatprep.subr.mxu0 0.0
  %105 = vmatpush1.msra.mxu0 0.0
  %106 = vmatprep.subr.mxu0 0.0
  %107 = vmatpush1.msra.mxu0 0.0
  %108 = vmatprep.subr.mxu0 0.0
  %109 = vmatpush1.msra.mxu0 0.0
  %110 = vmatprep.subr.mxu0 0.0
  %111 = vmatpush1.msra.mxu0 0.0
  %112 = vmatprep.subr.mxu0 0.0
  %113 = vmatpush1.msra.mxu0 0.0
  %114 = vmatprep.subr.mxu0 0.0
  %115 = vmatpush1.msra.mxu0 0.0
  %116 = vmatprep.subr.mxu0 0.0
  %117 = vmatpush1.msra.mxu0 0.0
  %118 = vmatprep.subr.mxu0 0.0
  %119 = vmatpush1.msra.mxu0 0.0
  %120 = vmatprep.subr.mxu0 0.0
  %121 = vmatpush1.msra.mxu0 0.0
  %122 = vmatprep.subr.mxu0 0.0
  %123 = vmatpush1.msra.mxu0 0.0
  %124 = vmatprep.subr.mxu0 0.0
  %125 = vmatpush1.msra.mxu0 0.0
  %126 = vmatprep.subr.mxu0 0.0
  %127 = vmatpush1.msra.mxu0 0.0
  %128 = vmatprep.subr.mxu0 0.0
  %129 = vmatpush1.msra.mxu0 %v89
  %130 = vmatprep.subr.mxu0 0.0
  %131 = vmatpush1.msra.mxu0 %v88
  %132 = vmatprep.subr.mxu0 0.0
  %133 = vmatpush1.msra.mxu0 %v87
  %134 = vmatprep.subr.mxu0 0.0
  %135 = vmatpush1.msra.mxu0 %v86
  %136 = vmatprep.subr.mxu0 0.0
  %137 = vmatpush2.msra.mxu0 0.0
  %138 = vmatprep.subr.mxu0 0.0
  %139 = vmatpush2.msra.mxu0 0.0
  %140 = vmatprep.subr.mxu0 0.0
  %141 = vmatpush2.msra.mxu0 0.0
  %142 = vmatprep.subr.mxu0 0.0
  %143 = vmatpush2.msra.mxu0 0.0
  %144 = vmatprep.subr.mxu0 0.0
  %145 = vmatpush2.msra.mxu0 0.0
  %146 = vmatprep.subr.mxu0 0.0
  %147 = vmatpush2.msra.mxu0 0.0
  %148 = vmatprep.subr.mxu0 0.0
  %149 = vmatpush2.msra.mxu0 0.0
  %150 = vmatprep.subr.mxu0 0.0
  %151 = vmatpush2.msra.mxu0 0.0
  %152 = vmatprep.subr.mxu0 0.0
  %153 = vmatpush2.msra.mxu0 0.0
  %154 = vmatprep.subr.mxu0 0.0
  %155 = vmatpush2.msra.mxu0 0.0
  %156 = vmatprep.subr.mxu0 0.0
  %157 = vmatpush2.msra.mxu0 0.0
  %158 = vmatprep.subr.mxu0 0.0
  %159 = vmatpush2.msra.mxu0 0.0
  %160 = vmatprep.subr.mxu0 0.0
  %161 = vmatpush2.msra.mxu0 0.0
  %162 = vmatprep.subr.mxu0 0.0
  %163 = vmatpush2.msra.mxu0 0.0
  %164 = vmatprep.subr.mxu0 0.0
  %165 = vmatpush2.msra.mxu0 0.0
  %166 = vmatprep.subr.mxu0 0.0
  %167 = vmatpush2.msra.mxu0 0.0
  %168 = vmatprep.mubr.f32.mxu0 0.0
  %169 = vmatmul.mubr.f32.gmra.mxu0 %v99
  %v170 = vpop.f32.mrf.mxu0
  %v171 = vadd.f32 %v95, %v170
  %v172 = vpop.f32.mrf.mxu0
  %173 = vmatprep.mubr.f32.mxu0 0.0
  %174 = vmatmul.mubr.f32.gmra.mxu0 %v102
  %v175 = vpop.f32.mrf.mxu0
  %v176 = vadd.f32 %v95, %v175
  %v177 = vpop.f32.mrf.mxu0
  %178 = vdwg.mxu0
  %v179 = vld [vmem:[%s1] sm:$0x3]
  %v180 = vld [vmem:[%s6] sm:$0xff]
  %v181 = vld [vmem:[%s6 + $0x8] sm:$0xff]
  %v182 = vld [vmem:[%s6 + $0x10] sm:$0xff]
  %v183 = vld [vmem:[%s6 + $0x18] sm:$0xff]
  %v184 = vld [vmem:[%s7] sm:$0x1]
  %v186 = vlaneseq
  %v187 = vshrl.u32 %v186, 7
  %v188 = vsub.s32 0, %v187
  %v189 = vrot.slane %v184, %v188
  %v192 = vsel %vm97, %v179, 0
  %194 = vmatprep.subr.mxu0 0.0
  %195 = vmatpush1.msra.mxu0 0.0
  %196 = vmatprep.subr.mxu0 0.0
  %197 = vmatpush1.msra.mxu0 0.0
  %198 = vmatprep.subr.mxu0 0.0
  %199 = vmatpush1.msra.mxu0 0.0
  %200 = vmatprep.subr.mxu0 0.0
  %201 = vmatpush1.msra.mxu0 0.0
  %202 = vmatprep.subr.mxu0 0.0
  %203 = vmatpush1.msra.mxu0 0.0
  %204 = vmatprep.subr.mxu0 0.0
  %205 = vmatpush1.msra.mxu0 0.0
  %206 = vmatprep.subr.mxu0 0.0
  %207 = vmatpush1.msra.mxu0 0.0
  %208 = vmatprep.subr.mxu0 0.0
  %209 = vmatpush1.msra.mxu0 0.0
  %210 = vmatprep.subr.mxu0 0.0
  %211 = vmatpush1.msra.mxu0 0.0
  %212 = vmatprep.subr.mxu0 0.0
  %213 = vmatpush1.msra.mxu0 0.0
  %214 = vmatprep.subr.mxu0 0.0
  %215 = vmatpush1.msra.mxu0 0.0
  %216 = vmatprep.subr.mxu0 0.0
  %217 = vmatpush1.msra.mxu0 0.0
  %218 = vmatprep.subr.mxu0 0.0
  %219 = vmatpush1.msra.mxu0 %v183
  %220 = vmatprep.subr.mxu0 0.0
  %221 = vmatpush1.msra.mxu0 %v182
  %222 = vmatprep.subr.mxu0 0.0
  %223 = vmatpush1.msra.mxu0 %v181
  %224 = vmatprep.subr.mxu0 0.0
  %225 = vmatpush1.msra.mxu0 %v180
  %226 = vmatprep.subr.mxu0 0.0
  %227 = vmatpush2.msra.mxu0 0.0
  %228 = vmatprep.subr.mxu0 0.0
  %229 = vmatpush2.msra.mxu0 0.0
  %230 = vmatprep.subr.mxu0 0.0
  %231 = vmatpush2.msra.mxu0 0.0
  %232 = vmatprep.subr.mxu0 0.0
  %233 = vmatpush2.msra.mxu0 0.0
  %234 = vmatprep.subr.mxu0 0.0
  %235 = vmatpush2.msra.mxu0 0.0
  %236 = vmatprep.subr.mxu0 0.0
  %237 = vmatpush2.msra.mxu0 0.0
  %238 = vmatprep.subr.mxu0 0.0
  %239 = vmatpush2.msra.mxu0 0.0
  %240 = vmatprep.subr.mxu0 0.0
  %241 = vmatpush2.msra.mxu0 0.0
  %242 = vmatprep.subr.mxu0 0.0
  %243 = vmatpush2.msra.mxu0 0.0
  %244 = vmatprep.subr.mxu0 0.0
  %245 = vmatpush2.msra.mxu0 0.0
  %246 = vmatprep.subr.mxu0 0.0
  %247 = vmatpush2.msra.mxu0 0.0
  %248 = vmatprep.subr.mxu0 0.0
  %249 = vmatpush2.msra.mxu0 0.0
  %250 = vmatprep.subr.mxu0 0.0
  %251 = vmatpush2.msra.mxu0 0.0
  %252 = vmatprep.subr.mxu0 0.0
  %253 = vmatpush2.msra.mxu0 0.0
  %254 = vmatprep.subr.mxu0 0.0
  %255 = vmatpush2.msra.mxu0 0.0
  %256 = vmatprep.subr.mxu0 0.0
  %257 = vmatpush2.msra.mxu0 0.0
  %258 = vmatprep.mubr.f32.mxu0 0.0
  %259 = vmatmul.mubr.f32.gmra.mxu0 %v192
  %v260 = vpop.f32.mrf.mxu0
  %v261 = vadd.f32 %v189, %v260
  %v262 = vpop.f32.mrf.mxu0
  %263 = vdwg.mxu0
  %v264 = vld [vmem:[%s8] sm:$0xff]
  %v265 = vld [vmem:[%s8 + $0x8] sm:$0xff]
  %v266 = vld [vmem:[%s8 + $0x10] sm:$0xff]
  %v267 = vld [vmem:[%s8 + $0x18] sm:$0xff]
  %v268 = vld [vmem:[%s9] sm:$0x1]
  %v270 = vlaneseq
  %v271 = vshrl.u32 %v270, 7
  %v272 = vsub.s32 0, %v271
  %v273 = vrot.slane %v268, %v272
  %275 = vmatprep.subr.mxu0 0.0
  %276 = vmatpush1.msra.mxu0 0.0
  %277 = vmatprep.subr.mxu0 0.0
  %278 = vmatpush1.msra.mxu0 0.0
  %279 = vmatprep.subr.mxu0 0.0
  %280 = vmatpush1.msra.mxu0 0.0
  %281 = vmatprep.subr.mxu0 0.0
  %282 = vmatpush1.msra.mxu0 0.0
  %283 = vmatprep.subr.mxu0 0.0
  %284 = vmatpush1.msra.mxu0 0.0
  %285 = vmatprep.subr.mxu0 0.0
  %286 = vmatpush1.msra.mxu0 0.0
  %287 = vmatprep.subr.mxu0 0.0
  %288 = vmatpush1.msra.mxu0 0.0
  %289 = vmatprep.subr.mxu0 0.0
  %290 = vmatpush1.msra.mxu0 0.0
  %291 = vmatprep.subr.mxu0 0.0
  %292 = vmatpush1.msra.mxu0 0.0
  %293 = vmatprep.subr.mxu0 0.0
  %294 = vmatpush1.msra.mxu0 0.0
  %295 = vmatprep.subr.mxu0 0.0
  %296 = vmatpush1.msra.mxu0 0.0
  %297 = vmatprep.subr.mxu0 0.0
  %298 = vmatpush1.msra.mxu0 0.0
  %299 = vmatprep.subr.mxu0 0.0
  %300 = vmatpush1.msra.mxu0 %v267
  %301 = vmatprep.subr.mxu0 0.0
  %302 = vmatpush1.msra.mxu0 %v266
  %303 = vmatprep.subr.mxu0 0.0
  %304 = vmatpush1.msra.mxu0 %v265
  %305 = vmatprep.subr.mxu0 0.0
  %306 = vmatpush1.msra.mxu0 %v264
  %307 = vmatprep.subr.mxu0 0.0
  %308 = vmatpush2.msra.mxu0 0.0
  %309 = vmatprep.subr.mxu0 0.0
  %310 = vmatpush2.msra.mxu0 0.0
  %311 = vmatprep.subr.mxu0 0.0
  %312 = vmatpush2.msra.mxu0 0.0
  %313 = vmatprep.subr.mxu0 0.0
  %314 = vmatpush2.msra.mxu0 0.0
  %315 = vmatprep.subr.mxu0 0.0
  %316 = vmatpush2.msra.mxu0 0.0
  %317 = vmatprep.subr.mxu0 0.0
  %318 = vmatpush2.msra.mxu0 0.0
  %319 = vmatprep.subr.mxu0 0.0
  %320 = vmatpush2.msra.mxu0 0.0
  %321 = vmatprep.subr.mxu0 0.0
  %322 = vmatpush2.msra.mxu0 0.0
  %323 = vmatprep.subr.mxu0 0.0
  %324 = vmatpush2.msra.mxu0 0.0
  %325 = vmatprep.subr.mxu0 0.0
  %326 = vmatpush2.msra.mxu0 0.0
  %327 = vmatprep.subr.mxu0 0.0
  %328 = vmatpush2.msra.mxu0 0.0
  %329 = vmatprep.subr.mxu0 0.0
  %330 = vmatpush2.msra.mxu0 0.0
  %331 = vmatprep.subr.mxu0 0.0
  %332 = vmatpush2.msra.mxu0 0.0
  %333 = vmatprep.subr.mxu0 0.0
  %334 = vmatpush2.msra.mxu0 0.0
  %335 = vmatprep.subr.mxu0 0.0
  %336 = vmatpush2.msra.mxu0 0.0
  %337 = vmatprep.subr.mxu0 0.0
  %338 = vmatpush2.msra.mxu0 0.0
  %339 = vmatprep.mubr.f32.mxu0 0.0
  %340 = vmatmul.mubr.f32.gmra.mxu0 %v192
  %v341 = vpop.f32.mrf.mxu0
  %v342 = vadd.f32 %v273, %v341
  %v343 = vpop.f32.mrf.mxu0
  %344 = vdwg.mxu0
  %v345 = vld [vmem:[%s3] sm:$0xff]
  %v346 = vld [vmem:[%s3 + $0x8] sm:$0x3]
  %vm347 = vcmask 15360
  %v349 = vsel %vm347, %v345, 0
  %v352 = vsel %vm347, %v346, 0
  %vm354 = vcmask 1041408
  %v356 = vsel %vm354, %v261, 0
  %358 = vmatprep.subr.mxu0 0.0
  %359 = vmatpush1.msra.mxu0 0.0
  %360 = vmatprep.subr.mxu0 0.0
  %361 = vmatpush1.msra.mxu0 0.0
  %362 = vmatprep.subr.mxu0 0.0
  %363 = vmatpush1.msra.mxu0 0.0
  %364 = vmatprep.subr.mxu0 0.0
  %365 = vmatpush1.msra.mxu0 0.0
  %366 = vmatprep.subr.mxu0 0.0
  %367 = vmatpush1.msra.mxu0 0.0
  %368 = vmatprep.subr.mxu0 0.0
  %369 = vmatpush1.msra.mxu0 0.0
  %370 = vmatprep.subr.mxu0 0.0
  %371 = vmatpush1.msra.mxu0 0.0
  %372 = vmatprep.subr.mxu0 0.0
  %373 = vmatpush1.msra.mxu0 0.0
  %374 = vmatprep.subr.mxu0 0.0
  %375 = vmatpush1.msra.mxu0 0.0
  %376 = vmatprep.subr.mxu0 0.0
  %377 = vmatpush1.msra.mxu0 0.0
  %378 = vmatprep.subr.mxu0 0.0
  %379 = vmatpush1.msra.mxu0 0.0
  %380 = vmatprep.subr.mxu0 0.0
  %381 = vmatpush1.msra.mxu0 0.0
  %382 = vmatprep.subr.mxu0 0.0
  %383 = vmatpush1.msra.mxu0 0.0
  %384 = vmatprep.subr.mxu0 0.0
  %385 = vmatpush1.msra.mxu0 0.0
  %386 = vmatprep.subr.mxu0 0.0
  %387 = vmatpush1.msra.mxu0 0.0
  %388 = vmatprep.subr.mxu0 0.0
  %389 = vmatpush1.msra.mxu0 %v356
  %390 = vmatprep.subr.mxu0 0.0
  %391 = vmatpush2.msra.mxu0 0.0
  %392 = vmatprep.subr.mxu0 0.0
  %393 = vmatpush2.msra.mxu0 0.0
  %394 = vmatprep.subr.mxu0 0.0
  %395 = vmatpush2.msra.mxu0 0.0
  %396 = vmatprep.subr.mxu0 0.0
  %397 = vmatpush2.msra.mxu0 0.0
  %398 = vmatprep.subr.mxu0 0.0
  %399 = vmatpush2.msra.mxu0 0.0
  %400 = vmatprep.subr.mxu0 0.0
  %401 = vmatpush2.msra.mxu0 0.0
  %402 = vmatprep.subr.mxu0 0.0
  %403 = vmatpush2.msra.mxu0 0.0
  %404 = vmatprep.subr.mxu0 0.0
  %405 = vmatpush2.msra.mxu0 0.0
  %406 = vmatprep.subr.mxu0 0.0
  %407 = vmatpush2.msra.mxu0 0.0
  %408 = vmatprep.subr.mxu0 0.0
  %409 = vmatpush2.msra.mxu0 0.0
  %410 = vmatprep.subr.mxu0 0.0
  %411 = vmatpush2.msra.mxu0 0.0
  %412 = vmatprep.subr.mxu0 0.0
  %413 = vmatpush2.msra.mxu0 0.0
  %414 = vmatprep.subr.mxu0 0.0
  %415 = vmatpush2.msra.mxu0 0.0
  %416 = vmatprep.subr.mxu0 0.0
  %417 = vmatpush2.msra.mxu0 0.0
  %418 = vmatprep.subr.mxu0 0.0
  %419 = vmatpush2.msra.mxu0 0.0
  %420 = vmatprep.subr.mxu0 0.0
  %421 = vmatpush2.msra.mxu0 0.0
  %422 = vmatprep.mubr.f32.mxu0 0.0
  %423 = vmatmul.mubr.f32.gmra.mxu0 %v349
  %v424 = vpop.f32.mrf.mxu0
  %v425 = vadd.f32 0.0, %v424
  %v426 = vpop.f32.mrf.mxu0
  %427 = vmatprep.mubr.f32.mxu0 0.0
  %428 = vmatmul.mubr.f32.gmra.mxu0 %v352
  %v429 = vpop.f32.mrf.mxu0
  %v430 = vadd.f32 0.0, %v429
  %v431 = vpop.f32.mrf.mxu0
  %432 = vdwg.mxu0
  %v433 = vmul.f32 %v425, %v171
  %v434 = vmul.f32 %v430, %v176
  %v436 = vsel %vm354, %v342, 0
  %438 = vmatprep.subr.mxu0 0.0
  %439 = vmatpush1.msra.mxu0 0.0
  %440 = vmatprep.subr.mxu0 0.0
  %441 = vmatpush1.msra.mxu0 0.0
  %442 = vmatprep.subr.mxu0 0.0
  %443 = vmatpush1.msra.mxu0 0.0
  %444 = vmatprep.subr.mxu0 0.0
  %445 = vmatpush1.msra.mxu0 0.0
  %446 = vmatprep.subr.mxu0 0.0
  %447 = vmatpush1.msra.mxu0 0.0
  %448 = vmatprep.subr.mxu0 0.0
  %449 = vmatpush1.msra.mxu0 0.0
  %450 = vmatprep.subr.mxu0 0.0
  %451 = vmatpush1.msra.mxu0 0.0
  %452 = vmatprep.subr.mxu0 0.0
  %453 = vmatpush1.msra.mxu0 0.0
  %454 = vmatprep.subr.mxu0 0.0
  %455 = vmatpush1.msra.mxu0 0.0
  %456 = vmatprep.subr.mxu0 0.0
  %457 = vmatpush1.msra.mxu0 0.0
  %458 = vmatprep.subr.mxu0 0.0
  %459 = vmatpush1.msra.mxu0 0.0
  %460 = vmatprep.subr.mxu0 0.0
  %461 = vmatpush1.msra.mxu0 0.0
  %462 = vmatprep.subr.mxu0 0.0
  %463 = vmatpush1.msra.mxu0 0.0
  %464 = vmatprep.subr.mxu0 0.0
  %465 = vmatpush1.msra.mxu0 0.0
  %466 = vmatprep.subr.mxu0 0.0
  %467 = vmatpush1.msra.mxu0 0.0
  %468 = vmatprep.subr.mxu0 0.0
  %469 = vmatpush1.msra.mxu0 %v436
  %470 = vmatprep.subr.mxu0 0.0
  %471 = vmatpush2.msra.mxu0 0.0
  %472 = vmatprep.subr.mxu0 0.0
  %473 = vmatpush2.msra.mxu0 0.0
  %474 = vmatprep.subr.mxu0 0.0
  %475 = vmatpush2.msra.mxu0 0.0
  %476 = vmatprep.subr.mxu0 0.0
  %477 = vmatpush2.msra.mxu0 0.0
  %478 = vmatprep.subr.mxu0 0.0
  %479 = vmatpush2.msra.mxu0 0.0
  %480 = vmatprep.subr.mxu0 0.0
  %481 = vmatpush2.msra.mxu0 0.0
  %482 = vmatprep.subr.mxu0 0.0
  %483 = vmatpush2.msra.mxu0 0.0
  %484 = vmatprep.subr.mxu0 0.0
  %485 = vmatpush2.msra.mxu0 0.0
  %486 = vmatprep.subr.mxu0 0.0
  %487 = vmatpush2.msra.mxu0 0.0
  %488 = vmatprep.subr.mxu0 0.0
  %489 = vmatpush2.msra.mxu0 0.0
  %490 = vmatprep.subr.mxu0 0.0
  %491 = vmatpush2.msra.mxu0 0.0
  %492 = vmatprep.subr.mxu0 0.0
  %493 = vmatpush2.msra.mxu0 0.0
  %494 = vmatprep.subr.mxu0 0.0
  %495 = vmatpush2.msra.mxu0 0.0
  %496 = vmatprep.subr.mxu0 0.0
  %497 = vmatpush2.msra.mxu0 0.0
  %498 = vmatprep.subr.mxu0 0.0
  %499 = vmatpush2.msra.mxu0 0.0
  %500 = vmatprep.subr.mxu0 0.0
  %501 = vmatpush2.msra.mxu0 0.0
  %502 = vmatprep.mubr.f32.mxu0 0.0
  %503 = vmatmul.mubr.f32.gmra.mxu0 %v349
  %v504 = vpop.f32.mrf.mxu0
  %v505 = vadd.f32 0.0, %v504
  %v506 = vpop.f32.mrf.mxu0
  %507 = vmatprep.mubr.f32.mxu0 0.0
  %508 = vmatmul.mubr.f32.gmra.mxu0 %v352
  %v509 = vpop.f32.mrf.mxu0
  %v510 = vadd.f32 0.0, %v509
  %v511 = vpop.f32.mrf.mxu0
  %512 = vdwg.mxu0
  %v513 = vadd.f32 %v433, %v505
  %v514 = vadd.f32 %v434, %v510
  %v515 = vld [vmem:[%s10] sm:$0xff]
  %v516 = vld [vmem:[%s10 + $0x8] sm:$0xff]
  %v517 = vld [vmem:[%s11] sm:$0x1]
  %v519 = vlaneseq
  %v520 = vshrl.u32 %v519, 7
  %v521 = vsub.s32 0, %v520
  %v522 = vrot.slane %v517, %v521
  %vm524 = vcmask 130048
  %v526 = vsel %vm524, %v513, 0
  %v529 = vsel %vm524, %v514, 0
  %531 = vmatprep.subr.mxu0 0.0
  %532 = vmatpush1.msra.mxu0 0.0
  %533 = vmatprep.subr.mxu0 0.0
  %534 = vmatpush1.msra.mxu0 0.0
  %535 = vmatprep.subr.mxu0 0.0
  %536 = vmatpush1.msra.mxu0 0.0
  %537 = vmatprep.subr.mxu0 0.0
  %538 = vmatpush1.msra.mxu0 0.0
  %539 = vmatprep.subr.mxu0 0.0
  %540 = vmatpush1.msra.mxu0 0.0
  %541 = vmatprep.subr.mxu0 0.0
  %542 = vmatpush1.msra.mxu0 0.0
  %543 = vmatprep.subr.mxu0 0.0
  %544 = vmatpush1.msra.mxu0 0.0
  %545 = vmatprep.subr.mxu0 0.0
  %546 = vmatpush1.msra.mxu0 0.0
  %547 = vmatprep.subr.mxu0 0.0
  %548 = vmatpush1.msra.mxu0 0.0
  %549 = vmatprep.subr.mxu0 0.0
  %550 = vmatpush1.msra.mxu0 0.0
  %551 = vmatprep.subr.mxu0 0.0
  %552 = vmatpush1.msra.mxu0 0.0
  %553 = vmatprep.subr.mxu0 0.0
  %554 = vmatpush1.msra.mxu0 0.0
  %555 = vmatprep.subr.mxu0 0.0
  %556 = vmatpush1.msra.mxu0 0.0
  %557 = vmatprep.subr.mxu0 0.0
  %558 = vmatpush1.msra.mxu0 0.0
  %559 = vmatprep.subr.mxu0 0.0
  %560 = vmatpush1.msra.mxu0 %v516
  %561 = vmatprep.subr.mxu0 0.0
  %562 = vmatpush1.msra.mxu0 %v515
  %563 = vmatprep.subr.mxu0 0.0
  %564 = vmatpush2.msra.mxu0 0.0
  %565 = vmatprep.subr.mxu0 0.0
  %566 = vmatpush2.msra.mxu0 0.0
  %567 = vmatprep.subr.mxu0 0.0
  %568 = vmatpush2.msra.mxu0 0.0
  %569 = vmatprep.subr.mxu0 0.0
  %570 = vmatpush2.msra.mxu0 0.0
  %571 = vmatprep.subr.mxu0 0.0
  %572 = vmatpush2.msra.mxu0 0.0
  %573 = vmatprep.subr.mxu0 0.0
  %574 = vmatpush2.msra.mxu0 0.0
  %575 = vmatprep.subr.mxu0 0.0
  %576 = vmatpush2.msra.mxu0 0.0
  %577 = vmatprep.subr.mxu0 0.0
  %578 = vmatpush2.msra.mxu0 0.0
  %579 = vmatprep.subr.mxu0 0.0
  %580 = vmatpush2.msra.mxu0 0.0
  %581 = vmatprep.subr.mxu0 0.0
  %582 = vmatpush2.msra.mxu0 0.0
  %583 = vmatprep.subr.mxu0 0.0
  %584 = vmatpush2.msra.mxu0 0.0
  %585 = vmatprep.subr.mxu0 0.0
  %586 = vmatpush2.msra.mxu0 0.0
  %587 = vmatprep.subr.mxu0 0.0
  %588 = vmatpush2.msra.mxu0 0.0
  %589 = vmatprep.subr.mxu0 0.0
  %590 = vmatpush2.msra.mxu0 0.0
  %591 = vmatprep.subr.mxu0 0.0
  %592 = vmatpush2.msra.mxu0 0.0
  %593 = vmatprep.subr.mxu0 0.0
  %594 = vmatpush2.msra.mxu0 0.0
  %595 = vmatprep.mubr.f32.mxu0 0.0
  %596 = vmatmul.mubr.f32.gmra.mxu0 %v526
  %v597 = vpop.f32.mrf.mxu0
  %v598 = vadd.f32 %v522, %v597
  %v599 = vpop.f32.mrf.mxu0
  %600 = vmatprep.mubr.f32.mxu0 0.0
  %601 = vmatmul.mubr.f32.gmra.mxu0 %v529
  %v602 = vpop.f32.mrf.mxu0
  %v603 = vadd.f32 %v522, %v602
  %v604 = vpop.f32.mrf.mxu0
  %605 = vdwg.mxu0
  %v606 = vlaneseq
  %v607 = vshrl.u32 %v606, 7
  %v608 = vsub.s32 0, %v607
  %v609 = vrot.slane %v82, %v608
  %v610 = vmul.f32 %v598, %v609
  %v611 = vmul.f32 %v603, %v609
  %614 = vrot.lane.b32.xlu0 %v598, 112
  %v615 = vpop.permute.xlu0 %614
  %616 = vrot.lane.b32.xlu0 %v603, 112
  %v617 = vpop.permute.xlu0 %616
  %v619 = vsel %vm524, %v610, 0
  %v622 = vsel %vm524, %v611, 0
  %v624 = vsel %vm524, %v615, 0
  %v626 = vsel %vm524, %v617, 0
  %628 = vmatprep.subr.mxu0 0.0
  %629 = vmatpush1.xpose.msra.mxu0 0.0
  %630 = vmatprep.subr.mxu0 0.0
  %631 = vmatpush1.xpose.msra.mxu0 0.0
  %632 = vmatprep.subr.mxu0 0.0
  %633 = vmatpush1.xpose.msra.mxu0 0.0
  %634 = vmatprep.subr.mxu0 0.0
  %635 = vmatpush1.xpose.msra.mxu0 0.0
  %636 = vmatprep.subr.mxu0 0.0
  %637 = vmatpush1.xpose.msra.mxu0 0.0
  %638 = vmatprep.subr.mxu0 0.0
  %639 = vmatpush1.xpose.msra.mxu0 0.0
  %640 = vmatprep.subr.mxu0 0.0
  %641 = vmatpush1.xpose.msra.mxu0 0.0
  %642 = vmatprep.subr.mxu0 0.0
  %643 = vmatpush1.xpose.msra.mxu0 0.0
  %644 = vmatprep.subr.mxu0 0.0
  %645 = vmatpush1.xpose.msra.mxu0 0.0
  %646 = vmatprep.subr.mxu0 0.0
  %647 = vmatpush1.xpose.msra.mxu0 0.0
  %648 = vmatprep.subr.mxu0 0.0
  %649 = vmatpush1.xpose.msra.mxu0 0.0
  %650 = vmatprep.subr.mxu0 0.0
  %651 = vmatpush1.xpose.msra.mxu0 0.0
  %652 = vmatprep.subr.mxu0 0.0
  %653 = vmatpush1.xpose.msra.mxu0 0.0
  %654 = vmatprep.subr.mxu0 0.0
  %655 = vmatpush1.xpose.msra.mxu0 0.0
  %656 = vmatprep.subr.mxu0 0.0
  %657 = vmatpush1.xpose.msra.mxu0 %v626
  %658 = vmatprep.subr.mxu0 0.0
  %659 = vmatpush1.xpose.msra.mxu0 %v624
  %660 = vmatprep.subr.mxu0 0.0
  %661 = vmatpush2.xpose.msra.mxu0 0.0
  %662 = vmatprep.subr.mxu0 0.0
  %663 = vmatpush2.xpose.msra.mxu0 0.0
  %664 = vmatprep.subr.mxu0 0.0
  %665 = vmatpush2.xpose.msra.mxu0 0.0
  %666 = vmatprep.subr.mxu0 0.0
  %667 = vmatpush2.xpose.msra.mxu0 0.0
  %668 = vmatprep.subr.mxu0 0.0
  %669 = vmatpush2.xpose.msra.mxu0 0.0
  %670 = vmatprep.subr.mxu0 0.0
  %671 = vmatpush2.xpose.msra.mxu0 0.0
  %672 = vmatprep.subr.mxu0 0.0
  %673 = vmatpush2.xpose.msra.mxu0 0.0
  %674 = vmatprep.subr.mxu0 0.0
  %675 = vmatpush2.xpose.msra.mxu0 0.0
  %676 = vmatprep.subr.mxu0 0.0
  %677 = vmatpush2.xpose.msra.mxu0 0.0
  %678 = vmatprep.subr.mxu0 0.0
  %679 = vmatpush2.xpose.msra.mxu0 0.0
  %680 = vmatprep.subr.mxu0 0.0
  %681 = vmatpush2.xpose.msra.mxu0 0.0
  %682 = vmatprep.subr.mxu0 0.0
  %683 = vmatpush2.xpose.msra.mxu0 0.0
  %684 = vmatprep.subr.mxu0 0.0
  %685 = vmatpush2.xpose.msra.mxu0 0.0
  %686 = vmatprep.subr.mxu0 0.0
  %687 = vmatpush2.xpose.msra.mxu0 0.0
  %688 = vmatprep.subr.mxu0 0.0
  %689 = vmatpush2.xpose.msra.mxu0 0.0
  %690 = vmatprep.subr.mxu0 0.0
  %691 = vmatpush2.xpose.msra.mxu0 0.0
  %692 = vmatprep.mubr.f32.mxu0 0.0
  %693 = vmatmul.mubr.f32.gmra.mxu0 %v619
  %v694 = vpop.f32.mrf.mxu0
  %v695 = vadd.f32 %v80, %v694
  %v696 = vpop.f32.mrf.mxu0
  %697 = vmatprep.mubr.f32.mxu0 0.0
  %698 = vmatmul.mubr.f32.gmra.mxu0 %v622
  %v699 = vpop.f32.mrf.mxu0
  %v700 = vadd.f32 %v81, %v699
  %v701 = vpop.f32.mrf.mxu0
  %702 = vdwg.mxu0
  %vm703 = vcmask 80896
  %v704 = vsel %vm703, %v695, -inf
  %705 = vmax.xlane.f32.xlu0 %v704
  %v706 = vpop.xlane.xlu0 %705
  %vm707 = vcmask 74752
  %v708 = vsel %vm707, %v700, -inf
  %709 = vmax.xlane.f32.xlu0 %v708
  %v710 = vpop.xlane.xlu0 %709
  %v711 = vsub.f32 %v695, %v706
  %v712 = vsub.f32 %v700, %v710
  %v713 = vmul.f32 %v711, 1.442695
  %v714 = vpow.pop %v713
  %v715 = vmul.f32 %v712, 1.442695
  %v716 = vpow.pop %v715
  %v717 = vsel %vm703, %v714, 0.0
  %718 = vadd.xlane.f32.xlu0 %v717
  %v719 = vpop.xlane.xlu0 %718
  %v720 = vsel %vm707, %v716, 0.0
  %721 = vadd.xlane.f32.xlu0 %v720
  %v722 = vpop.xlane.xlu0 %721
  %v723 = vrcp.pop %v719
  %v724 = vrcp.pop %v722
  %v725 = vmul.f32 %v714, %v723
  %v726 = vmul.f32 %v716, %v724
  %728 = vrot.lane.b32.xlu0 %v609, 32
  %v729 = vpop.permute.xlu0 %728
  %v731 = vmul.f32 %v598, %v729
  %v732 = vmul.f32 %v603, %v729
  %v733 = vlaneseq
  %v734 = vshrl.u32 %v733, 7
  %v735 = vsub.s32 1, %v734
  %v736 = vrot.slane %v82, %v735
  %v737 = vmul.f32 %v598, %v736
  %v738 = vmul.f32 %v603, %v736
  %v740 = vsel %vm524, %v737, 0
  %v743 = vsel %vm524, %v738, 0
  %745 = vmatprep.subr.mxu0 0.0
  %746 = vmatpush1.xpose.msra.mxu0 0.0
  %747 = vmatprep.subr.mxu0 0.0
  %748 = vmatpush1.xpose.msra.mxu0 0.0
  %749 = vmatprep.subr.mxu0 0.0
  %750 = vmatpush1.xpose.msra.mxu0 0.0
  %751 = vmatprep.subr.mxu0 0.0
  %752 = vmatpush1.xpose.msra.mxu0 0.0
  %753 = vmatprep.subr.mxu0 0.0
  %754 = vmatpush1.xpose.msra.mxu0 0.0
  %755 = vmatprep.subr.mxu0 0.0
  %756 = vmatpush1.xpose.msra.mxu0 0.0
  %757 = vmatprep.subr.mxu0 0.0
  %758 = vmatpush1.xpose.msra.mxu0 0.0
  %759 = vmatprep.subr.mxu0 0.0
  %760 = vmatpush1.xpose.msra.mxu0 0.0
  %761 = vmatprep.subr.mxu0 0.0
  %762 = vmatpush1.xpose.msra.mxu0 0.0
  %763 = vmatprep.subr.mxu0 0.0
  %764 = vmatpush1.xpose.msra.mxu0 0.0
  %765 = vmatprep.subr.mxu0 0.0
  %766 = vmatpush1.xpose.msra.mxu0 0.0
  %767 = vmatprep.subr.mxu0 0.0
  %768 = vmatpush1.xpose.msra.mxu0 0.0
  %769 = vmatprep.subr.mxu0 0.0
  %770 = vmatpush1.xpose.msra.mxu0 0.0
  %771 = vmatprep.subr.mxu0 0.0
  %772 = vmatpush1.xpose.msra.mxu0 0.0
  %773 = vmatprep.subr.mxu0 0.0
  %774 = vmatpush1.xpose.msra.mxu0 %v626
  %775 = vmatprep.subr.mxu0 0.0
  %776 = vmatpush1.xpose.msra.mxu0 %v624
  %777 = vmatprep.subr.mxu0 0.0
  %778 = vmatpush2.xpose.msra.mxu0 0.0
  %779 = vmatprep.subr.mxu0 0.0
  %780 = vmatpush2.xpose.msra.mxu0 0.0
  %781 = vmatprep.subr.mxu0 0.0
  %782 = vmatpush2.xpose.msra.mxu0 0.0
  %783 = vmatprep.subr.mxu0 0.0
  %784 = vmatpush2.xpose.msra.mxu0 0.0
  %785 = vmatprep.subr.mxu0 0.0
  %786 = vmatpush2.xpose.msra.mxu0 0.0
  %787 = vmatprep.subr.mxu0 0.0
  %788 = vmatpush2.xpose.msra.mxu0 0.0
  %789 = vmatprep.subr.mxu0 0.0
  %790 = vmatpush2.xpose.msra.mxu0 0.0
  %791 = vmatprep.subr.mxu0 0.0
  %792 = vmatpush2.xpose.msra.mxu0 0.0
  %793 = vmatprep.subr.mxu0 0.0
  %794 = vmatpush2.xpose.msra.mxu0 0.0
  %795 = vmatprep.subr.mxu0 0.0
  %796 = vmatpush2.xpose.msra.mxu0 0.0
  %797 = vmatprep.subr.mxu0 0.0
  %798 = vmatpush2.xpose.msra.mxu0 0.0
  %799 = vmatprep.subr.mxu0 0.0
  %800 = vmatpush2.xpose.msra.mxu0 0.0
  %801 = vmatprep.subr.mxu0 0.0
  %802 = vmatpush2.xpose.msra.mxu0 0.0
  %803 = vmatprep.subr.mxu0 0.0
  %804 = vmatpush2.xpose.msra.mxu0 0.0
  %805 = vmatprep.subr.mxu0 0.0
  %806 = vmatpush2.xpose.msra.mxu0 0.0
  %807 = vmatprep.subr.mxu0 0.0
  %808 = vmatpush2.xpose.msra.mxu0 0.0
  %809 = vmatprep.mubr.f32.mxu0 0.0
  %810 = vmatmul.mubr.f32.gmra.mxu0 %v740
  %v811 = vpop.f32.mrf.mxu0
  %v812 = vadd.f32 %v80, %v811
  %v813 = vpop.f32.mrf.mxu0
  %814 = vmatprep.mubr.f32.mxu0 0.0
  %815 = vmatmul.mubr.f32.gmra.mxu0 %v743
  %v816 = vpop.f32.mrf.mxu0
  %v817 = vadd.f32 %v81, %v816
  %v818 = vpop.f32.mrf.mxu0
  %819 = vdwg.mxu0
  %v820 = vsel %vm703, %v812, -inf
  %821 = vmax.xlane.f32.xlu0 %v820
  %v822 = vpop.xlane.xlu0 %821
  %v823 = vsel %vm707, %v817, -inf
  %824 = vmax.xlane.f32.xlu0 %v823
  %v825 = vpop.xlane.xlu0 %824
  %v826 = vsub.f32 %v812, %v822
  %v827 = vsub.f32 %v817, %v825
  %v828 = vmul.f32 %v826, 1.442695
  %v829 = vpow.pop %v828
  %v830 = vmul.f32 %v827, 1.442695
  %v831 = vpow.pop %v830
  %v832 = vsel %vm703, %v829, 0.0
  %833 = vadd.xlane.f32.xlu0 %v832
  %v834 = vpop.xlane.xlu0 %833
  %v835 = vsel %vm707, %v831, 0.0
  %836 = vadd.xlane.f32.xlu0 %v835
  %v837 = vpop.xlane.xlu0 %836
  %v838 = vrcp.pop %v834
  %v839 = vrcp.pop %v837
  %v840 = vmul.f32 %v829, %v838
  %v841 = vmul.f32 %v831, %v839
  %843 = vrot.lane.b32.xlu0 %v736, 32
  %v844 = vpop.permute.xlu0 %843
  %v846 = vmul.f32 %v598, %v844
  %v847 = vmul.f32 %v603, %v844
  %850 = vrot.lane.b32.xlu0 %v846, 96
  %v851 = vpop.permute.xlu0 %850
  %852 = vrot.lane.b32.xlu0 %v847, 96
  %v853 = vpop.permute.xlu0 %852
  %v856 = vsel %vm703, %v840, 0
  %v859 = vsel %vm703, %v841, 0
  %v861 = vsel %vm354, %v853, 0
  %863 = vmatprep.subr.mxu0 0.0
  %864 = vmatpush1.msra.mxu0 0.0
  %865 = vmatprep.subr.mxu0 0.0
  %866 = vmatpush1.msra.mxu0 0.0
  %867 = vmatprep.subr.mxu0 0.0
  %868 = vmatpush1.msra.mxu0 0.0
  %869 = vmatprep.subr.mxu0 0.0
  %870 = vmatpush1.msra.mxu0 0.0
  %871 = vmatprep.subr.mxu0 0.0
  %872 = vmatpush1.msra.mxu0 0.0
  %873 = vmatprep.subr.mxu0 0.0
  %874 = vmatpush1.msra.mxu0 0.0
  %875 = vmatprep.subr.mxu0 0.0
  %876 = vmatpush1.msra.mxu0 0.0
  %877 = vmatprep.subr.mxu0 0.0
  %878 = vmatpush1.msra.mxu0 0.0
  %879 = vmatprep.subr.mxu0 0.0
  %880 = vmatpush1.msra.mxu0 0.0
  %881 = vmatprep.subr.mxu0 0.0
  %882 = vmatpush1.msra.mxu0 0.0
  %883 = vmatprep.subr.mxu0 0.0
  %884 = vmatpush1.msra.mxu0 0.0
  %885 = vmatprep.subr.mxu0 0.0
  %886 = vmatpush1.msra.mxu0 0.0
  %887 = vmatprep.subr.mxu0 0.0
  %888 = vmatpush1.msra.mxu0 0.0
  %889 = vmatprep.subr.mxu0 0.0
  %890 = vmatpush1.msra.mxu0 0.0
  %891 = vmatprep.subr.mxu0 0.0
  %892 = vmatpush1.msra.mxu0 %v861
  %893 = vmatprep.subr.mxu0 0.0
  %894 = vmatpush1.msra.mxu0 %v851
  %895 = vmatprep.subr.mxu0 0.0
  %896 = vmatpush2.msra.mxu0 0.0
  %897 = vmatprep.subr.mxu0 0.0
  %898 = vmatpush2.msra.mxu0 0.0
  %899 = vmatprep.subr.mxu0 0.0
  %900 = vmatpush2.msra.mxu0 0.0
  %901 = vmatprep.subr.mxu0 0.0
  %902 = vmatpush2.msra.mxu0 0.0
  %903 = vmatprep.subr.mxu0 0.0
  %904 = vmatpush2.msra.mxu0 0.0
  %905 = vmatprep.subr.mxu0 0.0
  %906 = vmatpush2.msra.mxu0 0.0
  %907 = vmatprep.subr.mxu0 0.0
  %908 = vmatpush2.msra.mxu0 0.0
  %909 = vmatprep.subr.mxu0 0.0
  %910 = vmatpush2.msra.mxu0 0.0
  %911 = vmatprep.subr.mxu0 0.0
  %912 = vmatpush2.msra.mxu0 0.0
  %913 = vmatprep.subr.mxu0 0.0
  %914 = vmatpush2.msra.mxu0 0.0
  %915 = vmatprep.subr.mxu0 0.0
  %916 = vmatpush2.msra.mxu0 0.0
  %917 = vmatprep.subr.mxu0 0.0
  %918 = vmatpush2.msra.mxu0 0.0
  %919 = vmatprep.subr.mxu0 0.0
  %920 = vmatpush2.msra.mxu0 0.0
  %921 = vmatprep.subr.mxu0 0.0
  %922 = vmatpush2.msra.mxu0 0.0
  %923 = vmatprep.subr.mxu0 0.0
  %924 = vmatpush2.msra.mxu0 0.0
  %925 = vmatprep.subr.mxu0 0.0
  %926 = vmatpush2.msra.mxu0 0.0
  %927 = vmatprep.mubr.f32.mxu0 0.0
  %928 = vmatmul.mubr.f32.gmra.mxu0 %v856
  %v929 = vpop.f32.mrf.mxu0
  %v930 = vadd.f32 0.0, %v929
  %v931 = vpop.f32.mrf.mxu0
  %932 = vmatprep.mubr.f32.mxu0 0.0
  %933 = vmatmul.mubr.f32.gmra.mxu0 %v859
  %v934 = vpop.f32.mrf.mxu0
  %v935 = vadd.f32 0.0, %v934
  %v936 = vpop.f32.mrf.mxu0
  %937 = vdwg.mxu0
  %940 = vrot.lane.b32.xlu0 %v731, 96
  %v941 = vpop.permute.xlu0 %940
  %942 = vrot.lane.b32.xlu0 %v732, 96
  %v943 = vpop.permute.xlu0 %942
  %v946 = vsel %vm703, %v725, 0
  %v949 = vsel %vm703, %v726, 0
  %v951 = vsel %vm354, %v943, 0
  %953 = vmatprep.subr.mxu0 0.0
  %954 = vmatpush1.msra.mxu0 0.0
  %955 = vmatprep.subr.mxu0 0.0
  %956 = vmatpush1.msra.mxu0 0.0
  %957 = vmatprep.subr.mxu0 0.0
  %958 = vmatpush1.msra.mxu0 0.0
  %959 = vmatprep.subr.mxu0 0.0
  %960 = vmatpush1.msra.mxu0 0.0
  %961 = vmatprep.subr.mxu0 0.0
  %962 = vmatpush1.msra.mxu0 0.0
  %963 = vmatprep.subr.mxu0 0.0
  %964 = vmatpush1.msra.mxu0 0.0
  %965 = vmatprep.subr.mxu0 0.0
  %966 = vmatpush1.msra.mxu0 0.0
  %967 = vmatprep.subr.mxu0 0.0
  %968 = vmatpush1.msra.mxu0 0.0
  %969 = vmatprep.subr.mxu0 0.0
  %970 = vmatpush1.msra.mxu0 0.0
  %971 = vmatprep.subr.mxu0 0.0
  %972 = vmatpush1.msra.mxu0 0.0
  %973 = vmatprep.subr.mxu0 0.0
  %974 = vmatpush1.msra.mxu0 0.0
  %975 = vmatprep.subr.mxu0 0.0
  %976 = vmatpush1.msra.mxu0 0.0
  %977 = vmatprep.subr.mxu0 0.0
  %978 = vmatpush1.msra.mxu0 0.0
  %979 = vmatprep.subr.mxu0 0.0
  %980 = vmatpush1.msra.mxu0 0.0
  %981 = vmatprep.subr.mxu0 0.0
  %982 = vmatpush1.msra.mxu0 %v951
  %983 = vmatprep.subr.mxu0 0.0
  %984 = vmatpush1.msra.mxu0 %v941
  %985 = vmatprep.subr.mxu0 0.0
  %986 = vmatpush2.msra.mxu0 0.0
  %987 = vmatprep.subr.mxu0 0.0
  %988 = vmatpush2.msra.mxu0 0.0
  %989 = vmatprep.subr.mxu0 0.0
  %990 = vmatpush2.msra.mxu0 0.0
  %991 = vmatprep.subr.mxu0 0.0
  %992 = vmatpush2.msra.mxu0 0.0
  %993 = vmatprep.subr.mxu0 0.0
  %994 = vmatpush2.msra.mxu0 0.0
  %995 = vmatprep.subr.mxu0 0.0
  %996 = vmatpush2.msra.mxu0 0.0
  %997 = vmatprep.subr.mxu0 0.0
  %998 = vmatpush2.msra.mxu0 0.0
  %999 = vmatprep.subr.mxu0 0.0
  %1000 = vmatpush2.msra.mxu0 0.0
  %1001 = vmatprep.subr.mxu0 0.0
  %1002 = vmatpush2.msra.mxu0 0.0
  %1003 = vmatprep.subr.mxu0 0.0
  %1004 = vmatpush2.msra.mxu0 0.0
  %1005 = vmatprep.subr.mxu0 0.0
  %1006 = vmatpush2.msra.mxu0 0.0
  %1007 = vmatprep.subr.mxu0 0.0
  %1008 = vmatpush2.msra.mxu0 0.0
  %1009 = vmatprep.subr.mxu0 0.0
  %1010 = vmatpush2.msra.mxu0 0.0
  %1011 = vmatprep.subr.mxu0 0.0
  %1012 = vmatpush2.msra.mxu0 0.0
  %1013 = vmatprep.subr.mxu0 0.0
  %1014 = vmatpush2.msra.mxu0 0.0
  %1015 = vmatprep.subr.mxu0 0.0
  %1016 = vmatpush2.msra.mxu0 0.0
  %1017 = vmatprep.mubr.f32.mxu0 0.0
  %1018 = vmatmul.mubr.f32.gmra.mxu0 %v946
  %v1019 = vpop.f32.mrf.mxu0
  %v1020 = vadd.f32 %v930, %v1019
  %v1021 = vpop.f32.mrf.mxu0
  %1022 = vmatprep.mubr.f32.mxu0 0.0
  %1023 = vmatmul.mubr.f32.gmra.mxu0 %v949
  %v1024 = vpop.f32.mrf.mxu0
  %v1025 = vadd.f32 %v935, %v1024
  %v1026 = vpop.f32.mrf.mxu0
  %1027 = vdwg.mxu0
  %v1028 = vlaneseq
  %v1029 = vshrl.u32 %v1028, 7
  %v1030 = vsub.s32 2, %v1029
  %v1031 = vrot.slane %v82, %v1030
  %v1032 = vmul.f32 %v598, %v1031
  %v1033 = vmul.f32 %v603, %v1031
  %v1035 = vsel %vm524, %v1032, 0
  %v1038 = vsel %vm524, %v1033, 0
  %1040 = vmatprep.subr.mxu0 0.0
  %1041 = vmatpush1.xpose.msra.mxu0 0.0
  %1042 = vmatprep.subr.mxu0 0.0
  %1043 = vmatpush1.xpose.msra.mxu0 0.0
  %1044 = vmatprep.subr.mxu0 0.0
  %1045 = vmatpush1.xpose.msra.mxu0 0.0
  %1046 = vmatprep.subr.mxu0 0.0
  %1047 = vmatpush1.xpose.msra.mxu0 0.0
  %1048 = vmatprep.subr.mxu0 0.0
  %1049 = vmatpush1.xpose.msra.mxu0 0.0
  %1050 = vmatprep.subr.mxu0 0.0
  %1051 = vmatpush1.xpose.msra.mxu0 0.0
  %1052 = vmatprep.subr.mxu0 0.0
  %1053 = vmatpush1.xpose.msra.mxu0 0.0
  %1054 = vmatprep.subr.mxu0 0.0
  %1055 = vmatpush1.xpose.msra.mxu0 0.0
  %1056 = vmatprep.subr.mxu0 0.0
  %1057 = vmatpush1.xpose.msra.mxu0 0.0
  %1058 = vmatprep.subr.mxu0 0.0
  %1059 = vmatpush1.xpose.msra.mxu0 0.0
  %1060 = vmatprep.subr.mxu0 0.0
  %1061 = vmatpush1.xpose.msra.mxu0 0.0
  %1062 = vmatprep.subr.mxu0 0.0
  %1063 = vmatpush1.xpose.msra.mxu0 0.0
  %1064 = vmatprep.subr.mxu0 0.0
  %1065 = vmatpush1.xpose.msra.mxu0 0.0
  %1066 = vmatprep.subr.mxu0 0.0
  %1067 = vmatpush1.xpose.msra.mxu0 0.0
  %1068 = vmatprep.subr.mxu0 0.0
  %1069 = vmatpush1.xpose.msra.mxu0 %v626
  %1070 = vmatprep.subr.mxu0 0.0
  %1071 = vmatpush1.xpose.msra.mxu0 %v624
  %1072 = vmatprep.subr.mxu0 0.0
  %1073 = vmatpush2.xpose.msra.mxu0 0.0
  %1074 = vmatprep.subr.mxu0 0.0
  %1075 = vmatpush2.xpose.msra.mxu0 0.0
  %1076 = vmatprep.subr.mxu0 0.0
  %1077 = vmatpush2.xpose.msra.mxu0 0.0
  %1078 = vmatprep.subr.mxu0 0.0
  %1079 = vmatpush2.xpose.msra.mxu0 0.0
  %1080 = vmatprep.subr.mxu0 0.0
  %1081 = vmatpush2.xpose.msra.mxu0 0.0
  %1082 = vmatprep.subr.mxu0 0.0
  %1083 = vmatpush2.xpose.msra.mxu0 0.0
  %1084 = vmatprep.subr.mxu0 0.0
  %1085 = vmatpush2.xpose.msra.mxu0 0.0
  %1086 = vmatprep.subr.mxu0 0.0
  %1087 = vmatpush2.xpose.msra.mxu0 0.0
  %1088 = vmatprep.subr.mxu0 0.0
  %1089 = vmatpush2.xpose.msra.mxu0 0.0
  %1090 = vmatprep.subr.mxu0 0.0
  %1091 = vmatpush2.xpose.msra.mxu0 0.0
  %1092 = vmatprep.subr.mxu0 0.0
  %1093 = vmatpush2.xpose.msra.mxu0 0.0
  %1094 = vmatprep.subr.mxu0 0.0
  %1095 = vmatpush2.xpose.msra.mxu0 0.0
  %1096 = vmatprep.subr.mxu0 0.0
  %1097 = vmatpush2.xpose.msra.mxu0 0.0
  %1098 = vmatprep.subr.mxu0 0.0
  %1099 = vmatpush2.xpose.msra.mxu0 0.0
  %1100 = vmatprep.subr.mxu0 0.0
  %1101 = vmatpush2.xpose.msra.mxu0 0.0
  %1102 = vmatprep.subr.mxu0 0.0
  %1103 = vmatpush2.xpose.msra.mxu0 0.0
  %1104 = vmatprep.mubr.f32.mxu0 0.0
  %1105 = vmatmul.mubr.f32.gmra.mxu0 %v1035
  %v1106 = vpop.f32.mrf.mxu0
  %v1107 = vadd.f32 %v80, %v1106
  %v1108 = vpop.f32.mrf.mxu0
  %1109 = vmatprep.mubr.f32.mxu0 0.0
  %1110 = vmatmul.mubr.f32.gmra.mxu0 %v1038
  %v1111 = vpop.f32.mrf.mxu0
  %v1112 = vadd.f32 %v81, %v1111
  %v1113 = vpop.f32.mrf.mxu0
  %1114 = vdwg.mxu0
  %v1115 = vsel %vm703, %v1107, -inf
  %1116 = vmax.xlane.f32.xlu0 %v1115
  %v1117 = vpop.xlane.xlu0 %1116
  %v1118 = vsel %vm707, %v1112, -inf
  %1119 = vmax.xlane.f32.xlu0 %v1118
  %v1120 = vpop.xlane.xlu0 %1119
  %v1121 = vsub.f32 %v1107, %v1117
  %v1122 = vsub.f32 %v1112, %v1120
  %v1123 = vmul.f32 %v1121, 1.442695
  %v1124 = vpow.pop %v1123
  %v1125 = vmul.f32 %v1122, 1.442695
  %v1126 = vpow.pop %v1125
  %v1127 = vsel %vm703, %v1124, 0.0
  %1128 = vadd.xlane.f32.xlu0 %v1127
  %v1129 = vpop.xlane.xlu0 %1128
  %v1130 = vsel %vm707, %v1126, 0.0
  %1131 = vadd.xlane.f32.xlu0 %v1130
  %v1132 = vpop.xlane.xlu0 %1131
  %v1133 = vrcp.pop %v1129
  %v1134 = vrcp.pop %v1132
  %v1135 = vmul.f32 %v1124, %v1133
  %v1136 = vmul.f32 %v1126, %v1134
  %1138 = vrot.lane.b32.xlu0 %v1031, 32
  %v1139 = vpop.permute.xlu0 %1138
  %v1141 = vmul.f32 %v598, %v1139
  %v1142 = vmul.f32 %v603, %v1139
  %1145 = vrot.lane.b32.xlu0 %v1141, 96
  %v1146 = vpop.permute.xlu0 %1145
  %1147 = vrot.lane.b32.xlu0 %v1142, 96
  %v1148 = vpop.permute.xlu0 %1147
  %v1151 = vsel %vm703, %v1135, 0
  %v1154 = vsel %vm703, %v1136, 0
  %v1156 = vsel %vm354, %v1148, 0
  %1158 = vmatprep.subr.mxu0 0.0
  %1159 = vmatpush1.msra.mxu0 0.0
  %1160 = vmatprep.subr.mxu0 0.0
  %1161 = vmatpush1.msra.mxu0 0.0
  %1162 = vmatprep.subr.mxu0 0.0
  %1163 = vmatpush1.msra.mxu0 0.0
  %1164 = vmatprep.subr.mxu0 0.0
  %1165 = vmatpush1.msra.mxu0 0.0
  %1166 = vmatprep.subr.mxu0 0.0
  %1167 = vmatpush1.msra.mxu0 0.0
  %1168 = vmatprep.subr.mxu0 0.0
  %1169 = vmatpush1.msra.mxu0 0.0
  %1170 = vmatprep.subr.mxu0 0.0
  %1171 = vmatpush1.msra.mxu0 0.0
  %1172 = vmatprep.subr.mxu0 0.0
  %1173 = vmatpush1.msra.mxu0 0.0
  %1174 = vmatprep.subr.mxu0 0.0
  %1175 = vmatpush1.msra.mxu0 0.0
  %1176 = vmatprep.subr.mxu0 0.0
  %1177 = vmatpush1.msra.mxu0 0.0
  %1178 = vmatprep.subr.mxu0 0.0
  %1179 = vmatpush1.msra.mxu0 0.0
  %1180 = vmatprep.subr.mxu0 0.0
  %1181 = vmatpush1.msra.mxu0 0.0
  %1182 = vmatprep.subr.mxu0 0.0
  %1183 = vmatpush1.msra.mxu0 0.0
  %1184 = vmatprep.subr.mxu0 0.0
  %1185 = vmatpush1.msra.mxu0 0.0
  %1186 = vmatprep.subr.mxu0 0.0
  %1187 = vmatpush1.msra.mxu0 %v1156
  %1188 = vmatprep.subr.mxu0 0.0
  %1189 = vmatpush1.msra.mxu0 %v1146
  %1190 = vmatprep.subr.mxu0 0.0
  %1191 = vmatpush2.msra.mxu0 0.0
  %1192 = vmatprep.subr.mxu0 0.0
  %1193 = vmatpush2.msra.mxu0 0.0
  %1194 = vmatprep.subr.mxu0 0.0
  %1195 = vmatpush2.msra.mxu0 0.0
  %1196 = vmatprep.subr.mxu0 0.0
  %1197 = vmatpush2.msra.mxu0 0.0
  %1198 = vmatprep.subr.mxu0 0.0
  %1199 = vmatpush2.msra.mxu0 0.0
  %1200 = vmatprep.subr.mxu0 0.0
  %1201 = vmatpush2.msra.mxu0 0.0
  %1202 = vmatprep.subr.mxu0 0.0
  %1203 = vmatpush2.msra.mxu0 0.0
  %1204 = vmatprep.subr.mxu0 0.0
  %1205 = vmatpush2.msra.mxu0 0.0
  %1206 = vmatprep.subr.mxu0 0.0
  %1207 = vmatpush2.msra.mxu0 0.0
  %1208 = vmatprep.subr.mxu0 0.0
  %1209 = vmatpush2.msra.mxu0 0.0
  %1210 = vmatprep.subr.mxu0 0.0
  %1211 = vmatpush2.msra.mxu0 0.0
  %1212 = vmatprep.subr.mxu0 0.0
  %1213 = vmatpush2.msra.mxu0 0.0
  %1214 = vmatprep.subr.mxu0 0.0
  %1215 = vmatpush2.msra.mxu0 0.0
  %1216 = vmatprep.subr.mxu0 0.0
  %1217 = vmatpush2.msra.mxu0 0.0
  %1218 = vmatprep.subr.mxu0 0.0
  %1219 = vmatpush2.msra.mxu0 0.0
  %1220 = vmatprep.subr.mxu0 0.0
  %1221 = vmatpush2.msra.mxu0 0.0
  %1222 = vmatprep.mubr.f32.mxu0 0.0
  %1223 = vmatmul.mubr.f32.gmra.mxu0 %v1151
  %v1224 = vpop.f32.mrf.mxu0
  %v1225 = vadd.f32 0.0, %v1224
  %v1226 = vpop.f32.mrf.mxu0
  %1227 = vmatprep.mubr.f32.mxu0 0.0
  %1228 = vmatmul.mubr.f32.gmra.mxu0 %v1154
  %v1229 = vpop.f32.mrf.mxu0
  %v1230 = vadd.f32 0.0, %v1229
  %v1231 = vpop.f32.mrf.mxu0
  %1232 = vdwg.mxu0
  %v1233 = vadd.f32 %v1020, %v1225
  %v1234 = vadd.f32 %v1025, %v1230
  %v1235 = vlaneseq
  %v1236 = vshrl.u32 %v1235, 7
  %v1237 = vsub.s32 3, %v1236
  %v1238 = vrot.slane %v82, %v1237
  %v1239 = vmul.f32 %v598, %v1238
  %v1240 = vmul.f32 %v603, %v1238
  %v1242 = vsel %vm524, %v1239, 0
  %v1245 = vsel %vm524, %v1240, 0
  %1247 = vmatprep.subr.mxu0 0.0
  %1248 = vmatpush1.xpose.msra.mxu0 0.0
  %1249 = vmatprep.subr.mxu0 0.0
  %1250 = vmatpush1.xpose.msra.mxu0 0.0
  %1251 = vmatprep.subr.mxu0 0.0
  %1252 = vmatpush1.xpose.msra.mxu0 0.0
  %1253 = vmatprep.subr.mxu0 0.0
  %1254 = vmatpush1.xpose.msra.mxu0 0.0
  %1255 = vmatprep.subr.mxu0 0.0
  %1256 = vmatpush1.xpose.msra.mxu0 0.0
  %1257 = vmatprep.subr.mxu0 0.0
  %1258 = vmatpush1.xpose.msra.mxu0 0.0
  %1259 = vmatprep.subr.mxu0 0.0
  %1260 = vmatpush1.xpose.msra.mxu0 0.0
  %1261 = vmatprep.subr.mxu0 0.0
  %1262 = vmatpush1.xpose.msra.mxu0 0.0
  %1263 = vmatprep.subr.mxu0 0.0
  %1264 = vmatpush1.xpose.msra.mxu0 0.0
  %1265 = vmatprep.subr.mxu0 0.0
  %1266 = vmatpush1.xpose.msra.mxu0 0.0
  %1267 = vmatprep.subr.mxu0 0.0
  %1268 = vmatpush1.xpose.msra.mxu0 0.0
  %1269 = vmatprep.subr.mxu0 0.0
  %1270 = vmatpush1.xpose.msra.mxu0 0.0
  %1271 = vmatprep.subr.mxu0 0.0
  %1272 = vmatpush1.xpose.msra.mxu0 0.0
  %1273 = vmatprep.subr.mxu0 0.0
  %1274 = vmatpush1.xpose.msra.mxu0 0.0
  %1275 = vmatprep.subr.mxu0 0.0
  %1276 = vmatpush1.xpose.msra.mxu0 %v626
  %1277 = vmatprep.subr.mxu0 0.0
  %1278 = vmatpush1.xpose.msra.mxu0 %v624
  %1279 = vmatprep.subr.mxu0 0.0
  %1280 = vmatpush2.xpose.msra.mxu0 0.0
  %1281 = vmatprep.subr.mxu0 0.0
  %1282 = vmatpush2.xpose.msra.mxu0 0.0
  %1283 = vmatprep.subr.mxu0 0.0
  %1284 = vmatpush2.xpose.msra.mxu0 0.0
  %1285 = vmatprep.subr.mxu0 0.0
  %1286 = vmatpush2.xpose.msra.mxu0 0.0
  %1287 = vmatprep.subr.mxu0 0.0
  %1288 = vmatpush2.xpose.msra.mxu0 0.0
  %1289 = vmatprep.subr.mxu0 0.0
  %1290 = vmatpush2.xpose.msra.mxu0 0.0
  %1291 = vmatprep.subr.mxu0 0.0
  %1292 = vmatpush2.xpose.msra.mxu0 0.0
  %1293 = vmatprep.subr.mxu0 0.0
  %1294 = vmatpush2.xpose.msra.mxu0 0.0
  %1295 = vmatprep.subr.mxu0 0.0
  %1296 = vmatpush2.xpose.msra.mxu0 0.0
  %1297 = vmatprep.subr.mxu0 0.0
  %1298 = vmatpush2.xpose.msra.mxu0 0.0
  %1299 = vmatprep.subr.mxu0 0.0
  %1300 = vmatpush2.xpose.msra.mxu0 0.0
  %1301 = vmatprep.subr.mxu0 0.0
  %1302 = vmatpush2.xpose.msra.mxu0 0.0
  %1303 = vmatprep.subr.mxu0 0.0
  %1304 = vmatpush2.xpose.msra.mxu0 0.0
  %1305 = vmatprep.subr.mxu0 0.0
  %1306 = vmatpush2.xpose.msra.mxu0 0.0
  %1307 = vmatprep.subr.mxu0 0.0
  %1308 = vmatpush2.xpose.msra.mxu0 0.0
  %1309 = vmatprep.subr.mxu0 0.0
  %1310 = vmatpush2.xpose.msra.mxu0 0.0
  %1311 = vmatprep.mubr.f32.mxu0 0.0
  %1312 = vmatmul.mubr.f32.gmra.mxu0 %v1242
  %v1313 = vpop.f32.mrf.mxu0
  %v1314 = vadd.f32 %v80, %v1313
  %v1315 = vpop.f32.mrf.mxu0
  %1316 = vmatprep.mubr.f32.mxu0 0.0
  %1317 = vmatmul.mubr.f32.gmra.mxu0 %v1245
  %v1318 = vpop.f32.mrf.mxu0
  %v1319 = vadd.f32 %v81, %v1318
  %v1320 = vpop.f32.mrf.mxu0
  %1321 = vdwg.mxu0
  %v1322 = vsel %vm703, %v1314, -inf
  %1323 = vmax.xlane.f32.xlu0 %v1322
  %v1324 = vpop.xlane.xlu0 %1323
  %v1325 = vsel %vm707, %v1319, -inf
  %1326 = vmax.xlane.f32.xlu0 %v1325
  %v1327 = vpop.xlane.xlu0 %1326
  %v1328 = vsub.f32 %v1314, %v1324
  %v1329 = vsub.f32 %v1319, %v1327
  %v1330 = vmul.f32 %v1328, 1.442695
  %v1331 = vpow.pop %v1330
  %v1332 = vmul.f32 %v1329, 1.442695
  %v1333 = vpow.pop %v1332
  %v1334 = vsel %vm703, %v1331, 0.0
  %1335 = vadd.xlane.f32.xlu0 %v1334
  %v1336 = vpop.xlane.xlu0 %1335
  %v1337 = vsel %vm707, %v1333, 0.0
  %1338 = vadd.xlane.f32.xlu0 %v1337
  %v1339 = vpop.xlane.xlu0 %1338
  %v1340 = vrcp.pop %v1336
  %v1341 = vrcp.pop %v1339
  %v1342 = vmul.f32 %v1331, %v1340
  %v1343 = vmul.f32 %v1333, %v1341
  %1345 = vrot.lane.b32.xlu0 %v1238, 32
  %v1346 = vpop.permute.xlu0 %1345
  %v1348 = vmul.f32 %v598, %v1346
  %v1349 = vmul.f32 %v603, %v1346
  %1352 = vrot.lane.b32.xlu0 %v1348, 96
  %v1353 = vpop.permute.xlu0 %1352
  %1354 = vrot.lane.b32.xlu0 %v1349, 96
  %v1355 = vpop.permute.xlu0 %1354
  %v1358 = vsel %vm703, %v1342, 0
  %v1361 = vsel %vm703, %v1343, 0
  %v1363 = vsel %vm354, %v1355, 0
  %1365 = vmatprep.subr.mxu0 0.0
  %1366 = vmatpush1.msra.mxu0 0.0
  %1367 = vmatprep.subr.mxu0 0.0
  %1368 = vmatpush1.msra.mxu0 0.0
  %1369 = vmatprep.subr.mxu0 0.0
  %1370 = vmatpush1.msra.mxu0 0.0
  %1371 = vmatprep.subr.mxu0 0.0
  %1372 = vmatpush1.msra.mxu0 0.0
  %1373 = vmatprep.subr.mxu0 0.0
  %1374 = vmatpush1.msra.mxu0 0.0
  %1375 = vmatprep.subr.mxu0 0.0
  %1376 = vmatpush1.msra.mxu0 0.0
  %1377 = vmatprep.subr.mxu0 0.0
  %1378 = vmatpush1.msra.mxu0 0.0
  %1379 = vmatprep.subr.mxu0 0.0
  %1380 = vmatpush1.msra.mxu0 0.0
  %1381 = vmatprep.subr.mxu0 0.0
  %1382 = vmatpush1.msra.mxu0 0.0
  %1383 = vmatprep.subr.mxu0 0.0
  %1384 = vmatpush1.msra.mxu0 0.0
  %1385 = vmatprep.subr.mxu0 0.0
  %1386 = vmatpush1.msra.mxu0 0.0
  %1387 = vmatprep.subr.mxu0 0.0
  %1388 = vmatpush1.msra.mxu0 0.0
  %1389 = vmatprep.subr.mxu0 0.0
  %1390 = vmatpush1.msra.mxu0 0.0
  %1391 = vmatprep.subr.mxu0 0.0
  %1392 = vmatpush1.msra.mxu0 0.0
  %1393 = vmatprep.subr.mxu0 0.0
  %1394 = vmatpush1.msra.mxu0 %v1363
  %1395 = vmatprep.subr.mxu0 0.0
  %1396 = vmatpush1.msra.mxu0 %v1353
  %1397 = vmatprep.subr.mxu0 0.0
  %1398 = vmatpush2.msra.mxu0 0.0
  %1399 = vmatprep.subr.mxu0 0.0
  %1400 = vmatpush2.msra.mxu0 0.0
  %1401 = vmatprep.subr.mxu0 0.0
  %1402 = vmatpush2.msra.mxu0 0.0
  %1403 = vmatprep.subr.mxu0 0.0
  %1404 = vmatpush2.msra.mxu0 0.0
  %1405 = vmatprep.subr.mxu0 0.0
  %1406 = vmatpush2.msra.mxu0 0.0
  %1407 = vmatprep.subr.mxu0 0.0
  %1408 = vmatpush2.msra.mxu0 0.0
  %1409 = vmatprep.subr.mxu0 0.0
  %1410 = vmatpush2.msra.mxu0 0.0
  %1411 = vmatprep.subr.mxu0 0.0
  %1412 = vmatpush2.msra.mxu0 0.0
  %1413 = vmatprep.subr.mxu0 0.0
  %1414 = vmatpush2.msra.mxu0 0.0
  %1415 = vmatprep.subr.mxu0 0.0
  %1416 = vmatpush2.msra.mxu0 0.0
  %1417 = vmatprep.subr.mxu0 0.0
  %1418 = vmatpush2.msra.mxu0 0.0
  %1419 = vmatprep.subr.mxu0 0.0
  %1420 = vmatpush2.msra.mxu0 0.0
  %1421 = vmatprep.subr.mxu0 0.0
  %1422 = vmatpush2.msra.mxu0 0.0
  %1423 = vmatprep.subr.mxu0 0.0
  %1424 = vmatpush2.msra.mxu0 0.0
  %1425 = vmatprep.subr.mxu0 0.0
  %1426 = vmatpush2.msra.mxu0 0.0
  %1427 = vmatprep.subr.mxu0 0.0
  %1428 = vmatpush2.msra.mxu0 0.0
  %1429 = vmatprep.mubr.f32.mxu0 0.0
  %1430 = vmatmul.mubr.f32.gmra.mxu0 %v1358
  %v1431 = vpop.f32.mrf.mxu0
  %v1432 = vadd.f32 0.0, %v1431
  %v1433 = vpop.f32.mrf.mxu0
  %1434 = vmatprep.mubr.f32.mxu0 0.0
  %1435 = vmatmul.mubr.f32.gmra.mxu0 %v1361
  %v1436 = vpop.f32.mrf.mxu0
  %v1437 = vadd.f32 0.0, %v1436
  %v1438 = vpop.f32.mrf.mxu0
  %1439 = vdwg.mxu0
  %v1440 = vadd.f32 %v1233, %v1432
  %v1441 = vadd.f32 %v1234, %v1437
  %v1442 = vld [vmem:[%s12] sm:$0xff]
  %v1443 = vld [vmem:[%s12 + $0x8] sm:$0xff]
  %v1444 = vld [vmem:[%s13] sm:$0x1]
  %v1446 = vlaneseq
  %v1447 = vshrl.u32 %v1446, 7
  %v1448 = vsub.s32 0, %v1447
  %v1449 = vrot.slane %v1444, %v1448
  %v1452 = vsel %vm524, %v1440, 0
  %v1455 = vsel %vm524, %v1441, 0
  %1457 = vmatprep.subr.mxu0 0.0
  %1458 = vmatpush1.msra.mxu0 0.0
  %1459 = vmatprep.subr.mxu0 0.0
  %1460 = vmatpush1.msra.mxu0 0.0
  %1461 = vmatprep.subr.mxu0 0.0
  %1462 = vmatpush1.msra.mxu0 0.0
  %1463 = vmatprep.subr.mxu0 0.0
  %1464 = vmatpush1.msra.mxu0 0.0
  %1465 = vmatprep.subr.mxu0 0.0
  %1466 = vmatpush1.msra.mxu0 0.0
  %1467 = vmatprep.subr.mxu0 0.0
  %1468 = vmatpush1.msra.mxu0 0.0
  %1469 = vmatprep.subr.mxu0 0.0
  %1470 = vmatpush1.msra.mxu0 0.0
  %1471 = vmatprep.subr.mxu0 0.0
  %1472 = vmatpush1.msra.mxu0 0.0
  %1473 = vmatprep.subr.mxu0 0.0
  %1474 = vmatpush1.msra.mxu0 0.0
  %1475 = vmatprep.subr.mxu0 0.0
  %1476 = vmatpush1.msra.mxu0 0.0
  %1477 = vmatprep.subr.mxu0 0.0
  %1478 = vmatpush1.msra.mxu0 0.0
  %1479 = vmatprep.subr.mxu0 0.0
  %1480 = vmatpush1.msra.mxu0 0.0
  %1481 = vmatprep.subr.mxu0 0.0
  %1482 = vmatpush1.msra.mxu0 0.0
  %1483 = vmatprep.subr.mxu0 0.0
  %1484 = vmatpush1.msra.mxu0 0.0
  %1485 = vmatprep.subr.mxu0 0.0
  %1486 = vmatpush1.msra.mxu0 %v1443
  %1487 = vmatprep.subr.mxu0 0.0
  %1488 = vmatpush1.msra.mxu0 %v1442
  %1489 = vmatprep.subr.mxu0 0.0
  %1490 = vmatpush2.msra.mxu0 0.0
  %1491 = vmatprep.subr.mxu0 0.0
  %1492 = vmatpush2.msra.mxu0 0.0
  %1493 = vmatprep.subr.mxu0 0.0
  %1494 = vmatpush2.msra.mxu0 0.0
  %1495 = vmatprep.subr.mxu0 0.0
  %1496 = vmatpush2.msra.mxu0 0.0
  %1497 = vmatprep.subr.mxu0 0.0
  %1498 = vmatpush2.msra.mxu0 0.0
  %1499 = vmatprep.subr.mxu0 0.0
  %1500 = vmatpush2.msra.mxu0 0.0
  %1501 = vmatprep.subr.mxu0 0.0
  %1502 = vmatpush2.msra.mxu0 0.0
  %1503 = vmatprep.subr.mxu0 0.0
  %1504 = vmatpush2.msra.mxu0 0.0
  %1505 = vmatprep.subr.mxu0 0.0
  %1506 = vmatpush2.msra.mxu0 0.0
  %1507 = vmatprep.subr.mxu0 0.0
  %1508 = vmatpush2.msra.mxu0 0.0
  %1509 = vmatprep.subr.mxu0 0.0
  %1510 = vmatpush2.msra.mxu0 0.0
  %1511 = vmatprep.subr.mxu0 0.0
  %1512 = vmatpush2.msra.mxu0 0.0
  %1513 = vmatprep.subr.mxu0 0.0
  %1514 = vmatpush2.msra.mxu0 0.0
  %1515 = vmatprep.subr.mxu0 0.0
  %1516 = vmatpush2.msra.mxu0 0.0
  %1517 = vmatprep.subr.mxu0 0.0
  %1518 = vmatpush2.msra.mxu0 0.0
  %1519 = vmatprep.subr.mxu0 0.0
  %1520 = vmatpush2.msra.mxu0 0.0
  %1521 = vmatprep.mubr.f32.mxu0 0.0
  %1522 = vmatmul.mubr.f32.gmra.mxu0 %v1452
  %v1523 = vpop.f32.mrf.mxu0
  %v1524 = vadd.f32 %v1449, %v1523
  %v1525 = vpop.f32.mrf.mxu0
  %1526 = vmatprep.mubr.f32.mxu0 0.0
  %1527 = vmatmul.mubr.f32.gmra.mxu0 %v1455
  %v1528 = vpop.f32.mrf.mxu0
  %v1529 = vadd.f32 %v1449, %v1528
  %v1530 = vpop.f32.mrf.mxu0
  %1531 = vdwg.mxu0
  %v1532 = vadd.f32 %v513, %v1524
  %v1533 = vadd.f32 %v514, %v1529
  %v1534 = vld [vmem:[%s14] sm:$0x1]
  %v1535 = vld [vmem:[%s15] sm:$0x1]
  %v1536 = vsel %vm524, %v1532, 0.0
  %1537 = vadd.xlane.f32.xlu0 %v1536
  %v1538 = vpop.xlane.xlu0 %1537
  %vm1539 = vcmask 123904
  %v1540 = vsel %vm1539, %v1533, 0.0
  %1541 = vadd.xlane.f32.xlu0 %v1540
  %v1542 = vpop.xlane.xlu0 %1541
  %v1543 = vrcp.pop 16.0
  %v1544 = vmul.f32 %v1538, %v1543
  %v1545 = vmul.f32 %v1542, %v1543
  %v1546 = vsub.f32 %v1532, %v1544
  %v1547 = vsub.f32 %v1533, %v1545
  %v1548 = vmul.f32 %v1546, %v1546
  %v1549 = vmul.f32 %v1547, %v1547
  %v1550 = vsel %vm524, %v1548, 0.0
  %1551 = vadd.xlane.f32.xlu0 %v1550
  %v1552 = vpop.xlane.xlu0 %1551
  %v1553 = vsel %vm1539, %v1549, 0.0
  %1554 = vadd.xlane.f32.xlu0 %v1553
  %v1555 = vpop.xlane.xlu0 %1554
  %v1556 = vmul.f32 %v1552, %v1543
  %v1557 = vmul.f32 %v1555, %v1543
  %v1558 = vadd.f32 %v1556, 1e-05
  %v1559 = vadd.f32 %v1557, 1e-05
  %v1560 = vrsqrt.pop %v1558
  %v1561 = vrsqrt.pop %v1559
  %v1562 = vmul.f32 %v1546, %v1560
  %v1563 = vmul.f32 %v1547, %v1561
  %v1565 = vlaneseq
  %v1566 = vshrl.u32 %v1565, 7
  %v1567 = vsub.s32 0, %v1566
  %v1568 = vrot.slane %v1534, %v1567
  %v1570 = vmul.f32 %v1562, %v1568
  %v1571 = vmul.f32 %v1563, %v1568
  %v1573 = vlaneseq
  %v1574 = vshrl.u32 %v1573, 7
  %v1575 = vsub.s32 0, %v1574
  %v1576 = vrot.slane %v1535, %v1575
  %v1578 = vadd.f32 %v1570, %v1576
  %v1579 = vadd.f32 %v1571, %v1576
  %v1580 = vld [vmem:[%s16] sm:$0xff]
  %v1581 = vld [vmem:[%s16 + $0x8] sm:$0xff]
  %v1582 = vld [vmem:[%s17] sm:$0x1]
  %v1584 = vlaneseq
  %v1585 = vshrl.u32 %v1584, 7
  %v1586 = vsub.s32 0, %v1585
  %v1587 = vrot.slane %v1582, %v1586
  %v1590 = vsel %vm524, %v1578, 0
  %v1593 = vsel %vm524, %v1579, 0
  %1595 = vmatprep.subr.mxu0 0.0
  %1596 = vmatpush1.msra.mxu0 0.0
  %1597 = vmatprep.subr.mxu0 0.0
  %1598 = vmatpush1.msra.mxu0 0.0
  %1599 = vmatprep.subr.mxu0 0.0
  %1600 = vmatpush1.msra.mxu0 0.0
  %1601 = vmatprep.subr.mxu0 0.0
  %1602 = vmatpush1.msra.mxu0 0.0
  %1603 = vmatprep.subr.mxu0 0.0
  %1604 = vmatpush1.msra.mxu0 0.0
  %1605 = vmatprep.subr.mxu0 0.0
  %1606 = vmatpush1.msra.mxu0 0.0
  %1607 = vmatprep.subr.mxu0 0.0
  %1608 = vmatpush1.msra.mxu0 0.0
  %1609 = vmatprep.subr.mxu0 0.0
  %1610 = vmatpush1.msra.mxu0 0.0
  %1611 = vmatprep.subr.mxu0 0.0
  %1612 = vmatpush1.msra.mxu0 0.0
  %1613 = vmatprep.subr.mxu0 0.0
  %1614 = vmatpush1.msra.mxu0 0.0
  %1615 = vmatprep.subr.mxu0 0.0
  %1616 = vmatpush1.msra.mxu0 0.0
  %1617 = vmatprep.subr.mxu0 0.0
  %1618 = vmatpush1.msra.mxu0 0.0
  %1619 = vmatprep.subr.mxu0 0.0
  %1620 = vmatpush1.msra.mxu0 0.0
  %1621 = vmatprep.subr.mxu0 0.0
  %1622 = vmatpush1.msra.mxu0 0.0
  %1623 = vmatprep.subr.mxu0 0.0
  %1624 = vmatpush1.msra.mxu0 %v1581
  %1625 = vmatprep.subr.mxu0 0.0
  %1626 = vmatpush1.msra.mxu0 %v1580
  %1627 = vmatprep.subr.mxu0 0.0
  %1628 = vmatpush2.msra.mxu0 0.0
  %1629 = vmatprep.subr.mxu0 0.0
  %1630 = vmatpush2.msra.mxu0 0.0
  %1631 = vmatprep.subr.mxu0 0.0
  %1632 = vmatpush2.msra.mxu0 0.0
  %1633 = vmatprep.subr.mxu0 0.0
  %1634 = vmatpush2.msra.mxu0 0.0
  %1635 = vmatprep.subr.mxu0 0.0
  %1636 = vmatpush2.msra.mxu0 0.0
  %1637 = vmatprep.subr.mxu0 0.0
  %1638 = vmatpush2.msra.mxu0 0.0
  %1639 = vmatprep.subr.mxu0 0.0
  %1640 = vmatpush2.msra.mxu0 0.0
  %1641 = vmatprep.subr.mxu0 0.0
  %1642 = vmatpush2.msra.mxu0 0.0
  %1643 = vmatprep.subr.mxu0 0.0
  %1644 = vmatpush2.msra.mxu0 0.0
  %1645 = vmatprep.subr.mxu0 0.0
  %1646 = vmatpush2.msra.mxu0 0.0
  %1647 = vmatprep.subr.mxu0 0.0
  %1648 = vmatpush2.msra.mxu0 0.0
  %1649 = vmatprep.subr.mxu0 0.0
  %1650 = vmatpush2.msra.mxu0 0.0
  %1651 = vmatprep.subr.mxu0 0.0
  %1652 = vmatpush2.msra.mxu0 0.0
  %1653 = vmatprep.subr.mxu0 0.0
  %1654 = vmatpush2.msra.mxu0 0.0
  %1655 = vmatprep.subr.mxu0 0.0
  %1656 = vmatpush2.msra.mxu0 0.0
  %1657 = vmatprep.subr.mxu0 0.0
  %1658 = vmatpush2.msra.mxu0 0.0
  %1659 = vmatprep.mubr.f32.mxu0 0.0
  %1660 = vmatmul.mubr.f32.gmra.mxu0 %v1590
  %v1661 = vpop.f32.mrf.mxu0
  %v1662 = vadd.f32 %v1587, %v1661
  %v1663 = vpop.f32.mrf.mxu0
  %1664 = vmatprep.mubr.f32.mxu0 0.0
  %1665 = vmatmul.mubr.f32.gmra.mxu0 %v1593
  %v1666 = vpop.f32.mrf.mxu0
  %v1667 = vadd.f32 %v1587, %v1666
  %v1668 = vpop.f32.mrf.mxu0
  %1669 = vdwg.mxu0
  %v1670 = vmax.f32 %v1662, 0.0
  %v1671 = vmax.f32 %v1667, 0.0
  %v1672 = vld [vmem:[%s18] sm:$0xff]
  %v1673 = vld [vmem:[%s18 + $0x8] sm:$0xff]
  %v1674 = vld [vmem:[%s18 + $0x10] sm:$0xff]
  %v1675 = vld [vmem:[%s18 + $0x18] sm:$0xff]
  %v1676 = vld [vmem:[%s18 + $0x20] sm:$0xff]
  %v1677 = vld [vmem:[%s18 + $0x28] sm:$0xff]
  %v1678 = vld [vmem:[%s18 + $0x30] sm:$0xff]
  %v1679 = vld [vmem:[%s18 + $0x38] sm:$0xff]
  %v1680 = vld [vmem:[%s19] sm:$0x1]
  %v1682 = vlaneseq
  %v1683 = vshrl.u32 %v1682, 7
  %v1684 = vsub.s32 0, %v1683
  %v1685 = vrot.slane %v1680, %v1684
  %vm1687 = vcmask 523264
  %v1689 = vsel %vm1687, %v1670, 0
  %v1692 = vsel %vm1687, %v1671, 0
  %1694 = vmatprep.subr.mxu0 0.0
  %1695 = vmatpush1.msra.mxu0 0.0
  %1696 = vmatprep.subr.mxu0 0.0
  %1697 = vmatpush1.msra.mxu0 0.0
  %1698 = vmatprep.subr.mxu0 0.0
  %1699 = vmatpush1.msra.mxu0 0.0
  %1700 = vmatprep.subr.mxu0 0.0
  %1701 = vmatpush1.msra.mxu0 0.0
  %1702 = vmatprep.subr.mxu0 0.0
  %1703 = vmatpush1.msra.mxu0 0.0
  %1704 = vmatprep.subr.mxu0 0.0
  %1705 = vmatpush1.msra.mxu0 0.0
  %1706 = vmatprep.subr.mxu0 0.0
  %1707 = vmatpush1.msra.mxu0 0.0
  %1708 = vmatprep.subr.mxu0 0.0
  %1709 = vmatpush1.msra.mxu0 0.0
  %1710 = vmatprep.subr.mxu0 0.0
  %1711 = vmatpush1.msra.mxu0 %v1679
  %1712 = vmatprep.subr.mxu0 0.0
  %1713 = vmatpush1.msra.mxu0 %v1678
  %1714 = vmatprep.subr.mxu0 0.0
  %1715 = vmatpush1.msra.mxu0 %v1677
  %1716 = vmatprep.subr.mxu0 0.0
  %1717 = vmatpush1.msra.mxu0 %v1676
  %1718 = vmatprep.subr.mxu0 0.0
  %1719 = vmatpush1.msra.mxu0 %v1675
  %1720 = vmatprep.subr.mxu0 0.0
  %1721 = vmatpush1.msra.mxu0 %v1674
  %1722 = vmatprep.subr.mxu0 0.0
  %1723 = vmatpush1.msra.mxu0 %v1673
  %1724 = vmatprep.subr.mxu0 0.0
  %1725 = vmatpush1.msra.mxu0 %v1672
  %1726 = vmatprep.subr.mxu0 0.0
  %1727 = vmatpush2.msra.mxu0 0.0
  %1728 = vmatprep.subr.mxu0 0.0
  %1729 = vmatpush2.msra.mxu0 0.0
  %1730 = vmatprep.subr.mxu0 0.0
  %1731 = vmatpush2.msra.mxu0 0.0
  %1732 = vmatprep.subr.mxu0 0.0
  %1733 = vmatpush2.msra.mxu0 0.0
  %1734 = vmatprep.subr.mxu0 0.0
  %1735 = vmatpush2.msra.mxu0 0.0
  %1736 = vmatprep.subr.mxu0 0.0
  %1737 = vmatpush2.msra.mxu0 0.0
  %1738 = vmatprep.subr.mxu0 0.0
  %1739 = vmatpush2.msra.mxu0 0.0
  %1740 = vmatprep.subr.mxu0 0.0
  %1741 = vmatpush2.msra.mxu0 0.0
  %1742 = vmatprep.subr.mxu0 0.0
  %1743 = vmatpush2.msra.mxu0 0.0
  %1744 = vmatprep.subr.mxu0 0.0
  %1745 = vmatpush2.msra.mxu0 0.0
  %1746 = vmatprep.subr.mxu0 0.0
  %1747 = vmatpush2.msra.mxu0 0.0
  %1748 = vmatprep.subr.mxu0 0.0
  %1749 = vmatpush2.msra.mxu0 0.0
  %1750 = vmatprep.subr.mxu0 0.0
  %1751 = vmatpush2.msra.mxu0 0.0
  %1752 = vmatprep.subr.mxu0 0.0
  %1753 = vmatpush2.msra.mxu0 0.0
  %1754 = vmatprep.subr.mxu0 0.0
  %1755 = vmatpush2.msra.mxu0 0.0
  %1756 = vmatprep.subr.mxu0 0.0
  %1757 = vmatpush2.msra.mxu0 0.0
  %1758 = vmatprep.mubr.f32.mxu0 0.0
  %1759 = vmatmul.mubr.f32.gmra.mxu0 %v1689
  %v1760 = vpop.f32.mrf.mxu0
  %v1761 = vadd.f32 %v1685, %v1760
  %v1762 = vpop.f32.mrf.mxu0
  %1763 = vmatprep.mubr.f32.mxu0 0.0
  %1764 = vmatmul.mubr.f32.gmra.mxu0 %v1692
  %v1765 = vpop.f32.mrf.mxu0
  %v1766 = vadd.f32 %v1685, %v1765
  %v1767 = vpop.f32.mrf.mxu0
  %1768 = vdwg.mxu0
  %v1769 = vadd.f32 %v1578, %v1761
  %v1770 = vadd.f32 %v1579, %v1766
  %v1771 = vld [vmem:[%s20] sm:$0x1]
  %v1772 = vld [vmem:[%s21] sm:$0x1]
  %v1773 = vsel %vm524, %v1769, 0.0
  %1774 = vadd.xlane.f32.xlu0 %v1773
  %v1775 = vpop.xlane.xlu0 %1774
  %v1776 = vsel %vm1539, %v1770, 0.0
  %1777 = vadd.xlane.f32.xlu0 %v1776
  %v1778 = vpop.xlane.xlu0 %1777
  %v1779 = vmul.f32 %v1775, %v1543
  %v1780 = vmul.f32 %v1778, %v1543
  %v1781 = vsub.f32 %v1769, %v1779
  %v1782 = vsub.f32 %v1770, %v1780
  %v1783 = vmul.f32 %v1781, %v1781
  %v1784 = vmul.f32 %v1782, %v1782
  %v1785 = vsel %vm524, %v1783, 0.0
  %1786 = vadd.xlane.f32.xlu0 %v1785
  %v1787 = vpop.xlane.xlu0 %1786
  %v1788 = vsel %vm1539, %v1784, 0.0
  %1789 = vadd.xlane.f32.xlu0 %v1788
  %v1790 = vpop.xlane.xlu0 %1789
  %v1791 = vmul.f32 %v1787, %v1543
  %v1792 = vmul.f32 %v1790, %v1543
  %v1793 = vadd.f32 %v1791, 1e-05
  %v1794 = vadd.f32 %v1792, 1e-05
  %v1795 = vrsqrt.pop %v1793
  %v1796 = vrsqrt.pop %v1794
  %v1797 = vmul.f32 %v1781, %v1795
  %v1798 = vmul.f32 %v1782, %v1796
  %v1800 = vlaneseq
  %v1801 = vshrl.u32 %v1800, 7
  %v1802 = vsub.s32 0, %v1801
  %v1803 = vrot.slane %v1771, %v1802
  %v1805 = vmul.f32 %v1797, %v1803
  %v1806 = vmul.f32 %v1798, %v1803
  %v1808 = vlaneseq
  %v1809 = vshrl.u32 %v1808, 7
  %v1810 = vsub.s32 0, %v1809
  %v1811 = vrot.slane %v1772, %v1810
  %v1813 = vadd.f32 %v1805, %v1811
  %v1814 = vadd.f32 %v1806, %v1811
  %s1815 = scalar_lea.vmem %s0, 16
  %v1816 = vld [vmem:[%s1815] sm:$0xff]
  %v1817 = vld [vmem:[%s1815 + $0x8] sm:$0x3]
  %s1818 = scalar_lea.vmem %s4, 32
  %v1819 = vld [vmem:[%s1818] sm:$0xff]
  %v1820 = vld [vmem:[%s1818 + $0x8] sm:$0xff]
  %v1821 = vld [vmem:[%s1818 + $0x10] sm:$0xff]
  %v1822 = vld [vmem:[%s1818 + $0x18] sm:$0xff]
  %s1823 = scalar_lea.vmem %s5, 1
  %v1824 = vld [vmem:[%s1823] sm:$0x1]
  %v1826 = vlaneseq
  %v1827 = vshrl.u32 %v1826, 7
  %v1828 = vsub.s32 0, %v1827
  %v1829 = vrot.slane %v1824, %v1828
  %v1832 = vsel %vm97, %v1816, 0
  %v1835 = vsel %vm97, %v1817, 0
  %1837 = vmatprep.subr.mxu0 0.0
  %1838 = vmatpush1.msra.mxu0 0.0
  %1839 = vmatprep.subr.mxu0 0.0
  %1840 = vmatpush1.msra.mxu0 0.0
  %1841 = vmatprep.subr.mxu0 0.0
  %1842 = vmatpush1.msra.mxu0 0.0
  %1843 = vmatprep.subr.mxu0 0.0
  %1844 = vmatpush1.msra.mxu0 0.0
  %1845 = vmatprep.subr.mxu0 0.0
  %1846 = vmatpush1.msra.mxu0 0.0
  %1847 = vmatprep.subr.mxu0 0.0
  %1848 = vmatpush1.msra.mxu0 0.0
  %1849 = vmatprep.subr.mxu0 0.0
  %1850 = vmatpush1.msra.mxu0 0.0
  %1851 = vmatprep.subr.mxu0 0.0
  %1852 = vmatpush1.msra.mxu0 0.0
  %1853 = vmatprep.subr.mxu0 0.0
  %1854 = vmatpush1.msra.mxu0 0.0
  %1855 = vmatprep.subr.mxu0 0.0
  %1856 = vmatpush1.msra.mxu0 0.0
  %1857 = vmatprep.subr.mxu0 0.0
  %1858 = vmatpush1.msra.mxu0 0.0
  %1859 = vmatprep.subr.mxu0 0.0
  %1860 = vmatpush1.msra.mxu0 0.0
  %1861 = vmatprep.subr.mxu0 0.0
  %1862 = vmatpush1.msra.mxu0 %v1822
  %1863 = vmatprep.subr.mxu0 0.0
  %1864 = vmatpush1.msra.mxu0 %v1821
  %1865 = vmatprep.subr.mxu0 0.0
  %1866 = vmatpush1.msra.mxu0 %v1820
  %1867 = vmatprep.subr.mxu0 0.0
  %1868 = vmatpush1.msra.mxu0 %v1819
  %1869 = vmatprep.subr.mxu0 0.0
  %1870 = vmatpush2.msra.mxu0 0.0
  %1871 = vmatprep.subr.mxu0 0.0
  %1872 = vmatpush2.msra.mxu0 0.0
  %1873 = vmatprep.subr.mxu0 0.0
  %1874 = vmatpush2.msra.mxu0 0.0
  %1875 = vmatprep.subr.mxu0 0.0
  %1876 = vmatpush2.msra.mxu0 0.0
  %1877 = vmatprep.subr.mxu0 0.0
  %1878 = vmatpush2.msra.mxu0 0.0
  %1879 = vmatprep.subr.mxu0 0.0
  %1880 = vmatpush2.msra.mxu0 0.0
  %1881 = vmatprep.subr.mxu0 0.0
  %1882 = vmatpush2.msra.mxu0 0.0
  %1883 = vmatprep.subr.mxu0 0.0
  %1884 = vmatpush2.msra.mxu0 0.0
  %1885 = vmatprep.subr.mxu0 0.0
  %1886 = vmatpush2.msra.mxu0 0.0
  %1887 = vmatprep.subr.mxu0 0.0
  %1888 = vmatpush2.msra.mxu0 0.0
  %1889 = vmatprep.subr.mxu0 0.0
  %1890 = vmatpush2.msra.mxu0 0.0
  %1891 = vmatprep.subr.mxu0 0.0
  %1892 = vmatpush2.msra.mxu0 0.0
  %1893 = vmatprep.subr.mxu0 0.0
  %1894 = vmatpush2.msra.mxu0 0.0
  %1895 = vmatprep.subr.mxu0 0.0
  %1896 = vmatpush2.msra.mxu0 0.0
  %1897 = vmatprep.subr.mxu0 0.0
  %1898 = vmatpush2.msra.mxu0 0.0
  %1899 = vmatprep.subr.mxu0 0.0
  %1900 = vmatpush2.msra.mxu0 0.0
  %1901 = vmatprep.mubr.f32.mxu0 0.0
  %1902 = vmatmul.mubr.f32.gmra.mxu0 %v1832
  %v1903 = vpop.f32.mrf.mxu0
  %v1904 = vadd.f32 %v1829, %v1903
  %v1905 = vpop.f32.mrf.mxu0
  %1906 = vmatprep.mubr.f32.mxu0 0.0
  %1907 = vmatmul.mubr.f32.gmra.mxu0 %v1835
  %v1908 = vpop.f32.mrf.mxu0
  %v1909 = vadd.f32 %v1829, %v1908
  %v1910 = vpop.f32.mrf.mxu0
  %1911 = vdwg.mxu0
  %v1912 = vadd.f32 %v1813, %v1904
  %v1913 = vadd.f32 %v1814, %v1909
  %s1914 = scalar_lea.vmem %s10, 16
  %v1915 = vld [vmem:[%s1914] sm:$0xff]
  %v1916 = vld [vmem:[%s1914 + $0x8] sm:$0xff]
  %s1917 = scalar_lea.vmem %s11, 1
  %v1918 = vld [vmem:[%s1917] sm:$0x1]
  %v1920 = vlaneseq
  %v1921 = vshrl.u32 %v1920, 7
  %v1922 = vsub.s32 0, %v1921
  %v1923 = vrot.slane %v1918, %v1922
  %v1926 = vsel %vm524, %v1912, 0
  %v1929 = vsel %vm524, %v1913, 0
  %1931 = vmatprep.subr.mxu0 0.0
  %1932 = vmatpush1.msra.mxu0 0.0
  %1933 = vmatprep.subr.mxu0 0.0
  %1934 = vmatpush1.msra.mxu0 0.0
  %1935 = vmatprep.subr.mxu0 0.0
  %1936 = vmatpush1.msra.mxu0 0.0
  %1937 = vmatprep.subr.mxu0 0.0
  %1938 = vmatpush1.msra.mxu0 0.0
  %1939 = vmatprep.subr.mxu0 0.0
  %1940 = vmatpush1.msra.mxu0 0.0
  %1941 = vmatprep.subr.mxu0 0.0
  %1942 = vmatpush1.msra.mxu0 0.0
  %1943 = vmatprep.subr.mxu0 0.0
  %1944 = vmatpush1.msra.mxu0 0.0
  %1945 = vmatprep.subr.mxu0 0.0
  %1946 = vmatpush1.msra.mxu0 0.0
  %1947 = vmatprep.subr.mxu0 0.0
  %1948 = vmatpush1.msra.mxu0 0.0
  %1949 = vmatprep.subr.mxu0 0.0
  %1950 = vmatpush1.msra.mxu0 0.0
  %1951 = vmatprep.subr.mxu0 0.0
  %1952 = vmatpush1.msra.mxu0 0.0
  %1953 = vmatprep.subr.mxu0 0.0
  %1954 = vmatpush1.msra.mxu0 0.0
  %1955 = vmatprep.subr.mxu0 0.0
  %1956 = vmatpush1.msra.mxu0 0.0
  %1957 = vmatprep.subr.mxu0 0.0
  %1958 = vmatpush1.msra.mxu0 0.0
  %1959 = vmatprep.subr.mxu0 0.0
  %1960 = vmatpush1.msra.mxu0 %v1916
  %1961 = vmatprep.subr.mxu0 0.0
  %1962 = vmatpush1.msra.mxu0 %v1915
  %1963 = vmatprep.subr.mxu0 0.0
  %1964 = vmatpush2.msra.mxu0 0.0
  %1965 = vmatprep.subr.mxu0 0.0
  %1966 = vmatpush2.msra.mxu0 0.0
  %1967 = vmatprep.subr.mxu0 0.0
  %1968 = vmatpush2.msra.mxu0 0.0
  %1969 = vmatprep.subr.mxu0 0.0
  %1970 = vmatpush2.msra.mxu0 0.0
  %1971 = vmatprep.subr.mxu0 0.0
  %1972 = vmatpush2.msra.mxu0 0.0
  %1973 = vmatprep.subr.mxu0 0.0
  %1974 = vmatpush2.msra.mxu0 0.0
  %1975 = vmatprep.subr.mxu0 0.0
  %1976 = vmatpush2.msra.mxu0 0.0
  %1977 = vmatprep.subr.mxu0 0.0
  %1978 = vmatpush2.msra.mxu0 0.0
  %1979 = vmatprep.subr.mxu0 0.0
  %1980 = vmatpush2.msra.mxu0 0.0
  %1981 = vmatprep.subr.mxu0 0.0
  %1982 = vmatpush2.msra.mxu0 0.0
  %1983 = vmatprep.subr.mxu0 0.0
  %1984 = vmatpush2.msra.mxu0 0.0
  %1985 = vmatprep.subr.mxu0 0.0
  %1986 = vmatpush2.msra.mxu0 0.0
  %1987 = vmatprep.subr.mxu0 0.0
  %1988 = vmatpush2.msra.mxu0 0.0
  %1989 = vmatprep.subr.mxu0 0.0
  %1990 = vmatpush2.msra.mxu0 0.0
  %1991 = vmatprep.subr.mxu0 0.0
  %1992 = vmatpush2.msra.mxu0 0.0
  %1993 = vmatprep.subr.mxu0 0.0
  %1994 = vmatpush2.msra.mxu0 0.0
  %1995 = vmatprep.mubr.f32.mxu0 0.0
  %1996 = vmatmul.mubr.f32.gmra.mxu0 %v1926
  %v1997 = vpop.f32.mrf.mxu0
  %v1998 = vadd.f32 %v1923, %v1997
  %v1999 = vpop.f32.mrf.mxu0
  %2000 = vmatprep.mubr.f32.mxu0 0.0
  %2001 = vmatmul.mubr.f32.gmra.mxu0 %v1929
  %v2002 = vpop.f32.mrf.mxu0
  %v2003 = vadd.f32 %v1923, %v2002
  %v2004 = vpop.f32.mrf.mxu0
  %2005 = vdwg.mxu0
  %v2006 = vmul.f32 %v1998, %v609
  %v2007 = vmul.f32 %v2003, %v609
  %2010 = vrot.lane.b32.xlu0 %v1998, 112
  %v2011 = vpop.permute.xlu0 %2010
  %2012 = vrot.lane.b32.xlu0 %v2003, 112
  %v2013 = vpop.permute.xlu0 %2012
  %v2015 = vsel %vm524, %v2006, 0
  %v2018 = vsel %vm524, %v2007, 0
  %v2020 = vsel %vm524, %v2011, 0
  %v2022 = vsel %vm524, %v2013, 0
  %2024 = vmatprep.subr.mxu0 0.0
  %2025 = vmatpush1.xpose.msra.mxu0 0.0
  %2026 = vmatprep.subr.mxu0 0.0
  %2027 = vmatpush1.xpose.msra.mxu0 0.0
  %2028 = vmatprep.subr.mxu0 0.0
  %2029 = vmatpush1.xpose.msra.mxu0 0.0
  %2030 = vmatprep.subr.mxu0 0.0
  %2031 = vmatpush1.xpose.msra.mxu0 0.0
  %2032 = vmatprep.subr.mxu0 0.0
  %2033 = vmatpush1.xpose.msra.mxu0 0.0
  %2034 = vmatprep.subr.mxu0 0.0
  %2035 = vmatpush1.xpose.msra.mxu0 0.0
  %2036 = vmatprep.subr.mxu0 0.0
  %2037 = vmatpush1.xpose.msra.mxu0 0.0
  %2038 = vmatprep.subr.mxu0 0.0
  %2039 = vmatpush1.xpose.msra.mxu0 0.0
  %2040 = vmatprep.subr.mxu0 0.0
  %2041 = vmatpush1.xpose.msra.mxu0 0.0
  %2042 = vmatprep.subr.mxu0 0.0
  %2043 = vmatpush1.xpose.msra.mxu0 0.0
  %2044 = vmatprep.subr.mxu0 0.0
  %2045 = vmatpush1.xpose.msra.mxu0 0.0
  %2046 = vmatprep.subr.mxu0 0.0
  %2047 = vmatpush1.xpose.msra.mxu0 0.0
  %2048 = vmatprep.subr.mxu0 0.0
  %2049 = vmatpush1.xpose.msra.mxu0 0.0
  %2050 = vmatprep.subr.mxu0 0.0
  %2051 = vmatpush1.xpose.msra.mxu0 0.0
  %2052 = vmatprep.subr.mxu0 0.0
  %2053 = vmatpush1.xpose.msra.mxu0 %v2022
  %2054 = vmatprep.subr.mxu0 0.0
  %2055 = vmatpush1.xpose.msra.mxu0 %v2020
  %2056 = vmatprep.subr.mxu0 0.0
  %2057 = vmatpush2.xpose.msra.mxu0 0.0
  %2058 = vmatprep.subr.mxu0 0.0
  %2059 = vmatpush2.xpose.msra.mxu0 0.0
  %2060 = vmatprep.subr.mxu0 0.0
  %2061 = vmatpush2.xpose.msra.mxu0 0.0
  %2062 = vmatprep.subr.mxu0 0.0
  %2063 = vmatpush2.xpose.msra.mxu0 0.0
  %2064 = vmatprep.subr.mxu0 0.0
  %2065 = vmatpush2.xpose.msra.mxu0 0.0
  %2066 = vmatprep.subr.mxu0 0.0
  %2067 = vmatpush2.xpose.msra.mxu0 0.0
  %2068 = vmatprep.subr.mxu0 0.0
  %2069 = vmatpush2.xpose.msra.mxu0 0.0
  %2070 = vmatprep.subr.mxu0 0.0
  %2071 = vmatpush2.xpose.msra.mxu0 0.0
  %2072 = vmatprep.subr.mxu0 0.0
  %2073 = vmatpush2.xpose.msra.mxu0 0.0
  %2074 = vmatprep.subr.mxu0 0.0
  %2075 = vmatpush2.xpose.msra.mxu0 0.0
  %2076 = vmatprep.subr.mxu0 0.0
  %2077 = vmatpush2.xpose.msra.mxu0 0.0
  %2078 = vmatprep.subr.mxu0 0.0
  %2079 = vmatpush2.xpose.msra.mxu0 0.0
  %2080 = vmatprep.subr.mxu0 0.0
  %2081 = vmatpush2.xpose.msra.mxu0 0.0
  %2082 = vmatprep.subr.mxu0 0.0
  %2083 = vmatpush2.xpose.msra.mxu0 0.0
  %2084 = vmatprep.subr.mxu0 0.0
  %2085 = vmatpush2.xpose.msra.mxu0 0.0
  %2086 = vmatprep.subr.mxu0 0.0
  %2087 = vmatpush2.xpose.msra.mxu0 0.0
  %2088 = vmatprep.mubr.f32.mxu0 0.0
  %2089 = vmatmul.mubr.f32.gmra.mxu0 %v2015
  %v2090 = vpop.f32.mrf.mxu0
  %v2091 = vadd.f32 %v80, %v2090
  %v2092 = vpop.f32.mrf.mxu0
  %2093 = vmatprep.mubr.f32.mxu0 0.0
  %2094 = vmatmul.mubr.f32.gmra.mxu0 %v2018
  %v2095 = vpop.f32.mrf.mxu0
  %v2096 = vadd.f32 %v81, %v2095
  %v2097 = vpop.f32.mrf.mxu0
  %2098 = vdwg.mxu0
  %v2099 = vsel %vm703, %v2091, -inf
  %2100 = vmax.xlane.f32.xlu0 %v2099
  %v2101 = vpop.xlane.xlu0 %2100
  %v2102 = vsel %vm707, %v2096, -inf
  %2103 = vmax.xlane.f32.xlu0 %v2102
  %v2104 = vpop.xlane.xlu0 %2103
  %v2105 = vsub.f32 %v2091, %v2101
  %v2106 = vsub.f32 %v2096, %v2104
  %v2107 = vmul.f32 %v2105, 1.442695
  %v2108 = vpow.pop %v2107
  %v2109 = vmul.f32 %v2106, 1.442695
  %v2110 = vpow.pop %v2109
  %v2111 = vsel %vm703, %v2108, 0.0
  %2112 = vadd.xlane.f32.xlu0 %v2111
  %v2113 = vpop.xlane.xlu0 %2112
  %v2114 = vsel %vm707, %v2110, 0.0
  %2115 = vadd.xlane.f32.xlu0 %v2114
  %v2116 = vpop.xlane.xlu0 %2115
  %v2117 = vrcp.pop %v2113
  %v2118 = vrcp.pop %v2116
  %v2119 = vmul.f32 %v2108, %v2117
  %v2120 = vmul.f32 %v2110, %v2118
  %v2121 = vmul.f32 %v1998, %v729
  %v2122 = vmul.f32 %v2003, %v729
  %v2123 = vmul.f32 %v1998, %v736
  %v2124 = vmul.f32 %v2003, %v736
  %v2126 = vsel %vm524, %v2123, 0
  %v2129 = vsel %vm524, %v2124, 0
  %2131 = vmatprep.subr.mxu0 0.0
  %2132 = vmatpush1.xpose.msra.mxu0 0.0
  %2133 = vmatprep.subr.mxu0 0.0
  %2134 = vmatpush1.xpose.msra.mxu0 0.0
  %2135 = vmatprep.subr.mxu0 0.0
  %2136 = vmatpush1.xpose.msra.mxu0 0.0
  %2137 = vmatprep.subr.mxu0 0.0
  %2138 = vmatpush1.xpose.msra.mxu0 0.0
  %2139 = vmatprep.subr.mxu0 0.0
  %2140 = vmatpush1.xpose.msra.mxu0 0.0
  %2141 = vmatprep.subr.mxu0 0.0
  %2142 = vmatpush1.xpose.msra.mxu0 0.0
  %2143 = vmatprep.subr.mxu0 0.0
  %2144 = vmatpush1.xpose.msra.mxu0 0.0
  %2145 = vmatprep.subr.mxu0 0.0
  %2146 = vmatpush1.xpose.msra.mxu0 0.0
  %2147 = vmatprep.subr.mxu0 0.0
  %2148 = vmatpush1.xpose.msra.mxu0 0.0
  %2149 = vmatprep.subr.mxu0 0.0
  %2150 = vmatpush1.xpose.msra.mxu0 0.0
  %2151 = vmatprep.subr.mxu0 0.0
  %2152 = vmatpush1.xpose.msra.mxu0 0.0
  %2153 = vmatprep.subr.mxu0 0.0
  %2154 = vmatpush1.xpose.msra.mxu0 0.0
  %2155 = vmatprep.subr.mxu0 0.0
  %2156 = vmatpush1.xpose.msra.mxu0 0.0
  %2157 = vmatprep.subr.mxu0 0.0
  %2158 = vmatpush1.xpose.msra.mxu0 0.0
  %2159 = vmatprep.subr.mxu0 0.0
  %2160 = vmatpush1.xpose.msra.mxu0 %v2022
  %2161 = vmatprep.subr.mxu0 0.0
  %2162 = vmatpush1.xpose.msra.mxu0 %v2020
  %2163 = vmatprep.subr.mxu0 0.0
  %2164 = vmatpush2.xpose.msra.mxu0 0.0
  %2165 = vmatprep.subr.mxu0 0.0
  %2166 = vmatpush2.xpose.msra.mxu0 0.0
  %2167 = vmatprep.subr.mxu0 0.0
  %2168 = vmatpush2.xpose.msra.mxu0 0.0
  %2169 = vmatprep.subr.mxu0 0.0
  %2170 = vmatpush2.xpose.msra.mxu0 0.0
  %2171 = vmatprep.subr.mxu0 0.0
  %2172 = vmatpush2.xpose.msra.mxu0 0.0
  %2173 = vmatprep.subr.mxu0 0.0
  %2174 = vmatpush2.xpose.msra.mxu0 0.0
  %2175 = vmatprep.subr.mxu0 0.0
  %2176 = vmatpush2.xpose.msra.mxu0 0.0
  %2177 = vmatprep.subr.mxu0 0.0
  %2178 = vmatpush2.xpose.msra.mxu0 0.0
  %2179 = vmatprep.subr.mxu0 0.0
  %2180 = vmatpush2.xpose.msra.mxu0 0.0
  %2181 = vmatprep.subr.mxu0 0.0
  %2182 = vmatpush2.xpose.msra.mxu0 0.0
  %2183 = vmatprep.subr.mxu0 0.0
  %2184 = vmatpush2.xpose.msra.mxu0 0.0
  %2185 = vmatprep.subr.mxu0 0.0
  %2186 = vmatpush2.xpose.msra.mxu0 0.0
  %2187 = vmatprep.subr.mxu0 0.0
  %2188 = vmatpush2.xpose.msra.mxu0 0.0
  %2189 = vmatprep.subr.mxu0 0.0
  %2190 = vmatpush2.xpose.msra.mxu0 0.0
  %2191 = vmatprep.subr.mxu0 0.0
  %2192 = vmatpush2.xpose.msra.mxu0 0.0
  %2193 = vmatprep.subr.mxu0 0.0
  %2194 = vmatpush2.xpose.msra.mxu0 0.0
  %2195 = vmatprep.mubr.f32.mxu0 0.0
  %2196 = vmatmul.mubr.f32.gmra.mxu0 %v2126
  %v2197 = vpop.f32.mrf.mxu0
  %v2198 = vadd.f32 %v80, %v2197
  %v2199 = vpop.f32.mrf.mxu0
  %2200 = vmatprep.mubr.f32.mxu0 0.0
  %2201 = vmatmul.mubr.f32.gmra.mxu0 %v2129
  %v2202 = vpop.f32.mrf.mxu0
  %v2203 = vadd.f32 %v81, %v2202
  %v2204 = vpop.f32.mrf.mxu0
  %2205 = vdwg.mxu0
  %v2206 = vsel %vm703, %v2198, -inf
  %2207 = vmax.xlane.f32.xlu0 %v2206
  %v2208 = vpop.xlane.xlu0 %2207
  %v2209 = vsel %vm707, %v2203, -inf
  %2210 = vmax.xlane.f32.xlu0 %v2209
  %v2211 = vpop.xlane.xlu0 %2210
  %v2212 = vsub.f32 %v2198, %v2208
  %v2213 = vsub.f32 %v2203, %v2211
  %v2214 = vmul.f32 %v2212, 1.442695
  %v2215 = vpow.pop %v2214
  %v2216 = vmul.f32 %v2213, 1.442695
  %v2217 = vpow.pop %v2216
  %v2218 = vsel %vm703, %v2215, 0.0
  %2219 = vadd.xlane.f32.xlu0 %v2218
  %v2220 = vpop.xlane.xlu0 %2219
  %v2221 = vsel %vm707, %v2217, 0.0
  %2222 = vadd.xlane.f32.xlu0 %v2221
  %v2223 = vpop.xlane.xlu0 %2222
  %v2224 = vrcp.pop %v2220
  %v2225 = vrcp.pop %v2223
  %v2226 = vmul.f32 %v2215, %v2224
  %v2227 = vmul.f32 %v2217, %v2225
  %v2228 = vmul.f32 %v1998, %v844
  %v2229 = vmul.f32 %v2003, %v844
  %2232 = vrot.lane.b32.xlu0 %v2228, 96
  %v2233 = vpop.permute.xlu0 %2232
  %2234 = vrot.lane.b32.xlu0 %v2229, 96
  %v2235 = vpop.permute.xlu0 %2234
  %v2238 = vsel %vm703, %v2226, 0
  %v2241 = vsel %vm703, %v2227, 0
  %v2243 = vsel %vm354, %v2235, 0
  %2245 = vmatprep.subr.mxu0 0.0
  %2246 = vmatpush1.msra.mxu0 0.0
  %2247 = vmatprep.subr.mxu0 0.0
  %2248 = vmatpush1.msra.mxu0 0.0
  %2249 = vmatprep.subr.mxu0 0.0
  %2250 = vmatpush1.msra.mxu0 0.0
  %2251 = vmatprep.subr.mxu0 0.0
  %2252 = vmatpush1.msra.mxu0 0.0
  %2253 = vmatprep.subr.mxu0 0.0
  %2254 = vmatpush1.msra.mxu0 0.0
  %2255 = vmatprep.subr.mxu0 0.0
  %2256 = vmatpush1.msra.mxu0 0.0
  %2257 = vmatprep.subr.mxu0 0.0
  %2258 = vmatpush1.msra.mxu0 0.0
  %2259 = vmatprep.subr.mxu0 0.0
  %2260 = vmatpush1.msra.mxu0 0.0
  %2261 = vmatprep.subr.mxu0 0.0
  %2262 = vmatpush1.msra.mxu0 0.0
  %2263 = vmatprep.subr.mxu0 0.0
  %2264 = vmatpush1.msra.mxu0 0.0
  %2265 = vmatprep.subr.mxu0 0.0
  %2266 = vmatpush1.msra.mxu0 0.0
  %2267 = vmatprep.subr.mxu0 0.0
  %2268 = vmatpush1.msra.mxu0 0.0
  %2269 = vmatprep.subr.mxu0 0.0
  %2270 = vmatpush1.msra.mxu0 0.0
  %2271 = vmatprep.subr.mxu0 0.0
  %2272 = vmatpush1.msra.mxu0 0.0
  %2273 = vmatprep.subr.mxu0 0.0
  %2274 = vmatpush1.msra.mxu0 %v2243
  %2275 = vmatprep.subr.mxu0 0.0
  %2276 = vmatpush1.msra.mxu0 %v2233
  %2277 = vmatprep.subr.mxu0 0.0
  %2278 = vmatpush2.msra.mxu0 0.0
  %2279 = vmatprep.subr.mxu0 0.0
  %2280 = vmatpush2.msra.mxu0 0.0
  %2281 = vmatprep.subr.mxu0 0.0
  %2282 = vmatpush2.msra.mxu0 0.0
  %2283 = vmatprep.subr.mxu0 0.0
  %2284 = vmatpush2.msra.mxu0 0.0
  %2285 = vmatprep.subr.mxu0 0.0
  %2286 = vmatpush2.msra.mxu0 0.0
  %2287 = vmatprep.subr.mxu0 0.0
  %2288 = vmatpush2.msra.mxu0 0.0
  %2289 = vmatprep.subr.mxu0 0.0
  %2290 = vmatpush2.msra.mxu0 0.0
  %2291 = vmatprep.subr.mxu0 0.0
  %2292 = vmatpush2.msra.mxu0 0.0
  %2293 = vmatprep.subr.mxu0 0.0
  %2294 = vmatpush2.msra.mxu0 0.0
  %2295 = vmatprep.subr.mxu0 0.0
  %2296 = vmatpush2.msra.mxu0 0.0
  %2297 = vmatprep.subr.mxu0 0.0
  %2298 = vmatpush2.msra.mxu0 0.0
  %2299 = vmatprep.subr.mxu0 0.0
  %2300 = vmatpush2.msra.mxu0 0.0
  %2301 = vmatprep.subr.mxu0 0.0
  %2302 = vmatpush2.msra.mxu0 0.0
  %2303 = vmatprep.subr.mxu0 0.0
  %2304 = vmatpush2.msra.mxu0 0.0
  %2305 = vmatprep.subr.mxu0 0.0
  %2306 = vmatpush2.msra.mxu0 0.0
  %2307 = vmatprep.subr.mxu0 0.0
  %2308 = vmatpush2.msra.mxu0 0.0
  %2309 = vmatprep.mubr.f32.mxu0 0.0
  %2310 = vmatmul.mubr.f32.gmra.mxu0 %v2238
  %v2311 = vpop.f32.mrf.mxu0
  %v2312 = vadd.f32 0.0, %v2311
  %v2313 = vpop.f32.mrf.mxu0
  %2314 = vmatprep.mubr.f32.mxu0 0.0
  %2315 = vmatmul.mubr.f32.gmra.mxu0 %v2241
  %v2316 = vpop.f32.mrf.mxu0
  %v2317 = vadd.f32 0.0, %v2316
  %v2318 = vpop.f32.mrf.mxu0
  %2319 = vdwg.mxu0
  %2322 = vrot.lane.b32.xlu0 %v2121, 96
  %v2323 = vpop.permute.xlu0 %2322
  %2324 = vrot.lane.b32.xlu0 %v2122, 96
  %v2325 = vpop.permute.xlu0 %2324
  %v2328 = vsel %vm703, %v2119, 0
  %v2331 = vsel %vm703, %v2120, 0
  %v2333 = vsel %vm354, %v2325, 0
  %2335 = vmatprep.subr.mxu0 0.0
  %2336 = vmatpush1.msra.mxu0 0.0
  %2337 = vmatprep.subr.mxu0 0.0
  %2338 = vmatpush1.msra.mxu0 0.0
  %2339 = vmatprep.subr.mxu0 0.0
  %2340 = vmatpush1.msra.mxu0 0.0
  %2341 = vmatprep.subr.mxu0 0.0
  %2342 = vmatpush1.msra.mxu0 0.0
  %2343 = vmatprep.subr.mxu0 0.0
  %2344 = vmatpush1.msra.mxu0 0.0
  %2345 = vmatprep.subr.mxu0 0.0
  %2346 = vmatpush1.msra.mxu0 0.0
  %2347 = vmatprep.subr.mxu0 0.0
  %2348 = vmatpush1.msra.mxu0 0.0
  %2349 = vmatprep.subr.mxu0 0.0
  %2350 = vmatpush1.msra.mxu0 0.0
  %2351 = vmatprep.subr.mxu0 0.0
  %2352 = vmatpush1.msra.mxu0 0.0
  %2353 = vmatprep.subr.mxu0 0.0
  %2354 = vmatpush1.msra.mxu0 0.0
  %2355 = vmatprep.subr.mxu0 0.0
  %2356 = vmatpush1.msra.mxu0 0.0
  %2357 = vmatprep.subr.mxu0 0.0
  %2358 = vmatpush1.msra.mxu0 0.0
  %2359 = vmatprep.subr.mxu0 0.0
  %2360 = vmatpush1.msra.mxu0 0.0
  %2361 = vmatprep.subr.mxu0 0.0
  %2362 = vmatpush1.msra.mxu0 0.0
  %2363 = vmatprep.subr.mxu0 0.0
  %2364 = vmatpush1.msra.mxu0 %v2333
  %2365 = vmatprep.subr.mxu0 0.0
  %2366 = vmatpush1.msra.mxu0 %v2323
  %2367 = vmatprep.subr.mxu0 0.0
  %2368 = vmatpush2.msra.mxu0 0.0
  %2369 = vmatprep.subr.mxu0 0.0
  %2370 = vmatpush2.msra.mxu0 0.0
  %2371 = vmatprep.subr.mxu0 0.0
  %2372 = vmatpush2.msra.mxu0 0.0
  %2373 = vmatprep.subr.mxu0 0.0
  %2374 = vmatpush2.msra.mxu0 0.0
  %2375 = vmatprep.subr.mxu0 0.0
  %2376 = vmatpush2.msra.mxu0 0.0
  %2377 = vmatprep.subr.mxu0 0.0
  %2378 = vmatpush2.msra.mxu0 0.0
  %2379 = vmatprep.subr.mxu0 0.0
  %2380 = vmatpush2.msra.mxu0 0.0
  %2381 = vmatprep.subr.mxu0 0.0
  %2382 = vmatpush2.msra.mxu0 0.0
  %2383 = vmatprep.subr.mxu0 0.0
  %2384 = vmatpush2.msra.mxu0 0.0
  %2385 = vmatprep.subr.mxu0 0.0
  %2386 = vmatpush2.msra.mxu0 0.0
  %2387 = vmatprep.subr.mxu0 0.0
  %2388 = vmatpush2.msra.mxu0 0.0
  %2389 = vmatprep.subr.mxu0 0.0
  %2390 = vmatpush2.msra.mxu0 0.0
  %2391 = vmatprep.subr.mxu0 0.0
  %2392 = vmatpush2.msra.mxu0 0.0
  %2393 = vmatprep.subr.mxu0 0.0
  %2394 = vmatpush2.msra.mxu0 0.0
  %2395 = vmatprep.subr.mxu0 0.0
  %2396 = vmatpush2.msra.mxu0 0.0
  %2397 = vmatprep.subr.mxu0 0.0
  %2398 = vmatpush2.msra.mxu0 0.0
  %2399 = vmatprep.mubr.f32.mxu0 0.0
  %2400 = vmatmul.mubr.f32.gmra.mxu0 %v2328
  %v2401 = vpop.f32.mrf.mxu0
  %v2402 = vadd.f32 %v2312, %v2401
  %v2403 = vpop.f32.mrf.mxu0
  %2404 = vmatprep.mubr.f32.mxu0 0.0
  %2405 = vmatmul.mubr.f32.gmra.mxu0 %v2331
  %v2406 = vpop.f32.mrf.mxu0
  %v2407 = vadd.f32 %v2317, %v2406
  %v2408 = vpop.f32.mrf.mxu0
  %2409 = vdwg.mxu0
  %v2410 = vmul.f32 %v1998, %v1031
  %v2411 = vmul.f32 %v2003, %v1031
  %v2413 = vsel %vm524, %v2410, 0
  %v2416 = vsel %vm524, %v2411, 0
  %2418 = vmatprep.subr.mxu0 0.0
  %2419 = vmatpush1.xpose.msra.mxu0 0.0
  %2420 = vmatprep.subr.mxu0 0.0
  %2421 = vmatpush1.xpose.msra.mxu0 0.0
  %2422 = vmatprep.subr.mxu0 0.0
  %2423 = vmatpush1.xpose.msra.mxu0 0.0
  %2424 = vmatprep.subr.mxu0 0.0
  %2425 = vmatpush1.xpose.msra.mxu0 0.0
  %2426 = vmatprep.subr.mxu0 0.0
  %2427 = vmatpush1.xpose.msra.mxu0 0.0
  %2428 = vmatprep.subr.mxu0 0.0
  %2429 = vmatpush1.xpose.msra.mxu0 0.0
  %2430 = vmatprep.subr.mxu0 0.0
  %2431 = vmatpush1.xpose.msra.mxu0 0.0
  %2432 = vmatprep.subr.mxu0 0.0
  %2433 = vmatpush1.xpose.msra.mxu0 0.0
  %2434 = vmatprep.subr.mxu0 0.0
  %2435 = vmatpush1.xpose.msra.mxu0 0.0
  %2436 = vmatprep.subr.mxu0 0.0
  %2437 = vmatpush1.xpose.msra.mxu0 0.0
  %2438 = vmatprep.subr.mxu0 0.0
  %2439 = vmatpush1.xpose.msra.mxu0 0.0
  %2440 = vmatprep.subr.mxu0 0.0
  %2441 = vmatpush1.xpose.msra.mxu0 0.0
  %2442 = vmatprep.subr.mxu0 0.0
  %2443 = vmatpush1.xpose.msra.mxu0 0.0
  %2444 = vmatprep.subr.mxu0 0.0
  %2445 = vmatpush1.xpose.msra.mxu0 0.0
  %2446 = vmatprep.subr.mxu0 0.0
  %2447 = vmatpush1.xpose.msra.mxu0 %v2022
  %2448 = vmatprep.subr.mxu0 0.0
  %2449 = vmatpush1.xpose.msra.mxu0 %v2020
  %2450 = vmatprep.subr.mxu0 0.0
  %2451 = vmatpush2.xpose.msra.mxu0 0.0
  %2452 = vmatprep.subr.mxu0 0.0
  %2453 = vmatpush2.xpose.msra.mxu0 0.0
  %2454 = vmatprep.subr.mxu0 0.0
  %2455 = vmatpush2.xpose.msra.mxu0 0.0
  %2456 = vmatprep.subr.mxu0 0.0
  %2457 = vmatpush2.xpose.msra.mxu0 0.0
  %2458 = vmatprep.subr.mxu0 0.0
  %2459 = vmatpush2.xpose.msra.mxu0 0.0
  %2460 = vmatprep.subr.mxu0 0.0
  %2461 = vmatpush2.xpose.msra.mxu0 0.0
  %2462 = vmatprep.subr.mxu0 0.0
  %2463 = vmatpush2.xpose.msra.mxu0 0.0
  %2464 = vmatprep.subr.mxu0 0.0
  %2465 = vmatpush2.xpose.msra.mxu0 0.0
  %2466 = vmatprep.subr.mxu0 0.0
  %2467 = vmatpush2.xpose.msra.mxu0 0.0
  %2468 = vmatprep.subr.mxu0 0.0
  %2469 = vmatpush2.xpose.msra.mxu0 0.0
  %2470 = vmatprep.subr.mxu0 0.0
  %2471 = vmatpush2.xpose.msra.mxu0 0.0
  %2472 = vmatprep.subr.mxu0 0.0
  %2473 = vmatpush2.xpose.msra.mxu0 0.0
  %2474 = vmatprep.subr.mxu0 0.0
  %2475 = vmatpush2.xpose.msra.mxu0 0.0
  %2476 = vmatprep.subr.mxu0 0.0
  %2477 = vmatpush2.xpose.msra.mxu0 0.0
  %2478 = vmatprep.subr.mxu0 0.0
  %2479 = vmatpush2.xpose.msra.mxu0 0.0
  %2480 = vmatprep.subr.mxu0 0.0
  %2481 = vmatpush2.xpose.msra.mxu0 0.0
  %2482 = vmatprep.mubr.f32.mxu0 0.0
  %2483 = vmatmul.mubr.f32.gmra.mxu0 %v2413
  %v2484 = vpop.f32.mrf.mxu0
  %v2485 = vadd.f32 %v80, %v2484
  %v2486 = vpop.f32.mrf.mxu0
  %2487 = vmatprep.mubr.f32.mxu0 0.0
  %2488 = vmatmul.mubr.f32.gmra.mxu0 %v2416
  %v2489 = vpop.f32.mrf.mxu0
  %v2490 = vadd.f32 %v81, %v2489
  %v2491 = vpop.f32.mrf.mxu0
  %2492 = vdwg.mxu0
  %v2493 = vsel %vm703, %v2485, -inf
  %2494 = vmax.xlane.f32.xlu0 %v2493
  %v2495 = vpop.xlane.xlu0 %2494
  %v2496 = vsel %vm707, %v2490, -inf
  %2497 = vmax.xlane.f32.xlu0 %v2496
  %v2498 = vpop.xlane.xlu0 %2497
  %v2499 = vsub.f32 %v2485, %v2495
  %v2500 = vsub.f32 %v2490, %v2498
  %v2501 = vmul.f32 %v2499, 1.442695
  %v2502 = vpow.pop %v2501
  %v2503 = vmul.f32 %v2500, 1.442695
  %v2504 = vpow.pop %v2503
  %v2505 = vsel %vm703, %v2502, 0.0
  %2506 = vadd.xlane.f32.xlu0 %v2505
  %v2507 = vpop.xlane.xlu0 %2506
  %v2508 = vsel %vm707, %v2504, 0.0
  %2509 = vadd.xlane.f32.xlu0 %v2508
  %v2510 = vpop.xlane.xlu0 %2509
  %v2511 = vrcp.pop %v2507
  %v2512 = vrcp.pop %v2510
  %v2513 = vmul.f32 %v2502, %v2511
  %v2514 = vmul.f32 %v2504, %v2512
  %v2515 = vmul.f32 %v1998, %v1139
  %v2516 = vmul.f32 %v2003, %v1139
  %2519 = vrot.lane.b32.xlu0 %v2515, 96
  %v2520 = vpop.permute.xlu0 %2519
  %2521 = vrot.lane.b32.xlu0 %v2516, 96
  %v2522 = vpop.permute.xlu0 %2521
  %v2525 = vsel %vm703, %v2513, 0
  %v2528 = vsel %vm703, %v2514, 0
  %v2530 = vsel %vm354, %v2522, 0
  %2532 = vmatprep.subr.mxu0 0.0
  %2533 = vmatpush1.msra.mxu0 0.0
  %2534 = vmatprep.subr.mxu0 0.0
  %2535 = vmatpush1.msra.mxu0 0.0
  %2536 = vmatprep.subr.mxu0 0.0
  %2537 = vmatpush1.msra.mxu0 0.0
  %2538 = vmatprep.subr.mxu0 0.0
  %2539 = vmatpush1.msra.mxu0 0.0
  %2540 = vmatprep.subr.mxu0 0.0
  %2541 = vmatpush1.msra.mxu0 0.0
  %2542 = vmatprep.subr.mxu0 0.0
  %2543 = vmatpush1.msra.mxu0 0.0
  %2544 = vmatprep.subr.mxu0 0.0
  %2545 = vmatpush1.msra.mxu0 0.0
  %2546 = vmatprep.subr.mxu0 0.0
  %2547 = vmatpush1.msra.mxu0 0.0
  %2548 = vmatprep.subr.mxu0 0.0
  %2549 = vmatpush1.msra.mxu0 0.0
  %2550 = vmatprep.subr.mxu0 0.0
  %2551 = vmatpush1.msra.mxu0 0.0
  %2552 = vmatprep.subr.mxu0 0.0
  %2553 = vmatpush1.msra.mxu0 0.0
  %2554 = vmatprep.subr.mxu0 0.0
  %2555 = vmatpush1.msra.mxu0 0.0
  %2556 = vmatprep.subr.mxu0 0.0
  %2557 = vmatpush1.msra.mxu0 0.0
  %2558 = vmatprep.subr.mxu0 0.0
  %2559 = vmatpush1.msra.mxu0 0.0
  %2560 = vmatprep.subr.mxu0 0.0
  %2561 = vmatpush1.msra.mxu0 %v2530
  %2562 = vmatprep.subr.mxu0 0.0
  %2563 = vmatpush1.msra.mxu0 %v2520
  %2564 = vmatprep.subr.mxu0 0.0
  %2565 = vmatpush2.msra.mxu0 0.0
  %2566 = vmatprep.subr.mxu0 0.0
  %2567 = vmatpush2.msra.mxu0 0.0
  %2568 = vmatprep.subr.mxu0 0.0
  %2569 = vmatpush2.msra.mxu0 0.0
  %2570 = vmatprep.subr.mxu0 0.0
  %2571 = vmatpush2.msra.mxu0 0.0
  %2572 = vmatprep.subr.mxu0 0.0
  %2573 = vmatpush2.msra.mxu0 0.0
  %2574 = vmatprep.subr.mxu0 0.0
  %2575 = vmatpush2.msra.mxu0 0.0
  %2576 = vmatprep.subr.mxu0 0.0
  %2577 = vmatpush2.msra.mxu0 0.0
  %2578 = vmatprep.subr.mxu0 0.0
  %2579 = vmatpush2.msra.mxu0 0.0
  %2580 = vmatprep.subr.mxu0 0.0
  %2581 = vmatpush2.msra.mxu0 0.0
  %2582 = vmatprep.subr.mxu0 0.0
  %2583 = vmatpush2.msra.mxu0 0.0
  %2584 = vmatprep.subr.mxu0 0.0
  %2585 = vmatpush2.msra.mxu0 0.0
  %2586 = vmatprep.subr.mxu0 0.0
  %2587 = vmatpush2.msra.mxu0 0.0
  %2588 = vmatprep.subr.mxu0 0.0
  %2589 = vmatpush2.msra.mxu0 0.0
  %2590 = vmatprep.subr.mxu0 0.0
  %2591 = vmatpush2.msra.mxu0 0.0
  %2592 = vmatprep.subr.mxu0 0.0
  %2593 = vmatpush2.msra.mxu0 0.0
  %2594 = vmatprep.subr.mxu0 0.0
  %2595 = vmatpush2.msra.mxu0 0.0
  %2596 = vmatprep.mubr.f32.mxu0 0.0
  %2597 = vmatmul.mubr.f32.gmra.mxu0 %v2525
  %v2598 = vpop.f32.mrf.mxu0
  %v2599 = vadd.f32 0.0, %v2598
  %v2600 = vpop.f32.mrf.mxu0
  %2601 = vmatprep.mubr.f32.mxu0 0.0
  %2602 = vmatmul.mubr.f32.gmra.mxu0 %v2528
  %v2603 = vpop.f32.mrf.mxu0
  %v2604 = vadd.f32 0.0, %v2603
  %v2605 = vpop.f32.mrf.mxu0
  %2606 = vdwg.mxu0
  %v2607 = vadd.f32 %v2402, %v2599
  %v2608 = vadd.f32 %v2407, %v2604
  %v2609 = vmul.f32 %v1998, %v1238
  %v2610 = vmul.f32 %v2003, %v1238
  %v2612 = vsel %vm524, %v2609, 0
  %v2615 = vsel %vm524, %v2610, 0
  %2617 = vmatprep.subr.mxu0 0.0
  %2618 = vmatpush1.xpose.msra.mxu0 0.0
  %2619 = vmatprep.subr.mxu0 0.0
  %2620 = vmatpush1.xpose.msra.mxu0 0.0
  %2621 = vmatprep.subr.mxu0 0.0
  %2622 = vmatpush1.xpose.msra.mxu0 0.0
  %2623 = vmatprep.subr.mxu0 0.0
  %2624 = vmatpush1.xpose.msra.mxu0 0.0
  %2625 = vmatprep.subr.mxu0 0.0
  %2626 = vmatpush1.xpose.msra.mxu0 0.0
  %2627 = vmatprep.subr.mxu0 0.0
  %2628 = vmatpush1.xpose.msra.mxu0 0.0
  %2629 = vmatprep.subr.mxu0 0.0
  %2630 = vmatpush1.xpose.msra.mxu0 0.0
  %2631 = vmatprep.subr.mxu0 0.0
  %2632 = vmatpush1.xpose.msra.mxu0 0.0
  %2633 = vmatprep.subr.mxu0 0.0
  %2634 = vmatpush1.xpose.msra.mxu0 0.0
  %2635 = vmatprep.subr.mxu0 0.0
  %2636 = vmatpush1.xpose.msra.mxu0 0.0
  %2637 = vmatprep.subr.mxu0 0.0
  %2638 = vmatpush1.xpose.msra.mxu0 0.0
  %2639 = vmatprep.subr.mxu0 0.0
  %2640 = vmatpush1.xpose.msra.mxu0 0.0
  %2641 = vmatprep.subr.mxu0 0.0
  %2642 = vmatpush1.xpose.msra.mxu0 0.0
  %2643 = vmatprep.subr.mxu0 0.0
  %2644 = vmatpush1.xpose.msra.mxu0 0.0
  %2645 = vmatprep.subr.mxu0 0.0
  %2646 = vmatpush1.xpose.msra.mxu0 %v2022
  %2647 = vmatprep.subr.mxu0 0.0
  %2648 = vmatpush1.xpose.msra.mxu0 %v2020
  %2649 = vmatprep.subr.mxu0 0.0
  %2650 = vmatpush2.xpose.msra.mxu0 0.0
  %2651 = vmatprep.subr.mxu0 0.0
  %2652 = vmatpush2.xpose.msra.mxu0 0.0
  %2653 = vmatprep.subr.mxu0 0.0
  %2654 = vmatpush2.xpose.msra.mxu0 0.0
  %2655 = vmatprep.subr.mxu0 0.0
  %2656 = vmatpush2.xpose.msra.mxu0 0.0
  %2657 = vmatprep.subr.mxu0 0.0
  %2658 = vmatpush2.xpose.msra.mxu0 0.0
  %2659 = vmatprep.subr.mxu0 0.0
  %2660 = vmatpush2.xpose.msra.mxu0 0.0
  %2661 = vmatprep.subr.mxu0 0.0
  %2662 = vmatpush2.xpose.msra.mxu0 0.0
  %2663 = vmatprep.subr.mxu0 0.0
  %2664 = vmatpush2.xpose.msra.mxu0 0.0
  %2665 = vmatprep.subr.mxu0 0.0
  %2666 = vmatpush2.xpose.msra.mxu0 0.0
  %2667 = vmatprep.subr.mxu0 0.0
  %2668 = vmatpush2.xpose.msra.mxu0 0.0
  %2669 = vmatprep.subr.mxu0 0.0
  %2670 = vmatpush2.xpose.msra.mxu0 0.0
  %2671 = vmatprep.subr.mxu0 0.0
  %2672 = vmatpush2.xpose.msra.mxu0 0.0
  %2673 = vmatprep.subr.mxu0 0.0
  %2674 = vmatpush2.xpose.msra.mxu0 0.0
  %2675 = vmatprep.subr.mxu0 0.0
  %2676 = vmatpush2.xpose.msra.mxu0 0.0
  %2677 = vmatprep.subr.mxu0 0.0
  %2678 = vmatpush2.xpose.msra.mxu0 0.0
  %2679 = vmatprep.subr.mxu0 0.0
  %2680 = vmatpush2.xpose.msra.mxu0 0.0
  %2681 = vmatprep.mubr.f32.mxu0 0.0
  %2682 = vmatmul.mubr.f32.gmra.mxu0 %v2612
  %v2683 = vpop.f32.mrf.mxu0
  %v2684 = vadd.f32 %v80, %v2683
  %v2685 = vpop.f32.mrf.mxu0
  %2686 = vmatprep.mubr.f32.mxu0 0.0
  %2687 = vmatmul.mubr.f32.gmra.mxu0 %v2615
  %v2688 = vpop.f32.mrf.mxu0
  %v2689 = vadd.f32 %v81, %v2688
  %v2690 = vpop.f32.mrf.mxu0
  %2691 = vdwg.mxu0
  %v2692 = vsel %vm703, %v2684, -inf
  %2693 = vmax.xlane.f32.xlu0 %v2692
  %v2694 = vpop.xlane.xlu0 %2693
  %v2695 = vsel %vm707, %v2689, -inf
  %2696 = vmax.xlane.f32.xlu0 %v2695
  %v2697 = vpop.xlane.xlu0 %2696
  %v2698 = vsub.f32 %v2684, %v2694
  %v2699 = vsub.f32 %v2689, %v2697
  %v2700 = vmul.f32 %v2698, 1.442695
  %v2701 = vpow.pop %v2700
  %v2702 = vmul.f32 %v2699, 1.442695
  %v2703 = vpow.pop %v2702
  %v2704 = vsel %vm703, %v2701, 0.0
  %2705 = vadd.xlane.f32.xlu0 %v2704
  %v2706 = vpop.xlane.xlu0 %2705
  %v2707 = vsel %vm707, %v2703, 0.0
  %2708 = vadd.xlane.f32.xlu0 %v2707
  %v2709 = vpop.xlane.xlu0 %2708
  %v2710 = vrcp.pop %v2706
  %v2711 = vrcp.pop %v2709
  %v2712 = vmul.f32 %v2701, %v2710
  %v2713 = vmul.f32 %v2703, %v2711
  %v2714 = vmul.f32 %v1998, %v1346
  %v2715 = vmul.f32 %v2003, %v1346
  %2718 = vrot.lane.b32.xlu0 %v2714, 96
  %v2719 = vpop.permute.xlu0 %2718
  %2720 = vrot.lane.b32.xlu0 %v2715, 96
  %v2721 = vpop.permute.xlu0 %2720
  %v2724 = vsel %vm703, %v2712, 0
  %v2727 = vsel %vm703, %v2713, 0
  %v2729 = vsel %vm354, %v2721, 0
  %2731 = vmatprep.subr.mxu0 0.0
  %2732 = vmatpush1.msra.mxu0 0.0
  %2733 = vmatprep.subr.mxu0 0.0
  %2734 = vmatpush1.msra.mxu0 0.0
  %2735 = vmatprep.subr.mxu0 0.0
  %2736 = vmatpush1.msra.mxu0 0.0
  %2737 = vmatprep.subr.mxu0 0.0
  %2738 = vmatpush1.msra.mxu0 0.0
  %2739 = vmatprep.subr.mxu0 0.0
  %2740 = vmatpush1.msra.mxu0 0.0
  %2741 = vmatprep.subr.mxu0 0.0
  %2742 = vmatpush1.msra.mxu0 0.0
  %2743 = vmatprep.subr.mxu0 0.0
  %2744 = vmatpush1.msra.mxu0 0.0
  %2745 = vmatprep.subr.mxu0 0.0
  %2746 = vmatpush1.msra.mxu0 0.0
  %2747 = vmatprep.subr.mxu0 0.0
  %2748 = vmatpush1.msra.mxu0 0.0
  %2749 = vmatprep.subr.mxu0 0.0
  %2750 = vmatpush1.msra.mxu0 0.0
  %2751 = vmatprep.subr.mxu0 0.0
  %2752 = vmatpush1.msra.mxu0 0.0
  %2753 = vmatprep.subr.mxu0 0.0
  %2754 = vmatpush1.msra.mxu0 0.0
  %2755 = vmatprep.subr.mxu0 0.0
  %2756 = vmatpush1.msra.mxu0 0.0
  %2757 = vmatprep.subr.mxu0 0.0
  %2758 = vmatpush1.msra.mxu0 0.0
  %2759 = vmatprep.subr.mxu0 0.0
  %2760 = vmatpush1.msra.mxu0 %v2729
  %2761 = vmatprep.subr.mxu0 0.0
  %2762 = vmatpush1.msra.mxu0 %v2719
  %2763 = vmatprep.subr.mxu0 0.0
  %2764 = vmatpush2.msra.mxu0 0.0
  %2765 = vmatprep.subr.mxu0 0.0
  %2766 = vmatpush2.msra.mxu0 0.0
  %2767 = vmatprep.subr.mxu0 0.0
  %2768 = vmatpush2.msra.mxu0 0.0
  %2769 = vmatprep.subr.mxu0 0.0
  %2770 = vmatpush2.msra.mxu0 0.0
  %2771 = vmatprep.subr.mxu0 0.0
  %2772 = vmatpush2.msra.mxu0 0.0
  %2773 = vmatprep.subr.mxu0 0.0
  %2774 = vmatpush2.msra.mxu0 0.0
  %2775 = vmatprep.subr.mxu0 0.0
  %2776 = vmatpush2.msra.mxu0 0.0
  %2777 = vmatprep.subr.mxu0 0.0
  %2778 = vmatpush2.msra.mxu0 0.0
  %2779 = vmatprep.subr.mxu0 0.0
  %2780 = vmatpush2.msra.mxu0 0.0
  %2781 = vmatprep.subr.mxu0 0.0
  %2782 = vmatpush2.msra.mxu0 0.0
  %2783 = vmatprep.subr.mxu0 0.0
  %2784 = vmatpush2.msra.mxu0 0.0
  %2785 = vmatprep.subr.mxu0 0.0
  %2786 = vmatpush2.msra.mxu0 0.0
  %2787 = vmatprep.subr.mxu0 0.0
  %2788 = vmatpush2.msra.mxu0 0.0
  %2789 = vmatprep.subr.mxu0 0.0
  %2790 = vmatpush2.msra.mxu0 0.0
  %2791 = vmatprep.subr.mxu0 0.0
  %2792 = vmatpush2.msra.mxu0 0.0
  %2793 = vmatprep.subr.mxu0 0.0
  %2794 = vmatpush2.msra.mxu0 0.0
  %2795 = vmatprep.mubr.f32.mxu0 0.0
  %2796 = vmatmul.mubr.f32.gmra.mxu0 %v2724
  %v2797 = vpop.f32.mrf.mxu0
  %v2798 = vadd.f32 0.0, %v2797
  %v2799 = vpop.f32.mrf.mxu0
  %2800 = vmatprep.mubr.f32.mxu0 0.0
  %2801 = vmatmul.mubr.f32.gmra.mxu0 %v2727
  %v2802 = vpop.f32.mrf.mxu0
  %v2803 = vadd.f32 0.0, %v2802
  %v2804 = vpop.f32.mrf.mxu0
  %2805 = vdwg.mxu0
  %v2806 = vadd.f32 %v2607, %v2798
  %v2807 = vadd.f32 %v2608, %v2803
  %s2808 = scalar_lea.vmem %s12, 16
  %v2809 = vld [vmem:[%s2808] sm:$0xff]
  %v2810 = vld [vmem:[%s2808 + $0x8] sm:$0xff]
  %s2811 = scalar_lea.vmem %s13, 1
  %v2812 = vld [vmem:[%s2811] sm:$0x1]
  %v2814 = vlaneseq
  %v2815 = vshrl.u32 %v2814, 7
  %v2816 = vsub.s32 0, %v2815
  %v2817 = vrot.slane %v2812, %v2816
  %v2820 = vsel %vm524, %v2806, 0
  %v2823 = vsel %vm524, %v2807, 0
  %2825 = vmatprep.subr.mxu0 0.0
  %2826 = vmatpush1.msra.mxu0 0.0
  %2827 = vmatprep.subr.mxu0 0.0
  %2828 = vmatpush1.msra.mxu0 0.0
  %2829 = vmatprep.subr.mxu0 0.0
  %2830 = vmatpush1.msra.mxu0 0.0
  %2831 = vmatprep.subr.mxu0 0.0
  %2832 = vmatpush1.msra.mxu0 0.0
  %2833 = vmatprep.subr.mxu0 0.0
  %2834 = vmatpush1.msra.mxu0 0.0
  %2835 = vmatprep.subr.mxu0 0.0
  %2836 = vmatpush1.msra.mxu0 0.0
  %2837 = vmatprep.subr.mxu0 0.0
  %2838 = vmatpush1.msra.mxu0 0.0
  %2839 = vmatprep.subr.mxu0 0.0
  %2840 = vmatpush1.msra.mxu0 0.0
  %2841 = vmatprep.subr.mxu0 0.0
  %2842 = vmatpush1.msra.mxu0 0.0
  %2843 = vmatprep.subr.mxu0 0.0
  %2844 = vmatpush1.msra.mxu0 0.0
  %2845 = vmatprep.subr.mxu0 0.0
  %2846 = vmatpush1.msra.mxu0 0.0
  %2847 = vmatprep.subr.mxu0 0.0
  %2848 = vmatpush1.msra.mxu0 0.0
  %2849 = vmatprep.subr.mxu0 0.0
  %2850 = vmatpush1.msra.mxu0 0.0
  %2851 = vmatprep.subr.mxu0 0.0
  %2852 = vmatpush1.msra.mxu0 0.0
  %2853 = vmatprep.subr.mxu0 0.0
  %2854 = vmatpush1.msra.mxu0 %v2810
  %2855 = vmatprep.subr.mxu0 0.0
  %2856 = vmatpush1.msra.mxu0 %v2809
  %2857 = vmatprep.subr.mxu0 0.0
  %2858 = vmatpush2.msra.mxu0 0.0
  %2859 = vmatprep.subr.mxu0 0.0
  %2860 = vmatpush2.msra.mxu0 0.0
  %2861 = vmatprep.subr.mxu0 0.0
  %2862 = vmatpush2.msra.mxu0 0.0
  %2863 = vmatprep.subr.mxu0 0.0
  %2864 = vmatpush2.msra.mxu0 0.0
  %2865 = vmatprep.subr.mxu0 0.0
  %2866 = vmatpush2.msra.mxu0 0.0
  %2867 = vmatprep.subr.mxu0 0.0
  %2868 = vmatpush2.msra.mxu0 0.0
  %2869 = vmatprep.subr.mxu0 0.0
  %2870 = vmatpush2.msra.mxu0 0.0
  %2871 = vmatprep.subr.mxu0 0.0
  %2872 = vmatpush2.msra.mxu0 0.0
  %2873 = vmatprep.subr.mxu0 0.0
  %2874 = vmatpush2.msra.mxu0 0.0
  %2875 = vmatprep.subr.mxu0 0.0
  %2876 = vmatpush2.msra.mxu0 0.0
  %2877 = vmatprep.subr.mxu0 0.0
  %2878 = vmatpush2.msra.mxu0 0.0
  %2879 = vmatprep.subr.mxu0 0.0
  %2880 = vmatpush2.msra.mxu0 0.0
  %2881 = vmatprep.subr.mxu0 0.0
  %2882 = vmatpush2.msra.mxu0 0.0
  %2883 = vmatprep.subr.mxu0 0.0
  %2884 = vmatpush2.msra.mxu0 0.0
  %2885 = vmatprep.subr.mxu0 0.0
  %2886 = vmatpush2.msra.mxu0 0.0
  %2887 = vmatprep.subr.mxu0 0.0
  %2888 = vmatpush2.msra.mxu0 0.0
  %2889 = vmatprep.mubr.f32.mxu0 0.0
  %2890 = vmatmul.mubr.f32.gmra.mxu0 %v2820
  %v2891 = vpop.f32.mrf.mxu0
  %v2892 = vadd.f32 %v2817, %v2891
  %v2893 = vpop.f32.mrf.mxu0
  %2894 = vmatprep.mubr.f32.mxu0 0.0
  %2895 = vmatmul.mubr.f32.gmra.mxu0 %v2823
  %v2896 = vpop.f32.mrf.mxu0
  %v2897 = vadd.f32 %v2817, %v2896
  %v2898 = vpop.f32.mrf.mxu0
  %2899 = vdwg.mxu0
  %v2900 = vadd.f32 %v1912, %v2892
  %v2901 = vadd.f32 %v1913, %v2897
  %s2902 = scalar_lea.vmem %s14, 1
  %v2903 = vld [vmem:[%s2902] sm:$0x1]
  %s2904 = scalar_lea.vmem %s15, 1
  %v2905 = vld [vmem:[%s2904] sm:$0x1]
  %v2906 = vsel %vm524, %v2900, 0.0
  %2907 = vadd.xlane.f32.xlu0 %v2906
  %v2908 = vpop.xlane.xlu0 %2907
  %v2909 = vsel %vm1539, %v2901, 0.0
  %2910 = vadd.xlane.f32.xlu0 %v2909
  %v2911 = vpop.xlane.xlu0 %2910
  %v2912 = vmul.f32 %v2908, %v1543
  %v2913 = vmul.f32 %v2911, %v1543
  %v2914 = vsub.f32 %v2900, %v2912
  %v2915 = vsub.f32 %v2901, %v2913
  %v2916 = vmul.f32 %v2914, %v2914
  %v2917 = vmul.f32 %v2915, %v2915
  %v2918 = vsel %vm524, %v2916, 0.0
  %2919 = vadd.xlane.f32.xlu0 %v2918
  %v2920 = vpop.xlane.xlu0 %2919
  %v2921 = vsel %vm1539, %v2917, 0.0
  %2922 = vadd.xlane.f32.xlu0 %v2921
  %v2923 = vpop.xlane.xlu0 %2922
  %v2924 = vmul.f32 %v2920, %v1543
  %v2925 = vmul.f32 %v2923, %v1543
  %v2926 = vadd.f32 %v2924, 1e-05
  %v2927 = vadd.f32 %v2925, 1e-05
  %v2928 = vrsqrt.pop %v2926
  %v2929 = vrsqrt.pop %v2927
  %v2930 = vmul.f32 %v2914, %v2928
  %v2931 = vmul.f32 %v2915, %v2929
  %v2933 = vlaneseq
  %v2934 = vshrl.u32 %v2933, 7
  %v2935 = vsub.s32 0, %v2934
  %v2936 = vrot.slane %v2903, %v2935
  %v2938 = vmul.f32 %v2930, %v2936
  %v2939 = vmul.f32 %v2931, %v2936
  %v2941 = vlaneseq
  %v2942 = vshrl.u32 %v2941, 7
  %v2943 = vsub.s32 0, %v2942
  %v2944 = vrot.slane %v2905, %v2943
  %v2946 = vadd.f32 %v2938, %v2944
  %v2947 = vadd.f32 %v2939, %v2944
  %s2948 = scalar_lea.vmem %s16, 16
  %v2949 = vld [vmem:[%s2948] sm:$0xff]
  %v2950 = vld [vmem:[%s2948 + $0x8] sm:$0xff]
  %s2951 = scalar_lea.vmem %s17, 1
  %v2952 = vld [vmem:[%s2951] sm:$0x1]
  %v2954 = vlaneseq
  %v2955 = vshrl.u32 %v2954, 7
  %v2956 = vsub.s32 0, %v2955
  %v2957 = vrot.slane %v2952, %v2956
  %v2960 = vsel %vm524, %v2946, 0
  %v2963 = vsel %vm524, %v2947, 0
  %2965 = vmatprep.subr.mxu0 0.0
  %2966 = vmatpush1.msra.mxu0 0.0
  %2967 = vmatprep.subr.mxu0 0.0
  %2968 = vmatpush1.msra.mxu0 0.0
  %2969 = vmatprep.subr.mxu0 0.0
  %2970 = vmatpush1.msra.mxu0 0.0
  %2971 = vmatprep.subr.mxu0 0.0
  %2972 = vmatpush1.msra.mxu0 0.0
  %2973 = vmatprep.subr.mxu0 0.0
  %2974 = vmatpush1.msra.mxu0 0.0
  %2975 = vmatprep.subr.mxu0 0.0
  %2976 = vmatpush1.msra.mxu0 0.0
  %2977 = vmatprep.subr.mxu0 0.0
  %2978 = vmatpush1.msra.mxu0 0.0
  %2979 = vmatprep.subr.mxu0 0.0
  %2980 = vmatpush1.msra.mxu0 0.0
  %2981 = vmatprep.subr.mxu0 0.0
  %2982 = vmatpush1.msra.mxu0 0.0
  %2983 = vmatprep.subr.mxu0 0.0
  %2984 = vmatpush1.msra.mxu0 0.0
  %2985 = vmatprep.subr.mxu0 0.0
  %2986 = vmatpush1.msra.mxu0 0.0
  %2987 = vmatprep.subr.mxu0 0.0
  %2988 = vmatpush1.msra.mxu0 0.0
  %2989 = vmatprep.subr.mxu0 0.0
  %2990 = vmatpush1.msra.mxu0 0.0
  %2991 = vmatprep.subr.mxu0 0.0
  %2992 = vmatpush1.msra.mxu0 0.0
  %2993 = vmatprep.subr.mxu0 0.0
  %2994 = vmatpush1.msra.mxu0 %v2950
  %2995 = vmatprep.subr.mxu0 0.0
  %2996 = vmatpush1.msra.mxu0 %v2949
  %2997 = vmatprep.subr.mxu0 0.0
  %2998 = vmatpush2.msra.mxu0 0.0
  %2999 = vmatprep.subr.mxu0 0.0
  %3000 = vmatpush2.msra.mxu0 0.0
  %3001 = vmatprep.subr.mxu0 0.0
  %3002 = vmatpush2.msra.mxu0 0.0
  %3003 = vmatprep.subr.mxu0 0.0
  %3004 = vmatpush2.msra.mxu0 0.0
  %3005 = vmatprep.subr.mxu0 0.0
  %3006 = vmatpush2.msra.mxu0 0.0
  %3007 = vmatprep.subr.mxu0 0.0
  %3008 = vmatpush2.msra.mxu0 0.0
  %3009 = vmatprep.subr.mxu0 0.0
  %3010 = vmatpush2.msra.mxu0 0.0
  %3011 = vmatprep.subr.mxu0 0.0
  %3012 = vmatpush2.msra.mxu0 0.0
  %3013 = vmatprep.subr.mxu0 0.0
  %3014 = vmatpush2.msra.mxu0 0.0
  %3015 = vmatprep.subr.mxu0 0.0
  %3016 = vmatpush2.msra.mxu0 0.0
  %3017 = vmatprep.subr.mxu0 0.0
  %3018 = vmatpush2.msra.mxu0 0.0
  %3019 = vmatprep.subr.mxu0 0.0
  %3020 = vmatpush2.msra.mxu0 0.0
  %3021 = vmatprep.subr.mxu0 0.0
  %3022 = vmatpush2.msra.mxu0 0.0
  %3023 = vmatprep.subr.mxu0 0.0
  %3024 = vmatpush2.msra.mxu0 0.0
  %3025 = vmatprep.subr.mxu0 0.0
  %3026 = vmatpush2.msra.mxu0 0.0
  %3027 = vmatprep.subr.mxu0 0.0
  %3028 = vmatpush2.msra.mxu0 0.0
  %3029 = vmatprep.mubr.f32.mxu0 0.0
  %3030 = vmatmul.mubr.f32.gmra.mxu0 %v2960
  %v3031 = vpop.f32.mrf.mxu0
  %v3032 = vadd.f32 %v2957, %v3031
  %v3033 = vpop.f32.mrf.mxu0
  %3034 = vmatprep.mubr.f32.mxu0 0.0
  %3035 = vmatmul.mubr.f32.gmra.mxu0 %v2963
  %v3036 = vpop.f32.mrf.mxu0
  %v3037 = vadd.f32 %v2957, %v3036
  %v3038 = vpop.f32.mrf.mxu0
  %3039 = vdwg.mxu0
  %v3040 = vmax.f32 %v3032, 0.0
  %v3041 = vmax.f32 %v3037, 0.0
  %s3042 = scalar_lea.vmem %s18, 64
  %v3043 = vld [vmem:[%s3042] sm:$0xff]
  %v3044 = vld [vmem:[%s3042 + $0x8] sm:$0xff]
  %v3045 = vld [vmem:[%s3042 + $0x10] sm:$0xff]
  %v3046 = vld [vmem:[%s3042 + $0x18] sm:$0xff]
  %v3047 = vld [vmem:[%s3042 + $0x20] sm:$0xff]
  %v3048 = vld [vmem:[%s3042 + $0x28] sm:$0xff]
  %v3049 = vld [vmem:[%s3042 + $0x30] sm:$0xff]
  %v3050 = vld [vmem:[%s3042 + $0x38] sm:$0xff]
  %s3051 = scalar_lea.vmem %s19, 1
  %v3052 = vld [vmem:[%s3051] sm:$0x1]
  %v3054 = vlaneseq
  %v3055 = vshrl.u32 %v3054, 7
  %v3056 = vsub.s32 0, %v3055
  %v3057 = vrot.slane %v3052, %v3056
  %v3060 = vsel %vm1687, %v3040, 0
  %v3063 = vsel %vm1687, %v3041, 0
  %3065 = vmatprep.subr.mxu0 0.0
  %3066 = vmatpush1.msra.mxu0 0.0
  %3067 = vmatprep.subr.mxu0 0.0
  %3068 = vmatpush1.msra.mxu0 0.0
  %3069 = vmatprep.subr.mxu0 0.0
  %3070 = vmatpush1.msra.mxu0 0.0
  %3071 = vmatprep.subr.mxu0 0.0
  %3072 = vmatpush1.msra.mxu0 0.0
  %3073 = vmatprep.subr.mxu0 0.0
  %3074 = vmatpush1.msra.mxu0 0.0
  %3075 = vmatprep.subr.mxu0 0.0
  %3076 = vmatpush1.msra.mxu0 0.0
  %3077 = vmatprep.subr.mxu0 0.0
  %3078 = vmatpush1.msra.mxu0 0.0
  %3079 = vmatprep.subr.mxu0 0.0
  %3080 = vmatpush1.msra.mxu0 0.0
  %3081 = vmatprep.subr.mxu0 0.0
  %3082 = vmatpush1.msra.mxu0 %v3050
  %3083 = vmatprep.subr.mxu0 0.0
  %3084 = vmatpush1.msra.mxu0 %v3049
  %3085 = vmatprep.subr.mxu0 0.0
  %3086 = vmatpush1.msra.mxu0 %v3048
  %3087 = vmatprep.subr.mxu0 0.0
  %3088 = vmatpush1.msra.mxu0 %v3047
  %3089 = vmatprep.subr.mxu0 0.0
  %3090 = vmatpush1.msra.mxu0 %v3046
  %3091 = vmatprep.subr.mxu0 0.0
  %3092 = vmatpush1.msra.mxu0 %v3045
  %3093 = vmatprep.subr.mxu0 0.0
  %3094 = vmatpush1.msra.mxu0 %v3044
  %3095 = vmatprep.subr.mxu0 0.0
  %3096 = vmatpush1.msra.mxu0 %v3043
  %3097 = vmatprep.subr.mxu0 0.0
  %3098 = vmatpush2.msra.mxu0 0.0
  %3099 = vmatprep.subr.mxu0 0.0
  %3100 = vmatpush2.msra.mxu0 0.0
  %3101 = vmatprep.subr.mxu0 0.0
  %3102 = vmatpush2.msra.mxu0 0.0
  %3103 = vmatprep.subr.mxu0 0.0
  %3104 = vmatpush2.msra.mxu0 0.0
  %3105 = vmatprep.subr.mxu0 0.0
  %3106 = vmatpush2.msra.mxu0 0.0
  %3107 = vmatprep.subr.mxu0 0.0
  %3108 = vmatpush2.msra.mxu0 0.0
  %3109 = vmatprep.subr.mxu0 0.0
  %3110 = vmatpush2.msra.mxu0 0.0
  %3111 = vmatprep.subr.mxu0 0.0
  %3112 = vmatpush2.msra.mxu0 0.0
  %3113 = vmatprep.subr.mxu0 0.0
  %3114 = vmatpush2.msra.mxu0 0.0
  %3115 = vmatprep.subr.mxu0 0.0
  %3116 = vmatpush2.msra.mxu0 0.0
  %3117 = vmatprep.subr.mxu0 0.0
  %3118 = vmatpush2.msra.mxu0 0.0
  %3119 = vmatprep.subr.mxu0 0.0
  %3120 = vmatpush2.msra.mxu0 0.0
  %3121 = vmatprep.subr.mxu0 0.0
  %3122 = vmatpush2.msra.mxu0 0.0
  %3123 = vmatprep.subr.mxu0 0.0
  %3124 = vmatpush2.msra.mxu0 0.0
  %3125 = vmatprep.subr.mxu0 0.0
  %3126 = vmatpush2.msra.mxu0 0.0
  %3127 = vmatprep.subr.mxu0 0.0
  %3128 = vmatpush2.msra.mxu0 0.0
  %3129 = vmatprep.mubr.f32.mxu0 0.0
  %3130 = vmatmul.mubr.f32.gmra.mxu0 %v3060
  %v3131 = vpop.f32.mrf.mxu0
  %v3132 = vadd.f32 %v3057, %v3131
  %v3133 = vpop.f32.mrf.mxu0
  %3134 = vmatprep.mubr.f32.mxu0 0.0
  %3135 = vmatmul.mubr.f32.gmra.mxu0 %v3063
  %v3136 = vpop.f32.mrf.mxu0
  %v3137 = vadd.f32 %v3057, %v3136
  %v3138 = vpop.f32.mrf.mxu0
  %3139 = vdwg.mxu0
  %v3140 = vadd.f32 %v2946, %v3132
  %v3141 = vadd.f32 %v2947, %v3137
  %s3142 = scalar_lea.vmem %s20, 1
  %v3143 = vld [vmem:[%s3142] sm:$0x1]
  %s3144 = scalar_lea.vmem %s21, 1
  %v3145 = vld [vmem:[%s3144] sm:$0x1]
  %v3146 = vsel %vm524, %v3140, 0.0
  %3147 = vadd.xlane.f32.xlu0 %v3146
  %v3148 = vpop.xlane.xlu0 %3147
  %v3149 = vsel %vm1539, %v3141, 0.0
  %3150 = vadd.xlane.f32.xlu0 %v3149
  %v3151 = vpop.xlane.xlu0 %3150
  %v3152 = vmul.f32 %v3148, %v1543
  %v3153 = vmul.f32 %v3151, %v1543
  %v3154 = vsub.f32 %v3140, %v3152
  %v3155 = vsub.f32 %v3141, %v3153
  %v3156 = vmul.f32 %v3154, %v3154
  %v3157 = vmul.f32 %v3155, %v3155
  %v3158 = vsel %vm524, %v3156, 0.0
  %3159 = vadd.xlane.f32.xlu0 %v3158
  %v3160 = vpop.xlane.xlu0 %3159
  %v3161 = vsel %vm1539, %v3157, 0.0
  %3162 = vadd.xlane.f32.xlu0 %v3161
  %v3163 = vpop.xlane.xlu0 %3162
  %v3164 = vmul.f32 %v3160, %v1543
  %v3165 = vmul.f32 %v3163, %v1543
  %v3166 = vadd.f32 %v3164, 1e-05
  %v3167 = vadd.f32 %v3165, 1e-05
  %v3168 = vrsqrt.pop %v3166
  %v3169 = vrsqrt.pop %v3167
  %v3170 = vmul.f32 %v3154, %v3168
  %v3171 = vmul.f32 %v3155, %v3169
  %v3173 = vlaneseq
  %v3174 = vshrl.u32 %v3173, 7
  %v3175 = vsub.s32 0, %v3174
  %v3176 = vrot.slane %v3143, %v3175
  %v3178 = vmul.f32 %v3170, %v3176
  %v3179 = vmul.f32 %v3171, %v3176
  %v3181 = vlaneseq
  %v3182 = vshrl.u32 %v3181, 7
  %v3183 = vsub.s32 0, %v3182
  %v3184 = vrot.slane %v3145, %v3183
  %v3186 = vadd.f32 %v3178, %v3184
  %v3187 = vadd.f32 %v3179, %v3184
  %v3188 = vld [vmem:[%s0] sm:$0xff]
  %v3189 = vld [vmem:[%s0 + $0x8] sm:$0x3]
  %s3190 = scalar_lea.vmem %s4, 64
  %v3191 = vld [vmem:[%s3190] sm:$0xff]
  %v3192 = vld [vmem:[%s3190 + $0x8] sm:$0xff]
  %v3193 = vld [vmem:[%s3190 + $0x10] sm:$0xff]
  %v3194 = vld [vmem:[%s3190 + $0x18] sm:$0xff]
  %s3195 = scalar_lea.vmem %s5, 2
  %v3196 = vld [vmem:[%s3195] sm:$0x1]
  %v3198 = vlaneseq
  %v3199 = vshrl.u32 %v3198, 7
  %v3200 = vsub.s32 0, %v3199
  %v3201 = vrot.slane %v3196, %v3200
  %v3204 = vsel %vm97, %v3188, 0
  %v3207 = vsel %vm97, %v3189, 0
  %3209 = vmatprep.subr.mxu0 0.0
  %3210 = vmatpush1.msra.mxu0 0.0
  %3211 = vmatprep.subr.mxu0 0.0
  %3212 = vmatpush1.msra.mxu0 0.0
  %3213 = vmatprep.subr.mxu0 0.0
  %3214 = vmatpush1.msra.mxu0 0.0
  %3215 = vmatprep.subr.mxu0 0.0
  %3216 = vmatpush1.msra.mxu0 0.0
  %3217 = vmatprep.subr.mxu0 0.0
  %3218 = vmatpush1.msra.mxu0 0.0
  %3219 = vmatprep.subr.mxu0 0.0
  %3220 = vmatpush1.msra.mxu0 0.0
  %3221 = vmatprep.subr.mxu0 0.0
  %3222 = vmatpush1.msra.mxu0 0.0
  %3223 = vmatprep.subr.mxu0 0.0
  %3224 = vmatpush1.msra.mxu0 0.0
  %3225 = vmatprep.subr.mxu0 0.0
  %3226 = vmatpush1.msra.mxu0 0.0
  %3227 = vmatprep.subr.mxu0 0.0
  %3228 = vmatpush1.msra.mxu0 0.0
  %3229 = vmatprep.subr.mxu0 0.0
  %3230 = vmatpush1.msra.mxu0 0.0
  %3231 = vmatprep.subr.mxu0 0.0
  %3232 = vmatpush1.msra.mxu0 0.0
  %3233 = vmatprep.subr.mxu0 0.0
  %3234 = vmatpush1.msra.mxu0 %v3194
  %3235 = vmatprep.subr.mxu0 0.0
  %3236 = vmatpush1.msra.mxu0 %v3193
  %3237 = vmatprep.subr.mxu0 0.0
  %3238 = vmatpush1.msra.mxu0 %v3192
  %3239 = vmatprep.subr.mxu0 0.0
  %3240 = vmatpush1.msra.mxu0 %v3191
  %3241 = vmatprep.subr.mxu0 0.0
  %3242 = vmatpush2.msra.mxu0 0.0
  %3243 = vmatprep.subr.mxu0 0.0
  %3244 = vmatpush2.msra.mxu0 0.0
  %3245 = vmatprep.subr.mxu0 0.0
  %3246 = vmatpush2.msra.mxu0 0.0
  %3247 = vmatprep.subr.mxu0 0.0
  %3248 = vmatpush2.msra.mxu0 0.0
  %3249 = vmatprep.subr.mxu0 0.0
  %3250 = vmatpush2.msra.mxu0 0.0
  %3251 = vmatprep.subr.mxu0 0.0
  %3252 = vmatpush2.msra.mxu0 0.0
  %3253 = vmatprep.subr.mxu0 0.0
  %3254 = vmatpush2.msra.mxu0 0.0
  %3255 = vmatprep.subr.mxu0 0.0
  %3256 = vmatpush2.msra.mxu0 0.0
  %3257 = vmatprep.subr.mxu0 0.0
  %3258 = vmatpush2.msra.mxu0 0.0
  %3259 = vmatprep.subr.mxu0 0.0
  %3260 = vmatpush2.msra.mxu0 0.0
  %3261 = vmatprep.subr.mxu0 0.0
  %3262 = vmatpush2.msra.mxu0 0.0
  %3263 = vmatprep.subr.mxu0 0.0
  %3264 = vmatpush2.msra.mxu0 0.0
  %3265 = vmatprep.subr.mxu0 0.0
  %3266 = vmatpush2.msra.mxu0 0.0
  %3267 = vmatprep.subr.mxu0 0.0
  %3268 = vmatpush2.msra.mxu0 0.0
  %3269 = vmatprep.subr.mxu0 0.0
  %3270 = vmatpush2.msra.mxu0 0.0
  %3271 = vmatprep.subr.mxu0 0.0
  %3272 = vmatpush2.msra.mxu0 0.0
  %3273 = vmatprep.mubr.f32.mxu0 0.0
  %3274 = vmatmul.mubr.f32.gmra.mxu0 %v3204
  %v3275 = vpop.f32.mrf.mxu0
  %v3276 = vadd.f32 %v3201, %v3275
  %v3277 = vpop.f32.mrf.mxu0
  %3278 = vmatprep.mubr.f32.mxu0 0.0
  %3279 = vmatmul.mubr.f32.gmra.mxu0 %v3207
  %v3280 = vpop.f32.mrf.mxu0
  %v3281 = vadd.f32 %v3201, %v3280
  %v3282 = vpop.f32.mrf.mxu0
  %3283 = vdwg.mxu0
  %v3284 = vadd.f32 %v3186, %v3276
  %v3285 = vadd.f32 %v3187, %v3281
  %s3286 = scalar_lea.vmem %s10, 32
  %v3287 = vld [vmem:[%s3286] sm:$0xff]
  %v3288 = vld [vmem:[%s3286 + $0x8] sm:$0xff]
  %s3289 = scalar_lea.vmem %s11, 2
  %v3290 = vld [vmem:[%s3289] sm:$0x1]
  %v3292 = vlaneseq
  %v3293 = vshrl.u32 %v3292, 7
  %v3294 = vsub.s32 0, %v3293
  %v3295 = vrot.slane %v3290, %v3294
  %v3298 = vsel %vm524, %v3284, 0
  %v3301 = vsel %vm524, %v3285, 0
  %3303 = vmatprep.subr.mxu0 0.0
  %3304 = vmatpush1.msra.mxu0 0.0
  %3305 = vmatprep.subr.mxu0 0.0
  %3306 = vmatpush1.msra.mxu0 0.0
  %3307 = vmatprep.subr.mxu0 0.0
  %3308 = vmatpush1.msra.mxu0 0.0
  %3309 = vmatprep.subr.mxu0 0.0
  %3310 = vmatpush1.msra.mxu0 0.0
  %3311 = vmatprep.subr.mxu0 0.0
  %3312 = vmatpush1.msra.mxu0 0.0
  %3313 = vmatprep.subr.mxu0 0.0
  %3314 = vmatpush1.msra.mxu0 0.0
  %3315 = vmatprep.subr.mxu0 0.0
  %3316 = vmatpush1.msra.mxu0 0.0
  %3317 = vmatprep.subr.mxu0 0.0
  %3318 = vmatpush1.msra.mxu0 0.0
  %3319 = vmatprep.subr.mxu0 0.0
  %3320 = vmatpush1.msra.mxu0 0.0
  %3321 = vmatprep.subr.mxu0 0.0
  %3322 = vmatpush1.msra.mxu0 0.0
  %3323 = vmatprep.subr.mxu0 0.0
  %3324 = vmatpush1.msra.mxu0 0.0
  %3325 = vmatprep.subr.mxu0 0.0
  %3326 = vmatpush1.msra.mxu0 0.0
  %3327 = vmatprep.subr.mxu0 0.0
  %3328 = vmatpush1.msra.mxu0 0.0
  %3329 = vmatprep.subr.mxu0 0.0
  %3330 = vmatpush1.msra.mxu0 0.0
  %3331 = vmatprep.subr.mxu0 0.0
  %3332 = vmatpush1.msra.mxu0 %v3288
  %3333 = vmatprep.subr.mxu0 0.0
  %3334 = vmatpush1.msra.mxu0 %v3287
  %3335 = vmatprep.subr.mxu0 0.0
  %3336 = vmatpush2.msra.mxu0 0.0
  %3337 = vmatprep.subr.mxu0 0.0
  %3338 = vmatpush2.msra.mxu0 0.0
  %3339 = vmatprep.subr.mxu0 0.0
  %3340 = vmatpush2.msra.mxu0 0.0
  %3341 = vmatprep.subr.mxu0 0.0
  %3342 = vmatpush2.msra.mxu0 0.0
  %3343 = vmatprep.subr.mxu0 0.0
  %3344 = vmatpush2.msra.mxu0 0.0
  %3345 = vmatprep.subr.mxu0 0.0
  %3346 = vmatpush2.msra.mxu0 0.0
  %3347 = vmatprep.subr.mxu0 0.0
  %3348 = vmatpush2.msra.mxu0 0.0
  %3349 = vmatprep.subr.mxu0 0.0
  %3350 = vmatpush2.msra.mxu0 0.0
  %3351 = vmatprep.subr.mxu0 0.0
  %3352 = vmatpush2.msra.mxu0 0.0
  %3353 = vmatprep.subr.mxu0 0.0
  %3354 = vmatpush2.msra.mxu0 0.0
  %3355 = vmatprep.subr.mxu0 0.0
  %3356 = vmatpush2.msra.mxu0 0.0
  %3357 = vmatprep.subr.mxu0 0.0
  %3358 = vmatpush2.msra.mxu0 0.0
  %3359 = vmatprep.subr.mxu0 0.0
  %3360 = vmatpush2.msra.mxu0 0.0
  %3361 = vmatprep.subr.mxu0 0.0
  %3362 = vmatpush2.msra.mxu0 0.0
  %3363 = vmatprep.subr.mxu0 0.0
  %3364 = vmatpush2.msra.mxu0 0.0
  %3365 = vmatprep.subr.mxu0 0.0
  %3366 = vmatpush2.msra.mxu0 0.0
  %3367 = vmatprep.mubr.f32.mxu0 0.0
  %3368 = vmatmul.mubr.f32.gmra.mxu0 %v3298
  %v3369 = vpop.f32.mrf.mxu0
  %v3370 = vadd.f32 %v3295, %v3369
  %v3371 = vpop.f32.mrf.mxu0
  %3372 = vmatprep.mubr.f32.mxu0 0.0
  %3373 = vmatmul.mubr.f32.gmra.mxu0 %v3301
  %v3374 = vpop.f32.mrf.mxu0
  %v3375 = vadd.f32 %v3295, %v3374
  %v3376 = vpop.f32.mrf.mxu0
  %3377 = vdwg.mxu0
  %v3378 = vmul.f32 %v3370, %v609
  %v3379 = vmul.f32 %v3375, %v609
  %3382 = vrot.lane.b32.xlu0 %v3370, 112
  %v3383 = vpop.permute.xlu0 %3382
  %3384 = vrot.lane.b32.xlu0 %v3375, 112
  %v3385 = vpop.permute.xlu0 %3384
  %v3387 = vsel %vm524, %v3378, 0
  %v3390 = vsel %vm524, %v3379, 0
  %v3392 = vsel %vm524, %v3383, 0
  %v3394 = vsel %vm524, %v3385, 0
  %3396 = vmatprep.subr.mxu0 0.0
  %3397 = vmatpush1.xpose.msra.mxu0 0.0
  %3398 = vmatprep.subr.mxu0 0.0
  %3399 = vmatpush1.xpose.msra.mxu0 0.0
  %3400 = vmatprep.subr.mxu0 0.0
  %3401 = vmatpush1.xpose.msra.mxu0 0.0
  %3402 = vmatprep.subr.mxu0 0.0
  %3403 = vmatpush1.xpose.msra.mxu0 0.0
  %3404 = vmatprep.subr.mxu0 0.0
  %3405 = vmatpush1.xpose.msra.mxu0 0.0
  %3406 = vmatprep.subr.mxu0 0.0
  %3407 = vmatpush1.xpose.msra.mxu0 0.0
  %3408 = vmatprep.subr.mxu0 0.0
  %3409 = vmatpush1.xpose.msra.mxu0 0.0
  %3410 = vmatprep.subr.mxu0 0.0
  %3411 = vmatpush1.xpose.msra.mxu0 0.0
  %3412 = vmatprep.subr.mxu0 0.0
  %3413 = vmatpush1.xpose.msra.mxu0 0.0
  %3414 = vmatprep.subr.mxu0 0.0
  %3415 = vmatpush1.xpose.msra.mxu0 0.0
  %3416 = vmatprep.subr.mxu0 0.0
  %3417 = vmatpush1.xpose.msra.mxu0 0.0
  %3418 = vmatprep.subr.mxu0 0.0
  %3419 = vmatpush1.xpose.msra.mxu0 0.0
  %3420 = vmatprep.subr.mxu0 0.0
  %3421 = vmatpush1.xpose.msra.mxu0 0.0
  %3422 = vmatprep.subr.mxu0 0.0
  %3423 = vmatpush1.xpose.msra.mxu0 0.0
  %3424 = vmatprep.subr.mxu0 0.0
  %3425 = vmatpush1.xpose.msra.mxu0 %v3394
  %3426 = vmatprep.subr.mxu0 0.0
  %3427 = vmatpush1.xpose.msra.mxu0 %v3392
  %3428 = vmatprep.subr.mxu0 0.0
  %3429 = vmatpush2.xpose.msra.mxu0 0.0
  %3430 = vmatprep.subr.mxu0 0.0
  %3431 = vmatpush2.xpose.msra.mxu0 0.0
  %3432 = vmatprep.subr.mxu0 0.0
  %3433 = vmatpush2.xpose.msra.mxu0 0.0
  %3434 = vmatprep.subr.mxu0 0.0
  %3435 = vmatpush2.xpose.msra.mxu0 0.0
  %3436 = vmatprep.subr.mxu0 0.0
  %3437 = vmatpush2.xpose.msra.mxu0 0.0
  %3438 = vmatprep.subr.mxu0 0.0
  %3439 = vmatpush2.xpose.msra.mxu0 0.0
  %3440 = vmatprep.subr.mxu0 0.0
  %3441 = vmatpush2.xpose.msra.mxu0 0.0
  %3442 = vmatprep.subr.mxu0 0.0
  %3443 = vmatpush2.xpose.msra.mxu0 0.0
  %3444 = vmatprep.subr.mxu0 0.0
  %3445 = vmatpush2.xpose.msra.mxu0 0.0
  %3446 = vmatprep.subr.mxu0 0.0
  %3447 = vmatpush2.xpose.msra.mxu0 0.0
  %3448 = vmatprep.subr.mxu0 0.0
  %3449 = vmatpush2.xpose.msra.mxu0 0.0
  %3450 = vmatprep.subr.mxu0 0.0
  %3451 = vmatpush2.xpose.msra.mxu0 0.0
  %3452 = vmatprep.subr.mxu0 0.0
  %3453 = vmatpush2.xpose.msra.mxu0 0.0
  %3454 = vmatprep.subr.mxu0 0.0
  %3455 = vmatpush2.xpose.msra.mxu0 0.0
  %3456 = vmatprep.subr.mxu0 0.0
  %3457 = vmatpush2.xpose.msra.mxu0 0.0
  %3458 = vmatprep.subr.mxu0 0.0
  %3459 = vmatpush2.xpose.msra.mxu0 0.0
  %3460 = vmatprep.mubr.f32.mxu0 0.0
  %3461 = vmatmul.mubr.f32.gmra.mxu0 %v3387
  %v3462 = vpop.f32.mrf.mxu0
  %v3463 = vadd.f32 %v80, %v3462
  %v3464 = vpop.f32.mrf.mxu0
  %3465 = vmatprep.mubr.f32.mxu0 0.0
  %3466 = vmatmul.mubr.f32.gmra.mxu0 %v3390
  %v3467 = vpop.f32.mrf.mxu0
  %v3468 = vadd.f32 %v81, %v3467
  %v3469 = vpop.f32.mrf.mxu0
  %3470 = vdwg.mxu0
  %v3471 = vsel %vm703, %v3463, -inf
  %3472 = vmax.xlane.f32.xlu0 %v3471
  %v3473 = vpop.xlane.xlu0 %3472
  %v3474 = vsel %vm707, %v3468, -inf
  %3475 = vmax.xlane.f32.xlu0 %v3474
  %v3476 = vpop.xlane.xlu0 %3475
  %v3477 = vsub.f32 %v3463, %v3473
  %v3478 = vsub.f32 %v3468, %v3476
  %v3479 = vmul.f32 %v3477, 1.442695
  %v3480 = vpow.pop %v3479
  %v3481 = vmul.f32 %v3478, 1.442695
  %v3482 = vpow.pop %v3481
  %v3483 = vsel %vm703, %v3480, 0.0
  %3484 = vadd.xlane.f32.xlu0 %v3483
  %v3485 = vpop.xlane.xlu0 %3484
  %v3486 = vsel %vm707, %v3482, 0.0
  %3487 = vadd.xlane.f32.xlu0 %v3486
  %v3488 = vpop.xlane.xlu0 %3487
  %v3489 = vrcp.pop %v3485
  %v3490 = vrcp.pop %v3488
  %v3491 = vmul.f32 %v3480, %v3489
  %v3492 = vmul.f32 %v3482, %v3490
  %v3493 = vmul.f32 %v3370, %v729
  %v3494 = vmul.f32 %v3375, %v729
  %v3495 = vmul.f32 %v3370, %v736
  %v3496 = vmul.f32 %v3375, %v736
  %v3498 = vsel %vm524, %v3495, 0
  %v3501 = vsel %vm524, %v3496, 0
  %3503 = vmatprep.subr.mxu0 0.0
  %3504 = vmatpush1.xpose.msra.mxu0 0.0
  %3505 = vmatprep.subr.mxu0 0.0
  %3506 = vmatpush1.xpose.msra.mxu0 0.0
  %3507 = vmatprep.subr.mxu0 0.0
  %3508 = vmatpush1.xpose.msra.mxu0 0.0
  %3509 = vmatprep.subr.mxu0 0.0
  %3510 = vmatpush1.xpose.msra.mxu0 0.0
  %3511 = vmatprep.subr.mxu0 0.0
  %3512 = vmatpush1.xpose.msra.mxu0 0.0
  %3513 = vmatprep.subr.mxu0 0.0
  %3514 = vmatpush1.xpose.msra.mxu0 0.0
  %3515 = vmatprep.subr.mxu0 0.0
  %3516 = vmatpush1.xpose.msra.mxu0 0.0
  %3517 = vmatprep.subr.mxu0 0.0
  %3518 = vmatpush1.xpose.msra.mxu0 0.0
  %3519 = vmatprep.subr.mxu0 0.0
  %3520 = vmatpush1.xpose.msra.mxu0 0.0
  %3521 = vmatprep.subr.mxu0 0.0
  %3522 = vmatpush1.xpose.msra.mxu0 0.0
  %3523 = vmatprep.subr.mxu0 0.0
  %3524 = vmatpush1.xpose.msra.mxu0 0.0
  %3525 = vmatprep.subr.mxu0 0.0
  %3526 = vmatpush1.xpose.msra.mxu0 0.0
  %3527 = vmatprep.subr.mxu0 0.0
  %3528 = vmatpush1.xpose.msra.mxu0 0.0
  %3529 = vmatprep.subr.mxu0 0.0
  %3530 = vmatpush1.xpose.msra.mxu0 0.0
  %3531 = vmatprep.subr.mxu0 0.0
  %3532 = vmatpush1.xpose.msra.mxu0 %v3394
  %3533 = vmatprep.subr.mxu0 0.0
  %3534 = vmatpush1.xpose.msra.mxu0 %v3392
  %3535 = vmatprep.subr.mxu0 0.0
  %3536 = vmatpush2.xpose.msra.mxu0 0.0
  %3537 = vmatprep.subr.mxu0 0.0
  %3538 = vmatpush2.xpose.msra.mxu0 0.0
  %3539 = vmatprep.subr.mxu0 0.0
  %3540 = vmatpush2.xpose.msra.mxu0 0.0
  %3541 = vmatprep.subr.mxu0 0.0
  %3542 = vmatpush2.xpose.msra.mxu0 0.0
  %3543 = vmatprep.subr.mxu0 0.0
  %3544 = vmatpush2.xpose.msra.mxu0 0.0
  %3545 = vmatprep.subr.mxu0 0.0
  %3546 = vmatpush2.xpose.msra.mxu0 0.0
  %3547 = vmatprep.subr.mxu0 0.0
  %3548 = vmatpush2.xpose.msra.mxu0 0.0
  %3549 = vmatprep.subr.mxu0 0.0
  %3550 = vmatpush2.xpose.msra.mxu0 0.0
  %3551 = vmatprep.subr.mxu0 0.0
  %3552 = vmatpush2.xpose.msra.mxu0 0.0
  %3553 = vmatprep.subr.mxu0 0.0
  %3554 = vmatpush2.xpose.msra.mxu0 0.0
  %3555 = vmatprep.subr.mxu0 0.0
  %3556 = vmatpush2.xpose.msra.mxu0 0.0
  %3557 = vmatprep.subr.mxu0 0.0
  %3558 = vmatpush2.xpose.msra.mxu0 0.0
  %3559 = vmatprep.subr.mxu0 0.0
  %3560 = vmatpush2.xpose.msra.mxu0 0.0
  %3561 = vmatprep.subr.mxu0 0.0
  %3562 = vmatpush2.xpose.msra.mxu0 0.0
  %3563 = vmatprep.subr.mxu0 0.0
  %3564 = vmatpush2.xpose.msra.mxu0 0.0
  %3565 = vmatprep.subr.mxu0 0.0
  %3566 = vmatpush2.xpose.msra.mxu0 0.0
  %3567 = vmatprep.mubr.f32.mxu0 0.0
  %3568 = vmatmul.mubr.f32.gmra.mxu0 %v3498
  %v3569 = vpop.f32.mrf.mxu0
  %v3570 = vadd.f32 %v80, %v3569
  %v3571 = vpop.f32.mrf.mxu0
  %3572 = vmatprep.mubr.f32.mxu0 0.0
  %3573 = vmatmul.mubr.f32.gmra.mxu0 %v3501
  %v3574 = vpop.f32.mrf.mxu0
  %v3575 = vadd.f32 %v81, %v3574
  %v3576 = vpop.f32.mrf.mxu0
  %3577 = vdwg.mxu0
  %v3578 = vsel %vm703, %v3570, -inf
  %3579 = vmax.xlane.f32.xlu0 %v3578
  %v3580 = vpop.xlane.xlu0 %3579
  %v3581 = vsel %vm707, %v3575, -inf
  %3582 = vmax.xlane.f32.xlu0 %v3581
  %v3583 = vpop.xlane.xlu0 %3582
  %v3584 = vsub.f32 %v3570, %v3580
  %v3585 = vsub.f32 %v3575, %v3583
  %v3586 = vmul.f32 %v3584, 1.442695
  %v3587 = vpow.pop %v3586
  %v3588 = vmul.f32 %v3585, 1.442695
  %v3589 = vpow.pop %v3588
  %v3590 = vsel %vm703, %v3587, 0.0
  %3591 = vadd.xlane.f32.xlu0 %v3590
  %v3592 = vpop.xlane.xlu0 %3591
  %v3593 = vsel %vm707, %v3589, 0.0
  %3594 = vadd.xlane.f32.xlu0 %v3593
  %v3595 = vpop.xlane.xlu0 %3594
  %v3596 = vrcp.pop %v3592
  %v3597 = vrcp.pop %v3595
  %v3598 = vmul.f32 %v3587, %v3596
  %v3599 = vmul.f32 %v3589, %v3597
  %v3600 = vmul.f32 %v3370, %v844
  %v3601 = vmul.f32 %v3375, %v844
  %3604 = vrot.lane.b32.xlu0 %v3600, 96
  %v3605 = vpop.permute.xlu0 %3604
  %3606 = vrot.lane.b32.xlu0 %v3601, 96
  %v3607 = vpop.permute.xlu0 %3606
  %v3610 = vsel %vm703, %v3598, 0
  %v3613 = vsel %vm703, %v3599, 0
  %v3615 = vsel %vm354, %v3607, 0
  %3617 = vmatprep.subr.mxu0 0.0
  %3618 = vmatpush1.msra.mxu0 0.0
  %3619 = vmatprep.subr.mxu0 0.0
  %3620 = vmatpush1.msra.mxu0 0.0
  %3621 = vmatprep.subr.mxu0 0.0
  %3622 = vmatpush1.msra.mxu0 0.0
  %3623 = vmatprep.subr.mxu0 0.0
  %3624 = vmatpush1.msra.mxu0 0.0
  %3625 = vmatprep.subr.mxu0 0.0
  %3626 = vmatpush1.msra.mxu0 0.0
  %3627 = vmatprep.subr.mxu0 0.0
  %3628 = vmatpush1.msra.mxu0 0.0
  %3629 = vmatprep.subr.mxu0 0.0
  %3630 = vmatpush1.msra.mxu0 0.0
  %3631 = vmatprep.subr.mxu0 0.0
  %3632 = vmatpush1.msra.mxu0 0.0
  %3633 = vmatprep.subr.mxu0 0.0
  %3634 = vmatpush1.msra.mxu0 0.0
  %3635 = vmatprep.subr.mxu0 0.0
  %3636 = vmatpush1.msra.mxu0 0.0
  %3637 = vmatprep.subr.mxu0 0.0
  %3638 = vmatpush1.msra.mxu0 0.0
  %3639 = vmatprep.subr.mxu0 0.0
  %3640 = vmatpush1.msra.mxu0 0.0
  %3641 = vmatprep.subr.mxu0 0.0
  %3642 = vmatpush1.msra.mxu0 0.0
  %3643 = vmatprep.subr.mxu0 0.0
  %3644 = vmatpush1.msra.mxu0 0.0
  %3645 = vmatprep.subr.mxu0 0.0
  %3646 = vmatpush1.msra.mxu0 %v3615
  %3647 = vmatprep.subr.mxu0 0.0
  %3648 = vmatpush1.msra.mxu0 %v3605
  %3649 = vmatprep.subr.mxu0 0.0
  %3650 = vmatpush2.msra.mxu0 0.0
  %3651 = vmatprep.subr.mxu0 0.0
  %3652 = vmatpush2.msra.mxu0 0.0
  %3653 = vmatprep.subr.mxu0 0.0
  %3654 = vmatpush2.msra.mxu0 0.0
  %3655 = vmatprep.subr.mxu0 0.0
  %3656 = vmatpush2.msra.mxu0 0.0
  %3657 = vmatprep.subr.mxu0 0.0
  %3658 = vmatpush2.msra.mxu0 0.0
  %3659 = vmatprep.subr.mxu0 0.0
  %3660 = vmatpush2.msra.mxu0 0.0
  %3661 = vmatprep.subr.mxu0 0.0
  %3662 = vmatpush2.msra.mxu0 0.0
  %3663 = vmatprep.subr.mxu0 0.0
  %3664 = vmatpush2.msra.mxu0 0.0
  %3665 = vmatprep.subr.mxu0 0.0
  %3666 = vmatpush2.msra.mxu0 0.0
  %3667 = vmatprep.subr.mxu0 0.0
  %3668 = vmatpush2.msra.mxu0 0.0
  %3669 = vmatprep.subr.mxu0 0.0
  %3670 = vmatpush2.msra.mxu0 0.0
  %3671 = vmatprep.subr.mxu0 0.0
  %3672 = vmatpush2.msra.mxu0 0.0
  %3673 = vmatprep.subr.mxu0 0.0
  %3674 = vmatpush2.msra.mxu0 0.0
  %3675 = vmatprep.subr.mxu0 0.0
  %3676 = vmatpush2.msra.mxu0 0.0
  %3677 = vmatprep.subr.mxu0 0.0
  %3678 = vmatpush2.msra.mxu0 0.0
  %3679 = vmatprep.subr.mxu0 0.0
  %3680 = vmatpush2.msra.mxu0 0.0
  %3681 = vmatprep.mubr.f32.mxu0 0.0
  %3682 = vmatmul.mubr.f32.gmra.mxu0 %v3610
  %v3683 = vpop.f32.mrf.mxu0
  %v3684 = vadd.f32 0.0, %v3683
  %v3685 = vpop.f32.mrf.mxu0
  %3686 = vmatprep.mubr.f32.mxu0 0.0
  %3687 = vmatmul.mubr.f32.gmra.mxu0 %v3613
  %v3688 = vpop.f32.mrf.mxu0
  %v3689 = vadd.f32 0.0, %v3688
  %v3690 = vpop.f32.mrf.mxu0
  %3691 = vdwg.mxu0
  %3694 = vrot.lane.b32.xlu0 %v3493, 96
  %v3695 = vpop.permute.xlu0 %3694
  %3696 = vrot.lane.b32.xlu0 %v3494, 96
  %v3697 = vpop.permute.xlu0 %3696
  %v3700 = vsel %vm703, %v3491, 0
  %v3703 = vsel %vm703, %v3492, 0
  %v3705 = vsel %vm354, %v3697, 0
  %3707 = vmatprep.subr.mxu0 0.0
  %3708 = vmatpush1.msra.mxu0 0.0
  %3709 = vmatprep.subr.mxu0 0.0
  %3710 = vmatpush1.msra.mxu0 0.0
  %3711 = vmatprep.subr.mxu0 0.0
  %3712 = vmatpush1.msra.mxu0 0.0
  %3713 = vmatprep.subr.mxu0 0.0
  %3714 = vmatpush1.msra.mxu0 0.0
  %3715 = vmatprep.subr.mxu0 0.0
  %3716 = vmatpush1.msra.mxu0 0.0
  %3717 = vmatprep.subr.mxu0 0.0
  %3718 = vmatpush1.msra.mxu0 0.0
  %3719 = vmatprep.subr.mxu0 0.0
  %3720 = vmatpush1.msra.mxu0 0.0
  %3721 = vmatprep.subr.mxu0 0.0
  %3722 = vmatpush1.msra.mxu0 0.0
  %3723 = vmatprep.subr.mxu0 0.0
  %3724 = vmatpush1.msra.mxu0 0.0
  %3725 = vmatprep.subr.mxu0 0.0
  %3726 = vmatpush1.msra.mxu0 0.0
  %3727 = vmatprep.subr.mxu0 0.0
  %3728 = vmatpush1.msra.mxu0 0.0
  %3729 = vmatprep.subr.mxu0 0.0
  %3730 = vmatpush1.msra.mxu0 0.0
  %3731 = vmatprep.subr.mxu0 0.0
  %3732 = vmatpush1.msra.mxu0 0.0
  %3733 = vmatprep.subr.mxu0 0.0
  %3734 = vmatpush1.msra.mxu0 0.0
  %3735 = vmatprep.subr.mxu0 0.0
  %3736 = vmatpush1.msra.mxu0 %v3705
  %3737 = vmatprep.subr.mxu0 0.0
  %3738 = vmatpush1.msra.mxu0 %v3695
  %3739 = vmatprep.subr.mxu0 0.0
  %3740 = vmatpush2.msra.mxu0 0.0
  %3741 = vmatprep.subr.mxu0 0.0
  %3742 = vmatpush2.msra.mxu0 0.0
  %3743 = vmatprep.subr.mxu0 0.0
  %3744 = vmatpush2.msra.mxu0 0.0
  %3745 = vmatprep.subr.mxu0 0.0
  %3746 = vmatpush2.msra.mxu0 0.0
  %3747 = vmatprep.subr.mxu0 0.0
  %3748 = vmatpush2.msra.mxu0 0.0
  %3749 = vmatprep.subr.mxu0 0.0
  %3750 = vmatpush2.msra.mxu0 0.0
  %3751 = vmatprep.subr.mxu0 0.0
  %3752 = vmatpush2.msra.mxu0 0.0
  %3753 = vmatprep.subr.mxu0 0.0
  %3754 = vmatpush2.msra.mxu0 0.0
  %3755 = vmatprep.subr.mxu0 0.0
  %3756 = vmatpush2.msra.mxu0 0.0
  %3757 = vmatprep.subr.mxu0 0.0
  %3758 = vmatpush2.msra.mxu0 0.0
  %3759 = vmatprep.subr.mxu0 0.0
  %3760 = vmatpush2.msra.mxu0 0.0
  %3761 = vmatprep.subr.mxu0 0.0
  %3762 = vmatpush2.msra.mxu0 0.0
  %3763 = vmatprep.subr.mxu0 0.0
  %3764 = vmatpush2.msra.mxu0 0.0
  %3765 = vmatprep.subr.mxu0 0.0
  %3766 = vmatpush2.msra.mxu0 0.0
  %3767 = vmatprep.subr.mxu0 0.0
  %3768 = vmatpush2.msra.mxu0 0.0
  %3769 = vmatprep.subr.mxu0 0.0
  %3770 = vmatpush2.msra.mxu0 0.0
  %3771 = vmatprep.mubr.f32.mxu0 0.0
  %3772 = vmatmul.mubr.f32.gmra.mxu0 %v3700
  %v3773 = vpop.f32.mrf.mxu0
  %v3774 = vadd.f32 %v3684, %v3773
  %v3775 = vpop.f32.mrf.mxu0
  %3776 = vmatprep.mubr.f32.mxu0 0.0
  %3777 = vmatmul.mubr.f32.gmra.mxu0 %v3703
  %v3778 = vpop.f32.mrf.mxu0
  %v3779 = vadd.f32 %v3689, %v3778
  %v3780 = vpop.f32.mrf.mxu0
  %3781 = vdwg.mxu0
  %v3782 = vmul.f32 %v3370, %v1031
  %v3783 = vmul.f32 %v3375, %v1031
  %v3785 = vsel %vm524, %v3782, 0
  %v3788 = vsel %vm524, %v3783, 0
  %3790 = vmatprep.subr.mxu0 0.0
  %3791 = vmatpush1.xpose.msra.mxu0 0.0
  %3792 = vmatprep.subr.mxu0 0.0
  %3793 = vmatpush1.xpose.msra.mxu0 0.0
  %3794 = vmatprep.subr.mxu0 0.0
  %3795 = vmatpush1.xpose.msra.mxu0 0.0
  %3796 = vmatprep.subr.mxu0 0.0
  %3797 = vmatpush1.xpose.msra.mxu0 0.0
  %3798 = vmatprep.subr.mxu0 0.0
  %3799 = vmatpush1.xpose.msra.mxu0 0.0
  %3800 = vmatprep.subr.mxu0 0.0
  %3801 = vmatpush1.xpose.msra.mxu0 0.0
  %3802 = vmatprep.subr.mxu0 0.0
  %3803 = vmatpush1.xpose.msra.mxu0 0.0
  %3804 = vmatprep.subr.mxu0 0.0
  %3805 = vmatpush1.xpose.msra.mxu0 0.0
  %3806 = vmatprep.subr.mxu0 0.0
  %3807 = vmatpush1.xpose.msra.mxu0 0.0
  %3808 = vmatprep.subr.mxu0 0.0
  %3809 = vmatpush1.xpose.msra.mxu0 0.0
  %3810 = vmatprep.subr.mxu0 0.0
  %3811 = vmatpush1.xpose.msra.mxu0 0.0
  %3812 = vmatprep.subr.mxu0 0.0
  %3813 = vmatpush1.xpose.msra.mxu0 0.0
  %3814 = vmatprep.subr.mxu0 0.0
  %3815 = vmatpush1.xpose.msra.mxu0 0.0
  %3816 = vmatprep.subr.mxu0 0.0
  %3817 = vmatpush1.xpose.msra.mxu0 0.0
  %3818 = vmatprep.subr.mxu0 0.0
  %3819 = vmatpush1.xpose.msra.mxu0 %v3394
  %3820 = vmatprep.subr.mxu0 0.0
  %3821 = vmatpush1.xpose.msra.mxu0 %v3392
  %3822 = vmatprep.subr.mxu0 0.0
  %3823 = vmatpush2.xpose.msra.mxu0 0.0
  %3824 = vmatprep.subr.mxu0 0.0
  %3825 = vmatpush2.xpose.msra.mxu0 0.0
  %3826 = vmatprep.subr.mxu0 0.0
  %3827 = vmatpush2.xpose.msra.mxu0 0.0
  %3828 = vmatprep.subr.mxu0 0.0
  %3829 = vmatpush2.xpose.msra.mxu0 0.0
  %3830 = vmatprep.subr.mxu0 0.0
  %3831 = vmatpush2.xpose.msra.mxu0 0.0
  %3832 = vmatprep.subr.mxu0 0.0
  %3833 = vmatpush2.xpose.msra.mxu0 0.0
  %3834 = vmatprep.subr.mxu0 0.0
  %3835 = vmatpush2.xpose.msra.mxu0 0.0
  %3836 = vmatprep.subr.mxu0 0.0
  %3837 = vmatpush2.xpose.msra.mxu0 0.0
  %3838 = vmatprep.subr.mxu0 0.0
  %3839 = vmatpush2.xpose.msra.mxu0 0.0
  %3840 = vmatprep.subr.mxu0 0.0
  %3841 = vmatpush2.xpose.msra.mxu0 0.0
  %3842 = vmatprep.subr.mxu0 0.0
  %3843 = vmatpush2.xpose.msra.mxu0 0.0
  %3844 = vmatprep.subr.mxu0 0.0
  %3845 = vmatpush2.xpose.msra.mxu0 0.0
  %3846 = vmatprep.subr.mxu0 0.0
  %3847 = vmatpush2.xpose.msra.mxu0 0.0
  %3848 = vmatprep.subr.mxu0 0.0
  %3849 = vmatpush2.xpose.msra.mxu0 0.0
  %3850 = vmatprep.subr.mxu0 0.0
  %3851 = vmatpush2.xpose.msra.mxu0 0.0
  %3852 = vmatprep.subr.mxu0 0.0
  %3853 = vmatpush2.xpose.msra.mxu0 0.0
  %3854 = vmatprep.mubr.f32.mxu0 0.0
  %3855 = vmatmul.mubr.f32.gmra.mxu0 %v3785
  %v3856 = vpop.f32.mrf.mxu0
  %v3857 = vadd.f32 %v80, %v3856
  %v3858 = vpop.f32.mrf.mxu0
  %3859 = vmatprep.mubr.f32.mxu0 0.0
  %3860 = vmatmul.mubr.f32.gmra.mxu0 %v3788
  %v3861 = vpop.f32.mrf.mxu0
  %v3862 = vadd.f32 %v81, %v3861
  %v3863 = vpop.f32.mrf.mxu0
  %3864 = vdwg.mxu0
  %v3865 = vsel %vm703, %v3857, -inf
  %3866 = vmax.xlane.f32.xlu0 %v3865
  %v3867 = vpop.xlane.xlu0 %3866
  %v3868 = vsel %vm707, %v3862, -inf
  %3869 = vmax.xlane.f32.xlu0 %v3868
  %v3870 = vpop.xlane.xlu0 %3869
  %v3871 = vsub.f32 %v3857, %v3867
  %v3872 = vsub.f32 %v3862, %v3870
  %v3873 = vmul.f32 %v3871, 1.442695
  %v3874 = vpow.pop %v3873
  %v3875 = vmul.f32 %v3872, 1.442695
  %v3876 = vpow.pop %v3875
  %v3877 = vsel %vm703, %v3874, 0.0
  %3878 = vadd.xlane.f32.xlu0 %v3877
  %v3879 = vpop.xlane.xlu0 %3878
  %v3880 = vsel %vm707, %v3876, 0.0
  %3881 = vadd.xlane.f32.xlu0 %v3880
  %v3882 = vpop.xlane.xlu0 %3881
  %v3883 = vrcp.pop %v3879
  %v3884 = vrcp.pop %v3882
  %v3885 = vmul.f32 %v3874, %v3883
  %v3886 = vmul.f32 %v3876, %v3884
  %v3887 = vmul.f32 %v3370, %v1139
  %v3888 = vmul.f32 %v3375, %v1139
  %3891 = vrot.lane.b32.xlu0 %v3887, 96
  %v3892 = vpop.permute.xlu0 %3891
  %3893 = vrot.lane.b32.xlu0 %v3888, 96
  %v3894 = vpop.permute.xlu0 %3893
  %v3897 = vsel %vm703, %v3885, 0
  %v3900 = vsel %vm703, %v3886, 0
  %v3902 = vsel %vm354, %v3894, 0
  %3904 = vmatprep.subr.mxu0 0.0
  %3905 = vmatpush1.msra.mxu0 0.0
  %3906 = vmatprep.subr.mxu0 0.0
  %3907 = vmatpush1.msra.mxu0 0.0
  %3908 = vmatprep.subr.mxu0 0.0
  %3909 = vmatpush1.msra.mxu0 0.0
  %3910 = vmatprep.subr.mxu0 0.0
  %3911 = vmatpush1.msra.mxu0 0.0
  %3912 = vmatprep.subr.mxu0 0.0
  %3913 = vmatpush1.msra.mxu0 0.0
  %3914 = vmatprep.subr.mxu0 0.0
  %3915 = vmatpush1.msra.mxu0 0.0
  %3916 = vmatprep.subr.mxu0 0.0
  %3917 = vmatpush1.msra.mxu0 0.0
  %3918 = vmatprep.subr.mxu0 0.0
  %3919 = vmatpush1.msra.mxu0 0.0
  %3920 = vmatprep.subr.mxu0 0.0
  %3921 = vmatpush1.msra.mxu0 0.0
  %3922 = vmatprep.subr.mxu0 0.0
  %3923 = vmatpush1.msra.mxu0 0.0
  %3924 = vmatprep.subr.mxu0 0.0
  %3925 = vmatpush1.msra.mxu0 0.0
  %3926 = vmatprep.subr.mxu0 0.0
  %3927 = vmatpush1.msra.mxu0 0.0
  %3928 = vmatprep.subr.mxu0 0.0
  %3929 = vmatpush1.msra.mxu0 0.0
  %3930 = vmatprep.subr.mxu0 0.0
  %3931 = vmatpush1.msra.mxu0 0.0
  %3932 = vmatprep.subr.mxu0 0.0
  %3933 = vmatpush1.msra.mxu0 %v3902
  %3934 = vmatprep.subr.mxu0 0.0
  %3935 = vmatpush1.msra.mxu0 %v3892
  %3936 = vmatprep.subr.mxu0 0.0
  %3937 = vmatpush2.msra.mxu0 0.0
  %3938 = vmatprep.subr.mxu0 0.0
  %3939 = vmatpush2.msra.mxu0 0.0
  %3940 = vmatprep.subr.mxu0 0.0
  %3941 = vmatpush2.msra.mxu0 0.0
  %3942 = vmatprep.subr.mxu0 0.0
  %3943 = vmatpush2.msra.mxu0 0.0
  %3944 = vmatprep.subr.mxu0 0.0
  %3945 = vmatpush2.msra.mxu0 0.0
  %3946 = vmatprep.subr.mxu0 0.0
  %3947 = vmatpush2.msra.mxu0 0.0
  %3948 = vmatprep.subr.mxu0 0.0
  %3949 = vmatpush2.msra.mxu0 0.0
  %3950 = vmatprep.subr.mxu0 0.0
  %3951 = vmatpush2.msra.mxu0 0.0
  %3952 = vmatprep.subr.mxu0 0.0
  %3953 = vmatpush2.msra.mxu0 0.0
  %3954 = vmatprep.subr.mxu0 0.0
  %3955 = vmatpush2.msra.mxu0 0.0
  %3956 = vmatprep.subr.mxu0 0.0
  %3957 = vmatpush2.msra.mxu0 0.0
  %3958 = vmatprep.subr.mxu0 0.0
  %3959 = vmatpush2.msra.mxu0 0.0
  %3960 = vmatprep.subr.mxu0 0.0
  %3961 = vmatpush2.msra.mxu0 0.0
  %3962 = vmatprep.subr.mxu0 0.0
  %3963 = vmatpush2.msra.mxu0 0.0
  %3964 = vmatprep.subr.mxu0 0.0
  %3965 = vmatpush2.msra.mxu0 0.0
  %3966 = vmatprep.subr.mxu0 0.0
  %3967 = vmatpush2.msra.mxu0 0.0
  %3968 = vmatprep.mubr.f32.mxu0 0.0
  %3969 = vmatmul.mubr.f32.gmra.mxu0 %v3897
  %v3970 = vpop.f32.mrf.mxu0
  %v3971 = vadd.f32 0.0, %v3970
  %v3972 = vpop.f32.mrf.mxu0
  %3973 = vmatprep.mubr.f32.mxu0 0.0
  %3974 = vmatmul.mubr.f32.gmra.mxu0 %v3900
  %v3975 = vpop.f32.mrf.mxu0
  %v3976 = vadd.f32 0.0, %v3975
  %v3977 = vpop.f32.mrf.mxu0
  %3978 = vdwg.mxu0
  %v3979 = vadd.f32 %v3774, %v3971
  %v3980 = vadd.f32 %v3779, %v3976
  %v3981 = vmul.f32 %v3370, %v1238
  %v3982 = vmul.f32 %v3375, %v1238
  %v3984 = vsel %vm524, %v3981, 0
  %v3987 = vsel %vm524, %v3982, 0
  %3989 = vmatprep.subr.mxu0 0.0
  %3990 = vmatpush1.xpose.msra.mxu0 0.0
  %3991 = vmatprep.subr.mxu0 0.0
  %3992 = vmatpush1.xpose.msra.mxu0 0.0
  %3993 = vmatprep.subr.mxu0 0.0
  %3994 = vmatpush1.xpose.msra.mxu0 0.0
  %3995 = vmatprep.subr.mxu0 0.0
  %3996 = vmatpush1.xpose.msra.mxu0 0.0
  %3997 = vmatprep.subr.mxu0 0.0
  %3998 = vmatpush1.xpose.msra.mxu0 0.0
  %3999 = vmatprep.subr.mxu0 0.0
  %4000 = vmatpush1.xpose.msra.mxu0 0.0
  %4001 = vmatprep.subr.mxu0 0.0
  %4002 = vmatpush1.xpose.msra.mxu0 0.0
  %4003 = vmatprep.subr.mxu0 0.0
  %4004 = vmatpush1.xpose.msra.mxu0 0.0
  %4005 = vmatprep.subr.mxu0 0.0
  %4006 = vmatpush1.xpose.msra.mxu0 0.0
  %4007 = vmatprep.subr.mxu0 0.0
  %4008 = vmatpush1.xpose.msra.mxu0 0.0
  %4009 = vmatprep.subr.mxu0 0.0
  %4010 = vmatpush1.xpose.msra.mxu0 0.0
  %4011 = vmatprep.subr.mxu0 0.0
  %4012 = vmatpush1.xpose.msra.mxu0 0.0
  %4013 = vmatprep.subr.mxu0 0.0
  %4014 = vmatpush1.xpose.msra.mxu0 0.0
  %4015 = vmatprep.subr.mxu0 0.0
  %4016 = vmatpush1.xpose.msra.mxu0 0.0
  %4017 = vmatprep.subr.mxu0 0.0
  %4018 = vmatpush1.xpose.msra.mxu0 %v3394
  %4019 = vmatprep.subr.mxu0 0.0
  %4020 = vmatpush1.xpose.msra.mxu0 %v3392
  %4021 = vmatprep.subr.mxu0 0.0
  %4022 = vmatpush2.xpose.msra.mxu0 0.0
  %4023 = vmatprep.subr.mxu0 0.0
  %4024 = vmatpush2.xpose.msra.mxu0 0.0
  %4025 = vmatprep.subr.mxu0 0.0
  %4026 = vmatpush2.xpose.msra.mxu0 0.0
  %4027 = vmatprep.subr.mxu0 0.0
  %4028 = vmatpush2.xpose.msra.mxu0 0.0
  %4029 = vmatprep.subr.mxu0 0.0
  %4030 = vmatpush2.xpose.msra.mxu0 0.0
  %4031 = vmatprep.subr.mxu0 0.0
  %4032 = vmatpush2.xpose.msra.mxu0 0.0
  %4033 = vmatprep.subr.mxu0 0.0
  %4034 = vmatpush2.xpose.msra.mxu0 0.0
  %4035 = vmatprep.subr.mxu0 0.0
  %4036 = vmatpush2.xpose.msra.mxu0 0.0
  %4037 = vmatprep.subr.mxu0 0.0
  %4038 = vmatpush2.xpose.msra.mxu0 0.0
  %4039 = vmatprep.subr.mxu0 0.0
  %4040 = vmatpush2.xpose.msra.mxu0 0.0
  %4041 = vmatprep.subr.mxu0 0.0
  %4042 = vmatpush2.xpose.msra.mxu0 0.0
  %4043 = vmatprep.subr.mxu0 0.0
  %4044 = vmatpush2.xpose.msra.mxu0 0.0
  %4045 = vmatprep.subr.mxu0 0.0
  %4046 = vmatpush2.xpose.msra.mxu0 0.0
  %4047 = vmatprep.subr.mxu0 0.0
  %4048 = vmatpush2.xpose.msra.mxu0 0.0
  %4049 = vmatprep.subr.mxu0 0.0
  %4050 = vmatpush2.xpose.msra.mxu0 0.0
  %4051 = vmatprep.subr.mxu0 0.0
  %4052 = vmatpush2.xpose.msra.mxu0 0.0
  %4053 = vmatprep.mubr.f32.mxu0 0.0
  %4054 = vmatmul.mubr.f32.gmra.mxu0 %v3984
  %v4055 = vpop.f32.mrf.mxu0
  %v4056 = vadd.f32 %v80, %v4055
  %v4057 = vpop.f32.mrf.mxu0
  %4058 = vmatprep.mubr.f32.mxu0 0.0
  %4059 = vmatmul.mubr.f32.gmra.mxu0 %v3987
  %v4060 = vpop.f32.mrf.mxu0
  %v4061 = vadd.f32 %v81, %v4060
  %v4062 = vpop.f32.mrf.mxu0
  %4063 = vdwg.mxu0
  %v4064 = vsel %vm703, %v4056, -inf
  %4065 = vmax.xlane.f32.xlu0 %v4064
  %v4066 = vpop.xlane.xlu0 %4065
  %v4067 = vsel %vm707, %v4061, -inf
  %4068 = vmax.xlane.f32.xlu0 %v4067
  %v4069 = vpop.xlane.xlu0 %4068
  %v4070 = vsub.f32 %v4056, %v4066
  %v4071 = vsub.f32 %v4061, %v4069
  %v4072 = vmul.f32 %v4070, 1.442695
  %v4073 = vpow.pop %v4072
  %v4074 = vmul.f32 %v4071, 1.442695
  %v4075 = vpow.pop %v4074
  %v4076 = vsel %vm703, %v4073, 0.0
  %4077 = vadd.xlane.f32.xlu0 %v4076
  %v4078 = vpop.xlane.xlu0 %4077
  %v4079 = vsel %vm707, %v4075, 0.0
  %4080 = vadd.xlane.f32.xlu0 %v4079
  %v4081 = vpop.xlane.xlu0 %4080
  %v4082 = vrcp.pop %v4078
  %v4083 = vrcp.pop %v4081
  %v4084 = vmul.f32 %v4073, %v4082
  %v4085 = vmul.f32 %v4075, %v4083
  %v4086 = vmul.f32 %v3370, %v1346
  %v4087 = vmul.f32 %v3375, %v1346
  %4090 = vrot.lane.b32.xlu0 %v4086, 96
  %v4091 = vpop.permute.xlu0 %4090
  %4092 = vrot.lane.b32.xlu0 %v4087, 96
  %v4093 = vpop.permute.xlu0 %4092
  %v4096 = vsel %vm703, %v4084, 0
  %v4099 = vsel %vm703, %v4085, 0
  %v4101 = vsel %vm354, %v4093, 0
  %4103 = vmatprep.subr.mxu0 0.0
  %4104 = vmatpush1.msra.mxu0 0.0
  %4105 = vmatprep.subr.mxu0 0.0
  %4106 = vmatpush1.msra.mxu0 0.0
  %4107 = vmatprep.subr.mxu0 0.0
  %4108 = vmatpush1.msra.mxu0 0.0
  %4109 = vmatprep.subr.mxu0 0.0
  %4110 = vmatpush1.msra.mxu0 0.0
  %4111 = vmatprep.subr.mxu0 0.0
  %4112 = vmatpush1.msra.mxu0 0.0
  %4113 = vmatprep.subr.mxu0 0.0
  %4114 = vmatpush1.msra.mxu0 0.0
  %4115 = vmatprep.subr.mxu0 0.0
  %4116 = vmatpush1.msra.mxu0 0.0
  %4117 = vmatprep.subr.mxu0 0.0
  %4118 = vmatpush1.msra.mxu0 0.0
  %4119 = vmatprep.subr.mxu0 0.0
  %4120 = vmatpush1.msra.mxu0 0.0
  %4121 = vmatprep.subr.mxu0 0.0
  %4122 = vmatpush1.msra.mxu0 0.0
  %4123 = vmatprep.subr.mxu0 0.0
  %4124 = vmatpush1.msra.mxu0 0.0
  %4125 = vmatprep.subr.mxu0 0.0
  %4126 = vmatpush1.msra.mxu0 0.0
  %4127 = vmatprep.subr.mxu0 0.0
  %4128 = vmatpush1.msra.mxu0 0.0
  %4129 = vmatprep.subr.mxu0 0.0
  %4130 = vmatpush1.msra.mxu0 0.0
  %4131 = vmatprep.subr.mxu0 0.0
  %4132 = vmatpush1.msra.mxu0 %v4101
  %4133 = vmatprep.subr.mxu0 0.0
  %4134 = vmatpush1.msra.mxu0 %v4091
  %4135 = vmatprep.subr.mxu0 0.0
  %4136 = vmatpush2.msra.mxu0 0.0
  %4137 = vmatprep.subr.mxu0 0.0
  %4138 = vmatpush2.msra.mxu0 0.0
  %4139 = vmatprep.subr.mxu0 0.0
  %4140 = vmatpush2.msra.mxu0 0.0
  %4141 = vmatprep.subr.mxu0 0.0
  %4142 = vmatpush2.msra.mxu0 0.0
  %4143 = vmatprep.subr.mxu0 0.0
  %4144 = vmatpush2.msra.mxu0 0.0
  %4145 = vmatprep.subr.mxu0 0.0
  %4146 = vmatpush2.msra.mxu0 0.0
  %4147 = vmatprep.subr.mxu0 0.0
  %4148 = vmatpush2.msra.mxu0 0.0
  %4149 = vmatprep.subr.mxu0 0.0
  %4150 = vmatpush2.msra.mxu0 0.0
  %4151 = vmatprep.subr.mxu0 0.0
  %4152 = vmatpush2.msra.mxu0 0.0
  %4153 = vmatprep.subr.mxu0 0.0
  %4154 = vmatpush2.msra.mxu0 0.0
  %4155 = vmatprep.subr.mxu0 0.0
  %4156 = vmatpush2.msra.mxu0 0.0
  %4157 = vmatprep.subr.mxu0 0.0
  %4158 = vmatpush2.msra.mxu0 0.0
  %4159 = vmatprep.subr.mxu0 0.0
  %4160 = vmatpush2.msra.mxu0 0.0
  %4161 = vmatprep.subr.mxu0 0.0
  %4162 = vmatpush2.msra.mxu0 0.0
  %4163 = vmatprep.subr.mxu0 0.0
  %4164 = vmatpush2.msra.mxu0 0.0
  %4165 = vmatprep.subr.mxu0 0.0
  %4166 = vmatpush2.msra.mxu0 0.0
  %4167 = vmatprep.mubr.f32.mxu0 0.0
  %4168 = vmatmul.mubr.f32.gmra.mxu0 %v4096
  %v4169 = vpop.f32.mrf.mxu0
  %v4170 = vadd.f32 0.0, %v4169
  %v4171 = vpop.f32.mrf.mxu0
  %4172 = vmatprep.mubr.f32.mxu0 0.0
  %4173 = vmatmul.mubr.f32.gmra.mxu0 %v4099
  %v4174 = vpop.f32.mrf.mxu0
  %v4175 = vadd.f32 0.0, %v4174
  %v4176 = vpop.f32.mrf.mxu0
  %4177 = vdwg.mxu0
  %v4178 = vadd.f32 %v3979, %v4170
  %v4179 = vadd.f32 %v3980, %v4175
  %s4180 = scalar_lea.vmem %s12, 32
  %v4181 = vld [vmem:[%s4180] sm:$0xff]
  %v4182 = vld [vmem:[%s4180 + $0x8] sm:$0xff]
  %s4183 = scalar_lea.vmem %s13, 2
  %v4184 = vld [vmem:[%s4183] sm:$0x1]
  %v4186 = vlaneseq
  %v4187 = vshrl.u32 %v4186, 7
  %v4188 = vsub.s32 0, %v4187
  %v4189 = vrot.slane %v4184, %v4188
  %v4192 = vsel %vm524, %v4178, 0
  %v4195 = vsel %vm524, %v4179, 0
  %4197 = vmatprep.subr.mxu0 0.0
  %4198 = vmatpush1.msra.mxu0 0.0
  %4199 = vmatprep.subr.mxu0 0.0
  %4200 = vmatpush1.msra.mxu0 0.0
  %4201 = vmatprep.subr.mxu0 0.0
  %4202 = vmatpush1.msra.mxu0 0.0
  %4203 = vmatprep.subr.mxu0 0.0
  %4204 = vmatpush1.msra.mxu0 0.0
  %4205 = vmatprep.subr.mxu0 0.0
  %4206 = vmatpush1.msra.mxu0 0.0
  %4207 = vmatprep.subr.mxu0 0.0
  %4208 = vmatpush1.msra.mxu0 0.0
  %4209 = vmatprep.subr.mxu0 0.0
  %4210 = vmatpush1.msra.mxu0 0.0
  %4211 = vmatprep.subr.mxu0 0.0
  %4212 = vmatpush1.msra.mxu0 0.0
  %4213 = vmatprep.subr.mxu0 0.0
  %4214 = vmatpush1.msra.mxu0 0.0
  %4215 = vmatprep.subr.mxu0 0.0
  %4216 = vmatpush1.msra.mxu0 0.0
  %4217 = vmatprep.subr.mxu0 0.0
  %4218 = vmatpush1.msra.mxu0 0.0
  %4219 = vmatprep.subr.mxu0 0.0
  %4220 = vmatpush1.msra.mxu0 0.0
  %4221 = vmatprep.subr.mxu0 0.0
  %4222 = vmatpush1.msra.mxu0 0.0
  %4223 = vmatprep.subr.mxu0 0.0
  %4224 = vmatpush1.msra.mxu0 0.0
  %4225 = vmatprep.subr.mxu0 0.0
  %4226 = vmatpush1.msra.mxu0 %v4182
  %4227 = vmatprep.subr.mxu0 0.0
  %4228 = vmatpush1.msra.mxu0 %v4181
  %4229 = vmatprep.subr.mxu0 0.0
  %4230 = vmatpush2.msra.mxu0 0.0
  %4231 = vmatprep.subr.mxu0 0.0
  %4232 = vmatpush2.msra.mxu0 0.0
  %4233 = vmatprep.subr.mxu0 0.0
  %4234 = vmatpush2.msra.mxu0 0.0
  %4235 = vmatprep.subr.mxu0 0.0
  %4236 = vmatpush2.msra.mxu0 0.0
  %4237 = vmatprep.subr.mxu0 0.0
  %4238 = vmatpush2.msra.mxu0 0.0
  %4239 = vmatprep.subr.mxu0 0.0
  %4240 = vmatpush2.msra.mxu0 0.0
  %4241 = vmatprep.subr.mxu0 0.0
  %4242 = vmatpush2.msra.mxu0 0.0
  %4243 = vmatprep.subr.mxu0 0.0
  %4244 = vmatpush2.msra.mxu0 0.0
  %4245 = vmatprep.subr.mxu0 0.0
  %4246 = vmatpush2.msra.mxu0 0.0
  %4247 = vmatprep.subr.mxu0 0.0
  %4248 = vmatpush2.msra.mxu0 0.0
  %4249 = vmatprep.subr.mxu0 0.0
  %4250 = vmatpush2.msra.mxu0 0.0
  %4251 = vmatprep.subr.mxu0 0.0
  %4252 = vmatpush2.msra.mxu0 0.0
  %4253 = vmatprep.subr.mxu0 0.0
  %4254 = vmatpush2.msra.mxu0 0.0
  %4255 = vmatprep.subr.mxu0 0.0
  %4256 = vmatpush2.msra.mxu0 0.0
  %4257 = vmatprep.subr.mxu0 0.0
  %4258 = vmatpush2.msra.mxu0 0.0
  %4259 = vmatprep.subr.mxu0 0.0
  %4260 = vmatpush2.msra.mxu0 0.0
  %4261 = vmatprep.mubr.f32.mxu0 0.0
  %4262 = vmatmul.mubr.f32.gmra.mxu0 %v4192
  %v4263 = vpop.f32.mrf.mxu0
  %v4264 = vadd.f32 %v4189, %v4263
  %v4265 = vpop.f32.mrf.mxu0
  %4266 = vmatprep.mubr.f32.mxu0 0.0
  %4267 = vmatmul.mubr.f32.gmra.mxu0 %v4195
  %v4268 = vpop.f32.mrf.mxu0
  %v4269 = vadd.f32 %v4189, %v4268
  %v4270 = vpop.f32.mrf.mxu0
  %4271 = vdwg.mxu0
  %v4272 = vadd.f32 %v3284, %v4264
  %v4273 = vadd.f32 %v3285, %v4269
  %s4274 = scalar_lea.vmem %s14, 2
  %v4275 = vld [vmem:[%s4274] sm:$0x1]
  %s4276 = scalar_lea.vmem %s15, 2
  %v4277 = vld [vmem:[%s4276] sm:$0x1]
  %v4278 = vsel %vm524, %v4272, 0.0
  %4279 = vadd.xlane.f32.xlu0 %v4278
  %v4280 = vpop.xlane.xlu0 %4279
  %v4281 = vsel %vm1539, %v4273, 0.0
  %4282 = vadd.xlane.f32.xlu0 %v4281
  %v4283 = vpop.xlane.xlu0 %4282
  %v4284 = vmul.f32 %v4280, %v1543
  %v4285 = vmul.f32 %v4283, %v1543
  %v4286 = vsub.f32 %v4272, %v4284
  %v4287 = vsub.f32 %v4273, %v4285
  %v4288 = vmul.f32 %v4286, %v4286
  %v4289 = vmul.f32 %v4287, %v4287
  %v4290 = vsel %vm524, %v4288, 0.0
  %4291 = vadd.xlane.f32.xlu0 %v4290
  %v4292 = vpop.xlane.xlu0 %4291
  %v4293 = vsel %vm1539, %v4289, 0.0
  %4294 = vadd.xlane.f32.xlu0 %v4293
  %v4295 = vpop.xlane.xlu0 %4294
  %v4296 = vmul.f32 %v4292, %v1543
  %v4297 = vmul.f32 %v4295, %v1543
  %v4298 = vadd.f32 %v4296, 1e-05
  %v4299 = vadd.f32 %v4297, 1e-05
  %v4300 = vrsqrt.pop %v4298
  %v4301 = vrsqrt.pop %v4299
  %v4302 = vmul.f32 %v4286, %v4300
  %v4303 = vmul.f32 %v4287, %v4301
  %v4305 = vlaneseq
  %v4306 = vshrl.u32 %v4305, 7
  %v4307 = vsub.s32 0, %v4306
  %v4308 = vrot.slane %v4275, %v4307
  %v4310 = vmul.f32 %v4302, %v4308
  %v4311 = vmul.f32 %v4303, %v4308
  %v4313 = vlaneseq
  %v4314 = vshrl.u32 %v4313, 7
  %v4315 = vsub.s32 0, %v4314
  %v4316 = vrot.slane %v4277, %v4315
  %v4318 = vadd.f32 %v4310, %v4316
  %v4319 = vadd.f32 %v4311, %v4316
  %s4320 = scalar_lea.vmem %s16, 32
  %v4321 = vld [vmem:[%s4320] sm:$0xff]
  %v4322 = vld [vmem:[%s4320 + $0x8] sm:$0xff]
  %s4323 = scalar_lea.vmem %s17, 2
  %v4324 = vld [vmem:[%s4323] sm:$0x1]
  %v4326 = vlaneseq
  %v4327 = vshrl.u32 %v4326, 7
  %v4328 = vsub.s32 0, %v4327
  %v4329 = vrot.slane %v4324, %v4328
  %v4332 = vsel %vm524, %v4318, 0
  %v4335 = vsel %vm524, %v4319, 0
  %4337 = vmatprep.subr.mxu0 0.0
  %4338 = vmatpush1.msra.mxu0 0.0
  %4339 = vmatprep.subr.mxu0 0.0
  %4340 = vmatpush1.msra.mxu0 0.0
  %4341 = vmatprep.subr.mxu0 0.0
  %4342 = vmatpush1.msra.mxu0 0.0
  %4343 = vmatprep.subr.mxu0 0.0
  %4344 = vmatpush1.msra.mxu0 0.0
  %4345 = vmatprep.subr.mxu0 0.0
  %4346 = vmatpush1.msra.mxu0 0.0
  %4347 = vmatprep.subr.mxu0 0.0
  %4348 = vmatpush1.msra.mxu0 0.0
  %4349 = vmatprep.subr.mxu0 0.0
  %4350 = vmatpush1.msra.mxu0 0.0
  %4351 = vmatprep.subr.mxu0 0.0
  %4352 = vmatpush1.msra.mxu0 0.0
  %4353 = vmatprep.subr.mxu0 0.0
  %4354 = vmatpush1.msra.mxu0 0.0
  %4355 = vmatprep.subr.mxu0 0.0
  %4356 = vmatpush1.msra.mxu0 0.0
  %4357 = vmatprep.subr.mxu0 0.0
  %4358 = vmatpush1.msra.mxu0 0.0
  %4359 = vmatprep.subr.mxu0 0.0
  %4360 = vmatpush1.msra.mxu0 0.0
  %4361 = vmatprep.subr.mxu0 0.0
  %4362 = vmatpush1.msra.mxu0 0.0
  %4363 = vmatprep.subr.mxu0 0.0
  %4364 = vmatpush1.msra.mxu0 0.0
  %4365 = vmatprep.subr.mxu0 0.0
  %4366 = vmatpush1.msra.mxu0 %v4322
  %4367 = vmatprep.subr.mxu0 0.0
  %4368 = vmatpush1.msra.mxu0 %v4321
  %4369 = vmatprep.subr.mxu0 0.0
  %4370 = vmatpush2.msra.mxu0 0.0
  %4371 = vmatprep.subr.mxu0 0.0
  %4372 = vmatpush2.msra.mxu0 0.0
  %4373 = vmatprep.subr.mxu0 0.0
  %4374 = vmatpush2.msra.mxu0 0.0
  %4375 = vmatprep.subr.mxu0 0.0
  %4376 = vmatpush2.msra.mxu0 0.0
  %4377 = vmatprep.subr.mxu0 0.0
  %4378 = vmatpush2.msra.mxu0 0.0
  %4379 = vmatprep.subr.mxu0 0.0
  %4380 = vmatpush2.msra.mxu0 0.0
  %4381 = vmatprep.subr.mxu0 0.0
  %4382 = vmatpush2.msra.mxu0 0.0
  %4383 = vmatprep.subr.mxu0 0.0
  %4384 = vmatpush2.msra.mxu0 0.0
  %4385 = vmatprep.subr.mxu0 0.0
  %4386 = vmatpush2.msra.mxu0 0.0
  %4387 = vmatprep.subr.mxu0 0.0
  %4388 = vmatpush2.msra.mxu0 0.0
  %4389 = vmatprep.subr.mxu0 0.0
  %4390 = vmatpush2.msra.mxu0 0.0
  %4391 = vmatprep.subr.mxu0 0.0
  %4392 = vmatpush2.msra.mxu0 0.0
  %4393 = vmatprep.subr.mxu0 0.0
  %4394 = vmatpush2.msra.mxu0 0.0
  %4395 = vmatprep.subr.mxu0 0.0
  %4396 = vmatpush2.msra.mxu0 0.0
  %4397 = vmatprep.subr.mxu0 0.0
  %4398 = vmatpush2.msra.mxu0 0.0
  %4399 = vmatprep.subr.mxu0 0.0
  %4400 = vmatpush2.msra.mxu0 0.0
  %4401 = vmatprep.mubr.f32.mxu0 0.0
  %4402 = vmatmul.mubr.f32.gmra.mxu0 %v4332
  %v4403 = vpop.f32.mrf.mxu0
  %v4404 = vadd.f32 %v4329, %v4403
  %v4405 = vpop.f32.mrf.mxu0
  %4406 = vmatprep.mubr.f32.mxu0 0.0
  %4407 = vmatmul.mubr.f32.gmra.mxu0 %v4335
  %v4408 = vpop.f32.mrf.mxu0
  %v4409 = vadd.f32 %v4329, %v4408
  %v4410 = vpop.f32.mrf.mxu0
  %4411 = vdwg.mxu0
  %v4412 = vmax.f32 %v4404, 0.0
  %v4413 = vmax.f32 %v4409, 0.0
  %s4414 = scalar_lea.vmem %s18, 128
  %v4415 = vld [vmem:[%s4414] sm:$0xff]
  %v4416 = vld [vmem:[%s4414 + $0x8] sm:$0xff]
  %v4417 = vld [vmem:[%s4414 + $0x10] sm:$0xff]
  %v4418 = vld [vmem:[%s4414 + $0x18] sm:$0xff]
  %v4419 = vld [vmem:[%s4414 + $0x20] sm:$0xff]
  %v4420 = vld [vmem:[%s4414 + $0x28] sm:$0xff]
  %v4421 = vld [vmem:[%s4414 + $0x30] sm:$0xff]
  %v4422 = vld [vmem:[%s4414 + $0x38] sm:$0xff]
  %s4423 = scalar_lea.vmem %s19, 2
  %v4424 = vld [vmem:[%s4423] sm:$0x1]
  %v4426 = vlaneseq
  %v4427 = vshrl.u32 %v4426, 7
  %v4428 = vsub.s32 0, %v4427
  %v4429 = vrot.slane %v4424, %v4428
  %v4432 = vsel %vm1687, %v4412, 0
  %v4435 = vsel %vm1687, %v4413, 0
  %4437 = vmatprep.subr.mxu0 0.0
  %4438 = vmatpush1.msra.mxu0 0.0
  %4439 = vmatprep.subr.mxu0 0.0
  %4440 = vmatpush1.msra.mxu0 0.0
  %4441 = vmatprep.subr.mxu0 0.0
  %4442 = vmatpush1.msra.mxu0 0.0
  %4443 = vmatprep.subr.mxu0 0.0
  %4444 = vmatpush1.msra.mxu0 0.0
  %4445 = vmatprep.subr.mxu0 0.0
  %4446 = vmatpush1.msra.mxu0 0.0
  %4447 = vmatprep.subr.mxu0 0.0
  %4448 = vmatpush1.msra.mxu0 0.0
  %4449 = vmatprep.subr.mxu0 0.0
  %4450 = vmatpush1.msra.mxu0 0.0
  %4451 = vmatprep.subr.mxu0 0.0
  %4452 = vmatpush1.msra.mxu0 0.0
  %4453 = vmatprep.subr.mxu0 0.0
  %4454 = vmatpush1.msra.mxu0 %v4422
  %4455 = vmatprep.subr.mxu0 0.0
  %4456 = vmatpush1.msra.mxu0 %v4421
  %4457 = vmatprep.subr.mxu0 0.0
  %4458 = vmatpush1.msra.mxu0 %v4420
  %4459 = vmatprep.subr.mxu0 0.0
  %4460 = vmatpush1.msra.mxu0 %v4419
  %4461 = vmatprep.subr.mxu0 0.0
  %4462 = vmatpush1.msra.mxu0 %v4418
  %4463 = vmatprep.subr.mxu0 0.0
  %4464 = vmatpush1.msra.mxu0 %v4417
  %4465 = vmatprep.subr.mxu0 0.0
  %4466 = vmatpush1.msra.mxu0 %v4416
  %4467 = vmatprep.subr.mxu0 0.0
  %4468 = vmatpush1.msra.mxu0 %v4415
  %4469 = vmatprep.subr.mxu0 0.0
  %4470 = vmatpush2.msra.mxu0 0.0
  %4471 = vmatprep.subr.mxu0 0.0
  %4472 = vmatpush2.msra.mxu0 0.0
  %4473 = vmatprep.subr.mxu0 0.0
  %4474 = vmatpush2.msra.mxu0 0.0
  %4475 = vmatprep.subr.mxu0 0.0
  %4476 = vmatpush2.msra.mxu0 0.0
  %4477 = vmatprep.subr.mxu0 0.0
  %4478 = vmatpush2.msra.mxu0 0.0
  %4479 = vmatprep.subr.mxu0 0.0
  %4480 = vmatpush2.msra.mxu0 0.0
  %4481 = vmatprep.subr.mxu0 0.0
  %4482 = vmatpush2.msra.mxu0 0.0
  %4483 = vmatprep.subr.mxu0 0.0
  %4484 = vmatpush2.msra.mxu0 0.0
  %4485 = vmatprep.subr.mxu0 0.0
  %4486 = vmatpush2.msra.mxu0 0.0
  %4487 = vmatprep.subr.mxu0 0.0
  %4488 = vmatpush2.msra.mxu0 0.0
  %4489 = vmatprep.subr.mxu0 0.0
  %4490 = vmatpush2.msra.mxu0 0.0
  %4491 = vmatprep.subr.mxu0 0.0
  %4492 = vmatpush2.msra.mxu0 0.0
  %4493 = vmatprep.subr.mxu0 0.0
  %4494 = vmatpush2.msra.mxu0 0.0
  %4495 = vmatprep.subr.mxu0 0.0
  %4496 = vmatpush2.msra.mxu0 0.0
  %4497 = vmatprep.subr.mxu0 0.0
  %4498 = vmatpush2.msra.mxu0 0.0
  %4499 = vmatprep.subr.mxu0 0.0
  %4500 = vmatpush2.msra.mxu0 0.0
  %4501 = vmatprep.mubr.f32.mxu0 0.0
  %4502 = vmatmul.mubr.f32.gmra.mxu0 %v4432
  %v4503 = vpop.f32.mrf.mxu0
  %v4504 = vadd.f32 %v4429, %v4503
  %v4505 = vpop.f32.mrf.mxu0
  %4506 = vmatprep.mubr.f32.mxu0 0.0
  %4507 = vmatmul.mubr.f32.gmra.mxu0 %v4435
  %v4508 = vpop.f32.mrf.mxu0
  %v4509 = vadd.f32 %v4429, %v4508
  %v4510 = vpop.f32.mrf.mxu0
  %4511 = vdwg.mxu0
  %v4512 = vadd.f32 %v4318, %v4504
  %v4513 = vadd.f32 %v4319, %v4509
  %s4514 = scalar_lea.vmem %s20, 2
  %v4515 = vld [vmem:[%s4514] sm:$0x1]
  %s4516 = scalar_lea.vmem %s21, 2
  %v4517 = vld [vmem:[%s4516] sm:$0x1]
  %v4518 = vsel %vm524, %v4512, 0.0
  %4519 = vadd.xlane.f32.xlu0 %v4518
  %v4520 = vpop.xlane.xlu0 %4519
  %v4521 = vsel %vm1539, %v4513, 0.0
  %4522 = vadd.xlane.f32.xlu0 %v4521
  %v4523 = vpop.xlane.xlu0 %4522
  %v4524 = vmul.f32 %v4520, %v1543
  %v4525 = vmul.f32 %v4523, %v1543
  %v4526 = vsub.f32 %v4512, %v4524
  %v4527 = vsub.f32 %v4513, %v4525
  %v4528 = vmul.f32 %v4526, %v4526
  %v4529 = vmul.f32 %v4527, %v4527
  %v4530 = vsel %vm524, %v4528, 0.0
  %4531 = vadd.xlane.f32.xlu0 %v4530
  %v4532 = vpop.xlane.xlu0 %4531
  %v4533 = vsel %vm1539, %v4529, 0.0
  %4534 = vadd.xlane.f32.xlu0 %v4533
  %v4535 = vpop.xlane.xlu0 %4534
  %v4536 = vmul.f32 %v4532, %v1543
  %v4537 = vmul.f32 %v4535, %v1543
  %v4538 = vadd.f32 %v4536, 1e-05
  %v4539 = vadd.f32 %v4537, 1e-05
  %v4540 = vrsqrt.pop %v4538
  %v4541 = vrsqrt.pop %v4539
  %v4542 = vmul.f32 %v4526, %v4540
  %v4543 = vmul.f32 %v4527, %v4541
  %v4545 = vlaneseq
  %v4546 = vshrl.u32 %v4545, 7
  %v4547 = vsub.s32 0, %v4546
  %v4548 = vrot.slane %v4515, %v4547
  %v4550 = vmul.f32 %v4542, %v4548
  %v4551 = vmul.f32 %v4543, %v4548
  %v4553 = vlaneseq
  %v4554 = vshrl.u32 %v4553, 7
  %v4555 = vsub.s32 0, %v4554
  %v4556 = vrot.slane %v4517, %v4555
  %v4558 = vadd.f32 %v4550, %v4556
  %v4559 = vadd.f32 %v4551, %v4556
  %v4560 = vld [vmem:[%s22] sm:$0xff]
  %v4561 = vld [vmem:[%s22 + $0x8] sm:$0xff]
  %v4562 = vld [vmem:[%s22 + $0x10] sm:$0xff]
  %v4563 = vld [vmem:[%s22 + $0x18] sm:$0xff]
  %v4564 = vld [vmem:[%s23] sm:$0x3]
  %v4566 = vlaneseq
  %v4567 = vshrl.u32 %v4566, 7
  %v4568 = vsub.s32 0, %v4567
  %v4569 = vrot.slane %v4564, %v4568
  %v4570 = vlaneseq
  %v4571 = vshrl.u32 %v4570, 7
  %v4572 = vsub.s32 1, %v4571
  %v4573 = vrot.slane %v4564, %v4572
  %vm4578 = vcmask 1045504
  %v4579 = vrot.slane %v4558, 2
  %v4580 = vrot.slane %v4559, 2
  %v4581 = vsel %vm4578, %v4579, %v4580
  %v4582 = vsel %vm524, %v4581, 0
  %4584 = vmatprep.subr.mxu0 0.0
  %4585 = vmatpush1.msra.mxu0 0.0
  %4586 = vmatprep.subr.mxu0 0.0
  %4587 = vmatpush1.msra.mxu0 0.0
  %4588 = vmatprep.subr.mxu0 0.0
  %4589 = vmatpush1.msra.mxu0 0.0
  %4590 = vmatprep.subr.mxu0 0.0
  %4591 = vmatpush1.msra.mxu0 0.0
  %4592 = vmatprep.subr.mxu0 0.0
  %4593 = vmatpush1.msra.mxu0 0.0
  %4594 = vmatprep.subr.mxu0 0.0
  %4595 = vmatpush1.msra.mxu0 0.0
  %4596 = vmatprep.subr.mxu0 0.0
  %4597 = vmatpush1.msra.mxu0 0.0
  %4598 = vmatprep.subr.mxu0 0.0
  %4599 = vmatpush1.msra.mxu0 0.0
  %4600 = vmatprep.subr.mxu0 0.0
  %4601 = vmatpush1.msra.mxu0 0.0
  %4602 = vmatprep.subr.mxu0 0.0
  %4603 = vmatpush1.msra.mxu0 0.0
  %4604 = vmatprep.subr.mxu0 0.0
  %4605 = vmatpush1.msra.mxu0 0.0
  %4606 = vmatprep.subr.mxu0 0.0
  %4607 = vmatpush1.msra.mxu0 0.0
  %4608 = vmatprep.subr.mxu0 0.0
  %4609 = vmatpush1.msra.mxu0 0.0
  %4610 = vmatprep.subr.mxu0 0.0
  %4611 = vmatpush1.msra.mxu0 0.0
  %4612 = vmatprep.subr.mxu0 %v4563
  %4613 = vmatpush1.msra.mxu0 %v4562
  %4614 = vmatprep.subr.mxu0 %v4561
  %4615 = vmatpush1.msra.mxu0 %v4560
  %4616 = vmatprep.subr.mxu0 0.0
  %4617 = vmatpush2.msra.mxu0 0.0
  %4618 = vmatprep.subr.mxu0 0.0
  %4619 = vmatpush2.msra.mxu0 0.0
  %4620 = vmatprep.subr.mxu0 0.0
  %4621 = vmatpush2.msra.mxu0 0.0
  %4622 = vmatprep.subr.mxu0 0.0
  %4623 = vmatpush2.msra.mxu0 0.0
  %4624 = vmatprep.subr.mxu0 0.0
  %4625 = vmatpush2.msra.mxu0 0.0
  %4626 = vmatprep.subr.mxu0 0.0
  %4627 = vmatpush2.msra.mxu0 0.0
  %4628 = vmatprep.subr.mxu0 0.0
  %4629 = vmatpush2.msra.mxu0 0.0
  %4630 = vmatprep.subr.mxu0 0.0
  %4631 = vmatpush2.msra.mxu0 0.0
  %4632 = vmatprep.subr.mxu0 0.0
  %4633 = vmatpush2.msra.mxu0 0.0
  %4634 = vmatprep.subr.mxu0 0.0
  %4635 = vmatpush2.msra.mxu0 0.0
  %4636 = vmatprep.subr.mxu0 0.0
  %4637 = vmatpush2.msra.mxu0 0.0
  %4638 = vmatprep.subr.mxu0 0.0
  %4639 = vmatpush2.msra.mxu0 0.0
  %4640 = vmatprep.subr.mxu0 0.0
  %4641 = vmatpush2.msra.mxu0 0.0
  %4642 = vmatprep.subr.mxu0 0.0
  %4643 = vmatpush2.msra.mxu0 0.0
  %4644 = vmatprep.subr.mxu0 0.0
  %4645 = vmatpush2.msra.mxu0 0.0
  %4646 = vmatprep.subr.mxu0 0.0
  %4647 = vmatpush2.msra.mxu0 0.0
  %4648 = vmatprep.mubr.f32.mxu0 0.0
  %4649 = vmatmul.mubr.f32.gmra.mxu0 %v4582
  %v4650 = vpop.f32.mrf.mxu0
  %v4651 = vadd.f32 %v4569, %v4650
  %v4652 = vpop.f32.mrf.mxu0
  %v4653 = vadd.f32 %v4573, %v4652
  %4654 = vdwg.mxu0
  %4655 = vst [vmem:[%s25] sm:$0xff] %v4651
  %4656 = vst [vmem:[%s25 + $0x8] sm:$0xff] %v4653
  // Predicated region
  $region102: #{clipseg_masked_forward.3} parent=0 // pred_check
    _
  $region103: #{clipseg_masked_forward.3} parent=0 // pred_check_branch
    %4658 = sbr.rel (0) target = $region105
  $region104: #{clipseg_masked_forward.3} parent=0 // pred_region
    _
  $region105: #{clipseg_masked_forward.3} parent=0 // pred_fallthru
    _
  // Predicated region
  $region106: #{clipseg_masked_forward.3} parent=0 // pred_check
    _
  $region107: #{clipseg_masked_forward.3} parent=0 // pred_check_branch
    %4660 = sbr.rel (0) target = $region109
  $region108: #{clipseg_masked_forward.3} parent=0 // pred_region
    _
  $region109: #{clipseg_masked_forward.3} parent=0 // pred_fallthru
    _

</llo_original>
